<compile_context>
chip_gen: v7x
topology: tpu7x:2x2x1
jax: 0.10.0
libtpu: 0.0.40
codegen_flags: <defaults>
</compile_context>

<pallas_src>
import numpy as np
import jax
import jax.numpy as jnp
from jax.experimental import pallas as pl
from jax.experimental.pallas import tpu as pltpu

EPS = 1e-5
_NG = 7          # conv2 tap groups: 25 taps padded to 28 = 7 groups of 4
_NP = 16         # conv2 output positions (4x4)


def _round_up(n, m):
    return ((n + m - 1) // m) * m


def _build_gather_idx():
    """Gather indices building the duplicated conv1 patch slab from the flat image.

    idx[g, p, 32*j + c] = flat pixel index needed by conv2 tap t=4g+j at conv2
    output position p=(oh,ow), conv1 kernel tap c=(kh1,kw1):
        pixel (4*oh + 2*kh + kh1, 4*ow + 2*kw + kw1), t=(kh,kw).
    Pad entries (c in 25..31, taps 25..27) point at an appended zero pixel.
    """
    idx = np.full((_NG, _NP, 128), 28 * 28, dtype=np.int32)
    for t in range(25):
        kh, kw = divmod(t, 5)
        g, j = divmod(t, 4)
        for oh in range(4):
            for ow in range(4):
                p = oh * 4 + ow
                for c in range(25):
                    kh1, kw1 = divmod(c, 5)
                    row = 4 * oh + 2 * kh + kh1
                    col = 4 * ow + 2 * kw + kw1
                    idx[g, p, 32 * j + c] = row * 28 + col
    return idx


_GATHER_IDX = _build_gather_idx()


# ------------------------------ fused kernel --------------------------------

def _make_kernel(tb):
    n_rows = _NP * tb     # rows per tap-group slab, ordered (position, image)

    def kernel(p_ref, w1_ref, b1_ref, w2_ref, b2_ref,
               fc1w_ref, fc1b_ref, fc2w_ref, fc2b_ref, o_ref):
        f32, bf16 = jnp.float32, jnp.bfloat16

        # conv1 (block-diag: 4 taps per 128-lane row) + folded BN1 + ReLU,
        # immediately consumed by conv2 (one K=128 matmul per tap group).
        acc2 = jnp.zeros((n_rows, 64), f32)
        for g in range(_NG):
            a1 = jnp.dot(p_ref[0, g], w1_ref[...],
                         preferred_element_type=f32)                 # (16*TB,128)
            o1g = jnp.maximum(a1 + b1_ref[...], 0.0).astype(bf16)
            acc2 = acc2 + jnp.dot(o1g, w2_ref[g],
                                  preferred_element_type=f32)        # (16*TB,64)
        o2 = jnp.maximum(acc2 + b2_ref[...], 0.0).astype(bf16)

        # fc1 + ReLU: accumulate over the 16 conv2 positions; o2 rows are
        # ordered (position, image) so each slice is contiguous and aligned.
        accf = jnp.zeros((tb, 1024), f32)
        for p in range(_NP):
            accf = accf + jnp.dot(o2[p * tb:(p + 1) * tb, :], fc1w_ref[p],
                                  preferred_element_type=f32)        # (TB,1024)
        h = jnp.maximum(accf + fc1b_ref[...], 0.0).astype(bf16)

        # fc2 (10 logits zero-padded to 128 lanes -> lane-dense store).
        o_ref[...] = jnp.dot(h, fc2w_ref[...],
                             preferred_element_type=f32) + fc2b_ref[...]

    return kernel


# ------------------------- parameter preparation ----------------------------

def prepare_params(params):
    """One-time (outside jit): fold BN, permute/group layouts, pad, cast bf16."""
    f32, bf16 = jnp.float32, jnp.bfloat16

    # conv1 + BN1 fold; block-diagonal (4 copies) so 4 conv2 taps share a row.
    s1 = params["bn1_gamma"] / jnp.sqrt(params["bn1_var"] + EPS)
    sh1 = params["bn1_beta"] - params["bn1_mean"] * s1
    w1 = params["conv1_w"].reshape(32, 25).T * s1[None, :]           # (25, 32)
    w1 = jnp.pad(w1, ((0, 7), (0, 0)))                               # (32, 32)
    w1blk = jnp.zeros((128, 128), f32)
    for j in range(4):
        w1blk = w1blk.at[32 * j:32 * (j + 1), 32 * j:32 * (j + 1)].set(w1)
    b1 = (params["conv1_b"] * s1 + sh1).reshape(1, 32)
    b1t = jnp.tile(b1, (1, 4))                                       # (1, 128)

    # conv2 + BN2 fold; taps grouped 4-at-a-time along K (pad 25 -> 28 taps).
    s2 = params["bn2_gamma"] / jnp.sqrt(params["bn2_var"] + EPS)
    sh2 = params["bn2_beta"] - params["bn2_mean"] * s2
    w2 = (params["conv2_w"].transpose(2, 3, 1, 0).reshape(25, 32, 64)
          * s2[None, None, :])
    w2 = jnp.pad(w2, ((0, 3), (0, 0), (0, 0)))                       # (28, 32, 64)
    w2g = w2.reshape(_NG, 128, 64)
    b2 = (params["conv2_b"] * s2 + sh2).reshape(1, 64)

    # fc1: fold torch's NCHW flatten (i = c*16 + p) into 16 position blocks.
    fc1w = (params["fc1_w"].reshape(1024, 64, 4, 4)
            .transpose(2, 3, 1, 0).reshape(_NP, 64, 1024))
    fc1b = params["fc1_b"].reshape(1, 1024)

    fc2w = jnp.pad(params["fc2_w"].T, ((0, 0), (0, 128 - 10)))       # (1024, 128)
    fc2b = jnp.pad(params["fc2_b"], (0, 128 - 10)).reshape(1, 128)

    return dict(w1=w1blk.astype(bf16), b1=b1t.astype(f32),
                w2=w2g.astype(bf16), b2=b2.astype(f32),
                fc1w=fc1w.astype(bf16), fc1b=fc1b.astype(f32),
                fc2w=fc2w.astype(bf16), fc2b=fc2b.astype(f32))


# ------------------------------- forward ------------------------------------

def net_forward(x, pp, tb=64):
    B = x.shape[0]
    tb = max(16, min(tb, _round_up(B, 16)))   # multiple of 16 (bf16 sublane tile)
    b_pad = _round_up(B, tb)
    n_steps = b_pad // tb

    # Duplicated conv1-patch slab, bf16, rows ordered (group, position, image).
    x_flat = jnp.pad(x.reshape(B, 28 * 28),
                     ((0, b_pad - B), (0, 1))).astype(jnp.bfloat16)  # +zero pixel
    gath = jnp.take(x_flat, jnp.asarray(_GATHER_IDX.reshape(-1)), axis=1)
    gath = gath.reshape(n_steps, tb, _NG, _NP, 128)
    patches = jnp.transpose(gath, (0, 2, 3, 1, 4)).reshape(
        n_steps, _NG, _NP * tb, 128)

    logits = pl.pallas_call(
        _make_kernel(tb),
        out_shape=jax.ShapeDtypeStruct((b_pad, 128), jnp.float32),
        grid=(n_steps,),
        in_specs=[
            pl.BlockSpec((1, _NG, _NP * tb, 128), lambda s: (s, 0, 0, 0)),  # patches
            pl.BlockSpec((128, 128), lambda s: (0, 0)),                     # w1 blkdiag
            pl.BlockSpec((1, 128), lambda s: (0, 0)),                       # b1 tiled
            pl.BlockSpec((_NG, 128, 64), lambda s: (0, 0, 0)),              # w2 grouped
            pl.BlockSpec((1, 64), lambda s: (0, 0)),                        # b2
            pl.BlockSpec((_NP, 64, 1024), lambda s: (0, 0, 0)),             # fc1w
            pl.BlockSpec((1, 1024), lambda s: (0, 0)),                      # fc1b
            pl.BlockSpec((1024, 128), lambda s: (0, 0)),                    # fc2w
            pl.BlockSpec((1, 128), lambda s: (0, 0)),                       # fc2b
        ],
        out_specs=pl.BlockSpec((tb, 128), lambda s: (s, 0)),
        compiler_params=pltpu.CompilerParams(
            dimension_semantics=("parallel",),
            vmem_limit_bytes=32 * 1024 * 1024),
    )(patches, pp["w1"], pp["b1"], pp["w2"], pp["b2"],
      pp["fc1w"], pp["fc1b"], pp["fc2w"], pp["fc2b"])

    return logits[:B, :10]


# ------------------------------ reference -----------------------------------

def net_forward_ref(x, params):
    def bn(y, g, b, m, v):
        return ((y - m[None, :, None, None])
                / jnp.sqrt(v + EPS)[None, :, None, None]
                * g[None, :, None, None] + b[None, :, None, None])

    out = jax.lax.conv_general_dilated(
        x, params["conv1_w"], (2, 2), "VALID",
        dimension_numbers=("NCHW", "OIHW", "NCHW"))
    out = out + params["conv1_b"][None, :, None, None]
    out = jnp.maximum(bn(out, params["bn1_gamma"], params["bn1_beta"],
                         params["bn1_mean"], params["bn1_var"]), 0.0)
    out = jax.lax.conv_general_dilated(
        out, params["conv2_w"], (2, 2), "VALID",
        dimension_numbers=("NCHW", "OIHW", "NCHW"))
    out = out + params["conv2_b"][None, :, None, None]
    out = jnp.maximum(bn(out, params["bn2_gamma"], params["bn2_beta"],
                         params["bn2_mean"], params["bn2_var"]), 0.0)
    out = out.reshape(out.shape[0], -1)
    out = jnp.maximum(out @ params["fc1_w"].T + params["fc1_b"], 0.0)
    out = out @ params["fc2_w"].T + params["fc2_b"]
    return out


def init_params(key):
    ks = jax.random.split(key, 12)
    f32 = jnp.float32

    def w(k, shape, fan_in):
        return (jax.random.normal(k, shape, f32) / np.sqrt(fan_in)).astype(f32)

    return dict(
        conv1_w=w(ks[0], (32, 1, 5, 5), 25),
        conv1_b=w(ks[1], (32,), 25),
        bn1_gamma=1.0 + 0.1 * jax.random.normal(ks[2], (32,), f32),
        bn1_beta=0.1 * jax.random.normal(ks[3], (32,), f32),
        bn1_mean=0.1 * jax.random.normal(ks[4], (32,), f32),
        bn1_var=0.5 + jnp.abs(jax.random.normal(ks[5], (32,), f32)),
        conv2_w=w(ks[6], (64, 32, 5, 5), 32 * 25),
        conv2_b=w(ks[7], (64,), 32 * 25),
        bn2_gamma=1.0 + 0.1 * jax.random.normal(ks[8], (64,), f32),
        bn2_beta=0.1 * jax.random.normal(ks[9], (64,), f32),
        bn2_mean=0.1 * jax.random.normal(ks[10], (64,), f32),
        bn2_var=0.5 + jnp.abs(jax.random.normal(ks[11], (64,), f32)),
        fc1_w=w(jax.random.fold_in(key, 100), (1024, 64 * 4 * 4), 1024),
        fc1_b=w(jax.random.fold_in(key, 101), (1024,), 1024),
        fc2_w=w(jax.random.fold_in(key, 102), (10, 1024), 1024),
        fc2_b=w(jax.random.fold_in(key, 103), (10,), 1024),
    )


if __name__ == "__main__":
    key = jax.random.PRNGKey(0)
    params = init_params(key)
    prepped = prepare_params(params)          # one-time, outside jit

    fwd = jax.jit(net_forward)

    # Required small demo batch (28x28 input is implied by .view(-1, 64*4*4)).
    x = jax.random.normal(jax.random.fold_in(key, 1), (2, 1, 28, 28), jnp.float32)
    out = jax.block_until_ready(fwd(x, prepped))
    ref = jax.block_until_ready(net_forward_ref(x, params))
    assert out.shape == (2, 10), out.shape
    assert np.allclose(np.asarray(out), np.asarray(ref), rtol=5e-2, atol=5e-2), (
        np.max(np.abs(np.asarray(out) - np.asarray(ref))))

    # Larger batch: exercises multi-step grid + batch padding (bf16 tolerance).
    x2 = jax.random.normal(jax.random.fold_in(key, 2), (70, 1, 28, 28), jnp.float32)
    out2 = jax.block_until_ready(fwd(x2, prepped))
    ref2 = jax.block_until_ready(net_forward_ref(x2, params))
    assert out2.shape == (70, 10), out2.shape
    assert np.allclose(np.asarray(out2), np.asarray(ref2), rtol=5e-2, atol=1e-1), (
        np.max(np.abs(np.asarray(out2) - np.asarray(ref2))))

    print("KERNEL_OK")
</pallas_src>

<mosaic_0001>
module attributes {stable_mosaic.version = 11 : i64} {
  func.func @kernel(%arg0: i32, %arg1: memref<1x7x256x128xbf16, #tpu.memory_space<vmem>>, %arg2: memref<128x128xbf16, #tpu.memory_space<vmem>>, %arg3: memref<1x128xf32, #tpu.memory_space<vmem>>, %arg4: memref<7x128x64xbf16, #tpu.memory_space<vmem>>, %arg5: memref<1x64xf32, #tpu.memory_space<vmem>>, %arg6: memref<16x64x1024xbf16, #tpu.memory_space<vmem>>, %arg7: memref<1x1024xf32, #tpu.memory_space<vmem>>, %arg8: memref<1024x128xbf16, #tpu.memory_space<vmem>>, %arg9: memref<1x128xf32, #tpu.memory_space<vmem>>, %arg10: memref<16x128xf32, #tpu.memory_space<vmem>>) attributes {dimension_semantics = [#tpu.dimension_semantics<parallel>], iteration_bounds = array<i64: 1>, scalar_prefetch = 0 : i64, scratch_operands = 0 : i64, tpu.core_type = #tpu.core_type<tc>, window_params = [{transform_indices = @transform_0, window_bounds = array<i64: 1, 7, 256, 128>}, {pipeline_mode = #tpu.pipeline_mode<synchronous>, transform_indices = @transform_1, window_bounds = array<i64: 128, 128>}, {pipeline_mode = #tpu.pipeline_mode<synchronous>, transform_indices = @transform_2, window_bounds = array<i64: 1, 128>}, {pipeline_mode = #tpu.pipeline_mode<synchronous>, transform_indices = @transform_3, window_bounds = array<i64: 7, 128, 64>}, {pipeline_mode = #tpu.pipeline_mode<synchronous>, transform_indices = @transform_4, window_bounds = array<i64: 1, 64>}, {pipeline_mode = #tpu.pipeline_mode<synchronous>, transform_indices = @transform_5, window_bounds = array<i64: 16, 64, 1024>}, {pipeline_mode = #tpu.pipeline_mode<synchronous>, transform_indices = @transform_6, window_bounds = array<i64: 1, 1024>}, {pipeline_mode = #tpu.pipeline_mode<synchronous>, transform_indices = @transform_7, window_bounds = array<i64: 1024, 128>}, {pipeline_mode = #tpu.pipeline_mode<synchronous>, transform_indices = @transform_8, window_bounds = array<i64: 1, 128>}, {transform_indices = @transform_9, window_bounds = array<i64: 16, 128>}]} {
    %cst = arith.constant 0.000000e+00 : f32
    %0 = vector.broadcast %cst : f32 to vector<256x64xf32>
    %c0 = arith.constant 0 : index
    %c0_0 = arith.constant 0 : index
    %c0_1 = arith.constant 0 : index
    %c0_2 = arith.constant 0 : index
    %1 = vector.load %arg1[%c0, %c0_0, %c0_1, %c0_2] : memref<1x7x256x128xbf16, #tpu.memory_space<vmem>>, vector<1x1x256x128xbf16>
    %2 = vector.shape_cast %1 : vector<1x1x256x128xbf16> to vector<256x128xbf16>
    %c0_3 = arith.constant 0 : index
    %c0_4 = arith.constant 0 : index
    %3 = vector.load %arg2[%c0_3, %c0_4] : memref<128x128xbf16, #tpu.memory_space<vmem>>, vector<128x128xbf16>
    %cst_5 = arith.constant dense<0.000000e+00> : vector<256x128xf32>
    %4 = tpu.matmul %2, %3, %cst_5 {dimension_numbers = #tpu.dot_dimension_numbers<[1], [0], [0], [1], [0, 0, 1, 1], [], []>} : vector<256x128xbf16>, vector<128x128xbf16>, vector<256x128xf32> -> vector<256x128xf32>
    %c0_6 = arith.constant 0 : index
    %c0_7 = arith.constant 0 : index
    %5 = vector.load %arg3[%c0_6, %c0_7] : memref<1x128xf32, #tpu.memory_space<vmem>>, vector<1x128xf32>
    %6 = vector.broadcast %5 : vector<1x128xf32> to vector<256x128xf32>
    %7 = arith.addf %4, %6 : vector<256x128xf32>
    %cst_8 = arith.constant 0.000000e+00 : f32
    %8 = vector.broadcast %cst_8 : f32 to vector<256x128xf32>
    %9 = arith.maximumf %7, %8 : vector<256x128xf32>
    %10 = arith.truncf %9 : vector<256x128xf32> to vector<256x128xbf16>
    %c0_9 = arith.constant 0 : index
    %c0_10 = arith.constant 0 : index
    %c0_11 = arith.constant 0 : index
    %11 = vector.load %arg4[%c0_9, %c0_10, %c0_11] : memref<7x128x64xbf16, #tpu.memory_space<vmem>>, vector<1x128x64xbf16>
    %12 = vector.shape_cast %11 : vector<1x128x64xbf16> to vector<128x64xbf16>
    %cst_12 = arith.constant dense<0.000000e+00> : vector<256x64xf32>
    %13 = tpu.matmul %10, %12, %cst_12 {dimension_numbers = #tpu.dot_dimension_numbers<[1], [0], [0], [1], [0, 0, 1, 1], [], []>} : vector<256x128xbf16>, vector<128x64xbf16>, vector<256x64xf32> -> vector<256x64xf32>
    %14 = arith.addf %0, %13 : vector<256x64xf32>
    %c0_13 = arith.constant 0 : index
    %c1 = arith.constant 1 : index
    %c0_14 = arith.constant 0 : index
    %c0_15 = arith.constant 0 : index
    %15 = vector.load %arg1[%c0_13, %c1, %c0_14, %c0_15] : memref<1x7x256x128xbf16, #tpu.memory_space<vmem>>, vector<1x1x256x128xbf16>
    %16 = vector.shape_cast %15 : vector<1x1x256x128xbf16> to vector<256x128xbf16>
    %c0_16 = arith.constant 0 : index
    %c0_17 = arith.constant 0 : index
    %17 = vector.load %arg2[%c0_16, %c0_17] : memref<128x128xbf16, #tpu.memory_space<vmem>>, vector<128x128xbf16>
    %cst_18 = arith.constant dense<0.000000e+00> : vector<256x128xf32>
    %18 = tpu.matmul %16, %17, %cst_18 {dimension_numbers = #tpu.dot_dimension_numbers<[1], [0], [0], [1], [0, 0, 1, 1], [], []>} : vector<256x128xbf16>, vector<128x128xbf16>, vector<256x128xf32> -> vector<256x128xf32>
    %c0_19 = arith.constant 0 : index
    %c0_20 = arith.constant 0 : index
    %19 = vector.load %arg3[%c0_19, %c0_20] : memref<1x128xf32, #tpu.memory_space<vmem>>, vector<1x128xf32>
    %20 = vector.broadcast %19 : vector<1x128xf32> to vector<256x128xf32>
    %21 = arith.addf %18, %20 : vector<256x128xf32>
    %cst_21 = arith.constant 0.000000e+00 : f32
    %22 = vector.broadcast %cst_21 : f32 to vector<256x128xf32>
    %23 = arith.maximumf %21, %22 : vector<256x128xf32>
    %24 = arith.truncf %23 : vector<256x128xf32> to vector<256x128xbf16>
    %c1_22 = arith.constant 1 : index
    %c0_23 = arith.constant 0 : index
    %c0_24 = arith.constant 0 : index
    %25 = vector.load %arg4[%c1_22, %c0_23, %c0_24] : memref<7x128x64xbf16, #tpu.memory_space<vmem>>, vector<1x128x64xbf16>
    %26 = vector.shape_cast %25 : vector<1x128x64xbf16> to vector<128x64xbf16>
    %cst_25 = arith.constant dense<0.000000e+00> : vector<256x64xf32>
    %27 = tpu.matmul %24, %26, %cst_25 {dimension_numbers = #tpu.dot_dimension_numbers<[1], [0], [0], [1], [0, 0, 1, 1], [], []>} : vector<256x128xbf16>, vector<128x64xbf16>, vector<256x64xf32> -> vector<256x64xf32>
    %28 = arith.addf %14, %27 : vector<256x64xf32>
    %c0_26 = arith.constant 0 : index
    %c2 = arith.constant 2 : index
    %c0_27 = arith.constant 0 : index
    %c0_28 = arith.constant 0 : index
    %29 = vector.load %arg1[%c0_26, %c2, %c0_27, %c0_28] : memref<1x7x256x128xbf16, #tpu.memory_space<vmem>>, vector<1x1x256x128xbf16>
    %30 = vector.shape_cast %29 : vector<1x1x256x128xbf16> to vector<256x128xbf16>
    %c0_29 = arith.constant 0 : index
    %c0_30 = arith.constant 0 : index
    %31 = vector.load %arg2[%c0_29, %c0_30] : memref<128x128xbf16, #tpu.memory_space<vmem>>, vector<128x128xbf16>
    %cst_31 = arith.constant dense<0.000000e+00> : vector<256x128xf32>
    %32 = tpu.matmul %30, %31, %cst_31 {dimension_numbers = #tpu.dot_dimension_numbers<[1], [0], [0], [1], [0, 0, 1, 1], [], []>} : vector<256x128xbf16>, vector<128x128xbf16>, vector<256x128xf32> -> vector<256x128xf32>
    %c0_32 = arith.constant 0 : index
    %c0_33 = arith.constant 0 : index
    %33 = vector.load %arg3[%c0_32, %c0_33] : memref<1x128xf32, #tpu.memory_space<vmem>>, vector<1x128xf32>
    %34 = vector.broadcast %33 : vector<1x128xf32> to vector<256x128xf32>
    %35 = arith.addf %32, %34 : vector<256x128xf32>
    %cst_34 = arith.constant 0.000000e+00 : f32
    %36 = vector.broadcast %cst_34 : f32 to vector<256x128xf32>
    %37 = arith.maximumf %35, %36 : vector<256x128xf32>
    %38 = arith.truncf %37 : vector<256x128xf32> to vector<256x128xbf16>
    %c2_35 = arith.constant 2 : index
    %c0_36 = arith.constant 0 : index
    %c0_37 = arith.constant 0 : index
    %39 = vector.load %arg4[%c2_35, %c0_36, %c0_37] : memref<7x128x64xbf16, #tpu.memory_space<vmem>>, vector<1x128x64xbf16>
    %40 = vector.shape_cast %39 : vector<1x128x64xbf16> to vector<128x64xbf16>
    %cst_38 = arith.constant dense<0.000000e+00> : vector<256x64xf32>
    %41 = tpu.matmul %38, %40, %cst_38 {dimension_numbers = #tpu.dot_dimension_numbers<[1], [0], [0], [1], [0, 0, 1, 1], [], []>} : vector<256x128xbf16>, vector<128x64xbf16>, vector<256x64xf32> -> vector<256x64xf32>
    %42 = arith.addf %28, %41 : vector<256x64xf32>
    %c0_39 = arith.constant 0 : index
    %c3 = arith.constant 3 : index
    %c0_40 = arith.constant 0 : index
    %c0_41 = arith.constant 0 : index
    %43 = vector.load %arg1[%c0_39, %c3, %c0_40, %c0_41] : memref<1x7x256x128xbf16, #tpu.memory_space<vmem>>, vector<1x1x256x128xbf16>
    %44 = vector.shape_cast %43 : vector<1x1x256x128xbf16> to vector<256x128xbf16>
    %c0_42 = arith.constant 0 : index
    %c0_43 = arith.constant 0 : index
    %45 = vector.load %arg2[%c0_42, %c0_43] : memref<128x128xbf16, #tpu.memory_space<vmem>>, vector<128x128xbf16>
    %cst_44 = arith.constant dense<0.000000e+00> : vector<256x128xf32>
    %46 = tpu.matmul %44, %45, %cst_44 {dimension_numbers = #tpu.dot_dimension_numbers<[1], [0], [0], [1], [0, 0, 1, 1], [], []>} : vector<256x128xbf16>, vector<128x128xbf16>, vector<256x128xf32> -> vector<256x128xf32>
    %c0_45 = arith.constant 0 : index
    %c0_46 = arith.constant 0 : index
    %47 = vector.load %arg3[%c0_45, %c0_46] : memref<1x128xf32, #tpu.memory_space<vmem>>, vector<1x128xf32>
    %48 = vector.broadcast %47 : vector<1x128xf32> to vector<256x128xf32>
    %49 = arith.addf %46, %48 : vector<256x128xf32>
    %cst_47 = arith.constant 0.000000e+00 : f32
    %50 = vector.broadcast %cst_47 : f32 to vector<256x128xf32>
    %51 = arith.maximumf %49, %50 : vector<256x128xf32>
    %52 = arith.truncf %51 : vector<256x128xf32> to vector<256x128xbf16>
    %c3_48 = arith.constant 3 : index
    %c0_49 = arith.constant 0 : index
    %c0_50 = arith.constant 0 : index
    %53 = vector.load %arg4[%c3_48, %c0_49, %c0_50] : memref<7x128x64xbf16, #tpu.memory_space<vmem>>, vector<1x128x64xbf16>
    %54 = vector.shape_cast %53 : vector<1x128x64xbf16> to vector<128x64xbf16>
    %cst_51 = arith.constant dense<0.000000e+00> : vector<256x64xf32>
    %55 = tpu.matmul %52, %54, %cst_51 {dimension_numbers = #tpu.dot_dimension_numbers<[1], [0], [0], [1], [0, 0, 1, 1], [], []>} : vector<256x128xbf16>, vector<128x64xbf16>, vector<256x64xf32> -> vector<256x64xf32>
    %56 = arith.addf %42, %55 : vector<256x64xf32>
    %c0_52 = arith.constant 0 : index
    %c4 = arith.constant 4 : index
    %c0_53 = arith.constant 0 : index
    %c0_54 = arith.constant 0 : index
    %57 = vector.load %arg1[%c0_52, %c4, %c0_53, %c0_54] : memref<1x7x256x128xbf16, #tpu.memory_space<vmem>>, vector<1x1x256x128xbf16>
    %58 = vector.shape_cast %57 : vector<1x1x256x128xbf16> to vector<256x128xbf16>
    %c0_55 = arith.constant 0 : index
    %c0_56 = arith.constant 0 : index
    %59 = vector.load %arg2[%c0_55, %c0_56] : memref<128x128xbf16, #tpu.memory_space<vmem>>, vector<128x128xbf16>
    %cst_57 = arith.constant dense<0.000000e+00> : vector<256x128xf32>
    %60 = tpu.matmul %58, %59, %cst_57 {dimension_numbers = #tpu.dot_dimension_numbers<[1], [0], [0], [1], [0, 0, 1, 1], [], []>} : vector<256x128xbf16>, vector<128x128xbf16>, vector<256x128xf32> -> vector<256x128xf32>
    %c0_58 = arith.constant 0 : index
    %c0_59 = arith.constant 0 : index
    %61 = vector.load %arg3[%c0_58, %c0_59] : memref<1x128xf32, #tpu.memory_space<vmem>>, vector<1x128xf32>
    %62 = vector.broadcast %61 : vector<1x128xf32> to vector<256x128xf32>
    %63 = arith.addf %60, %62 : vector<256x128xf32>
    %cst_60 = arith.constant 0.000000e+00 : f32
    %64 = vector.broadcast %cst_60 : f32 to vector<256x128xf32>
    %65 = arith.maximumf %63, %64 : vector<256x128xf32>
    %66 = arith.truncf %65 : vector<256x128xf32> to vector<256x128xbf16>
    %c4_61 = arith.constant 4 : index
    %c0_62 = arith.constant 0 : index
    %c0_63 = arith.constant 0 : index
    %67 = vector.load %arg4[%c4_61, %c0_62, %c0_63] : memref<7x128x64xbf16, #tpu.memory_space<vmem>>, vector<1x128x64xbf16>
    %68 = vector.shape_cast %67 : vector<1x128x64xbf16> to vector<128x64xbf16>
    %cst_64 = arith.constant dense<0.000000e+00> : vector<256x64xf32>
    %69 = tpu.matmul %66, %68, %cst_64 {dimension_numbers = #tpu.dot_dimension_numbers<[1], [0], [0], [1], [0, 0, 1, 1], [], []>} : vector<256x128xbf16>, vector<128x64xbf16>, vector<256x64xf32> -> vector<256x64xf32>
    %70 = arith.addf %56, %69 : vector<256x64xf32>
    %c0_65 = arith.constant 0 : index
    %c5 = arith.constant 5 : index
    %c0_66 = arith.constant 0 : index
    %c0_67 = arith.constant 0 : index
    %71 = vector.load %arg1[%c0_65, %c5, %c0_66, %c0_67] : memref<1x7x256x128xbf16, #tpu.memory_space<vmem>>, vector<1x1x256x128xbf16>
    %72 = vector.shape_cast %71 : vector<1x1x256x128xbf16> to vector<256x128xbf16>
    %c0_68 = arith.constant 0 : index
    %c0_69 = arith.constant 0 : index
    %73 = vector.load %arg2[%c0_68, %c0_69] : memref<128x128xbf16, #tpu.memory_space<vmem>>, vector<128x128xbf16>
    %cst_70 = arith.constant dense<0.000000e+00> : vector<256x128xf32>
    %74 = tpu.matmul %72, %73, %cst_70 {dimension_numbers = #tpu.dot_dimension_numbers<[1], [0], [0], [1], [0, 0, 1, 1], [], []>} : vector<256x128xbf16>, vector<128x128xbf16>, vector<256x128xf32> -> vector<256x128xf32>
    %c0_71 = arith.constant 0 : index
    %c0_72 = arith.constant 0 : index
    %75 = vector.load %arg3[%c0_71, %c0_72] : memref<1x128xf32, #tpu.memory_space<vmem>>, vector<1x128xf32>
    %76 = vector.broadcast %75 : vector<1x128xf32> to vector<256x128xf32>
    %77 = arith.addf %74, %76 : vector<256x128xf32>
    %cst_73 = arith.constant 0.000000e+00 : f32
    %78 = vector.broadcast %cst_73 : f32 to vector<256x128xf32>
    %79 = arith.maximumf %77, %78 : vector<256x128xf32>
    %80 = arith.truncf %79 : vector<256x128xf32> to vector<256x128xbf16>
    %c5_74 = arith.constant 5 : index
    %c0_75 = arith.constant 0 : index
    %c0_76 = arith.constant 0 : index
    %81 = vector.load %arg4[%c5_74, %c0_75, %c0_76] : memref<7x128x64xbf16, #tpu.memory_space<vmem>>, vector<1x128x64xbf16>
    %82 = vector.shape_cast %81 : vector<1x128x64xbf16> to vector<128x64xbf16>
    %cst_77 = arith.constant dense<0.000000e+00> : vector<256x64xf32>
    %83 = tpu.matmul %80, %82, %cst_77 {dimension_numbers = #tpu.dot_dimension_numbers<[1], [0], [0], [1], [0, 0, 1, 1], [], []>} : vector<256x128xbf16>, vector<128x64xbf16>, vector<256x64xf32> -> vector<256x64xf32>
    %84 = arith.addf %70, %83 : vector<256x64xf32>
    %c0_78 = arith.constant 0 : index
    %c6 = arith.constant 6 : index
    %c0_79 = arith.constant 0 : index
    %c0_80 = arith.constant 0 : index
    %85 = vector.load %arg1[%c0_78, %c6, %c0_79, %c0_80] : memref<1x7x256x128xbf16, #tpu.memory_space<vmem>>, vector<1x1x256x128xbf16>
    %86 = vector.shape_cast %85 : vector<1x1x256x128xbf16> to vector<256x128xbf16>
    %c0_81 = arith.constant 0 : index
    %c0_82 = arith.constant 0 : index
    %87 = vector.load %arg2[%c0_81, %c0_82] : memref<128x128xbf16, #tpu.memory_space<vmem>>, vector<128x128xbf16>
    %cst_83 = arith.constant dense<0.000000e+00> : vector<256x128xf32>
    %88 = tpu.matmul %86, %87, %cst_83 {dimension_numbers = #tpu.dot_dimension_numbers<[1], [0], [0], [1], [0, 0, 1, 1], [], []>} : vector<256x128xbf16>, vector<128x128xbf16>, vector<256x128xf32> -> vector<256x128xf32>
    %c0_84 = arith.constant 0 : index
    %c0_85 = arith.constant 0 : index
    %89 = vector.load %arg3[%c0_84, %c0_85] : memref<1x128xf32, #tpu.memory_space<vmem>>, vector<1x128xf32>
    %90 = vector.broadcast %89 : vector<1x128xf32> to vector<256x128xf32>
    %91 = arith.addf %88, %90 : vector<256x128xf32>
    %cst_86 = arith.constant 0.000000e+00 : f32
    %92 = vector.broadcast %cst_86 : f32 to vector<256x128xf32>
    %93 = arith.maximumf %91, %92 : vector<256x128xf32>
    %94 = arith.truncf %93 : vector<256x128xf32> to vector<256x128xbf16>
    %c6_87 = arith.constant 6 : index
    %c0_88 = arith.constant 0 : index
    %c0_89 = arith.constant 0 : index
    %95 = vector.load %arg4[%c6_87, %c0_88, %c0_89] : memref<7x128x64xbf16, #tpu.memory_space<vmem>>, vector<1x128x64xbf16>
    %96 = vector.shape_cast %95 : vector<1x128x64xbf16> to vector<128x64xbf16>
    %cst_90 = arith.constant dense<0.000000e+00> : vector<256x64xf32>
    %97 = tpu.matmul %94, %96, %cst_90 {dimension_numbers = #tpu.dot_dimension_numbers<[1], [0], [0], [1], [0, 0, 1, 1], [], []>} : vector<256x128xbf16>, vector<128x64xbf16>, vector<256x64xf32> -> vector<256x64xf32>
    %98 = arith.addf %84, %97 : vector<256x64xf32>
    %c0_91 = arith.constant 0 : index
    %c0_92 = arith.constant 0 : index
    %99 = vector.load %arg5[%c0_91, %c0_92] : memref<1x64xf32, #tpu.memory_space<vmem>>, vector<1x64xf32>
    %100 = vector.broadcast %99 : vector<1x64xf32> to vector<256x64xf32>
    %101 = arith.addf %98, %100 : vector<256x64xf32>
    %cst_93 = arith.constant 0.000000e+00 : f32
    %102 = vector.broadcast %cst_93 : f32 to vector<256x64xf32>
    %103 = arith.maximumf %101, %102 : vector<256x64xf32>
    %104 = arith.truncf %103 : vector<256x64xf32> to vector<256x64xbf16>
    %cst_94 = arith.constant 0.000000e+00 : f32
    %105 = vector.broadcast %cst_94 : f32 to vector<16x1024xf32>
    %106 = vector.extract_strided_slice %104 {offsets = [0, 0], sizes = [16, 64], strides = [1, 1]} : vector<256x64xbf16> to vector<16x64xbf16>
    %c0_95 = arith.constant 0 : index
    %c0_96 = arith.constant 0 : index
    %c0_97 = arith.constant 0 : index
    %107 = vector.load %arg6[%c0_95, %c0_96, %c0_97] : memref<16x64x1024xbf16, #tpu.memory_space<vmem>>, vector<1x64x1024xbf16>
    %108 = vector.shape_cast %107 : vector<1x64x1024xbf16> to vector<64x1024xbf16>
    %cst_98 = arith.constant dense<0.000000e+00> : vector<16x1024xf32>
    %109 = tpu.matmul %106, %108, %cst_98 {dimension_numbers = #tpu.dot_dimension_numbers<[1], [0], [0], [1], [0, 0, 1, 1], [], []>} : vector<16x64xbf16>, vector<64x1024xbf16>, vector<16x1024xf32> -> vector<16x1024xf32>
    %110 = arith.addf %105, %109 : vector<16x1024xf32>
    %111 = vector.extract_strided_slice %104 {offsets = [16, 0], sizes = [16, 64], strides = [1, 1]} : vector<256x64xbf16> to vector<16x64xbf16>
    %c1_99 = arith.constant 1 : index
    %c0_100 = arith.constant 0 : index
    %c0_101 = arith.constant 0 : index
    %112 = vector.load %arg6[%c1_99, %c0_100, %c0_101] : memref<16x64x1024xbf16, #tpu.memory_space<vmem>>, vector<1x64x1024xbf16>
    %113 = vector.shape_cast %112 : vector<1x64x1024xbf16> to vector<64x1024xbf16>
    %cst_102 = arith.constant dense<0.000000e+00> : vector<16x1024xf32>
    %114 = tpu.matmul %111, %113, %cst_102 {dimension_numbers = #tpu.dot_dimension_numbers<[1], [0], [0], [1], [0, 0, 1, 1], [], []>} : vector<16x64xbf16>, vector<64x1024xbf16>, vector<16x1024xf32> -> vector<16x1024xf32>
    %115 = arith.addf %110, %114 : vector<16x1024xf32>
    %116 = vector.extract_strided_slice %104 {offsets = [32, 0], sizes = [16, 64], strides = [1, 1]} : vector<256x64xbf16> to vector<16x64xbf16>
    %c2_103 = arith.constant 2 : index
    %c0_104 = arith.constant 0 : index
    %c0_105 = arith.constant 0 : index
    %117 = vector.load %arg6[%c2_103, %c0_104, %c0_105] : memref<16x64x1024xbf16, #tpu.memory_space<vmem>>, vector<1x64x1024xbf16>
    %118 = vector.shape_cast %117 : vector<1x64x1024xbf16> to vector<64x1024xbf16>
    %cst_106 = arith.constant dense<0.000000e+00> : vector<16x1024xf32>
    %119 = tpu.matmul %116, %118, %cst_106 {dimension_numbers = #tpu.dot_dimension_numbers<[1], [0], [0], [1], [0, 0, 1, 1], [], []>} : vector<16x64xbf16>, vector<64x1024xbf16>, vector<16x1024xf32> -> vector<16x1024xf32>
    %120 = arith.addf %115, %119 : vector<16x1024xf32>
    %121 = vector.extract_strided_slice %104 {offsets = [48, 0], sizes = [16, 64], strides = [1, 1]} : vector<256x64xbf16> to vector<16x64xbf16>
    %c3_107 = arith.constant 3 : index
    %c0_108 = arith.constant 0 : index
    %c0_109 = arith.constant 0 : index
    %122 = vector.load %arg6[%c3_107, %c0_108, %c0_109] : memref<16x64x1024xbf16, #tpu.memory_space<vmem>>, vector<1x64x1024xbf16>
    %123 = vector.shape_cast %122 : vector<1x64x1024xbf16> to vector<64x1024xbf16>
    %cst_110 = arith.constant dense<0.000000e+00> : vector<16x1024xf32>
    %124 = tpu.matmul %121, %123, %cst_110 {dimension_numbers = #tpu.dot_dimension_numbers<[1], [0], [0], [1], [0, 0, 1, 1], [], []>} : vector<16x64xbf16>, vector<64x1024xbf16>, vector<16x1024xf32> -> vector<16x1024xf32>
    %125 = arith.addf %120, %124 : vector<16x1024xf32>
    %126 = vector.extract_strided_slice %104 {offsets = [64, 0], sizes = [16, 64], strides = [1, 1]} : vector<256x64xbf16> to vector<16x64xbf16>
    %c4_111 = arith.constant 4 : index
    %c0_112 = arith.constant 0 : index
    %c0_113 = arith.constant 0 : index
    %127 = vector.load %arg6[%c4_111, %c0_112, %c0_113] : memref<16x64x1024xbf16, #tpu.memory_space<vmem>>, vector<1x64x1024xbf16>
    %128 = vector.shape_cast %127 : vector<1x64x1024xbf16> to vector<64x1024xbf16>
    %cst_114 = arith.constant dense<0.000000e+00> : vector<16x1024xf32>
    %129 = tpu.matmul %126, %128, %cst_114 {dimension_numbers = #tpu.dot_dimension_numbers<[1], [0], [0], [1], [0, 0, 1, 1], [], []>} : vector<16x64xbf16>, vector<64x1024xbf16>, vector<16x1024xf32> -> vector<16x1024xf32>
    %130 = arith.addf %125, %129 : vector<16x1024xf32>
    %131 = vector.extract_strided_slice %104 {offsets = [80, 0], sizes = [16, 64], strides = [1, 1]} : vector<256x64xbf16> to vector<16x64xbf16>
    %c5_115 = arith.constant 5 : index
    %c0_116 = arith.constant 0 : index
    %c0_117 = arith.constant 0 : index
    %132 = vector.load %arg6[%c5_115, %c0_116, %c0_117] : memref<16x64x1024xbf16, #tpu.memory_space<vmem>>, vector<1x64x1024xbf16>
    %133 = vector.shape_cast %132 : vector<1x64x1024xbf16> to vector<64x1024xbf16>
    %cst_118 = arith.constant dense<0.000000e+00> : vector<16x1024xf32>
    %134 = tpu.matmul %131, %133, %cst_118 {dimension_numbers = #tpu.dot_dimension_numbers<[1], [0], [0], [1], [0, 0, 1, 1], [], []>} : vector<16x64xbf16>, vector<64x1024xbf16>, vector<16x1024xf32> -> vector<16x1024xf32>
    %135 = arith.addf %130, %134 : vector<16x1024xf32>
    %136 = vector.extract_strided_slice %104 {offsets = [96, 0], sizes = [16, 64], strides = [1, 1]} : vector<256x64xbf16> to vector<16x64xbf16>
    %c6_119 = arith.constant 6 : index
    %c0_120 = arith.constant 0 : index
    %c0_121 = arith.constant 0 : index
    %137 = vector.load %arg6[%c6_119, %c0_120, %c0_121] : memref<16x64x1024xbf16, #tpu.memory_space<vmem>>, vector<1x64x1024xbf16>
    %138 = vector.shape_cast %137 : vector<1x64x1024xbf16> to vector<64x1024xbf16>
    %cst_122 = arith.constant dense<0.000000e+00> : vector<16x1024xf32>
    %139 = tpu.matmul %136, %138, %cst_122 {dimension_numbers = #tpu.dot_dimension_numbers<[1], [0], [0], [1], [0, 0, 1, 1], [], []>} : vector<16x64xbf16>, vector<64x1024xbf16>, vector<16x1024xf32> -> vector<16x1024xf32>
    %140 = arith.addf %135, %139 : vector<16x1024xf32>
    %141 = vector.extract_strided_slice %104 {offsets = [112, 0], sizes = [16, 64], strides = [1, 1]} : vector<256x64xbf16> to vector<16x64xbf16>
    %c7 = arith.constant 7 : index
    %c0_123 = arith.constant 0 : index
    %c0_124 = arith.constant 0 : index
    %142 = vector.load %arg6[%c7, %c0_123, %c0_124] : memref<16x64x1024xbf16, #tpu.memory_space<vmem>>, vector<1x64x1024xbf16>
    %143 = vector.shape_cast %142 : vector<1x64x1024xbf16> to vector<64x1024xbf16>
    %cst_125 = arith.constant dense<0.000000e+00> : vector<16x1024xf32>
    %144 = tpu.matmul %141, %143, %cst_125 {dimension_numbers = #tpu.dot_dimension_numbers<[1], [0], [0], [1], [0, 0, 1, 1], [], []>} : vector<16x64xbf16>, vector<64x1024xbf16>, vector<16x1024xf32> -> vector<16x1024xf32>
    %145 = arith.addf %140, %144 : vector<16x1024xf32>
    %146 = vector.extract_strided_slice %104 {offsets = [128, 0], sizes = [16, 64], strides = [1, 1]} : vector<256x64xbf16> to vector<16x64xbf16>
    %c8 = arith.constant 8 : index
    %c0_126 = arith.constant 0 : index
    %c0_127 = arith.constant 0 : index
    %147 = vector.load %arg6[%c8, %c0_126, %c0_127] : memref<16x64x1024xbf16, #tpu.memory_space<vmem>>, vector<1x64x1024xbf16>
    %148 = vector.shape_cast %147 : vector<1x64x1024xbf16> to vector<64x1024xbf16>
    %cst_128 = arith.constant dense<0.000000e+00> : vector<16x1024xf32>
    %149 = tpu.matmul %146, %148, %cst_128 {dimension_numbers = #tpu.dot_dimension_numbers<[1], [0], [0], [1], [0, 0, 1, 1], [], []>} : vector<16x64xbf16>, vector<64x1024xbf16>, vector<16x1024xf32> -> vector<16x1024xf32>
    %150 = arith.addf %145, %149 : vector<16x1024xf32>
    %151 = vector.extract_strided_slice %104 {offsets = [144, 0], sizes = [16, 64], strides = [1, 1]} : vector<256x64xbf16> to vector<16x64xbf16>
    %c9 = arith.constant 9 : index
    %c0_129 = arith.constant 0 : index
    %c0_130 = arith.constant 0 : index
    %152 = vector.load %arg6[%c9, %c0_129, %c0_130] : memref<16x64x1024xbf16, #tpu.memory_space<vmem>>, vector<1x64x1024xbf16>
    %153 = vector.shape_cast %152 : vector<1x64x1024xbf16> to vector<64x1024xbf16>
    %cst_131 = arith.constant dense<0.000000e+00> : vector<16x1024xf32>
    %154 = tpu.matmul %151, %153, %cst_131 {dimension_numbers = #tpu.dot_dimension_numbers<[1], [0], [0], [1], [0, 0, 1, 1], [], []>} : vector<16x64xbf16>, vector<64x1024xbf16>, vector<16x1024xf32> -> vector<16x1024xf32>
    %155 = arith.addf %150, %154 : vector<16x1024xf32>
    %156 = vector.extract_strided_slice %104 {offsets = [160, 0], sizes = [16, 64], strides = [1, 1]} : vector<256x64xbf16> to vector<16x64xbf16>
    %c10 = arith.constant 10 : index
    %c0_132 = arith.constant 0 : index
    %c0_133 = arith.constant 0 : index
    %157 = vector.load %arg6[%c10, %c0_132, %c0_133] : memref<16x64x1024xbf16, #tpu.memory_space<vmem>>, vector<1x64x1024xbf16>
    %158 = vector.shape_cast %157 : vector<1x64x1024xbf16> to vector<64x1024xbf16>
    %cst_134 = arith.constant dense<0.000000e+00> : vector<16x1024xf32>
    %159 = tpu.matmul %156, %158, %cst_134 {dimension_numbers = #tpu.dot_dimension_numbers<[1], [0], [0], [1], [0, 0, 1, 1], [], []>} : vector<16x64xbf16>, vector<64x1024xbf16>, vector<16x1024xf32> -> vector<16x1024xf32>
    %160 = arith.addf %155, %159 : vector<16x1024xf32>
    %161 = vector.extract_strided_slice %104 {offsets = [176, 0], sizes = [16, 64], strides = [1, 1]} : vector<256x64xbf16> to vector<16x64xbf16>
    %c11 = arith.constant 11 : index
    %c0_135 = arith.constant 0 : index
    %c0_136 = arith.constant 0 : index
    %162 = vector.load %arg6[%c11, %c0_135, %c0_136] : memref<16x64x1024xbf16, #tpu.memory_space<vmem>>, vector<1x64x1024xbf16>
    %163 = vector.shape_cast %162 : vector<1x64x1024xbf16> to vector<64x1024xbf16>
    %cst_137 = arith.constant dense<0.000000e+00> : vector<16x1024xf32>
    %164 = tpu.matmul %161, %163, %cst_137 {dimension_numbers = #tpu.dot_dimension_numbers<[1], [0], [0], [1], [0, 0, 1, 1], [], []>} : vector<16x64xbf16>, vector<64x1024xbf16>, vector<16x1024xf32> -> vector<16x1024xf32>
    %165 = arith.addf %160, %164 : vector<16x1024xf32>
    %166 = vector.extract_strided_slice %104 {offsets = [192, 0], sizes = [16, 64], strides = [1, 1]} : vector<256x64xbf16> to vector<16x64xbf16>
    %c12 = arith.constant 12 : index
    %c0_138 = arith.constant 0 : index
    %c0_139 = arith.constant 0 : index
    %167 = vector.load %arg6[%c12, %c0_138, %c0_139] : memref<16x64x1024xbf16, #tpu.memory_space<vmem>>, vector<1x64x1024xbf16>
    %168 = vector.shape_cast %167 : vector<1x64x1024xbf16> to vector<64x1024xbf16>
    %cst_140 = arith.constant dense<0.000000e+00> : vector<16x1024xf32>
    %169 = tpu.matmul %166, %168, %cst_140 {dimension_numbers = #tpu.dot_dimension_numbers<[1], [0], [0], [1], [0, 0, 1, 1], [], []>} : vector<16x64xbf16>, vector<64x1024xbf16>, vector<16x1024xf32> -> vector<16x1024xf32>
    %170 = arith.addf %165, %169 : vector<16x1024xf32>
    %171 = vector.extract_strided_slice %104 {offsets = [208, 0], sizes = [16, 64], strides = [1, 1]} : vector<256x64xbf16> to vector<16x64xbf16>
    %c13 = arith.constant 13 : index
    %c0_141 = arith.constant 0 : index
    %c0_142 = arith.constant 0 : index
    %172 = vector.load %arg6[%c13, %c0_141, %c0_142] : memref<16x64x1024xbf16, #tpu.memory_space<vmem>>, vector<1x64x1024xbf16>
    %173 = vector.shape_cast %172 : vector<1x64x1024xbf16> to vector<64x1024xbf16>
    %cst_143 = arith.constant dense<0.000000e+00> : vector<16x1024xf32>
    %174 = tpu.matmul %171, %173, %cst_143 {dimension_numbers = #tpu.dot_dimension_numbers<[1], [0], [0], [1], [0, 0, 1, 1], [], []>} : vector<16x64xbf16>, vector<64x1024xbf16>, vector<16x1024xf32> -> vector<16x1024xf32>
    %175 = arith.addf %170, %174 : vector<16x1024xf32>
    %176 = vector.extract_strided_slice %104 {offsets = [224, 0], sizes = [16, 64], strides = [1, 1]} : vector<256x64xbf16> to vector<16x64xbf16>
    %c14 = arith.constant 14 : index
    %c0_144 = arith.constant 0 : index
    %c0_145 = arith.constant 0 : index
    %177 = vector.load %arg6[%c14, %c0_144, %c0_145] : memref<16x64x1024xbf16, #tpu.memory_space<vmem>>, vector<1x64x1024xbf16>
    %178 = vector.shape_cast %177 : vector<1x64x1024xbf16> to vector<64x1024xbf16>
    %cst_146 = arith.constant dense<0.000000e+00> : vector<16x1024xf32>
    %179 = tpu.matmul %176, %178, %cst_146 {dimension_numbers = #tpu.dot_dimension_numbers<[1], [0], [0], [1], [0, 0, 1, 1], [], []>} : vector<16x64xbf16>, vector<64x1024xbf16>, vector<16x1024xf32> -> vector<16x1024xf32>
    %180 = arith.addf %175, %179 : vector<16x1024xf32>
    %181 = vector.extract_strided_slice %104 {offsets = [240, 0], sizes = [16, 64], strides = [1, 1]} : vector<256x64xbf16> to vector<16x64xbf16>
    %c15 = arith.constant 15 : index
    %c0_147 = arith.constant 0 : index
    %c0_148 = arith.constant 0 : index
    %182 = vector.load %arg6[%c15, %c0_147, %c0_148] : memref<16x64x1024xbf16, #tpu.memory_space<vmem>>, vector<1x64x1024xbf16>
    %183 = vector.shape_cast %182 : vector<1x64x1024xbf16> to vector<64x1024xbf16>
    %cst_149 = arith.constant dense<0.000000e+00> : vector<16x1024xf32>
    %184 = tpu.matmul %181, %183, %cst_149 {dimension_numbers = #tpu.dot_dimension_numbers<[1], [0], [0], [1], [0, 0, 1, 1], [], []>} : vector<16x64xbf16>, vector<64x1024xbf16>, vector<16x1024xf32> -> vector<16x1024xf32>
    %185 = arith.addf %180, %184 : vector<16x1024xf32>
    %c0_150 = arith.constant 0 : index
    %c0_151 = arith.constant 0 : index
    %186 = vector.load %arg7[%c0_150, %c0_151] : memref<1x1024xf32, #tpu.memory_space<vmem>>, vector<1x1024xf32>
    %187 = vector.broadcast %186 : vector<1x1024xf32> to vector<16x1024xf32>
    %188 = arith.addf %185, %187 : vector<16x1024xf32>
    %cst_152 = arith.constant 0.000000e+00 : f32
    %189 = vector.broadcast %cst_152 : f32 to vector<16x1024xf32>
    %190 = arith.maximumf %188, %189 : vector<16x1024xf32>
    %191 = arith.truncf %190 : vector<16x1024xf32> to vector<16x1024xbf16>
    %c0_153 = arith.constant 0 : index
    %c0_154 = arith.constant 0 : index
    %192 = vector.load %arg8[%c0_153, %c0_154] : memref<1024x128xbf16, #tpu.memory_space<vmem>>, vector<1024x128xbf16>
    %cst_155 = arith.constant dense<0.000000e+00> : vector<16x128xf32>
    %193 = tpu.matmul %191, %192, %cst_155 {dimension_numbers = #tpu.dot_dimension_numbers<[1], [0], [0], [1], [0, 0, 1, 1], [], []>} : vector<16x1024xbf16>, vector<1024x128xbf16>, vector<16x128xf32> -> vector<16x128xf32>
    %c0_156 = arith.constant 0 : index
    %c0_157 = arith.constant 0 : index
    %194 = vector.load %arg9[%c0_156, %c0_157] : memref<1x128xf32, #tpu.memory_space<vmem>>, vector<1x128xf32>
    %195 = vector.broadcast %194 : vector<1x128xf32> to vector<16x128xf32>
    %196 = arith.addf %193, %195 : vector<16x128xf32>
    %c0_158 = arith.constant 0 : index
    %c0_159 = arith.constant 0 : index
    %197 = vector.load %arg10[%c0_158, %c0_159] : memref<16x128xf32, #tpu.memory_space<vmem>>, vector<16x128xf32>
    tpu.vector_store %arg10[%c0_158, %c0_159], %196 {strides = array<i32>} : memref<16x128xf32, #tpu.memory_space<vmem>>, vector<16x128xf32>,
    return
  }
  func.func @transform_0(%arg0: i32) -> (i32, i32, i32, i32) {
    %c0_i32 = arith.constant 0 : i32
    %c0_i32_0 = arith.constant 0 : i32
    %c0_i32_1 = arith.constant 0 : i32
    %c0_i32_2 = arith.constant 0 : i32
    return %arg0, %c0_i32, %c0_i32_0, %c0_i32_1 : i32, i32, i32, i32
  }
  func.func @transform_1(%arg0: i32) -> (i32, i32) {
    %c0_i32 = arith.constant 0 : i32
    %c0_i32_0 = arith.constant 0 : i32
    %c0_i32_1 = arith.constant 0 : i32
    return %c0_i32, %c0_i32_0 : i32, i32
  }
  func.func @transform_2(%arg0: i32) -> (i32, i32) {
    %c0_i32 = arith.constant 0 : i32
    %c0_i32_0 = arith.constant 0 : i32
    %c0_i32_1 = arith.constant 0 : i32
    return %c0_i32, %c0_i32_0 : i32, i32
  }
  func.func @transform_3(%arg0: i32) -> (i32, i32, i32) {
    %c0_i32 = arith.constant 0 : i32
    %c0_i32_0 = arith.constant 0 : i32
    %c0_i32_1 = arith.constant 0 : i32
    %c0_i32_2 = arith.constant 0 : i32
    return %c0_i32, %c0_i32_0, %c0_i32_1 : i32, i32, i32
  }
  func.func @transform_4(%arg0: i32) -> (i32, i32) {
    %c0_i32 = arith.constant 0 : i32
    %c0_i32_0 = arith.constant 0 : i32
    %c0_i32_1 = arith.constant 0 : i32
    return %c0_i32, %c0_i32_0 : i32, i32
  }
  func.func @transform_5(%arg0: i32) -> (i32, i32, i32) {
    %c0_i32 = arith.constant 0 : i32
    %c0_i32_0 = arith.constant 0 : i32
    %c0_i32_1 = arith.constant 0 : i32
    %c0_i32_2 = arith.constant 0 : i32
    return %c0_i32, %c0_i32_0, %c0_i32_1 : i32, i32, i32
  }
  func.func @transform_6(%arg0: i32) -> (i32, i32) {
    %c0_i32 = arith.constant 0 : i32
    %c0_i32_0 = arith.constant 0 : i32
    %c0_i32_1 = arith.constant 0 : i32
    return %c0_i32, %c0_i32_0 : i32, i32
  }
  func.func @transform_7(%arg0: i32) -> (i32, i32) {
    %c0_i32 = arith.constant 0 : i32
    %c0_i32_0 = arith.constant 0 : i32
    %c0_i32_1 = arith.constant 0 : i32
    return %c0_i32, %c0_i32_0 : i32, i32
  }
  func.func @transform_8(%arg0: i32) -> (i32, i32) {
    %c0_i32 = arith.constant 0 : i32
    %c0_i32_0 = arith.constant 0 : i32
    %c0_i32_1 = arith.constant 0 : i32
    return %c0_i32, %c0_i32_0 : i32, i32
  }
  func.func @transform_9(%arg0: i32) -> (i32, i32) {
    %c0_i32 = arith.constant 0 : i32
    %c0_i32_0 = arith.constant 0 : i32
    return %arg0, %c0_i32 : i32, i32
  }
}

</mosaic_0001>

<llo_original>
// kernel: net_forward.1
$region0: #{net_forward.1}
  #allocation0 [shape = 'u32[]', space=smem, size = 0x4, offset = 0x4, fixed_abs, tag = 'smem constant byte address 0x4 - core index']
  #allocation1 [shape = 'u32[144,128]{1,0:T(1,128)}', space=vmem, size = 0x12000, scoped, tag = 'internal scratch']
  %s0 = inlined_call_operand.vmem [shape: bf16[1,7,256,128], index: 0, kind: input, shape index: {}]
  %s1 = inlined_call_operand.vmem [shape: bf16[128,128], index: 1, kind: input, shape index: {}]
  %s2 = inlined_call_operand.vmem [shape: f32[1,128], index: 2, kind: input, shape index: {}]
  %s3 = inlined_call_operand.vmem [shape: bf16[7,128,64], index: 3, kind: input, shape index: {}]
  %s4 = inlined_call_operand.vmem [shape: f32[1,64], index: 4, kind: input, shape index: {}]
  %s5 = inlined_call_operand.vmem [shape: bf16[16,64,1024], index: 5, kind: input, shape index: {}]
  %s6 = inlined_call_operand.vmem [shape: f32[1,1024], index: 6, kind: input, shape index: {}]
  %s7 = inlined_call_operand.vmem [shape: bf16[1024,128], index: 7, kind: input, shape index: {}]
  %s8 = inlined_call_operand.vmem [shape: f32[1,128], index: 8, kind: input, shape index: {}]
  %s9 = inlined_call_operand.vmem [shape: f32[16,128], index: 9, kind: output, shape index: {}]
  %s10 = sld [smem:[#allocation0]]
  $region46: #{net_forward.1} parent=0
    _
  %s12 = ssub.s32 1, %s10
  %s13 = scalar_select 0, %s12, %s10
  // Predicated region
  $region2: #{net_forward.1} parent=0 // pred_check
    _
  $region3: #{net_forward.1} parent=0 // pred_check_branch
    %15 = sbr.rel (0) target = $region5
  $region4: #{net_forward.1} parent=0 // pred_region
    _
  $region5: #{net_forward.1} parent=0 // pred_fallthru
    _
  // Predicated region
  $region6: #{net_forward.1} parent=0 // pred_check
    _
  $region7: #{net_forward.1} parent=0 // pred_check_branch
    %17 = sbr.rel (0) target = $region9
  $region8: #{net_forward.1} parent=0 // pred_region
    _
  $region9: #{net_forward.1} parent=0 // pred_fallthru
    _
  // Predicated region
  $region10: #{net_forward.1} parent=0 // pred_check
    _
  $region11: #{net_forward.1} parent=0 // pred_check_branch
    %19 = sbr.rel (0) target = $region13
  $region12: #{net_forward.1} parent=0 // pred_region
    _
  $region13: #{net_forward.1} parent=0 // pred_fallthru
    _
  // Predicated region
  $region14: #{net_forward.1} parent=0 // pred_check
    _
  $region15: #{net_forward.1} parent=0 // pred_check_branch
    %21 = sbr.rel (0) target = $region17
  $region16: #{net_forward.1} parent=0 // pred_region
    _
  $region17: #{net_forward.1} parent=0 // pred_fallthru
    _
  // Predicated region
  $region18: #{net_forward.1} parent=0 // pred_check
    _
  $region19: #{net_forward.1} parent=0 // pred_check_branch
    %23 = sbr.rel (0) target = $region21
  $region20: #{net_forward.1} parent=0 // pred_region
    _
  $region21: #{net_forward.1} parent=0 // pred_fallthru
    _
  // Predicated region
  $region22: #{net_forward.1} parent=0 // pred_check
    _
  $region23: #{net_forward.1} parent=0 // pred_check_branch
    %25 = sbr.rel (0) target = $region25
  $region24: #{net_forward.1} parent=0 // pred_region
    _
  $region25: #{net_forward.1} parent=0 // pred_fallthru
    _
  // Predicated region
  $region26: #{net_forward.1} parent=0 // pred_check
    _
  $region27: #{net_forward.1} parent=0 // pred_check_branch
    %27 = sbr.rel (0) target = $region29
  $region28: #{net_forward.1} parent=0 // pred_region
    _
  $region29: #{net_forward.1} parent=0 // pred_fallthru
    _
  // Predicated region
  $region30: #{net_forward.1} parent=0 // pred_check
    _
  $region31: #{net_forward.1} parent=0 // pred_check_branch
    %29 = sbr.rel (0) target = $region33
  $region32: #{net_forward.1} parent=0 // pred_region
    _
  $region33: #{net_forward.1} parent=0 // pred_fallthru
    _
  // Predicated region
  $region34: #{net_forward.1} parent=0 // pred_check
    _
  $region35: #{net_forward.1} parent=0 // pred_check_branch
    %31 = sbr.rel (0) target = $region37
  $region36: #{net_forward.1} parent=0 // pred_region
    _
  $region37: #{net_forward.1} parent=0 // pred_fallthru
    _
  %v33 = vld [vmem:[%s0] sm:$0xf]
  %v34 = vld [vmem:[%s0 + $0x4] sm:$0xf]
  %v35 = vld [vmem:[%s0 + $0x8] sm:$0xf]
  %v36 = vld [vmem:[%s0 + $0xc] sm:$0xf]
  %v37 = vld [vmem:[%s0 + $0x10] sm:$0xf]
  %v38 = vld [vmem:[%s0 + $0x14] sm:$0xf]
  %v39 = vld [vmem:[%s0 + $0x18] sm:$0xf]
  %v40 = vld [vmem:[%s0 + $0x1c] sm:$0xf]
  %v41 = vld [vmem:[%s0 + $0x20] sm:$0xf]
  %v42 = vld [vmem:[%s0 + $0x24] sm:$0xf]
  %v43 = vld [vmem:[%s0 + $0x28] sm:$0xf]
  %v44 = vld [vmem:[%s0 + $0x2c] sm:$0xf]
  %v45 = vld [vmem:[%s0 + $0x30] sm:$0xf]
  %v46 = vld [vmem:[%s0 + $0x34] sm:$0xf]
  %v47 = vld [vmem:[%s0 + $0x38] sm:$0xf]
  %v48 = vld [vmem:[%s0 + $0x3c] sm:$0xf]
  %v49 = vld [vmem:[%s0 + $0x40] sm:$0xf]
  %v50 = vld [vmem:[%s0 + $0x44] sm:$0xf]
  %v51 = vld [vmem:[%s0 + $0x48] sm:$0xf]
  %v52 = vld [vmem:[%s0 + $0x4c] sm:$0xf]
  %v53 = vld [vmem:[%s0 + $0x50] sm:$0xf]
  %v54 = vld [vmem:[%s0 + $0x54] sm:$0xf]
  %v55 = vld [vmem:[%s0 + $0x58] sm:$0xf]
  %v56 = vld [vmem:[%s0 + $0x5c] sm:$0xf]
  %v57 = vld [vmem:[%s0 + $0x60] sm:$0xf]
  %v58 = vld [vmem:[%s0 + $0x64] sm:$0xf]
  %v59 = vld [vmem:[%s0 + $0x68] sm:$0xf]
  %v60 = vld [vmem:[%s0 + $0x6c] sm:$0xf]
  %v61 = vld [vmem:[%s0 + $0x70] sm:$0xf]
  %v62 = vld [vmem:[%s0 + $0x74] sm:$0xf]
  %v63 = vld [vmem:[%s0 + $0x78] sm:$0xf]
  %v64 = vld [vmem:[%s0 + $0x7c] sm:$0xf]
  %v65 = vld [vmem:[%s1] sm:$0xf]
  %v66 = vld [vmem:[%s1 + $0x4] sm:$0xf]
  %v67 = vld [vmem:[%s1 + $0x8] sm:$0xf]
  %v68 = vld [vmem:[%s1 + $0xc] sm:$0xf]
  %v69 = vld [vmem:[%s1 + $0x10] sm:$0xf]
  %v70 = vld [vmem:[%s1 + $0x14] sm:$0xf]
  %v71 = vld [vmem:[%s1 + $0x18] sm:$0xf]
  %v72 = vld [vmem:[%s1 + $0x1c] sm:$0xf]
  %v73 = vld [vmem:[%s1 + $0x20] sm:$0xf]
  %v74 = vld [vmem:[%s1 + $0x24] sm:$0xf]
  %v75 = vld [vmem:[%s1 + $0x28] sm:$0xf]
  %v76 = vld [vmem:[%s1 + $0x2c] sm:$0xf]
  %v77 = vld [vmem:[%s1 + $0x30] sm:$0xf]
  %v78 = vld [vmem:[%s1 + $0x34] sm:$0xf]
  %v79 = vld [vmem:[%s1 + $0x38] sm:$0xf]
  %v80 = vld [vmem:[%s1 + $0x3c] sm:$0xf]
  %v81 = vld [vmem:[%s2] sm:$0x1]
  %v83 = vlaneseq
  %v84 = vshrl.u32 %v83, 7
  %v85 = vsub.s32 0, %v84
  %v86 = vrot.slane %v81, %v85
  %v120 = vunpack.c.l.b16 %v33
  %v121 = vunpack.c.l.b16 %v34
  %v122 = vunpack.c.l.b16 %v35
  %v123 = vunpack.c.l.b16 %v36
  %v124 = vunpack.c.l.b16 %v37
  %v125 = vunpack.c.l.b16 %v38
  %v126 = vunpack.c.l.b16 %v39
  %v127 = vunpack.c.l.b16 %v40
  %v128 = vunpack.c.l.b16 %v41
  %v129 = vunpack.c.l.b16 %v42
  %v130 = vunpack.c.l.b16 %v43
  %v131 = vunpack.c.l.b16 %v44
  %v132 = vunpack.c.l.b16 %v45
  %v133 = vunpack.c.l.b16 %v46
  %v134 = vunpack.c.l.b16 %v47
  %v135 = vunpack.c.l.b16 %v48
  %v136 = vunpack.c.l.b16 %v49
  %v137 = vunpack.c.l.b16 %v50
  %v138 = vunpack.c.l.b16 %v51
  %v139 = vunpack.c.l.b16 %v52
  %v140 = vunpack.c.l.b16 %v53
  %v141 = vunpack.c.l.b16 %v54
  %v142 = vunpack.c.l.b16 %v55
  %v143 = vunpack.c.l.b16 %v56
  %v144 = vunpack.c.l.b16 %v57
  %v145 = vunpack.c.l.b16 %v58
  %v146 = vunpack.c.l.b16 %v59
  %v147 = vunpack.c.l.b16 %v60
  %v148 = vunpack.c.l.b16 %v61
  %v149 = vunpack.c.l.b16 %v62
  %v150 = vunpack.c.l.b16 %v63
  %v151 = vunpack.c.l.b16 %v64
  %v152 = vpack.c.b16 %v121, %v120
  %v153 = vpack.c.b16 %v123, %v122
  %v154 = vpack.c.b16 %v125, %v124
  %v155 = vpack.c.b16 %v127, %v126
  %v156 = vpack.c.b16 %v129, %v128
  %v157 = vpack.c.b16 %v131, %v130
  %v158 = vpack.c.b16 %v133, %v132
  %v159 = vpack.c.b16 %v135, %v134
  %v160 = vpack.c.b16 %v137, %v136
  %v161 = vpack.c.b16 %v139, %v138
  %v162 = vpack.c.b16 %v141, %v140
  %v163 = vpack.c.b16 %v143, %v142
  %v164 = vpack.c.b16 %v145, %v144
  %v165 = vpack.c.b16 %v147, %v146
  %v166 = vpack.c.b16 %v149, %v148
  %v167 = vpack.c.b16 %v151, %v150
  %v200 = vunpack.c.l.b16 %v65
  %v201 = vunpack.c.l.b16 %v66
  %v202 = vunpack.c.l.b16 %v67
  %v203 = vunpack.c.l.b16 %v68
  %v204 = vunpack.c.l.b16 %v69
  %v205 = vunpack.c.l.b16 %v70
  %v206 = vunpack.c.l.b16 %v71
  %v207 = vunpack.c.l.b16 %v72
  %v208 = vunpack.c.l.b16 %v73
  %v209 = vunpack.c.l.b16 %v74
  %v210 = vunpack.c.l.b16 %v75
  %v211 = vunpack.c.l.b16 %v76
  %v212 = vunpack.c.l.b16 %v77
  %v213 = vunpack.c.l.b16 %v78
  %v214 = vunpack.c.l.b16 %v79
  %v215 = vunpack.c.l.b16 %v80
  %v216 = vpack.c.b16 %v201, %v200
  %v217 = vpack.c.b16 %v203, %v202
  %v218 = vpack.c.b16 %v205, %v204
  %v219 = vpack.c.b16 %v207, %v206
  %v220 = vpack.c.b16 %v209, %v208
  %v221 = vpack.c.b16 %v211, %v210
  %v222 = vpack.c.b16 %v213, %v212
  %v223 = vpack.c.b16 %v215, %v214
  %232 = vmatprep.subr.bf16.mxu0 0
  %233 = vmatpush1.bf16.msra.mxu0 %v216
  %234 = vmatprep.subr.bf16.mxu0 0
  %235 = vmatpush1.bf16.msra.mxu0 %v217
  %236 = vmatprep.subr.bf16.mxu0 0
  %237 = vmatpush1.bf16.msra.mxu0 %v218
  %238 = vmatprep.subr.bf16.mxu0 0
  %239 = vmatpush1.bf16.msra.mxu0 %v219
  %240 = vmatprep.subr.bf16.mxu0 0
  %241 = vmatpush1.bf16.msra.mxu0 %v220
  %242 = vmatprep.subr.bf16.mxu0 0
  %243 = vmatpush1.bf16.msra.mxu0 %v221
  %244 = vmatprep.subr.bf16.mxu0 0
  %245 = vmatpush1.bf16.msra.mxu0 %v222
  %246 = vmatprep.subr.bf16.mxu0 0
  %247 = vmatpush1.bf16.msra.mxu0 %v223
  %248 = vmatprep.subr.bf16.mxu0 0
  %249 = vmatpush1.bf16.msra.mxu0 0
  %250 = vmatprep.subr.bf16.mxu0 0
  %251 = vmatpush1.bf16.msra.mxu0 0
  %252 = vmatprep.subr.bf16.mxu0 0
  %253 = vmatpush1.bf16.msra.mxu0 0
  %254 = vmatprep.subr.bf16.mxu0 0
  %255 = vmatpush1.bf16.msra.mxu0 0
  %256 = vmatprep.subr.bf16.mxu0 0
  %257 = vmatpush1.bf16.msra.mxu0 0
  %258 = vmatprep.subr.bf16.mxu0 0
  %259 = vmatpush1.bf16.msra.mxu0 0
  %260 = vmatprep.subr.bf16.mxu0 0
  %261 = vmatpush1.bf16.msra.mxu0 0
  %262 = vmatprep.subr.bf16.mxu0 0
  %263 = vmatpush1.bf16.msra.mxu0 0
  %264 = vmatprep.mubr.bf16.mxu0 0
  %265 = vmatmul.mubr.bf16.gmra.mrb[0].mxu0 %v152
  %v266 = vpop.f32.mrb[0].mxu0
  %v267 = vadd.f32 %v86, %v266
  %v268 = vpop.f32.mrb[0].mxu0
  %v269 = vpop.f32.mrb[0].mxu0
  %v270 = vadd.f32 %v86, %v269
  %v271 = vpop.f32.mrb[0].mxu0
  %272 = vmatprep.mubr.bf16.mxu0 0
  %273 = vmatmul.mubr.bf16.gmra.mrb[0].mxu0 %v153
  %v274 = vpop.f32.mrb[0].mxu0
  %v275 = vadd.f32 %v86, %v274
  %v276 = vpop.f32.mrb[0].mxu0
  %v277 = vpop.f32.mrb[0].mxu0
  %v278 = vadd.f32 %v86, %v277
  %v279 = vpop.f32.mrb[0].mxu0
  %280 = vmatprep.mubr.bf16.mxu0 0
  %281 = vmatmul.mubr.bf16.gmra.mrb[0].mxu0 %v154
  %v282 = vpop.f32.mrb[0].mxu0
  %v283 = vadd.f32 %v86, %v282
  %v284 = vpop.f32.mrb[0].mxu0
  %v285 = vpop.f32.mrb[0].mxu0
  %v286 = vadd.f32 %v86, %v285
  %v287 = vpop.f32.mrb[0].mxu0
  %288 = vmatprep.mubr.bf16.mxu0 0
  %289 = vmatmul.mubr.bf16.gmra.mrb[0].mxu0 %v155
  %v290 = vpop.f32.mrb[0].mxu0
  %v291 = vadd.f32 %v86, %v290
  %v292 = vpop.f32.mrb[0].mxu0
  %v293 = vpop.f32.mrb[0].mxu0
  %v294 = vadd.f32 %v86, %v293
  %v295 = vpop.f32.mrb[0].mxu0
  %296 = vmatprep.mubr.bf16.mxu0 0
  %297 = vmatmul.mubr.bf16.gmra.mrb[0].mxu0 %v156
  %v298 = vpop.f32.mrb[0].mxu0
  %v299 = vadd.f32 %v86, %v298
  %v300 = vpop.f32.mrb[0].mxu0
  %v301 = vpop.f32.mrb[0].mxu0
  %v302 = vadd.f32 %v86, %v301
  %v303 = vpop.f32.mrb[0].mxu0
  %304 = vmatprep.mubr.bf16.mxu0 0
  %305 = vmatmul.mubr.bf16.gmra.mrb[0].mxu0 %v157
  %v306 = vpop.f32.mrb[0].mxu0
  %v307 = vadd.f32 %v86, %v306
  %v308 = vpop.f32.mrb[0].mxu0
  %v309 = vpop.f32.mrb[0].mxu0
  %v310 = vadd.f32 %v86, %v309
  %v311 = vpop.f32.mrb[0].mxu0
  %312 = vmatprep.mubr.bf16.mxu0 0
  %313 = vmatmul.mubr.bf16.gmra.mrb[0].mxu0 %v158
  %v314 = vpop.f32.mrb[0].mxu0
  %v315 = vadd.f32 %v86, %v314
  %v316 = vpop.f32.mrb[0].mxu0
  %v317 = vpop.f32.mrb[0].mxu0
  %v318 = vadd.f32 %v86, %v317
  %v319 = vpop.f32.mrb[0].mxu0
  %320 = vmatprep.mubr.bf16.mxu0 0
  %321 = vmatmul.mubr.bf16.gmra.mrb[0].mxu0 %v159
  %v322 = vpop.f32.mrb[0].mxu0
  %v323 = vadd.f32 %v86, %v322
  %v324 = vpop.f32.mrb[0].mxu0
  %v325 = vpop.f32.mrb[0].mxu0
  %v326 = vadd.f32 %v86, %v325
  %v327 = vpop.f32.mrb[0].mxu0
  %328 = vmatprep.mubr.bf16.mxu0 0
  %329 = vmatmul.mubr.bf16.gmra.mrb[0].mxu0 %v160
  %v330 = vpop.f32.mrb[0].mxu0
  %v331 = vadd.f32 %v86, %v330
  %v332 = vpop.f32.mrb[0].mxu0
  %v333 = vpop.f32.mrb[0].mxu0
  %v334 = vadd.f32 %v86, %v333
  %v335 = vpop.f32.mrb[0].mxu0
  %336 = vmatprep.mubr.bf16.mxu0 0
  %337 = vmatmul.mubr.bf16.gmra.mrb[0].mxu0 %v161
  %v338 = vpop.f32.mrb[0].mxu0
  %v339 = vadd.f32 %v86, %v338
  %v340 = vpop.f32.mrb[0].mxu0
  %v341 = vpop.f32.mrb[0].mxu0
  %v342 = vadd.f32 %v86, %v341
  %v343 = vpop.f32.mrb[0].mxu0
  %344 = vmatprep.mubr.bf16.mxu0 0
  %345 = vmatmul.mubr.bf16.gmra.mrb[0].mxu0 %v162
  %v346 = vpop.f32.mrb[0].mxu0
  %v347 = vadd.f32 %v86, %v346
  %v348 = vpop.f32.mrb[0].mxu0
  %v349 = vpop.f32.mrb[0].mxu0
  %v350 = vadd.f32 %v86, %v349
  %v351 = vpop.f32.mrb[0].mxu0
  %352 = vmatprep.mubr.bf16.mxu0 0
  %353 = vmatmul.mubr.bf16.gmra.mrb[0].mxu0 %v163
  %v354 = vpop.f32.mrb[0].mxu0
  %v355 = vadd.f32 %v86, %v354
  %v356 = vpop.f32.mrb[0].mxu0
  %v357 = vpop.f32.mrb[0].mxu0
  %v358 = vadd.f32 %v86, %v357
  %v359 = vpop.f32.mrb[0].mxu0
  %360 = vmatprep.mubr.bf16.mxu0 0
  %361 = vmatmul.mubr.bf16.gmra.mrb[0].mxu0 %v164
  %v362 = vpop.f32.mrb[0].mxu0
  %v363 = vadd.f32 %v86, %v362
  %v364 = vpop.f32.mrb[0].mxu0
  %v365 = vpop.f32.mrb[0].mxu0
  %v366 = vadd.f32 %v86, %v365
  %v367 = vpop.f32.mrb[0].mxu0
  %368 = vmatprep.mubr.bf16.mxu0 0
  %369 = vmatmul.mubr.bf16.gmra.mrb[0].mxu0 %v165
  %v370 = vpop.f32.mrb[0].mxu0
  %v371 = vadd.f32 %v86, %v370
  %v372 = vpop.f32.mrb[0].mxu0
  %v373 = vpop.f32.mrb[0].mxu0
  %v374 = vadd.f32 %v86, %v373
  %v375 = vpop.f32.mrb[0].mxu0
  %376 = vmatprep.mubr.bf16.mxu0 0
  %377 = vmatmul.mubr.bf16.gmra.mrb[0].mxu0 %v166
  %v378 = vpop.f32.mrb[0].mxu0
  %v379 = vadd.f32 %v86, %v378
  %v380 = vpop.f32.mrb[0].mxu0
  %v381 = vpop.f32.mrb[0].mxu0
  %v382 = vadd.f32 %v86, %v381
  %v383 = vpop.f32.mrb[0].mxu0
  %384 = vmatprep.mubr.bf16.mxu0 0
  %385 = vmatmul.mubr.bf16.gmra.mrb[0].mxu0 %v167
  %v386 = vpop.f32.mrb[0].mxu0
  %v387 = vadd.f32 %v86, %v386
  %v388 = vpop.f32.mrb[0].mxu0
  %v389 = vpop.f32.mrb[0].mxu0
  %v390 = vadd.f32 %v86, %v389
  %v391 = vpop.f32.mrb[0].mxu0
  %392 = vdwg.mxu0
  %v393 = vmax.f32 %v267, 0.0
  %v394 = vmax.f32 %v270, 0.0
  %v395 = vmax.f32 %v275, 0.0
  %v396 = vmax.f32 %v278, 0.0
  %v397 = vmax.f32 %v283, 0.0
  %v398 = vmax.f32 %v286, 0.0
  %v399 = vmax.f32 %v291, 0.0
  %v400 = vmax.f32 %v294, 0.0
  %v401 = vmax.f32 %v299, 0.0
  %v402 = vmax.f32 %v302, 0.0
  %v403 = vmax.f32 %v307, 0.0
  %v404 = vmax.f32 %v310, 0.0
  %v405 = vmax.f32 %v315, 0.0
  %v406 = vmax.f32 %v318, 0.0
  %v407 = vmax.f32 %v323, 0.0
  %v408 = vmax.f32 %v326, 0.0
  %v409 = vmax.f32 %v331, 0.0
  %v410 = vmax.f32 %v334, 0.0
  %v411 = vmax.f32 %v339, 0.0
  %v412 = vmax.f32 %v342, 0.0
  %v413 = vmax.f32 %v347, 0.0
  %v414 = vmax.f32 %v350, 0.0
  %v415 = vmax.f32 %v355, 0.0
  %v416 = vmax.f32 %v358, 0.0
  %v417 = vmax.f32 %v363, 0.0
  %v418 = vmax.f32 %v366, 0.0
  %v419 = vmax.f32 %v371, 0.0
  %v420 = vmax.f32 %v374, 0.0
  %v421 = vmax.f32 %v379, 0.0
  %v422 = vmax.f32 %v382, 0.0
  %v423 = vmax.f32 %v387, 0.0
  %v424 = vmax.f32 %v390, 0.0
  %v425 = vpack.c.bf16 %v394, %v393
  %v426 = vpack.c.bf16 %v396, %v395
  %v427 = vpack.c.bf16 %v398, %v397
  %v428 = vpack.c.bf16 %v400, %v399
  %v429 = vpack.c.bf16 %v402, %v401
  %v430 = vpack.c.bf16 %v404, %v403
  %v431 = vpack.c.bf16 %v406, %v405
  %v432 = vpack.c.bf16 %v408, %v407
  %v433 = vpack.c.bf16 %v410, %v409
  %v434 = vpack.c.bf16 %v412, %v411
  %v435 = vpack.c.bf16 %v414, %v413
  %v436 = vpack.c.bf16 %v416, %v415
  %v437 = vpack.c.bf16 %v418, %v417
  %v438 = vpack.c.bf16 %v420, %v419
  %v439 = vpack.c.bf16 %v422, %v421
  %v440 = vpack.c.bf16 %v424, %v423
  %v441 = vld [vmem:[%s3] sm:$0xf]
  %v442 = vld [vmem:[%s3 + $0x4] sm:$0xf]
  %v443 = vld [vmem:[%s3 + $0x8] sm:$0xf]
  %v444 = vld [vmem:[%s3 + $0xc] sm:$0xf]
  %v445 = vld [vmem:[%s3 + $0x10] sm:$0xf]
  %v446 = vld [vmem:[%s3 + $0x14] sm:$0xf]
  %v447 = vld [vmem:[%s3 + $0x18] sm:$0xf]
  %v448 = vld [vmem:[%s3 + $0x1c] sm:$0xf]
  %v449 = vld [vmem:[%s3 + $0x20] sm:$0xf]
  %v450 = vld [vmem:[%s3 + $0x24] sm:$0xf]
  %v451 = vld [vmem:[%s3 + $0x28] sm:$0xf]
  %v452 = vld [vmem:[%s3 + $0x2c] sm:$0xf]
  %v453 = vld [vmem:[%s3 + $0x30] sm:$0xf]
  %v454 = vld [vmem:[%s3 + $0x34] sm:$0xf]
  %v455 = vld [vmem:[%s3 + $0x38] sm:$0xf]
  %v456 = vld [vmem:[%s3 + $0x3c] sm:$0xf]
  %s457 = scalar_lea.vmem %s0, 128
  %v458 = vld [vmem:[%s457] sm:$0xf]
  %v459 = vld [vmem:[%s457 + $0x4] sm:$0xf]
  %v460 = vld [vmem:[%s457 + $0x8] sm:$0xf]
  %v461 = vld [vmem:[%s457 + $0xc] sm:$0xf]
  %v462 = vld [vmem:[%s457 + $0x10] sm:$0xf]
  %v463 = vld [vmem:[%s457 + $0x14] sm:$0xf]
  %v464 = vld [vmem:[%s457 + $0x18] sm:$0xf]
  %v465 = vld [vmem:[%s457 + $0x1c] sm:$0xf]
  %v466 = vld [vmem:[%s457 + $0x20] sm:$0xf]
  %v467 = vld [vmem:[%s457 + $0x24] sm:$0xf]
  %v468 = vld [vmem:[%s457 + $0x28] sm:$0xf]
  %v469 = vld [vmem:[%s457 + $0x2c] sm:$0xf]
  %v470 = vld [vmem:[%s457 + $0x30] sm:$0xf]
  %v471 = vld [vmem:[%s457 + $0x34] sm:$0xf]
  %v472 = vld [vmem:[%s457 + $0x38] sm:$0xf]
  %v473 = vld [vmem:[%s457 + $0x3c] sm:$0xf]
  %v474 = vld [vmem:[%s457 + $0x40] sm:$0xf]
  %v475 = vld [vmem:[%s457 + $0x44] sm:$0xf]
  %v476 = vld [vmem:[%s457 + $0x48] sm:$0xf]
  %v477 = vld [vmem:[%s457 + $0x4c] sm:$0xf]
  %v478 = vld [vmem:[%s457 + $0x50] sm:$0xf]
  %v479 = vld [vmem:[%s457 + $0x54] sm:$0xf]
  %v480 = vld [vmem:[%s457 + $0x58] sm:$0xf]
  %v481 = vld [vmem:[%s457 + $0x5c] sm:$0xf]
  %v482 = vld [vmem:[%s457 + $0x60] sm:$0xf]
  %v483 = vld [vmem:[%s457 + $0x64] sm:$0xf]
  %v484 = vld [vmem:[%s457 + $0x68] sm:$0xf]
  %v485 = vld [vmem:[%s457 + $0x6c] sm:$0xf]
  %v486 = vld [vmem:[%s457 + $0x70] sm:$0xf]
  %v487 = vld [vmem:[%s457 + $0x74] sm:$0xf]
  %v488 = vld [vmem:[%s457 + $0x78] sm:$0xf]
  %v489 = vld [vmem:[%s457 + $0x7c] sm:$0xf]
  %v522 = vunpack.c.l.b16 %v458
  %v523 = vunpack.c.l.b16 %v459
  %v524 = vunpack.c.l.b16 %v460
  %v525 = vunpack.c.l.b16 %v461
  %v526 = vunpack.c.l.b16 %v462
  %v527 = vunpack.c.l.b16 %v463
  %v528 = vunpack.c.l.b16 %v464
  %v529 = vunpack.c.l.b16 %v465
  %v530 = vunpack.c.l.b16 %v466
  %v531 = vunpack.c.l.b16 %v467
  %v532 = vunpack.c.l.b16 %v468
  %v533 = vunpack.c.l.b16 %v469
  %v534 = vunpack.c.l.b16 %v470
  %v535 = vunpack.c.l.b16 %v471
  %v536 = vunpack.c.l.b16 %v472
  %v537 = vunpack.c.l.b16 %v473
  %v538 = vunpack.c.l.b16 %v474
  %v539 = vunpack.c.l.b16 %v475
  %v540 = vunpack.c.l.b16 %v476
  %v541 = vunpack.c.l.b16 %v477
  %v542 = vunpack.c.l.b16 %v478
  %v543 = vunpack.c.l.b16 %v479
  %v544 = vunpack.c.l.b16 %v480
  %v545 = vunpack.c.l.b16 %v481
  %v546 = vunpack.c.l.b16 %v482
  %v547 = vunpack.c.l.b16 %v483
  %v548 = vunpack.c.l.b16 %v484
  %v549 = vunpack.c.l.b16 %v485
  %v550 = vunpack.c.l.b16 %v486
  %v551 = vunpack.c.l.b16 %v487
  %v552 = vunpack.c.l.b16 %v488
  %v553 = vunpack.c.l.b16 %v489
  %v554 = vpack.c.b16 %v523, %v522
  %v555 = vpack.c.b16 %v525, %v524
  %v556 = vpack.c.b16 %v527, %v526
  %v557 = vpack.c.b16 %v529, %v528
  %v558 = vpack.c.b16 %v531, %v530
  %v559 = vpack.c.b16 %v533, %v532
  %v560 = vpack.c.b16 %v535, %v534
  %v561 = vpack.c.b16 %v537, %v536
  %v562 = vpack.c.b16 %v539, %v538
  %v563 = vpack.c.b16 %v541, %v540
  %v564 = vpack.c.b16 %v543, %v542
  %v565 = vpack.c.b16 %v545, %v544
  %v566 = vpack.c.b16 %v547, %v546
  %v567 = vpack.c.b16 %v549, %v548
  %v568 = vpack.c.b16 %v551, %v550
  %v569 = vpack.c.b16 %v553, %v552
  %586 = vmatprep.subr.bf16.mxu0 0
  %587 = vmatpush1.bf16.msra.mxu0 %v216
  %588 = vmatprep.subr.bf16.mxu0 0
  %589 = vmatpush1.bf16.msra.mxu0 %v217
  %590 = vmatprep.subr.bf16.mxu0 0
  %591 = vmatpush1.bf16.msra.mxu0 %v218
  %592 = vmatprep.subr.bf16.mxu0 0
  %593 = vmatpush1.bf16.msra.mxu0 %v219
  %594 = vmatprep.subr.bf16.mxu0 0
  %595 = vmatpush1.bf16.msra.mxu0 %v220
  %596 = vmatprep.subr.bf16.mxu0 0
  %597 = vmatpush1.bf16.msra.mxu0 %v221
  %598 = vmatprep.subr.bf16.mxu0 0
  %599 = vmatpush1.bf16.msra.mxu0 %v222
  %600 = vmatprep.subr.bf16.mxu0 0
  %601 = vmatpush1.bf16.msra.mxu0 %v223
  %602 = vmatprep.subr.bf16.mxu0 0
  %603 = vmatpush1.bf16.msra.mxu0 0
  %604 = vmatprep.subr.bf16.mxu0 0
  %605 = vmatpush1.bf16.msra.mxu0 0
  %606 = vmatprep.subr.bf16.mxu0 0
  %607 = vmatpush1.bf16.msra.mxu0 0
  %608 = vmatprep.subr.bf16.mxu0 0
  %609 = vmatpush1.bf16.msra.mxu0 0
  %610 = vmatprep.subr.bf16.mxu0 0
  %611 = vmatpush1.bf16.msra.mxu0 0
  %612 = vmatprep.subr.bf16.mxu0 0
  %613 = vmatpush1.bf16.msra.mxu0 0
  %614 = vmatprep.subr.bf16.mxu0 0
  %615 = vmatpush1.bf16.msra.mxu0 0
  %616 = vmatprep.subr.bf16.mxu0 0
  %617 = vmatpush1.bf16.msra.mxu0 0
  %618 = vmatprep.mubr.bf16.mxu0 0
  %619 = vmatmul.mubr.bf16.gmra.mrb[0].mxu0 %v554
  %v620 = vpop.f32.mrb[0].mxu0
  %v621 = vadd.f32 %v86, %v620
  %v622 = vpop.f32.mrb[0].mxu0
  %v623 = vpop.f32.mrb[0].mxu0
  %v624 = vadd.f32 %v86, %v623
  %v625 = vpop.f32.mrb[0].mxu0
  %626 = vmatprep.mubr.bf16.mxu0 0
  %627 = vmatmul.mubr.bf16.gmra.mrb[0].mxu0 %v555
  %v628 = vpop.f32.mrb[0].mxu0
  %v629 = vadd.f32 %v86, %v628
  %v630 = vpop.f32.mrb[0].mxu0
  %v631 = vpop.f32.mrb[0].mxu0
  %v632 = vadd.f32 %v86, %v631
  %v633 = vpop.f32.mrb[0].mxu0
  %634 = vmatprep.mubr.bf16.mxu0 0
  %635 = vmatmul.mubr.bf16.gmra.mrb[0].mxu0 %v556
  %v636 = vpop.f32.mrb[0].mxu0
  %v637 = vadd.f32 %v86, %v636
  %v638 = vpop.f32.mrb[0].mxu0
  %v639 = vpop.f32.mrb[0].mxu0
  %v640 = vadd.f32 %v86, %v639
  %v641 = vpop.f32.mrb[0].mxu0
  %642 = vmatprep.mubr.bf16.mxu0 0
  %643 = vmatmul.mubr.bf16.gmra.mrb[0].mxu0 %v557
  %v644 = vpop.f32.mrb[0].mxu0
  %v645 = vadd.f32 %v86, %v644
  %v646 = vpop.f32.mrb[0].mxu0
  %v647 = vpop.f32.mrb[0].mxu0
  %v648 = vadd.f32 %v86, %v647
  %v649 = vpop.f32.mrb[0].mxu0
  %650 = vmatprep.mubr.bf16.mxu0 0
  %651 = vmatmul.mubr.bf16.gmra.mrb[0].mxu0 %v558
  %v652 = vpop.f32.mrb[0].mxu0
  %v653 = vadd.f32 %v86, %v652
  %v654 = vpop.f32.mrb[0].mxu0
  %v655 = vpop.f32.mrb[0].mxu0
  %v656 = vadd.f32 %v86, %v655
  %v657 = vpop.f32.mrb[0].mxu0
  %658 = vmatprep.mubr.bf16.mxu0 0
  %659 = vmatmul.mubr.bf16.gmra.mrb[0].mxu0 %v559
  %v660 = vpop.f32.mrb[0].mxu0
  %v661 = vadd.f32 %v86, %v660
  %v662 = vpop.f32.mrb[0].mxu0
  %v663 = vpop.f32.mrb[0].mxu0
  %v664 = vadd.f32 %v86, %v663
  %v665 = vpop.f32.mrb[0].mxu0
  %666 = vmatprep.mubr.bf16.mxu0 0
  %667 = vmatmul.mubr.bf16.gmra.mrb[0].mxu0 %v560
  %v668 = vpop.f32.mrb[0].mxu0
  %v669 = vadd.f32 %v86, %v668
  %v670 = vpop.f32.mrb[0].mxu0
  %v671 = vpop.f32.mrb[0].mxu0
  %v672 = vadd.f32 %v86, %v671
  %v673 = vpop.f32.mrb[0].mxu0
  %674 = vmatprep.mubr.bf16.mxu0 0
  %675 = vmatmul.mubr.bf16.gmra.mrb[0].mxu0 %v561
  %v676 = vpop.f32.mrb[0].mxu0
  %v677 = vadd.f32 %v86, %v676
  %v678 = vpop.f32.mrb[0].mxu0
  %v679 = vpop.f32.mrb[0].mxu0
  %v680 = vadd.f32 %v86, %v679
  %v681 = vpop.f32.mrb[0].mxu0
  %682 = vmatprep.mubr.bf16.mxu0 0
  %683 = vmatmul.mubr.bf16.gmra.mrb[0].mxu0 %v562
  %v684 = vpop.f32.mrb[0].mxu0
  %v685 = vadd.f32 %v86, %v684
  %v686 = vpop.f32.mrb[0].mxu0
  %v687 = vpop.f32.mrb[0].mxu0
  %v688 = vadd.f32 %v86, %v687
  %v689 = vpop.f32.mrb[0].mxu0
  %690 = vmatprep.mubr.bf16.mxu0 0
  %691 = vmatmul.mubr.bf16.gmra.mrb[0].mxu0 %v563
  %v692 = vpop.f32.mrb[0].mxu0
  %v693 = vadd.f32 %v86, %v692
  %v694 = vpop.f32.mrb[0].mxu0
  %v695 = vpop.f32.mrb[0].mxu0
  %v696 = vadd.f32 %v86, %v695
  %v697 = vpop.f32.mrb[0].mxu0
  %698 = vmatprep.mubr.bf16.mxu0 0
  %699 = vmatmul.mubr.bf16.gmra.mrb[0].mxu0 %v564
  %v700 = vpop.f32.mrb[0].mxu0
  %v701 = vadd.f32 %v86, %v700
  %v702 = vpop.f32.mrb[0].mxu0
  %v703 = vpop.f32.mrb[0].mxu0
  %v704 = vadd.f32 %v86, %v703
  %v705 = vpop.f32.mrb[0].mxu0
  %706 = vmatprep.mubr.bf16.mxu0 0
  %707 = vmatmul.mubr.bf16.gmra.mrb[0].mxu0 %v565
  %v708 = vpop.f32.mrb[0].mxu0
  %v709 = vadd.f32 %v86, %v708
  %v710 = vpop.f32.mrb[0].mxu0
  %v711 = vpop.f32.mrb[0].mxu0
  %v712 = vadd.f32 %v86, %v711
  %v713 = vpop.f32.mrb[0].mxu0
  %714 = vmatprep.mubr.bf16.mxu0 0
  %715 = vmatmul.mubr.bf16.gmra.mrb[0].mxu0 %v566
  %v716 = vpop.f32.mrb[0].mxu0
  %v717 = vadd.f32 %v86, %v716
  %v718 = vpop.f32.mrb[0].mxu0
  %v719 = vpop.f32.mrb[0].mxu0
  %v720 = vadd.f32 %v86, %v719
  %v721 = vpop.f32.mrb[0].mxu0
  %722 = vmatprep.mubr.bf16.mxu0 0
  %723 = vmatmul.mubr.bf16.gmra.mrb[0].mxu0 %v567
  %v724 = vpop.f32.mrb[0].mxu0
  %v725 = vadd.f32 %v86, %v724
  %v726 = vpop.f32.mrb[0].mxu0
  %v727 = vpop.f32.mrb[0].mxu0
  %v728 = vadd.f32 %v86, %v727
  %v729 = vpop.f32.mrb[0].mxu0
  %730 = vmatprep.mubr.bf16.mxu0 0
  %731 = vmatmul.mubr.bf16.gmra.mrb[0].mxu0 %v568
  %v732 = vpop.f32.mrb[0].mxu0
  %v733 = vadd.f32 %v86, %v732
  %v734 = vpop.f32.mrb[0].mxu0
  %v735 = vpop.f32.mrb[0].mxu0
  %v736 = vadd.f32 %v86, %v735
  %v737 = vpop.f32.mrb[0].mxu0
  %738 = vmatprep.mubr.bf16.mxu0 0
  %739 = vmatmul.mubr.bf16.gmra.mrb[0].mxu0 %v569
  %v740 = vpop.f32.mrb[0].mxu0
  %v741 = vadd.f32 %v86, %v740
  %v742 = vpop.f32.mrb[0].mxu0
  %v743 = vpop.f32.mrb[0].mxu0
  %v744 = vadd.f32 %v86, %v743
  %v745 = vpop.f32.mrb[0].mxu0
  %746 = vdwg.mxu0
  %v747 = vmax.f32 %v621, 0.0
  %v748 = vmax.f32 %v624, 0.0
  %v749 = vmax.f32 %v629, 0.0
  %v750 = vmax.f32 %v632, 0.0
  %v751 = vmax.f32 %v637, 0.0
  %v752 = vmax.f32 %v640, 0.0
  %v753 = vmax.f32 %v645, 0.0
  %v754 = vmax.f32 %v648, 0.0
  %v755 = vmax.f32 %v653, 0.0
  %v756 = vmax.f32 %v656, 0.0
  %v757 = vmax.f32 %v661, 0.0
  %v758 = vmax.f32 %v664, 0.0
  %v759 = vmax.f32 %v669, 0.0
  %v760 = vmax.f32 %v672, 0.0
  %v761 = vmax.f32 %v677, 0.0
  %v762 = vmax.f32 %v680, 0.0
  %v763 = vmax.f32 %v685, 0.0
  %v764 = vmax.f32 %v688, 0.0
  %v765 = vmax.f32 %v693, 0.0
  %v766 = vmax.f32 %v696, 0.0
  %v767 = vmax.f32 %v701, 0.0
  %v768 = vmax.f32 %v704, 0.0
  %v769 = vmax.f32 %v709, 0.0
  %v770 = vmax.f32 %v712, 0.0
  %v771 = vmax.f32 %v717, 0.0
  %v772 = vmax.f32 %v720, 0.0
  %v773 = vmax.f32 %v725, 0.0
  %v774 = vmax.f32 %v728, 0.0
  %v775 = vmax.f32 %v733, 0.0
  %v776 = vmax.f32 %v736, 0.0
  %v777 = vmax.f32 %v741, 0.0
  %v778 = vmax.f32 %v744, 0.0
  %v779 = vpack.c.bf16 %v748, %v747
  %v780 = vpack.c.bf16 %v750, %v749
  %v781 = vpack.c.bf16 %v752, %v751
  %v782 = vpack.c.bf16 %v754, %v753
  %v783 = vpack.c.bf16 %v756, %v755
  %v784 = vpack.c.bf16 %v758, %v757
  %v785 = vpack.c.bf16 %v760, %v759
  %v786 = vpack.c.bf16 %v762, %v761
  %v787 = vpack.c.bf16 %v764, %v763
  %v788 = vpack.c.bf16 %v766, %v765
  %v789 = vpack.c.bf16 %v768, %v767
  %v790 = vpack.c.bf16 %v770, %v769
  %v791 = vpack.c.bf16 %v772, %v771
  %v792 = vpack.c.bf16 %v774, %v773
  %v793 = vpack.c.bf16 %v776, %v775
  %v794 = vpack.c.bf16 %v778, %v777
  %s795 = scalar_lea.vmem %s3, 64
  %v796 = vld [vmem:[%s795] sm:$0xf]
  %v797 = vld [vmem:[%s795 + $0x4] sm:$0xf]
  %v798 = vld [vmem:[%s795 + $0x8] sm:$0xf]
  %v799 = vld [vmem:[%s795 + $0xc] sm:$0xf]
  %v800 = vld [vmem:[%s795 + $0x10] sm:$0xf]
  %v801 = vld [vmem:[%s795 + $0x14] sm:$0xf]
  %v802 = vld [vmem:[%s795 + $0x18] sm:$0xf]
  %v803 = vld [vmem:[%s795 + $0x1c] sm:$0xf]
  %v804 = vld [vmem:[%s795 + $0x20] sm:$0xf]
  %v805 = vld [vmem:[%s795 + $0x24] sm:$0xf]
  %v806 = vld [vmem:[%s795 + $0x28] sm:$0xf]
  %v807 = vld [vmem:[%s795 + $0x2c] sm:$0xf]
  %v808 = vld [vmem:[%s795 + $0x30] sm:$0xf]
  %v809 = vld [vmem:[%s795 + $0x34] sm:$0xf]
  %v810 = vld [vmem:[%s795 + $0x38] sm:$0xf]
  %v811 = vld [vmem:[%s795 + $0x3c] sm:$0xf]
  %v828 = vunpack.c.l.b16 %v796
  %v829 = vunpack.c.l.b16 %v797
  %v830 = vunpack.c.l.b16 %v798
  %v831 = vunpack.c.l.b16 %v799
  %v832 = vunpack.c.l.b16 %v800
  %v833 = vunpack.c.l.b16 %v801
  %v834 = vunpack.c.l.b16 %v802
  %v835 = vunpack.c.l.b16 %v803
  %v836 = vunpack.c.l.b16 %v804
  %v837 = vunpack.c.l.b16 %v805
  %v838 = vunpack.c.l.b16 %v806
  %v839 = vunpack.c.l.b16 %v807
  %v840 = vunpack.c.l.b16 %v808
  %v841 = vunpack.c.l.b16 %v809
  %v842 = vunpack.c.l.b16 %v810
  %v843 = vunpack.c.l.b16 %v811
  %v844 = vpack.c.b16 %v829, %v828
  %v845 = vpack.c.b16 %v831, %v830
  %v846 = vpack.c.b16 %v833, %v832
  %v847 = vpack.c.b16 %v835, %v834
  %v848 = vpack.c.b16 %v837, %v836
  %v849 = vpack.c.b16 %v839, %v838
  %v850 = vpack.c.b16 %v841, %v840
  %v851 = vpack.c.b16 %v843, %v842
  %860 = vmatprep.subr.bf16.mxu0 0
  %861 = vmatpush1.bf16.msra.mxu0 %v844
  %862 = vmatprep.subr.bf16.mxu0 0
  %863 = vmatpush1.bf16.msra.mxu0 %v845
  %864 = vmatprep.subr.bf16.mxu0 0
  %865 = vmatpush1.bf16.msra.mxu0 %v846
  %866 = vmatprep.subr.bf16.mxu0 0
  %867 = vmatpush1.bf16.msra.mxu0 %v847
  %868 = vmatprep.subr.bf16.mxu0 0
  %869 = vmatpush1.bf16.msra.mxu0 %v848
  %870 = vmatprep.subr.bf16.mxu0 0
  %871 = vmatpush1.bf16.msra.mxu0 %v849
  %872 = vmatprep.subr.bf16.mxu0 0
  %873 = vmatpush1.bf16.msra.mxu0 %v850
  %874 = vmatprep.subr.bf16.mxu0 0
  %875 = vmatpush1.bf16.msra.mxu0 %v851
  %876 = vmatprep.subr.bf16.mxu0 0
  %877 = vmatpush1.bf16.msra.mxu0 0
  %878 = vmatprep.subr.bf16.mxu0 0
  %879 = vmatpush1.bf16.msra.mxu0 0
  %880 = vmatprep.subr.bf16.mxu0 0
  %881 = vmatpush1.bf16.msra.mxu0 0
  %882 = vmatprep.subr.bf16.mxu0 0
  %883 = vmatpush1.bf16.msra.mxu0 0
  %884 = vmatprep.subr.bf16.mxu0 0
  %885 = vmatpush1.bf16.msra.mxu0 0
  %886 = vmatprep.subr.bf16.mxu0 0
  %887 = vmatpush1.bf16.msra.mxu0 0
  %888 = vmatprep.subr.bf16.mxu0 0
  %889 = vmatpush1.bf16.msra.mxu0 0
  %890 = vmatprep.subr.bf16.mxu0 0
  %891 = vmatpush1.bf16.msra.mxu0 0
  %892 = vmatprep.mubr.bf16.mxu0 0
  %893 = vmatmul.mubr.bf16.gmra.mrb[0].mxu0 %v779
  %v894 = vpop.f32.mrb[0].mxu0
  %v895 = vadd.f32 0.0, %v894
  %v896 = vpop.f32.mrb[0].mxu0
  %v897 = vpop.f32.mrb[0].mxu0
  %v898 = vadd.f32 0.0, %v897
  %v899 = vpop.f32.mrb[0].mxu0
  %900 = vmatprep.mubr.bf16.mxu0 0
  %901 = vmatmul.mubr.bf16.gmra.mrb[0].mxu0 %v780
  %v902 = vpop.f32.mrb[0].mxu0
  %v903 = vadd.f32 0.0, %v902
  %v904 = vpop.f32.mrb[0].mxu0
  %v905 = vpop.f32.mrb[0].mxu0
  %v906 = vadd.f32 0.0, %v905
  %v907 = vpop.f32.mrb[0].mxu0
  %908 = vmatprep.mubr.bf16.mxu0 0
  %909 = vmatmul.mubr.bf16.gmra.mrb[0].mxu0 %v781
  %v910 = vpop.f32.mrb[0].mxu0
  %v911 = vadd.f32 0.0, %v910
  %v912 = vpop.f32.mrb[0].mxu0
  %v913 = vpop.f32.mrb[0].mxu0
  %v914 = vadd.f32 0.0, %v913
  %v915 = vpop.f32.mrb[0].mxu0
  %916 = vmatprep.mubr.bf16.mxu0 0
  %917 = vmatmul.mubr.bf16.gmra.mrb[0].mxu0 %v782
  %v918 = vpop.f32.mrb[0].mxu0
  %v919 = vadd.f32 0.0, %v918
  %v920 = vpop.f32.mrb[0].mxu0
  %v921 = vpop.f32.mrb[0].mxu0
  %v922 = vadd.f32 0.0, %v921
  %v923 = vpop.f32.mrb[0].mxu0
  %924 = vmatprep.mubr.bf16.mxu0 0
  %925 = vmatmul.mubr.bf16.gmra.mrb[0].mxu0 %v783
  %v926 = vpop.f32.mrb[0].mxu0
  %v927 = vadd.f32 0.0, %v926
  %v928 = vpop.f32.mrb[0].mxu0
  %v929 = vpop.f32.mrb[0].mxu0
  %v930 = vadd.f32 0.0, %v929
  %v931 = vpop.f32.mrb[0].mxu0
  %932 = vmatprep.mubr.bf16.mxu0 0
  %933 = vmatmul.mubr.bf16.gmra.mrb[0].mxu0 %v784
  %v934 = vpop.f32.mrb[0].mxu0
  %v935 = vadd.f32 0.0, %v934
  %v936 = vpop.f32.mrb[0].mxu0
  %v937 = vpop.f32.mrb[0].mxu0
  %v938 = vadd.f32 0.0, %v937
  %v939 = vpop.f32.mrb[0].mxu0
  %940 = vmatprep.mubr.bf16.mxu0 0
  %941 = vmatmul.mubr.bf16.gmra.mrb[0].mxu0 %v785
  %v942 = vpop.f32.mrb[0].mxu0
  %v943 = vadd.f32 0.0, %v942
  %v944 = vpop.f32.mrb[0].mxu0
  %v945 = vpop.f32.mrb[0].mxu0
  %v946 = vadd.f32 0.0, %v945
  %v947 = vpop.f32.mrb[0].mxu0
  %948 = vmatprep.mubr.bf16.mxu0 0
  %949 = vmatmul.mubr.bf16.gmra.mrb[0].mxu0 %v786
  %v950 = vpop.f32.mrb[0].mxu0
  %v951 = vadd.f32 0.0, %v950
  %v952 = vpop.f32.mrb[0].mxu0
  %v953 = vpop.f32.mrb[0].mxu0
  %v954 = vadd.f32 0.0, %v953
  %v955 = vpop.f32.mrb[0].mxu0
  %956 = vmatprep.mubr.bf16.mxu0 0
  %957 = vmatmul.mubr.bf16.gmra.mrb[0].mxu0 %v787
  %v958 = vpop.f32.mrb[0].mxu0
  %v959 = vadd.f32 0.0, %v958
  %v960 = vpop.f32.mrb[0].mxu0
  %v961 = vpop.f32.mrb[0].mxu0
  %v962 = vadd.f32 0.0, %v961
  %v963 = vpop.f32.mrb[0].mxu0
  %964 = vmatprep.mubr.bf16.mxu0 0
  %965 = vmatmul.mubr.bf16.gmra.mrb[0].mxu0 %v788
  %v966 = vpop.f32.mrb[0].mxu0
  %v967 = vadd.f32 0.0, %v966
  %v968 = vpop.f32.mrb[0].mxu0
  %v969 = vpop.f32.mrb[0].mxu0
  %v970 = vadd.f32 0.0, %v969
  %v971 = vpop.f32.mrb[0].mxu0
  %972 = vmatprep.mubr.bf16.mxu0 0
  %973 = vmatmul.mubr.bf16.gmra.mrb[0].mxu0 %v789
  %v974 = vpop.f32.mrb[0].mxu0
  %v975 = vadd.f32 0.0, %v974
  %v976 = vpop.f32.mrb[0].mxu0
  %v977 = vpop.f32.mrb[0].mxu0
  %v978 = vadd.f32 0.0, %v977
  %v979 = vpop.f32.mrb[0].mxu0
  %980 = vmatprep.mubr.bf16.mxu0 0
  %981 = vmatmul.mubr.bf16.gmra.mrb[0].mxu0 %v790
  %v982 = vpop.f32.mrb[0].mxu0
  %v983 = vadd.f32 0.0, %v982
  %v984 = vpop.f32.mrb[0].mxu0
  %v985 = vpop.f32.mrb[0].mxu0
  %v986 = vadd.f32 0.0, %v985
  %v987 = vpop.f32.mrb[0].mxu0
  %988 = vmatprep.mubr.bf16.mxu0 0
  %989 = vmatmul.mubr.bf16.gmra.mrb[0].mxu0 %v791
  %v990 = vpop.f32.mrb[0].mxu0
  %v991 = vadd.f32 0.0, %v990
  %v992 = vpop.f32.mrb[0].mxu0
  %v993 = vpop.f32.mrb[0].mxu0
  %v994 = vadd.f32 0.0, %v993
  %v995 = vpop.f32.mrb[0].mxu0
  %996 = vmatprep.mubr.bf16.mxu0 0
  %997 = vmatmul.mubr.bf16.gmra.mrb[0].mxu0 %v792
  %v998 = vpop.f32.mrb[0].mxu0
  %v999 = vadd.f32 0.0, %v998
  %v1000 = vpop.f32.mrb[0].mxu0
  %v1001 = vpop.f32.mrb[0].mxu0
  %v1002 = vadd.f32 0.0, %v1001
  %v1003 = vpop.f32.mrb[0].mxu0
  %1004 = vmatprep.mubr.bf16.mxu0 0
  %1005 = vmatmul.mubr.bf16.gmra.mrb[0].mxu0 %v793
  %v1006 = vpop.f32.mrb[0].mxu0
  %v1007 = vadd.f32 0.0, %v1006
  %v1008 = vpop.f32.mrb[0].mxu0
  %v1009 = vpop.f32.mrb[0].mxu0
  %v1010 = vadd.f32 0.0, %v1009
  %v1011 = vpop.f32.mrb[0].mxu0
  %1012 = vmatprep.mubr.bf16.mxu0 0
  %1013 = vmatmul.mubr.bf16.gmra.mrb[0].mxu0 %v794
  %v1014 = vpop.f32.mrb[0].mxu0
  %v1015 = vadd.f32 0.0, %v1014
  %v1016 = vpop.f32.mrb[0].mxu0
  %v1017 = vpop.f32.mrb[0].mxu0
  %v1018 = vadd.f32 0.0, %v1017
  %v1019 = vpop.f32.mrb[0].mxu0
  %1020 = vdwg.mxu0
  %v1037 = vunpack.c.l.b16 %v441
  %v1038 = vunpack.c.l.b16 %v442
  %v1039 = vunpack.c.l.b16 %v443
  %v1040 = vunpack.c.l.b16 %v444
  %v1041 = vunpack.c.l.b16 %v445
  %v1042 = vunpack.c.l.b16 %v446
  %v1043 = vunpack.c.l.b16 %v447
  %v1044 = vunpack.c.l.b16 %v448
  %v1045 = vunpack.c.l.b16 %v449
  %v1046 = vunpack.c.l.b16 %v450
  %v1047 = vunpack.c.l.b16 %v451
  %v1048 = vunpack.c.l.b16 %v452
  %v1049 = vunpack.c.l.b16 %v453
  %v1050 = vunpack.c.l.b16 %v454
  %v1051 = vunpack.c.l.b16 %v455
  %v1052 = vunpack.c.l.b16 %v456
  %v1053 = vpack.c.b16 %v1038, %v1037
  %v1054 = vpack.c.b16 %v1040, %v1039
  %v1055 = vpack.c.b16 %v1042, %v1041
  %v1056 = vpack.c.b16 %v1044, %v1043
  %v1057 = vpack.c.b16 %v1046, %v1045
  %v1058 = vpack.c.b16 %v1048, %v1047
  %v1059 = vpack.c.b16 %v1050, %v1049
  %v1060 = vpack.c.b16 %v1052, %v1051
  %1069 = vmatprep.subr.bf16.mxu0 0
  %1070 = vmatpush1.bf16.msra.mxu0 %v1053
  %1071 = vmatprep.subr.bf16.mxu0 0
  %1072 = vmatpush1.bf16.msra.mxu0 %v1054
  %1073 = vmatprep.subr.bf16.mxu0 0
  %1074 = vmatpush1.bf16.msra.mxu0 %v1055
  %1075 = vmatprep.subr.bf16.mxu0 0
  %1076 = vmatpush1.bf16.msra.mxu0 %v1056
  %1077 = vmatprep.subr.bf16.mxu0 0
  %1078 = vmatpush1.bf16.msra.mxu0 %v1057
  %1079 = vmatprep.subr.bf16.mxu0 0
  %1080 = vmatpush1.bf16.msra.mxu0 %v1058
  %1081 = vmatprep.subr.bf16.mxu0 0
  %1082 = vmatpush1.bf16.msra.mxu0 %v1059
  %1083 = vmatprep.subr.bf16.mxu0 0
  %1084 = vmatpush1.bf16.msra.mxu0 %v1060
  %1085 = vmatprep.subr.bf16.mxu0 0
  %1086 = vmatpush1.bf16.msra.mxu0 0
  %1087 = vmatprep.subr.bf16.mxu0 0
  %1088 = vmatpush1.bf16.msra.mxu0 0
  %1089 = vmatprep.subr.bf16.mxu0 0
  %1090 = vmatpush1.bf16.msra.mxu0 0
  %1091 = vmatprep.subr.bf16.mxu0 0
  %1092 = vmatpush1.bf16.msra.mxu0 0
  %1093 = vmatprep.subr.bf16.mxu0 0
  %1094 = vmatpush1.bf16.msra.mxu0 0
  %1095 = vmatprep.subr.bf16.mxu0 0
  %1096 = vmatpush1.bf16.msra.mxu0 0
  %1097 = vmatprep.subr.bf16.mxu0 0
  %1098 = vmatpush1.bf16.msra.mxu0 0
  %1099 = vmatprep.subr.bf16.mxu0 0
  %1100 = vmatpush1.bf16.msra.mxu0 0
  %1101 = vmatprep.mubr.bf16.mxu0 0
  %1102 = vmatmul.mubr.bf16.gmra.mrb[0].mxu0 %v425
  %v1103 = vpop.f32.mrb[0].mxu0
  %v1104 = vadd.f32 %v895, %v1103
  %v1105 = vpop.f32.mrb[0].mxu0
  %v1106 = vpop.f32.mrb[0].mxu0
  %v1107 = vadd.f32 %v898, %v1106
  %v1108 = vpop.f32.mrb[0].mxu0
  %1109 = vmatprep.mubr.bf16.mxu0 0
  %1110 = vmatmul.mubr.bf16.gmra.mrb[0].mxu0 %v426
  %v1111 = vpop.f32.mrb[0].mxu0
  %v1112 = vadd.f32 %v903, %v1111
  %v1113 = vpop.f32.mrb[0].mxu0
  %v1114 = vpop.f32.mrb[0].mxu0
  %v1115 = vadd.f32 %v906, %v1114
  %v1116 = vpop.f32.mrb[0].mxu0
  %1117 = vmatprep.mubr.bf16.mxu0 0
  %1118 = vmatmul.mubr.bf16.gmra.mrb[0].mxu0 %v427
  %v1119 = vpop.f32.mrb[0].mxu0
  %v1120 = vadd.f32 %v911, %v1119
  %v1121 = vpop.f32.mrb[0].mxu0
  %v1122 = vpop.f32.mrb[0].mxu0
  %v1123 = vadd.f32 %v914, %v1122
  %v1124 = vpop.f32.mrb[0].mxu0
  %1125 = vmatprep.mubr.bf16.mxu0 0
  %1126 = vmatmul.mubr.bf16.gmra.mrb[0].mxu0 %v428
  %v1127 = vpop.f32.mrb[0].mxu0
  %v1128 = vadd.f32 %v919, %v1127
  %v1129 = vpop.f32.mrb[0].mxu0
  %v1130 = vpop.f32.mrb[0].mxu0
  %v1131 = vadd.f32 %v922, %v1130
  %v1132 = vpop.f32.mrb[0].mxu0
  %1133 = vmatprep.mubr.bf16.mxu0 0
  %1134 = vmatmul.mubr.bf16.gmra.mrb[0].mxu0 %v429
  %v1135 = vpop.f32.mrb[0].mxu0
  %v1136 = vadd.f32 %v927, %v1135
  %v1137 = vpop.f32.mrb[0].mxu0
  %v1138 = vpop.f32.mrb[0].mxu0
  %v1139 = vadd.f32 %v930, %v1138
  %v1140 = vpop.f32.mrb[0].mxu0
  %1141 = vmatprep.mubr.bf16.mxu0 0
  %1142 = vmatmul.mubr.bf16.gmra.mrb[0].mxu0 %v430
  %v1143 = vpop.f32.mrb[0].mxu0
  %v1144 = vadd.f32 %v935, %v1143
  %v1145 = vpop.f32.mrb[0].mxu0
  %v1146 = vpop.f32.mrb[0].mxu0
  %v1147 = vadd.f32 %v938, %v1146
  %v1148 = vpop.f32.mrb[0].mxu0
  %1149 = vmatprep.mubr.bf16.mxu0 0
  %1150 = vmatmul.mubr.bf16.gmra.mrb[0].mxu0 %v431
  %v1151 = vpop.f32.mrb[0].mxu0
  %v1152 = vadd.f32 %v943, %v1151
  %v1153 = vpop.f32.mrb[0].mxu0
  %v1154 = vpop.f32.mrb[0].mxu0
  %v1155 = vadd.f32 %v946, %v1154
  %v1156 = vpop.f32.mrb[0].mxu0
  %1157 = vmatprep.mubr.bf16.mxu0 0
  %1158 = vmatmul.mubr.bf16.gmra.mrb[0].mxu0 %v432
  %v1159 = vpop.f32.mrb[0].mxu0
  %v1160 = vadd.f32 %v951, %v1159
  %v1161 = vpop.f32.mrb[0].mxu0
  %v1162 = vpop.f32.mrb[0].mxu0
  %v1163 = vadd.f32 %v954, %v1162
  %v1164 = vpop.f32.mrb[0].mxu0
  %1165 = vmatprep.mubr.bf16.mxu0 0
  %1166 = vmatmul.mubr.bf16.gmra.mrb[0].mxu0 %v433
  %v1167 = vpop.f32.mrb[0].mxu0
  %v1168 = vadd.f32 %v959, %v1167
  %v1169 = vpop.f32.mrb[0].mxu0
  %v1170 = vpop.f32.mrb[0].mxu0
  %v1171 = vadd.f32 %v962, %v1170
  %v1172 = vpop.f32.mrb[0].mxu0
  %1173 = vmatprep.mubr.bf16.mxu0 0
  %1174 = vmatmul.mubr.bf16.gmra.mrb[0].mxu0 %v434
  %v1175 = vpop.f32.mrb[0].mxu0
  %v1176 = vadd.f32 %v967, %v1175
  %v1177 = vpop.f32.mrb[0].mxu0
  %v1178 = vpop.f32.mrb[0].mxu0
  %v1179 = vadd.f32 %v970, %v1178
  %v1180 = vpop.f32.mrb[0].mxu0
  %1181 = vmatprep.mubr.bf16.mxu0 0
  %1182 = vmatmul.mubr.bf16.gmra.mrb[0].mxu0 %v435
  %v1183 = vpop.f32.mrb[0].mxu0
  %v1184 = vadd.f32 %v975, %v1183
  %v1185 = vpop.f32.mrb[0].mxu0
  %v1186 = vpop.f32.mrb[0].mxu0
  %v1187 = vadd.f32 %v978, %v1186
  %v1188 = vpop.f32.mrb[0].mxu0
  %1189 = vmatprep.mubr.bf16.mxu0 0
  %1190 = vmatmul.mubr.bf16.gmra.mrb[0].mxu0 %v436
  %v1191 = vpop.f32.mrb[0].mxu0
  %v1192 = vadd.f32 %v983, %v1191
  %v1193 = vpop.f32.mrb[0].mxu0
  %v1194 = vpop.f32.mrb[0].mxu0
  %v1195 = vadd.f32 %v986, %v1194
  %v1196 = vpop.f32.mrb[0].mxu0
  %1197 = vmatprep.mubr.bf16.mxu0 0
  %1198 = vmatmul.mubr.bf16.gmra.mrb[0].mxu0 %v437
  %v1199 = vpop.f32.mrb[0].mxu0
  %v1200 = vadd.f32 %v991, %v1199
  %v1201 = vpop.f32.mrb[0].mxu0
  %v1202 = vpop.f32.mrb[0].mxu0
  %v1203 = vadd.f32 %v994, %v1202
  %v1204 = vpop.f32.mrb[0].mxu0
  %1205 = vmatprep.mubr.bf16.mxu0 0
  %1206 = vmatmul.mubr.bf16.gmra.mrb[0].mxu0 %v438
  %v1207 = vpop.f32.mrb[0].mxu0
  %v1208 = vadd.f32 %v999, %v1207
  %v1209 = vpop.f32.mrb[0].mxu0
  %v1210 = vpop.f32.mrb[0].mxu0
  %v1211 = vadd.f32 %v1002, %v1210
  %v1212 = vpop.f32.mrb[0].mxu0
  %1213 = vmatprep.mubr.bf16.mxu0 0
  %1214 = vmatmul.mubr.bf16.gmra.mrb[0].mxu0 %v439
  %v1215 = vpop.f32.mrb[0].mxu0
  %v1216 = vadd.f32 %v1007, %v1215
  %v1217 = vpop.f32.mrb[0].mxu0
  %v1218 = vpop.f32.mrb[0].mxu0
  %v1219 = vadd.f32 %v1010, %v1218
  %v1220 = vpop.f32.mrb[0].mxu0
  %1221 = vmatprep.mubr.bf16.mxu0 0
  %1222 = vmatmul.mubr.bf16.gmra.mrb[0].mxu0 %v440
  %v1223 = vpop.f32.mrb[0].mxu0
  %v1224 = vadd.f32 %v1015, %v1223
  %v1225 = vpop.f32.mrb[0].mxu0
  %v1226 = vpop.f32.mrb[0].mxu0
  %v1227 = vadd.f32 %v1018, %v1226
  %v1228 = vpop.f32.mrb[0].mxu0
  %1229 = vdwg.mxu0
  %s1230 = scalar_lea.vmem %s0, 256
  %v1231 = vld [vmem:[%s1230] sm:$0xf]
  %v1232 = vld [vmem:[%s1230 + $0x4] sm:$0xf]
  %v1233 = vld [vmem:[%s1230 + $0x8] sm:$0xf]
  %v1234 = vld [vmem:[%s1230 + $0xc] sm:$0xf]
  %v1235 = vld [vmem:[%s1230 + $0x10] sm:$0xf]
  %v1236 = vld [vmem:[%s1230 + $0x14] sm:$0xf]
  %v1237 = vld [vmem:[%s1230 + $0x18] sm:$0xf]
  %v1238 = vld [vmem:[%s1230 + $0x1c] sm:$0xf]
  %v1239 = vld [vmem:[%s1230 + $0x20] sm:$0xf]
  %v1240 = vld [vmem:[%s1230 + $0x24] sm:$0xf]
  %v1241 = vld [vmem:[%s1230 + $0x28] sm:$0xf]
  %v1242 = vld [vmem:[%s1230 + $0x2c] sm:$0xf]
  %v1243 = vld [vmem:[%s1230 + $0x30] sm:$0xf]
  %v1244 = vld [vmem:[%s1230 + $0x34] sm:$0xf]
  %v1245 = vld [vmem:[%s1230 + $0x38] sm:$0xf]
  %v1246 = vld [vmem:[%s1230 + $0x3c] sm:$0xf]
  %v1247 = vld [vmem:[%s1230 + $0x40] sm:$0xf]
  %v1248 = vld [vmem:[%s1230 + $0x44] sm:$0xf]
  %v1249 = vld [vmem:[%s1230 + $0x48] sm:$0xf]
  %v1250 = vld [vmem:[%s1230 + $0x4c] sm:$0xf]
  %v1251 = vld [vmem:[%s1230 + $0x50] sm:$0xf]
  %v1252 = vld [vmem:[%s1230 + $0x54] sm:$0xf]
  %v1253 = vld [vmem:[%s1230 + $0x58] sm:$0xf]
  %v1254 = vld [vmem:[%s1230 + $0x5c] sm:$0xf]
  %v1255 = vld [vmem:[%s1230 + $0x60] sm:$0xf]
  %v1256 = vld [vmem:[%s1230 + $0x64] sm:$0xf]
  %v1257 = vld [vmem:[%s1230 + $0x68] sm:$0xf]
  %v1258 = vld [vmem:[%s1230 + $0x6c] sm:$0xf]
  %v1259 = vld [vmem:[%s1230 + $0x70] sm:$0xf]
  %v1260 = vld [vmem:[%s1230 + $0x74] sm:$0xf]
  %v1261 = vld [vmem:[%s1230 + $0x78] sm:$0xf]
  %v1262 = vld [vmem:[%s1230 + $0x7c] sm:$0xf]
  %v1295 = vunpack.c.l.b16 %v1231
  %v1296 = vunpack.c.l.b16 %v1232
  %v1297 = vunpack.c.l.b16 %v1233
  %v1298 = vunpack.c.l.b16 %v1234
  %v1299 = vunpack.c.l.b16 %v1235
  %v1300 = vunpack.c.l.b16 %v1236
  %v1301 = vunpack.c.l.b16 %v1237
  %v1302 = vunpack.c.l.b16 %v1238
  %v1303 = vunpack.c.l.b16 %v1239
  %v1304 = vunpack.c.l.b16 %v1240
  %v1305 = vunpack.c.l.b16 %v1241
  %v1306 = vunpack.c.l.b16 %v1242
  %v1307 = vunpack.c.l.b16 %v1243
  %v1308 = vunpack.c.l.b16 %v1244
  %v1309 = vunpack.c.l.b16 %v1245
  %v1310 = vunpack.c.l.b16 %v1246
  %v1311 = vunpack.c.l.b16 %v1247
  %v1312 = vunpack.c.l.b16 %v1248
  %v1313 = vunpack.c.l.b16 %v1249
  %v1314 = vunpack.c.l.b16 %v1250
  %v1315 = vunpack.c.l.b16 %v1251
  %v1316 = vunpack.c.l.b16 %v1252
  %v1317 = vunpack.c.l.b16 %v1253
  %v1318 = vunpack.c.l.b16 %v1254
  %v1319 = vunpack.c.l.b16 %v1255
  %v1320 = vunpack.c.l.b16 %v1256
  %v1321 = vunpack.c.l.b16 %v1257
  %v1322 = vunpack.c.l.b16 %v1258
  %v1323 = vunpack.c.l.b16 %v1259
  %v1324 = vunpack.c.l.b16 %v1260
  %v1325 = vunpack.c.l.b16 %v1261
  %v1326 = vunpack.c.l.b16 %v1262
  %v1327 = vpack.c.b16 %v1296, %v1295
  %v1328 = vpack.c.b16 %v1298, %v1297
  %v1329 = vpack.c.b16 %v1300, %v1299
  %v1330 = vpack.c.b16 %v1302, %v1301
  %v1331 = vpack.c.b16 %v1304, %v1303
  %v1332 = vpack.c.b16 %v1306, %v1305
  %v1333 = vpack.c.b16 %v1308, %v1307
  %v1334 = vpack.c.b16 %v1310, %v1309
  %v1335 = vpack.c.b16 %v1312, %v1311
  %v1336 = vpack.c.b16 %v1314, %v1313
  %v1337 = vpack.c.b16 %v1316, %v1315
  %v1338 = vpack.c.b16 %v1318, %v1317
  %v1339 = vpack.c.b16 %v1320, %v1319
  %v1340 = vpack.c.b16 %v1322, %v1321
  %v1341 = vpack.c.b16 %v1324, %v1323
  %v1342 = vpack.c.b16 %v1326, %v1325
  %1359 = vmatprep.subr.bf16.mxu0 0
  %1360 = vmatpush1.bf16.msra.mxu0 %v216
  %1361 = vmatprep.subr.bf16.mxu0 0
  %1362 = vmatpush1.bf16.msra.mxu0 %v217
  %1363 = vmatprep.subr.bf16.mxu0 0
  %1364 = vmatpush1.bf16.msra.mxu0 %v218
  %1365 = vmatprep.subr.bf16.mxu0 0
  %1366 = vmatpush1.bf16.msra.mxu0 %v219
  %1367 = vmatprep.subr.bf16.mxu0 0
  %1368 = vmatpush1.bf16.msra.mxu0 %v220
  %1369 = vmatprep.subr.bf16.mxu0 0
  %1370 = vmatpush1.bf16.msra.mxu0 %v221
  %1371 = vmatprep.subr.bf16.mxu0 0
  %1372 = vmatpush1.bf16.msra.mxu0 %v222
  %1373 = vmatprep.subr.bf16.mxu0 0
  %1374 = vmatpush1.bf16.msra.mxu0 %v223
  %1375 = vmatprep.subr.bf16.mxu0 0
  %1376 = vmatpush1.bf16.msra.mxu0 0
  %1377 = vmatprep.subr.bf16.mxu0 0
  %1378 = vmatpush1.bf16.msra.mxu0 0
  %1379 = vmatprep.subr.bf16.mxu0 0
  %1380 = vmatpush1.bf16.msra.mxu0 0
  %1381 = vmatprep.subr.bf16.mxu0 0
  %1382 = vmatpush1.bf16.msra.mxu0 0
  %1383 = vmatprep.subr.bf16.mxu0 0
  %1384 = vmatpush1.bf16.msra.mxu0 0
  %1385 = vmatprep.subr.bf16.mxu0 0
  %1386 = vmatpush1.bf16.msra.mxu0 0
  %1387 = vmatprep.subr.bf16.mxu0 0
  %1388 = vmatpush1.bf16.msra.mxu0 0
  %1389 = vmatprep.subr.bf16.mxu0 0
  %1390 = vmatpush1.bf16.msra.mxu0 0
  %1391 = vmatprep.mubr.bf16.mxu0 0
  %1392 = vmatmul.mubr.bf16.gmra.mrb[0].mxu0 %v1327
  %v1393 = vpop.f32.mrb[0].mxu0
  %v1394 = vadd.f32 %v86, %v1393
  %v1395 = vpop.f32.mrb[0].mxu0
  %v1396 = vpop.f32.mrb[0].mxu0
  %v1397 = vadd.f32 %v86, %v1396
  %v1398 = vpop.f32.mrb[0].mxu0
  %1399 = vmatprep.mubr.bf16.mxu0 0
  %1400 = vmatmul.mubr.bf16.gmra.mrb[0].mxu0 %v1328
  %v1401 = vpop.f32.mrb[0].mxu0
  %v1402 = vadd.f32 %v86, %v1401
  %v1403 = vpop.f32.mrb[0].mxu0
  %v1404 = vpop.f32.mrb[0].mxu0
  %v1405 = vadd.f32 %v86, %v1404
  %v1406 = vpop.f32.mrb[0].mxu0
  %1407 = vmatprep.mubr.bf16.mxu0 0
  %1408 = vmatmul.mubr.bf16.gmra.mrb[0].mxu0 %v1329
  %v1409 = vpop.f32.mrb[0].mxu0
  %v1410 = vadd.f32 %v86, %v1409
  %v1411 = vpop.f32.mrb[0].mxu0
  %v1412 = vpop.f32.mrb[0].mxu0
  %v1413 = vadd.f32 %v86, %v1412
  %v1414 = vpop.f32.mrb[0].mxu0
  %1415 = vmatprep.mubr.bf16.mxu0 0
  %1416 = vmatmul.mubr.bf16.gmra.mrb[0].mxu0 %v1330
  %v1417 = vpop.f32.mrb[0].mxu0
  %v1418 = vadd.f32 %v86, %v1417
  %v1419 = vpop.f32.mrb[0].mxu0
  %v1420 = vpop.f32.mrb[0].mxu0
  %v1421 = vadd.f32 %v86, %v1420
  %v1422 = vpop.f32.mrb[0].mxu0
  %1423 = vmatprep.mubr.bf16.mxu0 0
  %1424 = vmatmul.mubr.bf16.gmra.mrb[0].mxu0 %v1331
  %v1425 = vpop.f32.mrb[0].mxu0
  %v1426 = vadd.f32 %v86, %v1425
  %v1427 = vpop.f32.mrb[0].mxu0
  %v1428 = vpop.f32.mrb[0].mxu0
  %v1429 = vadd.f32 %v86, %v1428
  %v1430 = vpop.f32.mrb[0].mxu0
  %1431 = vmatprep.mubr.bf16.mxu0 0
  %1432 = vmatmul.mubr.bf16.gmra.mrb[0].mxu0 %v1332
  %v1433 = vpop.f32.mrb[0].mxu0
  %v1434 = vadd.f32 %v86, %v1433
  %v1435 = vpop.f32.mrb[0].mxu0
  %v1436 = vpop.f32.mrb[0].mxu0
  %v1437 = vadd.f32 %v86, %v1436
  %v1438 = vpop.f32.mrb[0].mxu0
  %1439 = vmatprep.mubr.bf16.mxu0 0
  %1440 = vmatmul.mubr.bf16.gmra.mrb[0].mxu0 %v1333
  %v1441 = vpop.f32.mrb[0].mxu0
  %v1442 = vadd.f32 %v86, %v1441
  %v1443 = vpop.f32.mrb[0].mxu0
  %v1444 = vpop.f32.mrb[0].mxu0
  %v1445 = vadd.f32 %v86, %v1444
  %v1446 = vpop.f32.mrb[0].mxu0
  %1447 = vmatprep.mubr.bf16.mxu0 0
  %1448 = vmatmul.mubr.bf16.gmra.mrb[0].mxu0 %v1334
  %v1449 = vpop.f32.mrb[0].mxu0
  %v1450 = vadd.f32 %v86, %v1449
  %v1451 = vpop.f32.mrb[0].mxu0
  %v1452 = vpop.f32.mrb[0].mxu0
  %v1453 = vadd.f32 %v86, %v1452
  %v1454 = vpop.f32.mrb[0].mxu0
  %1455 = vmatprep.mubr.bf16.mxu0 0
  %1456 = vmatmul.mubr.bf16.gmra.mrb[0].mxu0 %v1335
  %v1457 = vpop.f32.mrb[0].mxu0
  %v1458 = vadd.f32 %v86, %v1457
  %v1459 = vpop.f32.mrb[0].mxu0
  %v1460 = vpop.f32.mrb[0].mxu0
  %v1461 = vadd.f32 %v86, %v1460
  %v1462 = vpop.f32.mrb[0].mxu0
  %1463 = vmatprep.mubr.bf16.mxu0 0
  %1464 = vmatmul.mubr.bf16.gmra.mrb[0].mxu0 %v1336
  %v1465 = vpop.f32.mrb[0].mxu0
  %v1466 = vadd.f32 %v86, %v1465
  %v1467 = vpop.f32.mrb[0].mxu0
  %v1468 = vpop.f32.mrb[0].mxu0
  %v1469 = vadd.f32 %v86, %v1468
  %v1470 = vpop.f32.mrb[0].mxu0
  %1471 = vmatprep.mubr.bf16.mxu0 0
  %1472 = vmatmul.mubr.bf16.gmra.mrb[0].mxu0 %v1337
  %v1473 = vpop.f32.mrb[0].mxu0
  %v1474 = vadd.f32 %v86, %v1473
  %v1475 = vpop.f32.mrb[0].mxu0
  %v1476 = vpop.f32.mrb[0].mxu0
  %v1477 = vadd.f32 %v86, %v1476
  %v1478 = vpop.f32.mrb[0].mxu0
  %1479 = vmatprep.mubr.bf16.mxu0 0
  %1480 = vmatmul.mubr.bf16.gmra.mrb[0].mxu0 %v1338
  %v1481 = vpop.f32.mrb[0].mxu0
  %v1482 = vadd.f32 %v86, %v1481
  %v1483 = vpop.f32.mrb[0].mxu0
  %v1484 = vpop.f32.mrb[0].mxu0
  %v1485 = vadd.f32 %v86, %v1484
  %v1486 = vpop.f32.mrb[0].mxu0
  %1487 = vmatprep.mubr.bf16.mxu0 0
  %1488 = vmatmul.mubr.bf16.gmra.mrb[0].mxu0 %v1339
  %v1489 = vpop.f32.mrb[0].mxu0
  %v1490 = vadd.f32 %v86, %v1489
  %v1491 = vpop.f32.mrb[0].mxu0
  %v1492 = vpop.f32.mrb[0].mxu0
  %v1493 = vadd.f32 %v86, %v1492
  %v1494 = vpop.f32.mrb[0].mxu0
  %1495 = vmatprep.mubr.bf16.mxu0 0
  %1496 = vmatmul.mubr.bf16.gmra.mrb[0].mxu0 %v1340
  %v1497 = vpop.f32.mrb[0].mxu0
  %v1498 = vadd.f32 %v86, %v1497
  %v1499 = vpop.f32.mrb[0].mxu0
  %v1500 = vpop.f32.mrb[0].mxu0
  %v1501 = vadd.f32 %v86, %v1500
  %v1502 = vpop.f32.mrb[0].mxu0
  %1503 = vmatprep.mubr.bf16.mxu0 0
  %1504 = vmatmul.mubr.bf16.gmra.mrb[0].mxu0 %v1341
  %v1505 = vpop.f32.mrb[0].mxu0
  %v1506 = vadd.f32 %v86, %v1505
  %v1507 = vpop.f32.mrb[0].mxu0
  %v1508 = vpop.f32.mrb[0].mxu0
  %v1509 = vadd.f32 %v86, %v1508
  %v1510 = vpop.f32.mrb[0].mxu0
  %1511 = vmatprep.mubr.bf16.mxu0 0
  %1512 = vmatmul.mubr.bf16.gmra.mrb[0].mxu0 %v1342
  %v1513 = vpop.f32.mrb[0].mxu0
  %v1514 = vadd.f32 %v86, %v1513
  %v1515 = vpop.f32.mrb[0].mxu0
  %v1516 = vpop.f32.mrb[0].mxu0
  %v1517 = vadd.f32 %v86, %v1516
  %v1518 = vpop.f32.mrb[0].mxu0
  %1519 = vdwg.mxu0
  %v1520 = vmax.f32 %v1394, 0.0
  %v1521 = vmax.f32 %v1397, 0.0
  %v1522 = vmax.f32 %v1402, 0.0
  %v1523 = vmax.f32 %v1405, 0.0
  %v1524 = vmax.f32 %v1410, 0.0
  %v1525 = vmax.f32 %v1413, 0.0
  %v1526 = vmax.f32 %v1418, 0.0
  %v1527 = vmax.f32 %v1421, 0.0
  %v1528 = vmax.f32 %v1426, 0.0
  %v1529 = vmax.f32 %v1429, 0.0
  %v1530 = vmax.f32 %v1434, 0.0
  %v1531 = vmax.f32 %v1437, 0.0
  %v1532 = vmax.f32 %v1442, 0.0
  %v1533 = vmax.f32 %v1445, 0.0
  %v1534 = vmax.f32 %v1450, 0.0
  %v1535 = vmax.f32 %v1453, 0.0
  %v1536 = vmax.f32 %v1458, 0.0
  %v1537 = vmax.f32 %v1461, 0.0
  %v1538 = vmax.f32 %v1466, 0.0
  %v1539 = vmax.f32 %v1469, 0.0
  %v1540 = vmax.f32 %v1474, 0.0
  %v1541 = vmax.f32 %v1477, 0.0
  %v1542 = vmax.f32 %v1482, 0.0
  %v1543 = vmax.f32 %v1485, 0.0
  %v1544 = vmax.f32 %v1490, 0.0
  %v1545 = vmax.f32 %v1493, 0.0
  %v1546 = vmax.f32 %v1498, 0.0
  %v1547 = vmax.f32 %v1501, 0.0
  %v1548 = vmax.f32 %v1506, 0.0
  %v1549 = vmax.f32 %v1509, 0.0
  %v1550 = vmax.f32 %v1514, 0.0
  %v1551 = vmax.f32 %v1517, 0.0
  %v1552 = vpack.c.bf16 %v1521, %v1520
  %v1553 = vpack.c.bf16 %v1523, %v1522
  %v1554 = vpack.c.bf16 %v1525, %v1524
  %v1555 = vpack.c.bf16 %v1527, %v1526
  %v1556 = vpack.c.bf16 %v1529, %v1528
  %v1557 = vpack.c.bf16 %v1531, %v1530
  %v1558 = vpack.c.bf16 %v1533, %v1532
  %v1559 = vpack.c.bf16 %v1535, %v1534
  %v1560 = vpack.c.bf16 %v1537, %v1536
  %v1561 = vpack.c.bf16 %v1539, %v1538
  %v1562 = vpack.c.bf16 %v1541, %v1540
  %v1563 = vpack.c.bf16 %v1543, %v1542
  %v1564 = vpack.c.bf16 %v1545, %v1544
  %v1565 = vpack.c.bf16 %v1547, %v1546
  %v1566 = vpack.c.bf16 %v1549, %v1548
  %v1567 = vpack.c.bf16 %v1551, %v1550
  %s1568 = scalar_lea.vmem %s3, 128
  %v1569 = vld [vmem:[%s1568] sm:$0xf]
  %v1570 = vld [vmem:[%s1568 + $0x4] sm:$0xf]
  %v1571 = vld [vmem:[%s1568 + $0x8] sm:$0xf]
  %v1572 = vld [vmem:[%s1568 + $0xc] sm:$0xf]
  %v1573 = vld [vmem:[%s1568 + $0x10] sm:$0xf]
  %v1574 = vld [vmem:[%s1568 + $0x14] sm:$0xf]
  %v1575 = vld [vmem:[%s1568 + $0x18] sm:$0xf]
  %v1576 = vld [vmem:[%s1568 + $0x1c] sm:$0xf]
  %v1577 = vld [vmem:[%s1568 + $0x20] sm:$0xf]
  %v1578 = vld [vmem:[%s1568 + $0x24] sm:$0xf]
  %v1579 = vld [vmem:[%s1568 + $0x28] sm:$0xf]
  %v1580 = vld [vmem:[%s1568 + $0x2c] sm:$0xf]
  %v1581 = vld [vmem:[%s1568 + $0x30] sm:$0xf]
  %v1582 = vld [vmem:[%s1568 + $0x34] sm:$0xf]
  %v1583 = vld [vmem:[%s1568 + $0x38] sm:$0xf]
  %v1584 = vld [vmem:[%s1568 + $0x3c] sm:$0xf]
  %v1601 = vunpack.c.l.b16 %v1569
  %v1602 = vunpack.c.l.b16 %v1570
  %v1603 = vunpack.c.l.b16 %v1571
  %v1604 = vunpack.c.l.b16 %v1572
  %v1605 = vunpack.c.l.b16 %v1573
  %v1606 = vunpack.c.l.b16 %v1574
  %v1607 = vunpack.c.l.b16 %v1575
  %v1608 = vunpack.c.l.b16 %v1576
  %v1609 = vunpack.c.l.b16 %v1577
  %v1610 = vunpack.c.l.b16 %v1578
  %v1611 = vunpack.c.l.b16 %v1579
  %v1612 = vunpack.c.l.b16 %v1580
  %v1613 = vunpack.c.l.b16 %v1581
  %v1614 = vunpack.c.l.b16 %v1582
  %v1615 = vunpack.c.l.b16 %v1583
  %v1616 = vunpack.c.l.b16 %v1584
  %v1617 = vpack.c.b16 %v1602, %v1601
  %v1618 = vpack.c.b16 %v1604, %v1603
  %v1619 = vpack.c.b16 %v1606, %v1605
  %v1620 = vpack.c.b16 %v1608, %v1607
  %v1621 = vpack.c.b16 %v1610, %v1609
  %v1622 = vpack.c.b16 %v1612, %v1611
  %v1623 = vpack.c.b16 %v1614, %v1613
  %v1624 = vpack.c.b16 %v1616, %v1615
  %1633 = vmatprep.subr.bf16.mxu0 0
  %1634 = vmatpush1.bf16.msra.mxu0 %v1617
  %1635 = vmatprep.subr.bf16.mxu0 0
  %1636 = vmatpush1.bf16.msra.mxu0 %v1618
  %1637 = vmatprep.subr.bf16.mxu0 0
  %1638 = vmatpush1.bf16.msra.mxu0 %v1619
  %1639 = vmatprep.subr.bf16.mxu0 0
  %1640 = vmatpush1.bf16.msra.mxu0 %v1620
  %1641 = vmatprep.subr.bf16.mxu0 0
  %1642 = vmatpush1.bf16.msra.mxu0 %v1621
  %1643 = vmatprep.subr.bf16.mxu0 0
  %1644 = vmatpush1.bf16.msra.mxu0 %v1622
  %1645 = vmatprep.subr.bf16.mxu0 0
  %1646 = vmatpush1.bf16.msra.mxu0 %v1623
  %1647 = vmatprep.subr.bf16.mxu0 0
  %1648 = vmatpush1.bf16.msra.mxu0 %v1624
  %1649 = vmatprep.subr.bf16.mxu0 0
  %1650 = vmatpush1.bf16.msra.mxu0 0
  %1651 = vmatprep.subr.bf16.mxu0 0
  %1652 = vmatpush1.bf16.msra.mxu0 0
  %1653 = vmatprep.subr.bf16.mxu0 0
  %1654 = vmatpush1.bf16.msra.mxu0 0
  %1655 = vmatprep.subr.bf16.mxu0 0
  %1656 = vmatpush1.bf16.msra.mxu0 0
  %1657 = vmatprep.subr.bf16.mxu0 0
  %1658 = vmatpush1.bf16.msra.mxu0 0
  %1659 = vmatprep.subr.bf16.mxu0 0
  %1660 = vmatpush1.bf16.msra.mxu0 0
  %1661 = vmatprep.subr.bf16.mxu0 0
  %1662 = vmatpush1.bf16.msra.mxu0 0
  %1663 = vmatprep.subr.bf16.mxu0 0
  %1664 = vmatpush1.bf16.msra.mxu0 0
  %1665 = vmatprep.mubr.bf16.mxu0 0
  %1666 = vmatmul.mubr.bf16.gmra.mrb[0].mxu0 %v1552
  %v1667 = vpop.f32.mrb[0].mxu0
  %v1668 = vadd.f32 0.0, %v1667
  %v1669 = vpop.f32.mrb[0].mxu0
  %v1670 = vpop.f32.mrb[0].mxu0
  %v1671 = vadd.f32 0.0, %v1670
  %v1672 = vpop.f32.mrb[0].mxu0
  %1673 = vmatprep.mubr.bf16.mxu0 0
  %1674 = vmatmul.mubr.bf16.gmra.mrb[0].mxu0 %v1553
  %v1675 = vpop.f32.mrb[0].mxu0
  %v1676 = vadd.f32 0.0, %v1675
  %v1677 = vpop.f32.mrb[0].mxu0
  %v1678 = vpop.f32.mrb[0].mxu0
  %v1679 = vadd.f32 0.0, %v1678
  %v1680 = vpop.f32.mrb[0].mxu0
  %1681 = vmatprep.mubr.bf16.mxu0 0
  %1682 = vmatmul.mubr.bf16.gmra.mrb[0].mxu0 %v1554
  %v1683 = vpop.f32.mrb[0].mxu0
  %v1684 = vadd.f32 0.0, %v1683
  %v1685 = vpop.f32.mrb[0].mxu0
  %v1686 = vpop.f32.mrb[0].mxu0
  %v1687 = vadd.f32 0.0, %v1686
  %v1688 = vpop.f32.mrb[0].mxu0
  %1689 = vmatprep.mubr.bf16.mxu0 0
  %1690 = vmatmul.mubr.bf16.gmra.mrb[0].mxu0 %v1555
  %v1691 = vpop.f32.mrb[0].mxu0
  %v1692 = vadd.f32 0.0, %v1691
  %v1693 = vpop.f32.mrb[0].mxu0
  %v1694 = vpop.f32.mrb[0].mxu0
  %v1695 = vadd.f32 0.0, %v1694
  %v1696 = vpop.f32.mrb[0].mxu0
  %1697 = vmatprep.mubr.bf16.mxu0 0
  %1698 = vmatmul.mubr.bf16.gmra.mrb[0].mxu0 %v1556
  %v1699 = vpop.f32.mrb[0].mxu0
  %v1700 = vadd.f32 0.0, %v1699
  %v1701 = vpop.f32.mrb[0].mxu0
  %v1702 = vpop.f32.mrb[0].mxu0
  %v1703 = vadd.f32 0.0, %v1702
  %v1704 = vpop.f32.mrb[0].mxu0
  %1705 = vmatprep.mubr.bf16.mxu0 0
  %1706 = vmatmul.mubr.bf16.gmra.mrb[0].mxu0 %v1557
  %v1707 = vpop.f32.mrb[0].mxu0
  %v1708 = vadd.f32 0.0, %v1707
  %v1709 = vpop.f32.mrb[0].mxu0
  %v1710 = vpop.f32.mrb[0].mxu0
  %v1711 = vadd.f32 0.0, %v1710
  %v1712 = vpop.f32.mrb[0].mxu0
  %1713 = vmatprep.mubr.bf16.mxu0 0
  %1714 = vmatmul.mubr.bf16.gmra.mrb[0].mxu0 %v1558
  %v1715 = vpop.f32.mrb[0].mxu0
  %v1716 = vadd.f32 0.0, %v1715
  %v1717 = vpop.f32.mrb[0].mxu0
  %v1718 = vpop.f32.mrb[0].mxu0
  %v1719 = vadd.f32 0.0, %v1718
  %v1720 = vpop.f32.mrb[0].mxu0
  %1721 = vmatprep.mubr.bf16.mxu0 0
  %1722 = vmatmul.mubr.bf16.gmra.mrb[0].mxu0 %v1559
  %v1723 = vpop.f32.mrb[0].mxu0
  %v1724 = vadd.f32 0.0, %v1723
  %v1725 = vpop.f32.mrb[0].mxu0
  %v1726 = vpop.f32.mrb[0].mxu0
  %v1727 = vadd.f32 0.0, %v1726
  %v1728 = vpop.f32.mrb[0].mxu0
  %1729 = vmatprep.mubr.bf16.mxu0 0
  %1730 = vmatmul.mubr.bf16.gmra.mrb[0].mxu0 %v1560
  %v1731 = vpop.f32.mrb[0].mxu0
  %v1732 = vadd.f32 0.0, %v1731
  %v1733 = vpop.f32.mrb[0].mxu0
  %v1734 = vpop.f32.mrb[0].mxu0
  %v1735 = vadd.f32 0.0, %v1734
  %v1736 = vpop.f32.mrb[0].mxu0
  %1737 = vmatprep.mubr.bf16.mxu0 0
  %1738 = vmatmul.mubr.bf16.gmra.mrb[0].mxu0 %v1561
  %v1739 = vpop.f32.mrb[0].mxu0
  %v1740 = vadd.f32 0.0, %v1739
  %v1741 = vpop.f32.mrb[0].mxu0
  %v1742 = vpop.f32.mrb[0].mxu0
  %v1743 = vadd.f32 0.0, %v1742
  %v1744 = vpop.f32.mrb[0].mxu0
  %1745 = vmatprep.mubr.bf16.mxu0 0
  %1746 = vmatmul.mubr.bf16.gmra.mrb[0].mxu0 %v1562
  %v1747 = vpop.f32.mrb[0].mxu0
  %v1748 = vadd.f32 0.0, %v1747
  %v1749 = vpop.f32.mrb[0].mxu0
  %v1750 = vpop.f32.mrb[0].mxu0
  %v1751 = vadd.f32 0.0, %v1750
  %v1752 = vpop.f32.mrb[0].mxu0
  %1753 = vmatprep.mubr.bf16.mxu0 0
  %1754 = vmatmul.mubr.bf16.gmra.mrb[0].mxu0 %v1563
  %v1755 = vpop.f32.mrb[0].mxu0
  %v1756 = vadd.f32 0.0, %v1755
  %v1757 = vpop.f32.mrb[0].mxu0
  %v1758 = vpop.f32.mrb[0].mxu0
  %v1759 = vadd.f32 0.0, %v1758
  %v1760 = vpop.f32.mrb[0].mxu0
  %1761 = vmatprep.mubr.bf16.mxu0 0
  %1762 = vmatmul.mubr.bf16.gmra.mrb[0].mxu0 %v1564
  %v1763 = vpop.f32.mrb[0].mxu0
  %v1764 = vadd.f32 0.0, %v1763
  %v1765 = vpop.f32.mrb[0].mxu0
  %v1766 = vpop.f32.mrb[0].mxu0
  %v1767 = vadd.f32 0.0, %v1766
  %v1768 = vpop.f32.mrb[0].mxu0
  %1769 = vmatprep.mubr.bf16.mxu0 0
  %1770 = vmatmul.mubr.bf16.gmra.mrb[0].mxu0 %v1565
  %v1771 = vpop.f32.mrb[0].mxu0
  %v1772 = vadd.f32 0.0, %v1771
  %v1773 = vpop.f32.mrb[0].mxu0
  %v1774 = vpop.f32.mrb[0].mxu0
  %v1775 = vadd.f32 0.0, %v1774
  %v1776 = vpop.f32.mrb[0].mxu0
  %1777 = vmatprep.mubr.bf16.mxu0 0
  %1778 = vmatmul.mubr.bf16.gmra.mrb[0].mxu0 %v1566
  %v1779 = vpop.f32.mrb[0].mxu0
  %v1780 = vadd.f32 0.0, %v1779
  %v1781 = vpop.f32.mrb[0].mxu0
  %v1782 = vpop.f32.mrb[0].mxu0
  %v1783 = vadd.f32 0.0, %v1782
  %v1784 = vpop.f32.mrb[0].mxu0
  %1785 = vmatprep.mubr.bf16.mxu0 0
  %1786 = vmatmul.mubr.bf16.gmra.mrb[0].mxu0 %v1567
  %v1787 = vpop.f32.mrb[0].mxu0
  %v1788 = vadd.f32 0.0, %v1787
  %v1789 = vpop.f32.mrb[0].mxu0
  %v1790 = vpop.f32.mrb[0].mxu0
  %v1791 = vadd.f32 0.0, %v1790
  %v1792 = vpop.f32.mrb[0].mxu0
  %1793 = vdwg.mxu0
  %v1794 = vadd.f32 %v1104, %v1668
  %v1795 = vadd.f32 %v1107, %v1671
  %v1796 = vadd.f32 %v1112, %v1676
  %v1797 = vadd.f32 %v1115, %v1679
  %v1798 = vadd.f32 %v1120, %v1684
  %v1799 = vadd.f32 %v1123, %v1687
  %v1800 = vadd.f32 %v1128, %v1692
  %v1801 = vadd.f32 %v1131, %v1695
  %v1802 = vadd.f32 %v1136, %v1700
  %v1803 = vadd.f32 %v1139, %v1703
  %v1804 = vadd.f32 %v1144, %v1708
  %v1805 = vadd.f32 %v1147, %v1711
  %v1806 = vadd.f32 %v1152, %v1716
  %v1807 = vadd.f32 %v1155, %v1719
  %v1808 = vadd.f32 %v1160, %v1724
  %v1809 = vadd.f32 %v1163, %v1727
  %v1810 = vadd.f32 %v1168, %v1732
  %v1811 = vadd.f32 %v1171, %v1735
  %v1812 = vadd.f32 %v1176, %v1740
  %v1813 = vadd.f32 %v1179, %v1743
  %v1814 = vadd.f32 %v1184, %v1748
  %v1815 = vadd.f32 %v1187, %v1751
  %v1816 = vadd.f32 %v1192, %v1756
  %v1817 = vadd.f32 %v1195, %v1759
  %v1818 = vadd.f32 %v1200, %v1764
  %v1819 = vadd.f32 %v1203, %v1767
  %v1820 = vadd.f32 %v1208, %v1772
  %v1821 = vadd.f32 %v1211, %v1775
  %v1822 = vadd.f32 %v1216, %v1780
  %v1823 = vadd.f32 %v1219, %v1783
  %v1824 = vadd.f32 %v1224, %v1788
  %v1825 = vadd.f32 %v1227, %v1791
  %s1826 = scalar_lea.vmem %s0, 384
  %v1827 = vld [vmem:[%s1826] sm:$0xf]
  %v1828 = vld [vmem:[%s1826 + $0x4] sm:$0xf]
  %v1829 = vld [vmem:[%s1826 + $0x8] sm:$0xf]
  %v1830 = vld [vmem:[%s1826 + $0xc] sm:$0xf]
  %v1831 = vld [vmem:[%s1826 + $0x10] sm:$0xf]
  %v1832 = vld [vmem:[%s1826 + $0x14] sm:$0xf]
  %v1833 = vld [vmem:[%s1826 + $0x18] sm:$0xf]
  %v1834 = vld [vmem:[%s1826 + $0x1c] sm:$0xf]
  %v1835 = vld [vmem:[%s1826 + $0x20] sm:$0xf]
  %v1836 = vld [vmem:[%s1826 + $0x24] sm:$0xf]
  %v1837 = vld [vmem:[%s1826 + $0x28] sm:$0xf]
  %v1838 = vld [vmem:[%s1826 + $0x2c] sm:$0xf]
  %v1839 = vld [vmem:[%s1826 + $0x30] sm:$0xf]
  %v1840 = vld [vmem:[%s1826 + $0x34] sm:$0xf]
  %v1841 = vld [vmem:[%s1826 + $0x38] sm:$0xf]
  %v1842 = vld [vmem:[%s1826 + $0x3c] sm:$0xf]
  %v1843 = vld [vmem:[%s1826 + $0x40] sm:$0xf]
  %v1844 = vld [vmem:[%s1826 + $0x44] sm:$0xf]
  %v1845 = vld [vmem:[%s1826 + $0x48] sm:$0xf]
  %v1846 = vld [vmem:[%s1826 + $0x4c] sm:$0xf]
  %v1847 = vld [vmem:[%s1826 + $0x50] sm:$0xf]
  %v1848 = vld [vmem:[%s1826 + $0x54] sm:$0xf]
  %v1849 = vld [vmem:[%s1826 + $0x58] sm:$0xf]
  %v1850 = vld [vmem:[%s1826 + $0x5c] sm:$0xf]
  %v1851 = vld [vmem:[%s1826 + $0x60] sm:$0xf]
  %v1852 = vld [vmem:[%s1826 + $0x64] sm:$0xf]
  %v1853 = vld [vmem:[%s1826 + $0x68] sm:$0xf]
  %v1854 = vld [vmem:[%s1826 + $0x6c] sm:$0xf]
  %v1855 = vld [vmem:[%s1826 + $0x70] sm:$0xf]
  %v1856 = vld [vmem:[%s1826 + $0x74] sm:$0xf]
  %v1857 = vld [vmem:[%s1826 + $0x78] sm:$0xf]
  %v1858 = vld [vmem:[%s1826 + $0x7c] sm:$0xf]
  %v1891 = vunpack.c.l.b16 %v1827
  %v1892 = vunpack.c.l.b16 %v1828
  %v1893 = vunpack.c.l.b16 %v1829
  %v1894 = vunpack.c.l.b16 %v1830
  %v1895 = vunpack.c.l.b16 %v1831
  %v1896 = vunpack.c.l.b16 %v1832
  %v1897 = vunpack.c.l.b16 %v1833
  %v1898 = vunpack.c.l.b16 %v1834
  %v1899 = vunpack.c.l.b16 %v1835
  %v1900 = vunpack.c.l.b16 %v1836
  %v1901 = vunpack.c.l.b16 %v1837
  %v1902 = vunpack.c.l.b16 %v1838
  %v1903 = vunpack.c.l.b16 %v1839
  %v1904 = vunpack.c.l.b16 %v1840
  %v1905 = vunpack.c.l.b16 %v1841
  %v1906 = vunpack.c.l.b16 %v1842
  %v1907 = vunpack.c.l.b16 %v1843
  %v1908 = vunpack.c.l.b16 %v1844
  %v1909 = vunpack.c.l.b16 %v1845
  %v1910 = vunpack.c.l.b16 %v1846
  %v1911 = vunpack.c.l.b16 %v1847
  %v1912 = vunpack.c.l.b16 %v1848
  %v1913 = vunpack.c.l.b16 %v1849
  %v1914 = vunpack.c.l.b16 %v1850
  %v1915 = vunpack.c.l.b16 %v1851
  %v1916 = vunpack.c.l.b16 %v1852
  %v1917 = vunpack.c.l.b16 %v1853
  %v1918 = vunpack.c.l.b16 %v1854
  %v1919 = vunpack.c.l.b16 %v1855
  %v1920 = vunpack.c.l.b16 %v1856
  %v1921 = vunpack.c.l.b16 %v1857
  %v1922 = vunpack.c.l.b16 %v1858
  %v1923 = vpack.c.b16 %v1892, %v1891
  %v1924 = vpack.c.b16 %v1894, %v1893
  %v1925 = vpack.c.b16 %v1896, %v1895
  %v1926 = vpack.c.b16 %v1898, %v1897
  %v1927 = vpack.c.b16 %v1900, %v1899
  %v1928 = vpack.c.b16 %v1902, %v1901
  %v1929 = vpack.c.b16 %v1904, %v1903
  %v1930 = vpack.c.b16 %v1906, %v1905
  %v1931 = vpack.c.b16 %v1908, %v1907
  %v1932 = vpack.c.b16 %v1910, %v1909
  %v1933 = vpack.c.b16 %v1912, %v1911
  %v1934 = vpack.c.b16 %v1914, %v1913
  %v1935 = vpack.c.b16 %v1916, %v1915
  %v1936 = vpack.c.b16 %v1918, %v1917
  %v1937 = vpack.c.b16 %v1920, %v1919
  %v1938 = vpack.c.b16 %v1922, %v1921
  %1955 = vmatprep.subr.bf16.mxu0 0
  %1956 = vmatpush1.bf16.msra.mxu0 %v216
  %1957 = vmatprep.subr.bf16.mxu0 0
  %1958 = vmatpush1.bf16.msra.mxu0 %v217
  %1959 = vmatprep.subr.bf16.mxu0 0
  %1960 = vmatpush1.bf16.msra.mxu0 %v218
  %1961 = vmatprep.subr.bf16.mxu0 0
  %1962 = vmatpush1.bf16.msra.mxu0 %v219
  %1963 = vmatprep.subr.bf16.mxu0 0
  %1964 = vmatpush1.bf16.msra.mxu0 %v220
  %1965 = vmatprep.subr.bf16.mxu0 0
  %1966 = vmatpush1.bf16.msra.mxu0 %v221
  %1967 = vmatprep.subr.bf16.mxu0 0
  %1968 = vmatpush1.bf16.msra.mxu0 %v222
  %1969 = vmatprep.subr.bf16.mxu0 0
  %1970 = vmatpush1.bf16.msra.mxu0 %v223
  %1971 = vmatprep.subr.bf16.mxu0 0
  %1972 = vmatpush1.bf16.msra.mxu0 0
  %1973 = vmatprep.subr.bf16.mxu0 0
  %1974 = vmatpush1.bf16.msra.mxu0 0
  %1975 = vmatprep.subr.bf16.mxu0 0
  %1976 = vmatpush1.bf16.msra.mxu0 0
  %1977 = vmatprep.subr.bf16.mxu0 0
  %1978 = vmatpush1.bf16.msra.mxu0 0
  %1979 = vmatprep.subr.bf16.mxu0 0
  %1980 = vmatpush1.bf16.msra.mxu0 0
  %1981 = vmatprep.subr.bf16.mxu0 0
  %1982 = vmatpush1.bf16.msra.mxu0 0
  %1983 = vmatprep.subr.bf16.mxu0 0
  %1984 = vmatpush1.bf16.msra.mxu0 0
  %1985 = vmatprep.subr.bf16.mxu0 0
  %1986 = vmatpush1.bf16.msra.mxu0 0
  %1987 = vmatprep.mubr.bf16.mxu0 0
  %1988 = vmatmul.mubr.bf16.gmra.mrb[0].mxu0 %v1923
  %v1989 = vpop.f32.mrb[0].mxu0
  %v1990 = vadd.f32 %v86, %v1989
  %v1991 = vpop.f32.mrb[0].mxu0
  %v1992 = vpop.f32.mrb[0].mxu0
  %v1993 = vadd.f32 %v86, %v1992
  %v1994 = vpop.f32.mrb[0].mxu0
  %1995 = vmatprep.mubr.bf16.mxu0 0
  %1996 = vmatmul.mubr.bf16.gmra.mrb[0].mxu0 %v1924
  %v1997 = vpop.f32.mrb[0].mxu0
  %v1998 = vadd.f32 %v86, %v1997
  %v1999 = vpop.f32.mrb[0].mxu0
  %v2000 = vpop.f32.mrb[0].mxu0
  %v2001 = vadd.f32 %v86, %v2000
  %v2002 = vpop.f32.mrb[0].mxu0
  %2003 = vmatprep.mubr.bf16.mxu0 0
  %2004 = vmatmul.mubr.bf16.gmra.mrb[0].mxu0 %v1925
  %v2005 = vpop.f32.mrb[0].mxu0
  %v2006 = vadd.f32 %v86, %v2005
  %v2007 = vpop.f32.mrb[0].mxu0
  %v2008 = vpop.f32.mrb[0].mxu0
  %v2009 = vadd.f32 %v86, %v2008
  %v2010 = vpop.f32.mrb[0].mxu0
  %2011 = vmatprep.mubr.bf16.mxu0 0
  %2012 = vmatmul.mubr.bf16.gmra.mrb[0].mxu0 %v1926
  %v2013 = vpop.f32.mrb[0].mxu0
  %v2014 = vadd.f32 %v86, %v2013
  %v2015 = vpop.f32.mrb[0].mxu0
  %v2016 = vpop.f32.mrb[0].mxu0
  %v2017 = vadd.f32 %v86, %v2016
  %v2018 = vpop.f32.mrb[0].mxu0
  %2019 = vmatprep.mubr.bf16.mxu0 0
  %2020 = vmatmul.mubr.bf16.gmra.mrb[0].mxu0 %v1927
  %v2021 = vpop.f32.mrb[0].mxu0
  %v2022 = vadd.f32 %v86, %v2021
  %v2023 = vpop.f32.mrb[0].mxu0
  %v2024 = vpop.f32.mrb[0].mxu0
  %v2025 = vadd.f32 %v86, %v2024
  %v2026 = vpop.f32.mrb[0].mxu0
  %2027 = vmatprep.mubr.bf16.mxu0 0
  %2028 = vmatmul.mubr.bf16.gmra.mrb[0].mxu0 %v1928
  %v2029 = vpop.f32.mrb[0].mxu0
  %v2030 = vadd.f32 %v86, %v2029
  %v2031 = vpop.f32.mrb[0].mxu0
  %v2032 = vpop.f32.mrb[0].mxu0
  %v2033 = vadd.f32 %v86, %v2032
  %v2034 = vpop.f32.mrb[0].mxu0
  %2035 = vmatprep.mubr.bf16.mxu0 0
  %2036 = vmatmul.mubr.bf16.gmra.mrb[0].mxu0 %v1929
  %v2037 = vpop.f32.mrb[0].mxu0
  %v2038 = vadd.f32 %v86, %v2037
  %v2039 = vpop.f32.mrb[0].mxu0
  %v2040 = vpop.f32.mrb[0].mxu0
  %v2041 = vadd.f32 %v86, %v2040
  %v2042 = vpop.f32.mrb[0].mxu0
  %2043 = vmatprep.mubr.bf16.mxu0 0
  %2044 = vmatmul.mubr.bf16.gmra.mrb[0].mxu0 %v1930
  %v2045 = vpop.f32.mrb[0].mxu0
  %v2046 = vadd.f32 %v86, %v2045
  %v2047 = vpop.f32.mrb[0].mxu0
  %v2048 = vpop.f32.mrb[0].mxu0
  %v2049 = vadd.f32 %v86, %v2048
  %v2050 = vpop.f32.mrb[0].mxu0
  %2051 = vmatprep.mubr.bf16.mxu0 0
  %2052 = vmatmul.mubr.bf16.gmra.mrb[0].mxu0 %v1931
  %v2053 = vpop.f32.mrb[0].mxu0
  %v2054 = vadd.f32 %v86, %v2053
  %v2055 = vpop.f32.mrb[0].mxu0
  %v2056 = vpop.f32.mrb[0].mxu0
  %v2057 = vadd.f32 %v86, %v2056
  %v2058 = vpop.f32.mrb[0].mxu0
  %2059 = vmatprep.mubr.bf16.mxu0 0
  %2060 = vmatmul.mubr.bf16.gmra.mrb[0].mxu0 %v1932
  %v2061 = vpop.f32.mrb[0].mxu0
  %v2062 = vadd.f32 %v86, %v2061
  %v2063 = vpop.f32.mrb[0].mxu0
  %v2064 = vpop.f32.mrb[0].mxu0
  %v2065 = vadd.f32 %v86, %v2064
  %v2066 = vpop.f32.mrb[0].mxu0
  %2067 = vmatprep.mubr.bf16.mxu0 0
  %2068 = vmatmul.mubr.bf16.gmra.mrb[0].mxu0 %v1933
  %v2069 = vpop.f32.mrb[0].mxu0
  %v2070 = vadd.f32 %v86, %v2069
  %v2071 = vpop.f32.mrb[0].mxu0
  %v2072 = vpop.f32.mrb[0].mxu0
  %v2073 = vadd.f32 %v86, %v2072
  %v2074 = vpop.f32.mrb[0].mxu0
  %2075 = vmatprep.mubr.bf16.mxu0 0
  %2076 = vmatmul.mubr.bf16.gmra.mrb[0].mxu0 %v1934
  %v2077 = vpop.f32.mrb[0].mxu0
  %v2078 = vadd.f32 %v86, %v2077
  %v2079 = vpop.f32.mrb[0].mxu0
  %v2080 = vpop.f32.mrb[0].mxu0
  %v2081 = vadd.f32 %v86, %v2080
  %v2082 = vpop.f32.mrb[0].mxu0
  %2083 = vmatprep.mubr.bf16.mxu0 0
  %2084 = vmatmul.mubr.bf16.gmra.mrb[0].mxu0 %v1935
  %v2085 = vpop.f32.mrb[0].mxu0
  %v2086 = vadd.f32 %v86, %v2085
  %v2087 = vpop.f32.mrb[0].mxu0
  %v2088 = vpop.f32.mrb[0].mxu0
  %v2089 = vadd.f32 %v86, %v2088
  %v2090 = vpop.f32.mrb[0].mxu0
  %2091 = vmatprep.mubr.bf16.mxu0 0
  %2092 = vmatmul.mubr.bf16.gmra.mrb[0].mxu0 %v1936
  %v2093 = vpop.f32.mrb[0].mxu0
  %v2094 = vadd.f32 %v86, %v2093
  %v2095 = vpop.f32.mrb[0].mxu0
  %v2096 = vpop.f32.mrb[0].mxu0
  %v2097 = vadd.f32 %v86, %v2096
  %v2098 = vpop.f32.mrb[0].mxu0
  %2099 = vmatprep.mubr.bf16.mxu0 0
  %2100 = vmatmul.mubr.bf16.gmra.mrb[0].mxu0 %v1937
  %v2101 = vpop.f32.mrb[0].mxu0
  %v2102 = vadd.f32 %v86, %v2101
  %v2103 = vpop.f32.mrb[0].mxu0
  %v2104 = vpop.f32.mrb[0].mxu0
  %v2105 = vadd.f32 %v86, %v2104
  %v2106 = vpop.f32.mrb[0].mxu0
  %2107 = vmatprep.mubr.bf16.mxu0 0
  %2108 = vmatmul.mubr.bf16.gmra.mrb[0].mxu0 %v1938
  %v2109 = vpop.f32.mrb[0].mxu0
  %v2110 = vadd.f32 %v86, %v2109
  %v2111 = vpop.f32.mrb[0].mxu0
  %v2112 = vpop.f32.mrb[0].mxu0
  %v2113 = vadd.f32 %v86, %v2112
  %v2114 = vpop.f32.mrb[0].mxu0
  %2115 = vdwg.mxu0
  %v2116 = vmax.f32 %v1990, 0.0
  %v2117 = vmax.f32 %v1993, 0.0
  %v2118 = vmax.f32 %v1998, 0.0
  %v2119 = vmax.f32 %v2001, 0.0
  %v2120 = vmax.f32 %v2006, 0.0
  %v2121 = vmax.f32 %v2009, 0.0
  %v2122 = vmax.f32 %v2014, 0.0
  %v2123 = vmax.f32 %v2017, 0.0
  %v2124 = vmax.f32 %v2022, 0.0
  %v2125 = vmax.f32 %v2025, 0.0
  %v2126 = vmax.f32 %v2030, 0.0
  %v2127 = vmax.f32 %v2033, 0.0
  %v2128 = vmax.f32 %v2038, 0.0
  %v2129 = vmax.f32 %v2041, 0.0
  %v2130 = vmax.f32 %v2046, 0.0
  %v2131 = vmax.f32 %v2049, 0.0
  %v2132 = vmax.f32 %v2054, 0.0
  %v2133 = vmax.f32 %v2057, 0.0
  %v2134 = vmax.f32 %v2062, 0.0
  %v2135 = vmax.f32 %v2065, 0.0
  %v2136 = vmax.f32 %v2070, 0.0
  %v2137 = vmax.f32 %v2073, 0.0
  %v2138 = vmax.f32 %v2078, 0.0
  %v2139 = vmax.f32 %v2081, 0.0
  %v2140 = vmax.f32 %v2086, 0.0
  %v2141 = vmax.f32 %v2089, 0.0
  %v2142 = vmax.f32 %v2094, 0.0
  %v2143 = vmax.f32 %v2097, 0.0
  %v2144 = vmax.f32 %v2102, 0.0
  %v2145 = vmax.f32 %v2105, 0.0
  %v2146 = vmax.f32 %v2110, 0.0
  %v2147 = vmax.f32 %v2113, 0.0
  %v2148 = vpack.c.bf16 %v2117, %v2116
  %v2149 = vpack.c.bf16 %v2119, %v2118
  %v2150 = vpack.c.bf16 %v2121, %v2120
  %v2151 = vpack.c.bf16 %v2123, %v2122
  %v2152 = vpack.c.bf16 %v2125, %v2124
  %v2153 = vpack.c.bf16 %v2127, %v2126
  %v2154 = vpack.c.bf16 %v2129, %v2128
  %v2155 = vpack.c.bf16 %v2131, %v2130
  %v2156 = vpack.c.bf16 %v2133, %v2132
  %v2157 = vpack.c.bf16 %v2135, %v2134
  %v2158 = vpack.c.bf16 %v2137, %v2136
  %v2159 = vpack.c.bf16 %v2139, %v2138
  %v2160 = vpack.c.bf16 %v2141, %v2140
  %v2161 = vpack.c.bf16 %v2143, %v2142
  %v2162 = vpack.c.bf16 %v2145, %v2144
  %v2163 = vpack.c.bf16 %v2147, %v2146
  %s2164 = scalar_lea.vmem %s3, 192
  %v2165 = vld [vmem:[%s2164] sm:$0xf]
  %v2166 = vld [vmem:[%s2164 + $0x4] sm:$0xf]
  %v2167 = vld [vmem:[%s2164 + $0x8] sm:$0xf]
  %v2168 = vld [vmem:[%s2164 + $0xc] sm:$0xf]
  %v2169 = vld [vmem:[%s2164 + $0x10] sm:$0xf]
  %v2170 = vld [vmem:[%s2164 + $0x14] sm:$0xf]
  %v2171 = vld [vmem:[%s2164 + $0x18] sm:$0xf]
  %v2172 = vld [vmem:[%s2164 + $0x1c] sm:$0xf]
  %v2173 = vld [vmem:[%s2164 + $0x20] sm:$0xf]
  %v2174 = vld [vmem:[%s2164 + $0x24] sm:$0xf]
  %v2175 = vld [vmem:[%s2164 + $0x28] sm:$0xf]
  %v2176 = vld [vmem:[%s2164 + $0x2c] sm:$0xf]
  %v2177 = vld [vmem:[%s2164 + $0x30] sm:$0xf]
  %v2178 = vld [vmem:[%s2164 + $0x34] sm:$0xf]
  %v2179 = vld [vmem:[%s2164 + $0x38] sm:$0xf]
  %v2180 = vld [vmem:[%s2164 + $0x3c] sm:$0xf]
  %v2197 = vunpack.c.l.b16 %v2165
  %v2198 = vunpack.c.l.b16 %v2166
  %v2199 = vunpack.c.l.b16 %v2167
  %v2200 = vunpack.c.l.b16 %v2168
  %v2201 = vunpack.c.l.b16 %v2169
  %v2202 = vunpack.c.l.b16 %v2170
  %v2203 = vunpack.c.l.b16 %v2171
  %v2204 = vunpack.c.l.b16 %v2172
  %v2205 = vunpack.c.l.b16 %v2173
  %v2206 = vunpack.c.l.b16 %v2174
  %v2207 = vunpack.c.l.b16 %v2175
  %v2208 = vunpack.c.l.b16 %v2176
  %v2209 = vunpack.c.l.b16 %v2177
  %v2210 = vunpack.c.l.b16 %v2178
  %v2211 = vunpack.c.l.b16 %v2179
  %v2212 = vunpack.c.l.b16 %v2180
  %v2213 = vpack.c.b16 %v2198, %v2197
  %v2214 = vpack.c.b16 %v2200, %v2199
  %v2215 = vpack.c.b16 %v2202, %v2201
  %v2216 = vpack.c.b16 %v2204, %v2203
  %v2217 = vpack.c.b16 %v2206, %v2205
  %v2218 = vpack.c.b16 %v2208, %v2207
  %v2219 = vpack.c.b16 %v2210, %v2209
  %v2220 = vpack.c.b16 %v2212, %v2211
  %2229 = vmatprep.subr.bf16.mxu0 0
  %2230 = vmatpush1.bf16.msra.mxu0 %v2213
  %2231 = vmatprep.subr.bf16.mxu0 0
  %2232 = vmatpush1.bf16.msra.mxu0 %v2214
  %2233 = vmatprep.subr.bf16.mxu0 0
  %2234 = vmatpush1.bf16.msra.mxu0 %v2215
  %2235 = vmatprep.subr.bf16.mxu0 0
  %2236 = vmatpush1.bf16.msra.mxu0 %v2216
  %2237 = vmatprep.subr.bf16.mxu0 0
  %2238 = vmatpush1.bf16.msra.mxu0 %v2217
  %2239 = vmatprep.subr.bf16.mxu0 0
  %2240 = vmatpush1.bf16.msra.mxu0 %v2218
  %2241 = vmatprep.subr.bf16.mxu0 0
  %2242 = vmatpush1.bf16.msra.mxu0 %v2219
  %2243 = vmatprep.subr.bf16.mxu0 0
  %2244 = vmatpush1.bf16.msra.mxu0 %v2220
  %2245 = vmatprep.subr.bf16.mxu0 0
  %2246 = vmatpush1.bf16.msra.mxu0 0
  %2247 = vmatprep.subr.bf16.mxu0 0
  %2248 = vmatpush1.bf16.msra.mxu0 0
  %2249 = vmatprep.subr.bf16.mxu0 0
  %2250 = vmatpush1.bf16.msra.mxu0 0
  %2251 = vmatprep.subr.bf16.mxu0 0
  %2252 = vmatpush1.bf16.msra.mxu0 0
  %2253 = vmatprep.subr.bf16.mxu0 0
  %2254 = vmatpush1.bf16.msra.mxu0 0
  %2255 = vmatprep.subr.bf16.mxu0 0
  %2256 = vmatpush1.bf16.msra.mxu0 0
  %2257 = vmatprep.subr.bf16.mxu0 0
  %2258 = vmatpush1.bf16.msra.mxu0 0
  %2259 = vmatprep.subr.bf16.mxu0 0
  %2260 = vmatpush1.bf16.msra.mxu0 0
  %2261 = vmatprep.mubr.bf16.mxu0 0
  %2262 = vmatmul.mubr.bf16.gmra.mrb[0].mxu0 %v2148
  %v2263 = vpop.f32.mrb[0].mxu0
  %v2264 = vadd.f32 0.0, %v2263
  %v2265 = vpop.f32.mrb[0].mxu0
  %v2266 = vpop.f32.mrb[0].mxu0
  %v2267 = vadd.f32 0.0, %v2266
  %v2268 = vpop.f32.mrb[0].mxu0
  %2269 = vmatprep.mubr.bf16.mxu0 0
  %2270 = vmatmul.mubr.bf16.gmra.mrb[0].mxu0 %v2149
  %v2271 = vpop.f32.mrb[0].mxu0
  %v2272 = vadd.f32 0.0, %v2271
  %v2273 = vpop.f32.mrb[0].mxu0
  %v2274 = vpop.f32.mrb[0].mxu0
  %v2275 = vadd.f32 0.0, %v2274
  %v2276 = vpop.f32.mrb[0].mxu0
  %2277 = vmatprep.mubr.bf16.mxu0 0
  %2278 = vmatmul.mubr.bf16.gmra.mrb[0].mxu0 %v2150
  %v2279 = vpop.f32.mrb[0].mxu0
  %v2280 = vadd.f32 0.0, %v2279
  %v2281 = vpop.f32.mrb[0].mxu0
  %v2282 = vpop.f32.mrb[0].mxu0
  %v2283 = vadd.f32 0.0, %v2282
  %v2284 = vpop.f32.mrb[0].mxu0
  %2285 = vmatprep.mubr.bf16.mxu0 0
  %2286 = vmatmul.mubr.bf16.gmra.mrb[0].mxu0 %v2151
  %v2287 = vpop.f32.mrb[0].mxu0
  %v2288 = vadd.f32 0.0, %v2287
  %v2289 = vpop.f32.mrb[0].mxu0
  %v2290 = vpop.f32.mrb[0].mxu0
  %v2291 = vadd.f32 0.0, %v2290
  %v2292 = vpop.f32.mrb[0].mxu0
  %2293 = vmatprep.mubr.bf16.mxu0 0
  %2294 = vmatmul.mubr.bf16.gmra.mrb[0].mxu0 %v2152
  %v2295 = vpop.f32.mrb[0].mxu0
  %v2296 = vadd.f32 0.0, %v2295
  %v2297 = vpop.f32.mrb[0].mxu0
  %v2298 = vpop.f32.mrb[0].mxu0
  %v2299 = vadd.f32 0.0, %v2298
  %v2300 = vpop.f32.mrb[0].mxu0
  %2301 = vmatprep.mubr.bf16.mxu0 0
  %2302 = vmatmul.mubr.bf16.gmra.mrb[0].mxu0 %v2153
  %v2303 = vpop.f32.mrb[0].mxu0
  %v2304 = vadd.f32 0.0, %v2303
  %v2305 = vpop.f32.mrb[0].mxu0
  %v2306 = vpop.f32.mrb[0].mxu0
  %v2307 = vadd.f32 0.0, %v2306
  %v2308 = vpop.f32.mrb[0].mxu0
  %2309 = vmatprep.mubr.bf16.mxu0 0
  %2310 = vmatmul.mubr.bf16.gmra.mrb[0].mxu0 %v2154
  %v2311 = vpop.f32.mrb[0].mxu0
  %v2312 = vadd.f32 0.0, %v2311
  %v2313 = vpop.f32.mrb[0].mxu0
  %v2314 = vpop.f32.mrb[0].mxu0
  %v2315 = vadd.f32 0.0, %v2314
  %v2316 = vpop.f32.mrb[0].mxu0
  %2317 = vmatprep.mubr.bf16.mxu0 0
  %2318 = vmatmul.mubr.bf16.gmra.mrb[0].mxu0 %v2155
  %v2319 = vpop.f32.mrb[0].mxu0
  %v2320 = vadd.f32 0.0, %v2319
  %v2321 = vpop.f32.mrb[0].mxu0
  %v2322 = vpop.f32.mrb[0].mxu0
  %v2323 = vadd.f32 0.0, %v2322
  %v2324 = vpop.f32.mrb[0].mxu0
  %2325 = vmatprep.mubr.bf16.mxu0 0
  %2326 = vmatmul.mubr.bf16.gmra.mrb[0].mxu0 %v2156
  %v2327 = vpop.f32.mrb[0].mxu0
  %v2328 = vadd.f32 0.0, %v2327
  %v2329 = vpop.f32.mrb[0].mxu0
  %v2330 = vpop.f32.mrb[0].mxu0
  %v2331 = vadd.f32 0.0, %v2330
  %v2332 = vpop.f32.mrb[0].mxu0
  %2333 = vmatprep.mubr.bf16.mxu0 0
  %2334 = vmatmul.mubr.bf16.gmra.mrb[0].mxu0 %v2157
  %v2335 = vpop.f32.mrb[0].mxu0
  %v2336 = vadd.f32 0.0, %v2335
  %v2337 = vpop.f32.mrb[0].mxu0
  %v2338 = vpop.f32.mrb[0].mxu0
  %v2339 = vadd.f32 0.0, %v2338
  %v2340 = vpop.f32.mrb[0].mxu0
  %2341 = vmatprep.mubr.bf16.mxu0 0
  %2342 = vmatmul.mubr.bf16.gmra.mrb[0].mxu0 %v2158
  %v2343 = vpop.f32.mrb[0].mxu0
  %v2344 = vadd.f32 0.0, %v2343
  %v2345 = vpop.f32.mrb[0].mxu0
  %v2346 = vpop.f32.mrb[0].mxu0
  %v2347 = vadd.f32 0.0, %v2346
  %v2348 = vpop.f32.mrb[0].mxu0
  %2349 = vmatprep.mubr.bf16.mxu0 0
  %2350 = vmatmul.mubr.bf16.gmra.mrb[0].mxu0 %v2159
  %v2351 = vpop.f32.mrb[0].mxu0
  %v2352 = vadd.f32 0.0, %v2351
  %v2353 = vpop.f32.mrb[0].mxu0
  %v2354 = vpop.f32.mrb[0].mxu0
  %v2355 = vadd.f32 0.0, %v2354
  %v2356 = vpop.f32.mrb[0].mxu0
  %2357 = vmatprep.mubr.bf16.mxu0 0
  %2358 = vmatmul.mubr.bf16.gmra.mrb[0].mxu0 %v2160
  %v2359 = vpop.f32.mrb[0].mxu0
  %v2360 = vadd.f32 0.0, %v2359
  %v2361 = vpop.f32.mrb[0].mxu0
  %v2362 = vpop.f32.mrb[0].mxu0
  %v2363 = vadd.f32 0.0, %v2362
  %v2364 = vpop.f32.mrb[0].mxu0
  %2365 = vmatprep.mubr.bf16.mxu0 0
  %2366 = vmatmul.mubr.bf16.gmra.mrb[0].mxu0 %v2161
  %v2367 = vpop.f32.mrb[0].mxu0
  %v2368 = vadd.f32 0.0, %v2367
  %v2369 = vpop.f32.mrb[0].mxu0
  %v2370 = vpop.f32.mrb[0].mxu0
  %v2371 = vadd.f32 0.0, %v2370
  %v2372 = vpop.f32.mrb[0].mxu0
  %2373 = vmatprep.mubr.bf16.mxu0 0
  %2374 = vmatmul.mubr.bf16.gmra.mrb[0].mxu0 %v2162
  %v2375 = vpop.f32.mrb[0].mxu0
  %v2376 = vadd.f32 0.0, %v2375
  %v2377 = vpop.f32.mrb[0].mxu0
  %v2378 = vpop.f32.mrb[0].mxu0
  %v2379 = vadd.f32 0.0, %v2378
  %v2380 = vpop.f32.mrb[0].mxu0
  %2381 = vmatprep.mubr.bf16.mxu0 0
  %2382 = vmatmul.mubr.bf16.gmra.mrb[0].mxu0 %v2163
  %v2383 = vpop.f32.mrb[0].mxu0
  %v2384 = vadd.f32 0.0, %v2383
  %v2385 = vpop.f32.mrb[0].mxu0
  %v2386 = vpop.f32.mrb[0].mxu0
  %v2387 = vadd.f32 0.0, %v2386
  %v2388 = vpop.f32.mrb[0].mxu0
  %2389 = vdwg.mxu0
  %v2390 = vadd.f32 %v1794, %v2264
  %v2391 = vadd.f32 %v1795, %v2267
  %v2392 = vadd.f32 %v1796, %v2272
  %v2393 = vadd.f32 %v1797, %v2275
  %v2394 = vadd.f32 %v1798, %v2280
  %v2395 = vadd.f32 %v1799, %v2283
  %v2396 = vadd.f32 %v1800, %v2288
  %v2397 = vadd.f32 %v1801, %v2291
  %v2398 = vadd.f32 %v1802, %v2296
  %v2399 = vadd.f32 %v1803, %v2299
  %v2400 = vadd.f32 %v1804, %v2304
  %v2401 = vadd.f32 %v1805, %v2307
  %v2402 = vadd.f32 %v1806, %v2312
  %v2403 = vadd.f32 %v1807, %v2315
  %v2404 = vadd.f32 %v1808, %v2320
  %v2405 = vadd.f32 %v1809, %v2323
  %v2406 = vadd.f32 %v1810, %v2328
  %v2407 = vadd.f32 %v1811, %v2331
  %v2408 = vadd.f32 %v1812, %v2336
  %v2409 = vadd.f32 %v1813, %v2339
  %v2410 = vadd.f32 %v1814, %v2344
  %v2411 = vadd.f32 %v1815, %v2347
  %v2412 = vadd.f32 %v1816, %v2352
  %v2413 = vadd.f32 %v1817, %v2355
  %v2414 = vadd.f32 %v1818, %v2360
  %v2415 = vadd.f32 %v1819, %v2363
  %v2416 = vadd.f32 %v1820, %v2368
  %v2417 = vadd.f32 %v1821, %v2371
  %v2418 = vadd.f32 %v1822, %v2376
  %v2419 = vadd.f32 %v1823, %v2379
  %v2420 = vadd.f32 %v1824, %v2384
  %v2421 = vadd.f32 %v1825, %v2387
  %s2422 = scalar_lea.vmem %s0, 512
  %v2423 = vld [vmem:[%s2422] sm:$0xf]
  %v2424 = vld [vmem:[%s2422 + $0x4] sm:$0xf]
  %v2425 = vld [vmem:[%s2422 + $0x8] sm:$0xf]
  %v2426 = vld [vmem:[%s2422 + $0xc] sm:$0xf]
  %v2427 = vld [vmem:[%s2422 + $0x10] sm:$0xf]
  %v2428 = vld [vmem:[%s2422 + $0x14] sm:$0xf]
  %v2429 = vld [vmem:[%s2422 + $0x18] sm:$0xf]
  %v2430 = vld [vmem:[%s2422 + $0x1c] sm:$0xf]
  %v2431 = vld [vmem:[%s2422 + $0x20] sm:$0xf]
  %v2432 = vld [vmem:[%s2422 + $0x24] sm:$0xf]
  %v2433 = vld [vmem:[%s2422 + $0x28] sm:$0xf]
  %v2434 = vld [vmem:[%s2422 + $0x2c] sm:$0xf]
  %v2435 = vld [vmem:[%s2422 + $0x30] sm:$0xf]
  %v2436 = vld [vmem:[%s2422 + $0x34] sm:$0xf]
  %v2437 = vld [vmem:[%s2422 + $0x38] sm:$0xf]
  %v2438 = vld [vmem:[%s2422 + $0x3c] sm:$0xf]
  %v2439 = vld [vmem:[%s2422 + $0x40] sm:$0xf]
  %v2440 = vld [vmem:[%s2422 + $0x44] sm:$0xf]
  %v2441 = vld [vmem:[%s2422 + $0x48] sm:$0xf]
  %v2442 = vld [vmem:[%s2422 + $0x4c] sm:$0xf]
  %v2443 = vld [vmem:[%s2422 + $0x50] sm:$0xf]
  %v2444 = vld [vmem:[%s2422 + $0x54] sm:$0xf]
  %v2445 = vld [vmem:[%s2422 + $0x58] sm:$0xf]
  %v2446 = vld [vmem:[%s2422 + $0x5c] sm:$0xf]
  %v2447 = vld [vmem:[%s2422 + $0x60] sm:$0xf]
  %v2448 = vld [vmem:[%s2422 + $0x64] sm:$0xf]
  %v2449 = vld [vmem:[%s2422 + $0x68] sm:$0xf]
  %v2450 = vld [vmem:[%s2422 + $0x6c] sm:$0xf]
  %v2451 = vld [vmem:[%s2422 + $0x70] sm:$0xf]
  %v2452 = vld [vmem:[%s2422 + $0x74] sm:$0xf]
  %v2453 = vld [vmem:[%s2422 + $0x78] sm:$0xf]
  %v2454 = vld [vmem:[%s2422 + $0x7c] sm:$0xf]
  %v2487 = vunpack.c.l.b16 %v2423
  %v2488 = vunpack.c.l.b16 %v2424
  %v2489 = vunpack.c.l.b16 %v2425
  %v2490 = vunpack.c.l.b16 %v2426
  %v2491 = vunpack.c.l.b16 %v2427
  %v2492 = vunpack.c.l.b16 %v2428
  %v2493 = vunpack.c.l.b16 %v2429
  %v2494 = vunpack.c.l.b16 %v2430
  %v2495 = vunpack.c.l.b16 %v2431
  %v2496 = vunpack.c.l.b16 %v2432
  %v2497 = vunpack.c.l.b16 %v2433
  %v2498 = vunpack.c.l.b16 %v2434
  %v2499 = vunpack.c.l.b16 %v2435
  %v2500 = vunpack.c.l.b16 %v2436
  %v2501 = vunpack.c.l.b16 %v2437
  %v2502 = vunpack.c.l.b16 %v2438
  %v2503 = vunpack.c.l.b16 %v2439
  %v2504 = vunpack.c.l.b16 %v2440
  %v2505 = vunpack.c.l.b16 %v2441
  %v2506 = vunpack.c.l.b16 %v2442
  %v2507 = vunpack.c.l.b16 %v2443
  %v2508 = vunpack.c.l.b16 %v2444
  %v2509 = vunpack.c.l.b16 %v2445
  %v2510 = vunpack.c.l.b16 %v2446
  %v2511 = vunpack.c.l.b16 %v2447
  %v2512 = vunpack.c.l.b16 %v2448
  %v2513 = vunpack.c.l.b16 %v2449
  %v2514 = vunpack.c.l.b16 %v2450
  %v2515 = vunpack.c.l.b16 %v2451
  %v2516 = vunpack.c.l.b16 %v2452
  %v2517 = vunpack.c.l.b16 %v2453
  %v2518 = vunpack.c.l.b16 %v2454
  %v2519 = vpack.c.b16 %v2488, %v2487
  %v2520 = vpack.c.b16 %v2490, %v2489
  %v2521 = vpack.c.b16 %v2492, %v2491
  %v2522 = vpack.c.b16 %v2494, %v2493
  %v2523 = vpack.c.b16 %v2496, %v2495
  %v2524 = vpack.c.b16 %v2498, %v2497
  %v2525 = vpack.c.b16 %v2500, %v2499
  %v2526 = vpack.c.b16 %v2502, %v2501
  %v2527 = vpack.c.b16 %v2504, %v2503
  %v2528 = vpack.c.b16 %v2506, %v2505
  %v2529 = vpack.c.b16 %v2508, %v2507
  %v2530 = vpack.c.b16 %v2510, %v2509
  %v2531 = vpack.c.b16 %v2512, %v2511
  %v2532 = vpack.c.b16 %v2514, %v2513
  %v2533 = vpack.c.b16 %v2516, %v2515
  %v2534 = vpack.c.b16 %v2518, %v2517
  %2551 = vmatprep.subr.bf16.mxu0 0
  %2552 = vmatpush1.bf16.msra.mxu0 %v216
  %2553 = vmatprep.subr.bf16.mxu0 0
  %2554 = vmatpush1.bf16.msra.mxu0 %v217
  %2555 = vmatprep.subr.bf16.mxu0 0
  %2556 = vmatpush1.bf16.msra.mxu0 %v218
  %2557 = vmatprep.subr.bf16.mxu0 0
  %2558 = vmatpush1.bf16.msra.mxu0 %v219
  %2559 = vmatprep.subr.bf16.mxu0 0
  %2560 = vmatpush1.bf16.msra.mxu0 %v220
  %2561 = vmatprep.subr.bf16.mxu0 0
  %2562 = vmatpush1.bf16.msra.mxu0 %v221
  %2563 = vmatprep.subr.bf16.mxu0 0
  %2564 = vmatpush1.bf16.msra.mxu0 %v222
  %2565 = vmatprep.subr.bf16.mxu0 0
  %2566 = vmatpush1.bf16.msra.mxu0 %v223
  %2567 = vmatprep.subr.bf16.mxu0 0
  %2568 = vmatpush1.bf16.msra.mxu0 0
  %2569 = vmatprep.subr.bf16.mxu0 0
  %2570 = vmatpush1.bf16.msra.mxu0 0
  %2571 = vmatprep.subr.bf16.mxu0 0
  %2572 = vmatpush1.bf16.msra.mxu0 0
  %2573 = vmatprep.subr.bf16.mxu0 0
  %2574 = vmatpush1.bf16.msra.mxu0 0
  %2575 = vmatprep.subr.bf16.mxu0 0
  %2576 = vmatpush1.bf16.msra.mxu0 0
  %2577 = vmatprep.subr.bf16.mxu0 0
  %2578 = vmatpush1.bf16.msra.mxu0 0
  %2579 = vmatprep.subr.bf16.mxu0 0
  %2580 = vmatpush1.bf16.msra.mxu0 0
  %2581 = vmatprep.subr.bf16.mxu0 0
  %2582 = vmatpush1.bf16.msra.mxu0 0
  %2583 = vmatprep.mubr.bf16.mxu0 0
  %2584 = vmatmul.mubr.bf16.gmra.mrb[0].mxu0 %v2519
  %v2585 = vpop.f32.mrb[0].mxu0
  %v2586 = vadd.f32 %v86, %v2585
  %v2587 = vpop.f32.mrb[0].mxu0
  %v2588 = vpop.f32.mrb[0].mxu0
  %v2589 = vadd.f32 %v86, %v2588
  %v2590 = vpop.f32.mrb[0].mxu0
  %2591 = vmatprep.mubr.bf16.mxu0 0
  %2592 = vmatmul.mubr.bf16.gmra.mrb[0].mxu0 %v2520
  %v2593 = vpop.f32.mrb[0].mxu0
  %v2594 = vadd.f32 %v86, %v2593
  %v2595 = vpop.f32.mrb[0].mxu0
  %v2596 = vpop.f32.mrb[0].mxu0
  %v2597 = vadd.f32 %v86, %v2596
  %v2598 = vpop.f32.mrb[0].mxu0
  %2599 = vmatprep.mubr.bf16.mxu0 0
  %2600 = vmatmul.mubr.bf16.gmra.mrb[0].mxu0 %v2521
  %v2601 = vpop.f32.mrb[0].mxu0
  %v2602 = vadd.f32 %v86, %v2601
  %v2603 = vpop.f32.mrb[0].mxu0
  %v2604 = vpop.f32.mrb[0].mxu0
  %v2605 = vadd.f32 %v86, %v2604
  %v2606 = vpop.f32.mrb[0].mxu0
  %2607 = vmatprep.mubr.bf16.mxu0 0
  %2608 = vmatmul.mubr.bf16.gmra.mrb[0].mxu0 %v2522
  %v2609 = vpop.f32.mrb[0].mxu0
  %v2610 = vadd.f32 %v86, %v2609
  %v2611 = vpop.f32.mrb[0].mxu0
  %v2612 = vpop.f32.mrb[0].mxu0
  %v2613 = vadd.f32 %v86, %v2612
  %v2614 = vpop.f32.mrb[0].mxu0
  %2615 = vmatprep.mubr.bf16.mxu0 0
  %2616 = vmatmul.mubr.bf16.gmra.mrb[0].mxu0 %v2523
  %v2617 = vpop.f32.mrb[0].mxu0
  %v2618 = vadd.f32 %v86, %v2617
  %v2619 = vpop.f32.mrb[0].mxu0
  %v2620 = vpop.f32.mrb[0].mxu0
  %v2621 = vadd.f32 %v86, %v2620
  %v2622 = vpop.f32.mrb[0].mxu0
  %2623 = vmatprep.mubr.bf16.mxu0 0
  %2624 = vmatmul.mubr.bf16.gmra.mrb[0].mxu0 %v2524
  %v2625 = vpop.f32.mrb[0].mxu0
  %v2626 = vadd.f32 %v86, %v2625
  %v2627 = vpop.f32.mrb[0].mxu0
  %v2628 = vpop.f32.mrb[0].mxu0
  %v2629 = vadd.f32 %v86, %v2628
  %v2630 = vpop.f32.mrb[0].mxu0
  %2631 = vmatprep.mubr.bf16.mxu0 0
  %2632 = vmatmul.mubr.bf16.gmra.mrb[0].mxu0 %v2525
  %v2633 = vpop.f32.mrb[0].mxu0
  %v2634 = vadd.f32 %v86, %v2633
  %v2635 = vpop.f32.mrb[0].mxu0
  %v2636 = vpop.f32.mrb[0].mxu0
  %v2637 = vadd.f32 %v86, %v2636
  %v2638 = vpop.f32.mrb[0].mxu0
  %2639 = vmatprep.mubr.bf16.mxu0 0
  %2640 = vmatmul.mubr.bf16.gmra.mrb[0].mxu0 %v2526
  %v2641 = vpop.f32.mrb[0].mxu0
  %v2642 = vadd.f32 %v86, %v2641
  %v2643 = vpop.f32.mrb[0].mxu0
  %v2644 = vpop.f32.mrb[0].mxu0
  %v2645 = vadd.f32 %v86, %v2644
  %v2646 = vpop.f32.mrb[0].mxu0
  %2647 = vmatprep.mubr.bf16.mxu0 0
  %2648 = vmatmul.mubr.bf16.gmra.mrb[0].mxu0 %v2527
  %v2649 = vpop.f32.mrb[0].mxu0
  %v2650 = vadd.f32 %v86, %v2649
  %v2651 = vpop.f32.mrb[0].mxu0
  %v2652 = vpop.f32.mrb[0].mxu0
  %v2653 = vadd.f32 %v86, %v2652
  %v2654 = vpop.f32.mrb[0].mxu0
  %2655 = vmatprep.mubr.bf16.mxu0 0
  %2656 = vmatmul.mubr.bf16.gmra.mrb[0].mxu0 %v2528
  %v2657 = vpop.f32.mrb[0].mxu0
  %v2658 = vadd.f32 %v86, %v2657
  %v2659 = vpop.f32.mrb[0].mxu0
  %v2660 = vpop.f32.mrb[0].mxu0
  %v2661 = vadd.f32 %v86, %v2660
  %v2662 = vpop.f32.mrb[0].mxu0
  %2663 = vmatprep.mubr.bf16.mxu0 0
  %2664 = vmatmul.mubr.bf16.gmra.mrb[0].mxu0 %v2529
  %v2665 = vpop.f32.mrb[0].mxu0
  %v2666 = vadd.f32 %v86, %v2665
  %v2667 = vpop.f32.mrb[0].mxu0
  %v2668 = vpop.f32.mrb[0].mxu0
  %v2669 = vadd.f32 %v86, %v2668
  %v2670 = vpop.f32.mrb[0].mxu0
  %2671 = vmatprep.mubr.bf16.mxu0 0
  %2672 = vmatmul.mubr.bf16.gmra.mrb[0].mxu0 %v2530
  %v2673 = vpop.f32.mrb[0].mxu0
  %v2674 = vadd.f32 %v86, %v2673
  %v2675 = vpop.f32.mrb[0].mxu0
  %v2676 = vpop.f32.mrb[0].mxu0
  %v2677 = vadd.f32 %v86, %v2676
  %v2678 = vpop.f32.mrb[0].mxu0
  %2679 = vmatprep.mubr.bf16.mxu0 0
  %2680 = vmatmul.mubr.bf16.gmra.mrb[0].mxu0 %v2531
  %v2681 = vpop.f32.mrb[0].mxu0
  %v2682 = vadd.f32 %v86, %v2681
  %v2683 = vpop.f32.mrb[0].mxu0
  %v2684 = vpop.f32.mrb[0].mxu0
  %v2685 = vadd.f32 %v86, %v2684
  %v2686 = vpop.f32.mrb[0].mxu0
  %2687 = vmatprep.mubr.bf16.mxu0 0
  %2688 = vmatmul.mubr.bf16.gmra.mrb[0].mxu0 %v2532
  %v2689 = vpop.f32.mrb[0].mxu0
  %v2690 = vadd.f32 %v86, %v2689
  %v2691 = vpop.f32.mrb[0].mxu0
  %v2692 = vpop.f32.mrb[0].mxu0
  %v2693 = vadd.f32 %v86, %v2692
  %v2694 = vpop.f32.mrb[0].mxu0
  %2695 = vmatprep.mubr.bf16.mxu0 0
  %2696 = vmatmul.mubr.bf16.gmra.mrb[0].mxu0 %v2533
  %v2697 = vpop.f32.mrb[0].mxu0
  %v2698 = vadd.f32 %v86, %v2697
  %v2699 = vpop.f32.mrb[0].mxu0
  %v2700 = vpop.f32.mrb[0].mxu0
  %v2701 = vadd.f32 %v86, %v2700
  %v2702 = vpop.f32.mrb[0].mxu0
  %2703 = vmatprep.mubr.bf16.mxu0 0
  %2704 = vmatmul.mubr.bf16.gmra.mrb[0].mxu0 %v2534
  %v2705 = vpop.f32.mrb[0].mxu0
  %v2706 = vadd.f32 %v86, %v2705
  %v2707 = vpop.f32.mrb[0].mxu0
  %v2708 = vpop.f32.mrb[0].mxu0
  %v2709 = vadd.f32 %v86, %v2708
  %v2710 = vpop.f32.mrb[0].mxu0
  %2711 = vdwg.mxu0
  %v2712 = vmax.f32 %v2586, 0.0
  %v2713 = vmax.f32 %v2589, 0.0
  %v2714 = vmax.f32 %v2594, 0.0
  %v2715 = vmax.f32 %v2597, 0.0
  %v2716 = vmax.f32 %v2602, 0.0
  %v2717 = vmax.f32 %v2605, 0.0
  %v2718 = vmax.f32 %v2610, 0.0
  %v2719 = vmax.f32 %v2613, 0.0
  %v2720 = vmax.f32 %v2618, 0.0
  %v2721 = vmax.f32 %v2621, 0.0
  %v2722 = vmax.f32 %v2626, 0.0
  %v2723 = vmax.f32 %v2629, 0.0
  %v2724 = vmax.f32 %v2634, 0.0
  %v2725 = vmax.f32 %v2637, 0.0
  %v2726 = vmax.f32 %v2642, 0.0
  %v2727 = vmax.f32 %v2645, 0.0
  %v2728 = vmax.f32 %v2650, 0.0
  %v2729 = vmax.f32 %v2653, 0.0
  %v2730 = vmax.f32 %v2658, 0.0
  %v2731 = vmax.f32 %v2661, 0.0
  %v2732 = vmax.f32 %v2666, 0.0
  %v2733 = vmax.f32 %v2669, 0.0
  %v2734 = vmax.f32 %v2674, 0.0
  %v2735 = vmax.f32 %v2677, 0.0
  %v2736 = vmax.f32 %v2682, 0.0
  %v2737 = vmax.f32 %v2685, 0.0
  %v2738 = vmax.f32 %v2690, 0.0
  %v2739 = vmax.f32 %v2693, 0.0
  %v2740 = vmax.f32 %v2698, 0.0
  %v2741 = vmax.f32 %v2701, 0.0
  %v2742 = vmax.f32 %v2706, 0.0
  %v2743 = vmax.f32 %v2709, 0.0
  %v2744 = vpack.c.bf16 %v2713, %v2712
  %v2745 = vpack.c.bf16 %v2715, %v2714
  %v2746 = vpack.c.bf16 %v2717, %v2716
  %v2747 = vpack.c.bf16 %v2719, %v2718
  %v2748 = vpack.c.bf16 %v2721, %v2720
  %v2749 = vpack.c.bf16 %v2723, %v2722
  %v2750 = vpack.c.bf16 %v2725, %v2724
  %v2751 = vpack.c.bf16 %v2727, %v2726
  %v2752 = vpack.c.bf16 %v2729, %v2728
  %v2753 = vpack.c.bf16 %v2731, %v2730
  %v2754 = vpack.c.bf16 %v2733, %v2732
  %v2755 = vpack.c.bf16 %v2735, %v2734
  %v2756 = vpack.c.bf16 %v2737, %v2736
  %v2757 = vpack.c.bf16 %v2739, %v2738
  %v2758 = vpack.c.bf16 %v2741, %v2740
  %v2759 = vpack.c.bf16 %v2743, %v2742
  %s2760 = scalar_lea.vmem %s3, 256
  %v2761 = vld [vmem:[%s2760] sm:$0xf]
  %v2762 = vld [vmem:[%s2760 + $0x4] sm:$0xf]
  %v2763 = vld [vmem:[%s2760 + $0x8] sm:$0xf]
  %v2764 = vld [vmem:[%s2760 + $0xc] sm:$0xf]
  %v2765 = vld [vmem:[%s2760 + $0x10] sm:$0xf]
  %v2766 = vld [vmem:[%s2760 + $0x14] sm:$0xf]
  %v2767 = vld [vmem:[%s2760 + $0x18] sm:$0xf]
  %v2768 = vld [vmem:[%s2760 + $0x1c] sm:$0xf]
  %v2769 = vld [vmem:[%s2760 + $0x20] sm:$0xf]
  %v2770 = vld [vmem:[%s2760 + $0x24] sm:$0xf]
  %v2771 = vld [vmem:[%s2760 + $0x28] sm:$0xf]
  %v2772 = vld [vmem:[%s2760 + $0x2c] sm:$0xf]
  %v2773 = vld [vmem:[%s2760 + $0x30] sm:$0xf]
  %v2774 = vld [vmem:[%s2760 + $0x34] sm:$0xf]
  %v2775 = vld [vmem:[%s2760 + $0x38] sm:$0xf]
  %v2776 = vld [vmem:[%s2760 + $0x3c] sm:$0xf]
  %v2793 = vunpack.c.l.b16 %v2761
  %v2794 = vunpack.c.l.b16 %v2762
  %v2795 = vunpack.c.l.b16 %v2763
  %v2796 = vunpack.c.l.b16 %v2764
  %v2797 = vunpack.c.l.b16 %v2765
  %v2798 = vunpack.c.l.b16 %v2766
  %v2799 = vunpack.c.l.b16 %v2767
  %v2800 = vunpack.c.l.b16 %v2768
  %v2801 = vunpack.c.l.b16 %v2769
  %v2802 = vunpack.c.l.b16 %v2770
  %v2803 = vunpack.c.l.b16 %v2771
  %v2804 = vunpack.c.l.b16 %v2772
  %v2805 = vunpack.c.l.b16 %v2773
  %v2806 = vunpack.c.l.b16 %v2774
  %v2807 = vunpack.c.l.b16 %v2775
  %v2808 = vunpack.c.l.b16 %v2776
  %v2809 = vpack.c.b16 %v2794, %v2793
  %v2810 = vpack.c.b16 %v2796, %v2795
  %v2811 = vpack.c.b16 %v2798, %v2797
  %v2812 = vpack.c.b16 %v2800, %v2799
  %v2813 = vpack.c.b16 %v2802, %v2801
  %v2814 = vpack.c.b16 %v2804, %v2803
  %v2815 = vpack.c.b16 %v2806, %v2805
  %v2816 = vpack.c.b16 %v2808, %v2807
  %2825 = vmatprep.subr.bf16.mxu0 0
  %2826 = vmatpush1.bf16.msra.mxu0 %v2809
  %2827 = vmatprep.subr.bf16.mxu0 0
  %2828 = vmatpush1.bf16.msra.mxu0 %v2810
  %2829 = vmatprep.subr.bf16.mxu0 0
  %2830 = vmatpush1.bf16.msra.mxu0 %v2811
  %2831 = vmatprep.subr.bf16.mxu0 0
  %2832 = vmatpush1.bf16.msra.mxu0 %v2812
  %2833 = vmatprep.subr.bf16.mxu0 0
  %2834 = vmatpush1.bf16.msra.mxu0 %v2813
  %2835 = vmatprep.subr.bf16.mxu0 0
  %2836 = vmatpush1.bf16.msra.mxu0 %v2814
  %2837 = vmatprep.subr.bf16.mxu0 0
  %2838 = vmatpush1.bf16.msra.mxu0 %v2815
  %2839 = vmatprep.subr.bf16.mxu0 0
  %2840 = vmatpush1.bf16.msra.mxu0 %v2816
  %2841 = vmatprep.subr.bf16.mxu0 0
  %2842 = vmatpush1.bf16.msra.mxu0 0
  %2843 = vmatprep.subr.bf16.mxu0 0
  %2844 = vmatpush1.bf16.msra.mxu0 0
  %2845 = vmatprep.subr.bf16.mxu0 0
  %2846 = vmatpush1.bf16.msra.mxu0 0
  %2847 = vmatprep.subr.bf16.mxu0 0
  %2848 = vmatpush1.bf16.msra.mxu0 0
  %2849 = vmatprep.subr.bf16.mxu0 0
  %2850 = vmatpush1.bf16.msra.mxu0 0
  %2851 = vmatprep.subr.bf16.mxu0 0
  %2852 = vmatpush1.bf16.msra.mxu0 0
  %2853 = vmatprep.subr.bf16.mxu0 0
  %2854 = vmatpush1.bf16.msra.mxu0 0
  %2855 = vmatprep.subr.bf16.mxu0 0
  %2856 = vmatpush1.bf16.msra.mxu0 0
  %2857 = vmatprep.mubr.bf16.mxu0 0
  %2858 = vmatmul.mubr.bf16.gmra.mrb[0].mxu0 %v2744
  %v2859 = vpop.f32.mrb[0].mxu0
  %v2860 = vadd.f32 0.0, %v2859
  %v2861 = vpop.f32.mrb[0].mxu0
  %v2862 = vpop.f32.mrb[0].mxu0
  %v2863 = vadd.f32 0.0, %v2862
  %v2864 = vpop.f32.mrb[0].mxu0
  %2865 = vmatprep.mubr.bf16.mxu0 0
  %2866 = vmatmul.mubr.bf16.gmra.mrb[0].mxu0 %v2745
  %v2867 = vpop.f32.mrb[0].mxu0
  %v2868 = vadd.f32 0.0, %v2867
  %v2869 = vpop.f32.mrb[0].mxu0
  %v2870 = vpop.f32.mrb[0].mxu0
  %v2871 = vadd.f32 0.0, %v2870
  %v2872 = vpop.f32.mrb[0].mxu0
  %2873 = vmatprep.mubr.bf16.mxu0 0
  %2874 = vmatmul.mubr.bf16.gmra.mrb[0].mxu0 %v2746
  %v2875 = vpop.f32.mrb[0].mxu0
  %v2876 = vadd.f32 0.0, %v2875
  %v2877 = vpop.f32.mrb[0].mxu0
  %v2878 = vpop.f32.mrb[0].mxu0
  %v2879 = vadd.f32 0.0, %v2878
  %v2880 = vpop.f32.mrb[0].mxu0
  %2881 = vmatprep.mubr.bf16.mxu0 0
  %2882 = vmatmul.mubr.bf16.gmra.mrb[0].mxu0 %v2747
  %v2883 = vpop.f32.mrb[0].mxu0
  %v2884 = vadd.f32 0.0, %v2883
  %v2885 = vpop.f32.mrb[0].mxu0
  %v2886 = vpop.f32.mrb[0].mxu0
  %v2887 = vadd.f32 0.0, %v2886
  %v2888 = vpop.f32.mrb[0].mxu0
  %2889 = vmatprep.mubr.bf16.mxu0 0
  %2890 = vmatmul.mubr.bf16.gmra.mrb[0].mxu0 %v2748
  %v2891 = vpop.f32.mrb[0].mxu0
  %v2892 = vadd.f32 0.0, %v2891
  %v2893 = vpop.f32.mrb[0].mxu0
  %v2894 = vpop.f32.mrb[0].mxu0
  %v2895 = vadd.f32 0.0, %v2894
  %v2896 = vpop.f32.mrb[0].mxu0
  %2897 = vmatprep.mubr.bf16.mxu0 0
  %2898 = vmatmul.mubr.bf16.gmra.mrb[0].mxu0 %v2749
  %v2899 = vpop.f32.mrb[0].mxu0
  %v2900 = vadd.f32 0.0, %v2899
  %v2901 = vpop.f32.mrb[0].mxu0
  %v2902 = vpop.f32.mrb[0].mxu0
  %v2903 = vadd.f32 0.0, %v2902
  %v2904 = vpop.f32.mrb[0].mxu0
  %2905 = vmatprep.mubr.bf16.mxu0 0
  %2906 = vmatmul.mubr.bf16.gmra.mrb[0].mxu0 %v2750
  %v2907 = vpop.f32.mrb[0].mxu0
  %v2908 = vadd.f32 0.0, %v2907
  %v2909 = vpop.f32.mrb[0].mxu0
  %v2910 = vpop.f32.mrb[0].mxu0
  %v2911 = vadd.f32 0.0, %v2910
  %v2912 = vpop.f32.mrb[0].mxu0
  %2913 = vmatprep.mubr.bf16.mxu0 0
  %2914 = vmatmul.mubr.bf16.gmra.mrb[0].mxu0 %v2751
  %v2915 = vpop.f32.mrb[0].mxu0
  %v2916 = vadd.f32 0.0, %v2915
  %v2917 = vpop.f32.mrb[0].mxu0
  %v2918 = vpop.f32.mrb[0].mxu0
  %v2919 = vadd.f32 0.0, %v2918
  %v2920 = vpop.f32.mrb[0].mxu0
  %2921 = vmatprep.mubr.bf16.mxu0 0
  %2922 = vmatmul.mubr.bf16.gmra.mrb[0].mxu0 %v2752
  %v2923 = vpop.f32.mrb[0].mxu0
  %v2924 = vadd.f32 0.0, %v2923
  %v2925 = vpop.f32.mrb[0].mxu0
  %v2926 = vpop.f32.mrb[0].mxu0
  %v2927 = vadd.f32 0.0, %v2926
  %v2928 = vpop.f32.mrb[0].mxu0
  %2929 = vmatprep.mubr.bf16.mxu0 0
  %2930 = vmatmul.mubr.bf16.gmra.mrb[0].mxu0 %v2753
  %v2931 = vpop.f32.mrb[0].mxu0
  %v2932 = vadd.f32 0.0, %v2931
  %v2933 = vpop.f32.mrb[0].mxu0
  %v2934 = vpop.f32.mrb[0].mxu0
  %v2935 = vadd.f32 0.0, %v2934
  %v2936 = vpop.f32.mrb[0].mxu0
  %2937 = vmatprep.mubr.bf16.mxu0 0
  %2938 = vmatmul.mubr.bf16.gmra.mrb[0].mxu0 %v2754
  %v2939 = vpop.f32.mrb[0].mxu0
  %v2940 = vadd.f32 0.0, %v2939
  %v2941 = vpop.f32.mrb[0].mxu0
  %v2942 = vpop.f32.mrb[0].mxu0
  %v2943 = vadd.f32 0.0, %v2942
  %v2944 = vpop.f32.mrb[0].mxu0
  %2945 = vmatprep.mubr.bf16.mxu0 0
  %2946 = vmatmul.mubr.bf16.gmra.mrb[0].mxu0 %v2755
  %v2947 = vpop.f32.mrb[0].mxu0
  %v2948 = vadd.f32 0.0, %v2947
  %v2949 = vpop.f32.mrb[0].mxu0
  %v2950 = vpop.f32.mrb[0].mxu0
  %v2951 = vadd.f32 0.0, %v2950
  %v2952 = vpop.f32.mrb[0].mxu0
  %2953 = vmatprep.mubr.bf16.mxu0 0
  %2954 = vmatmul.mubr.bf16.gmra.mrb[0].mxu0 %v2756
  %v2955 = vpop.f32.mrb[0].mxu0
  %v2956 = vadd.f32 0.0, %v2955
  %v2957 = vpop.f32.mrb[0].mxu0
  %v2958 = vpop.f32.mrb[0].mxu0
  %v2959 = vadd.f32 0.0, %v2958
  %v2960 = vpop.f32.mrb[0].mxu0
  %2961 = vmatprep.mubr.bf16.mxu0 0
  %2962 = vmatmul.mubr.bf16.gmra.mrb[0].mxu0 %v2757
  %v2963 = vpop.f32.mrb[0].mxu0
  %v2964 = vadd.f32 0.0, %v2963
  %v2965 = vpop.f32.mrb[0].mxu0
  %v2966 = vpop.f32.mrb[0].mxu0
  %v2967 = vadd.f32 0.0, %v2966
  %v2968 = vpop.f32.mrb[0].mxu0
  %2969 = vmatprep.mubr.bf16.mxu0 0
  %2970 = vmatmul.mubr.bf16.gmra.mrb[0].mxu0 %v2758
  %v2971 = vpop.f32.mrb[0].mxu0
  %v2972 = vadd.f32 0.0, %v2971
  %v2973 = vpop.f32.mrb[0].mxu0
  %v2974 = vpop.f32.mrb[0].mxu0
  %v2975 = vadd.f32 0.0, %v2974
  %v2976 = vpop.f32.mrb[0].mxu0
  %2977 = vmatprep.mubr.bf16.mxu0 0
  %2978 = vmatmul.mubr.bf16.gmra.mrb[0].mxu0 %v2759
  %v2979 = vpop.f32.mrb[0].mxu0
  %v2980 = vadd.f32 0.0, %v2979
  %v2981 = vpop.f32.mrb[0].mxu0
  %v2982 = vpop.f32.mrb[0].mxu0
  %v2983 = vadd.f32 0.0, %v2982
  %v2984 = vpop.f32.mrb[0].mxu0
  %2985 = vdwg.mxu0
  %v2986 = vadd.f32 %v2390, %v2860
  %v2987 = vadd.f32 %v2391, %v2863
  %v2988 = vadd.f32 %v2392, %v2868
  %v2989 = vadd.f32 %v2393, %v2871
  %v2990 = vadd.f32 %v2394, %v2876
  %v2991 = vadd.f32 %v2395, %v2879
  %v2992 = vadd.f32 %v2396, %v2884
  %v2993 = vadd.f32 %v2397, %v2887
  %v2994 = vadd.f32 %v2398, %v2892
  %v2995 = vadd.f32 %v2399, %v2895
  %v2996 = vadd.f32 %v2400, %v2900
  %v2997 = vadd.f32 %v2401, %v2903
  %v2998 = vadd.f32 %v2402, %v2908
  %v2999 = vadd.f32 %v2403, %v2911
  %v3000 = vadd.f32 %v2404, %v2916
  %v3001 = vadd.f32 %v2405, %v2919
  %v3002 = vadd.f32 %v2406, %v2924
  %v3003 = vadd.f32 %v2407, %v2927
  %v3004 = vadd.f32 %v2408, %v2932
  %v3005 = vadd.f32 %v2409, %v2935
  %v3006 = vadd.f32 %v2410, %v2940
  %v3007 = vadd.f32 %v2411, %v2943
  %v3008 = vadd.f32 %v2412, %v2948
  %v3009 = vadd.f32 %v2413, %v2951
  %v3010 = vadd.f32 %v2414, %v2956
  %v3011 = vadd.f32 %v2415, %v2959
  %v3012 = vadd.f32 %v2416, %v2964
  %v3013 = vadd.f32 %v2417, %v2967
  %v3014 = vadd.f32 %v2418, %v2972
  %v3015 = vadd.f32 %v2419, %v2975
  %v3016 = vadd.f32 %v2420, %v2980
  %v3017 = vadd.f32 %v2421, %v2983
  %s3018 = scalar_lea.vmem %s0, 640
  %v3019 = vld [vmem:[%s3018] sm:$0xf]
  %v3020 = vld [vmem:[%s3018 + $0x4] sm:$0xf]
  %v3021 = vld [vmem:[%s3018 + $0x8] sm:$0xf]
  %v3022 = vld [vmem:[%s3018 + $0xc] sm:$0xf]
  %v3023 = vld [vmem:[%s3018 + $0x10] sm:$0xf]
  %v3024 = vld [vmem:[%s3018 + $0x14] sm:$0xf]
  %v3025 = vld [vmem:[%s3018 + $0x18] sm:$0xf]
  %v3026 = vld [vmem:[%s3018 + $0x1c] sm:$0xf]
  %v3027 = vld [vmem:[%s3018 + $0x20] sm:$0xf]
  %v3028 = vld [vmem:[%s3018 + $0x24] sm:$0xf]
  %v3029 = vld [vmem:[%s3018 + $0x28] sm:$0xf]
  %v3030 = vld [vmem:[%s3018 + $0x2c] sm:$0xf]
  %v3031 = vld [vmem:[%s3018 + $0x30] sm:$0xf]
  %v3032 = vld [vmem:[%s3018 + $0x34] sm:$0xf]
  %v3033 = vld [vmem:[%s3018 + $0x38] sm:$0xf]
  %v3034 = vld [vmem:[%s3018 + $0x3c] sm:$0xf]
  %v3035 = vld [vmem:[%s3018 + $0x40] sm:$0xf]
  %v3036 = vld [vmem:[%s3018 + $0x44] sm:$0xf]
  %v3037 = vld [vmem:[%s3018 + $0x48] sm:$0xf]
  %v3038 = vld [vmem:[%s3018 + $0x4c] sm:$0xf]
  %v3039 = vld [vmem:[%s3018 + $0x50] sm:$0xf]
  %v3040 = vld [vmem:[%s3018 + $0x54] sm:$0xf]
  %v3041 = vld [vmem:[%s3018 + $0x58] sm:$0xf]
  %v3042 = vld [vmem:[%s3018 + $0x5c] sm:$0xf]
  %v3043 = vld [vmem:[%s3018 + $0x60] sm:$0xf]
  %v3044 = vld [vmem:[%s3018 + $0x64] sm:$0xf]
  %v3045 = vld [vmem:[%s3018 + $0x68] sm:$0xf]
  %v3046 = vld [vmem:[%s3018 + $0x6c] sm:$0xf]
  %v3047 = vld [vmem:[%s3018 + $0x70] sm:$0xf]
  %v3048 = vld [vmem:[%s3018 + $0x74] sm:$0xf]
  %v3049 = vld [vmem:[%s3018 + $0x78] sm:$0xf]
  %v3050 = vld [vmem:[%s3018 + $0x7c] sm:$0xf]
  %v3083 = vunpack.c.l.b16 %v3019
  %v3084 = vunpack.c.l.b16 %v3020
  %v3085 = vunpack.c.l.b16 %v3021
  %v3086 = vunpack.c.l.b16 %v3022
  %v3087 = vunpack.c.l.b16 %v3023
  %v3088 = vunpack.c.l.b16 %v3024
  %v3089 = vunpack.c.l.b16 %v3025
  %v3090 = vunpack.c.l.b16 %v3026
  %v3091 = vunpack.c.l.b16 %v3027
  %v3092 = vunpack.c.l.b16 %v3028
  %v3093 = vunpack.c.l.b16 %v3029
  %v3094 = vunpack.c.l.b16 %v3030
  %v3095 = vunpack.c.l.b16 %v3031
  %v3096 = vunpack.c.l.b16 %v3032
  %v3097 = vunpack.c.l.b16 %v3033
  %v3098 = vunpack.c.l.b16 %v3034
  %v3099 = vunpack.c.l.b16 %v3035
  %v3100 = vunpack.c.l.b16 %v3036
  %v3101 = vunpack.c.l.b16 %v3037
  %v3102 = vunpack.c.l.b16 %v3038
  %v3103 = vunpack.c.l.b16 %v3039
  %v3104 = vunpack.c.l.b16 %v3040
  %v3105 = vunpack.c.l.b16 %v3041
  %v3106 = vunpack.c.l.b16 %v3042
  %v3107 = vunpack.c.l.b16 %v3043
  %v3108 = vunpack.c.l.b16 %v3044
  %v3109 = vunpack.c.l.b16 %v3045
  %v3110 = vunpack.c.l.b16 %v3046
  %v3111 = vunpack.c.l.b16 %v3047
  %v3112 = vunpack.c.l.b16 %v3048
  %v3113 = vunpack.c.l.b16 %v3049
  %v3114 = vunpack.c.l.b16 %v3050
  %v3115 = vpack.c.b16 %v3084, %v3083
  %v3116 = vpack.c.b16 %v3086, %v3085
  %v3117 = vpack.c.b16 %v3088, %v3087
  %v3118 = vpack.c.b16 %v3090, %v3089
  %v3119 = vpack.c.b16 %v3092, %v3091
  %v3120 = vpack.c.b16 %v3094, %v3093
  %v3121 = vpack.c.b16 %v3096, %v3095
  %v3122 = vpack.c.b16 %v3098, %v3097
  %v3123 = vpack.c.b16 %v3100, %v3099
  %v3124 = vpack.c.b16 %v3102, %v3101
  %v3125 = vpack.c.b16 %v3104, %v3103
  %v3126 = vpack.c.b16 %v3106, %v3105
  %v3127 = vpack.c.b16 %v3108, %v3107
  %v3128 = vpack.c.b16 %v3110, %v3109
  %v3129 = vpack.c.b16 %v3112, %v3111
  %v3130 = vpack.c.b16 %v3114, %v3113
  %3147 = vmatprep.subr.bf16.mxu0 0
  %3148 = vmatpush1.bf16.msra.mxu0 %v216
  %3149 = vmatprep.subr.bf16.mxu0 0
  %3150 = vmatpush1.bf16.msra.mxu0 %v217
  %3151 = vmatprep.subr.bf16.mxu0 0
  %3152 = vmatpush1.bf16.msra.mxu0 %v218
  %3153 = vmatprep.subr.bf16.mxu0 0
  %3154 = vmatpush1.bf16.msra.mxu0 %v219
  %3155 = vmatprep.subr.bf16.mxu0 0
  %3156 = vmatpush1.bf16.msra.mxu0 %v220
  %3157 = vmatprep.subr.bf16.mxu0 0
  %3158 = vmatpush1.bf16.msra.mxu0 %v221
  %3159 = vmatprep.subr.bf16.mxu0 0
  %3160 = vmatpush1.bf16.msra.mxu0 %v222
  %3161 = vmatprep.subr.bf16.mxu0 0
  %3162 = vmatpush1.bf16.msra.mxu0 %v223
  %3163 = vmatprep.subr.bf16.mxu0 0
  %3164 = vmatpush1.bf16.msra.mxu0 0
  %3165 = vmatprep.subr.bf16.mxu0 0
  %3166 = vmatpush1.bf16.msra.mxu0 0
  %3167 = vmatprep.subr.bf16.mxu0 0
  %3168 = vmatpush1.bf16.msra.mxu0 0
  %3169 = vmatprep.subr.bf16.mxu0 0
  %3170 = vmatpush1.bf16.msra.mxu0 0
  %3171 = vmatprep.subr.bf16.mxu0 0
  %3172 = vmatpush1.bf16.msra.mxu0 0
  %3173 = vmatprep.subr.bf16.mxu0 0
  %3174 = vmatpush1.bf16.msra.mxu0 0
  %3175 = vmatprep.subr.bf16.mxu0 0
  %3176 = vmatpush1.bf16.msra.mxu0 0
  %3177 = vmatprep.subr.bf16.mxu0 0
  %3178 = vmatpush1.bf16.msra.mxu0 0
  %3179 = vmatprep.mubr.bf16.mxu0 0
  %3180 = vmatmul.mubr.bf16.gmra.mrb[0].mxu0 %v3115
  %v3181 = vpop.f32.mrb[0].mxu0
  %v3182 = vadd.f32 %v86, %v3181
  %v3183 = vpop.f32.mrb[0].mxu0
  %v3184 = vpop.f32.mrb[0].mxu0
  %v3185 = vadd.f32 %v86, %v3184
  %v3186 = vpop.f32.mrb[0].mxu0
  %3187 = vmatprep.mubr.bf16.mxu0 0
  %3188 = vmatmul.mubr.bf16.gmra.mrb[0].mxu0 %v3116
  %v3189 = vpop.f32.mrb[0].mxu0
  %v3190 = vadd.f32 %v86, %v3189
  %v3191 = vpop.f32.mrb[0].mxu0
  %v3192 = vpop.f32.mrb[0].mxu0
  %v3193 = vadd.f32 %v86, %v3192
  %v3194 = vpop.f32.mrb[0].mxu0
  %3195 = vmatprep.mubr.bf16.mxu0 0
  %3196 = vmatmul.mubr.bf16.gmra.mrb[0].mxu0 %v3117
  %v3197 = vpop.f32.mrb[0].mxu0
  %v3198 = vadd.f32 %v86, %v3197
  %v3199 = vpop.f32.mrb[0].mxu0
  %v3200 = vpop.f32.mrb[0].mxu0
  %v3201 = vadd.f32 %v86, %v3200
  %v3202 = vpop.f32.mrb[0].mxu0
  %3203 = vmatprep.mubr.bf16.mxu0 0
  %3204 = vmatmul.mubr.bf16.gmra.mrb[0].mxu0 %v3118
  %v3205 = vpop.f32.mrb[0].mxu0
  %v3206 = vadd.f32 %v86, %v3205
  %v3207 = vpop.f32.mrb[0].mxu0
  %v3208 = vpop.f32.mrb[0].mxu0
  %v3209 = vadd.f32 %v86, %v3208
  %v3210 = vpop.f32.mrb[0].mxu0
  %3211 = vmatprep.mubr.bf16.mxu0 0
  %3212 = vmatmul.mubr.bf16.gmra.mrb[0].mxu0 %v3119
  %v3213 = vpop.f32.mrb[0].mxu0
  %v3214 = vadd.f32 %v86, %v3213
  %v3215 = vpop.f32.mrb[0].mxu0
  %v3216 = vpop.f32.mrb[0].mxu0
  %v3217 = vadd.f32 %v86, %v3216
  %v3218 = vpop.f32.mrb[0].mxu0
  %3219 = vmatprep.mubr.bf16.mxu0 0
  %3220 = vmatmul.mubr.bf16.gmra.mrb[0].mxu0 %v3120
  %v3221 = vpop.f32.mrb[0].mxu0
  %v3222 = vadd.f32 %v86, %v3221
  %v3223 = vpop.f32.mrb[0].mxu0
  %v3224 = vpop.f32.mrb[0].mxu0
  %v3225 = vadd.f32 %v86, %v3224
  %v3226 = vpop.f32.mrb[0].mxu0
  %3227 = vmatprep.mubr.bf16.mxu0 0
  %3228 = vmatmul.mubr.bf16.gmra.mrb[0].mxu0 %v3121
  %v3229 = vpop.f32.mrb[0].mxu0
  %v3230 = vadd.f32 %v86, %v3229
  %v3231 = vpop.f32.mrb[0].mxu0
  %v3232 = vpop.f32.mrb[0].mxu0
  %v3233 = vadd.f32 %v86, %v3232
  %v3234 = vpop.f32.mrb[0].mxu0
  %3235 = vmatprep.mubr.bf16.mxu0 0
  %3236 = vmatmul.mubr.bf16.gmra.mrb[0].mxu0 %v3122
  %v3237 = vpop.f32.mrb[0].mxu0
  %v3238 = vadd.f32 %v86, %v3237
  %v3239 = vpop.f32.mrb[0].mxu0
  %v3240 = vpop.f32.mrb[0].mxu0
  %v3241 = vadd.f32 %v86, %v3240
  %v3242 = vpop.f32.mrb[0].mxu0
  %3243 = vmatprep.mubr.bf16.mxu0 0
  %3244 = vmatmul.mubr.bf16.gmra.mrb[0].mxu0 %v3123
  %v3245 = vpop.f32.mrb[0].mxu0
  %v3246 = vadd.f32 %v86, %v3245
  %v3247 = vpop.f32.mrb[0].mxu0
  %v3248 = vpop.f32.mrb[0].mxu0
  %v3249 = vadd.f32 %v86, %v3248
  %v3250 = vpop.f32.mrb[0].mxu0
  %3251 = vmatprep.mubr.bf16.mxu0 0
  %3252 = vmatmul.mubr.bf16.gmra.mrb[0].mxu0 %v3124
  %v3253 = vpop.f32.mrb[0].mxu0
  %v3254 = vadd.f32 %v86, %v3253
  %v3255 = vpop.f32.mrb[0].mxu0
  %v3256 = vpop.f32.mrb[0].mxu0
  %v3257 = vadd.f32 %v86, %v3256
  %v3258 = vpop.f32.mrb[0].mxu0
  %3259 = vmatprep.mubr.bf16.mxu0 0
  %3260 = vmatmul.mubr.bf16.gmra.mrb[0].mxu0 %v3125
  %v3261 = vpop.f32.mrb[0].mxu0
  %v3262 = vadd.f32 %v86, %v3261
  %v3263 = vpop.f32.mrb[0].mxu0
  %v3264 = vpop.f32.mrb[0].mxu0
  %v3265 = vadd.f32 %v86, %v3264
  %v3266 = vpop.f32.mrb[0].mxu0
  %3267 = vmatprep.mubr.bf16.mxu0 0
  %3268 = vmatmul.mubr.bf16.gmra.mrb[0].mxu0 %v3126
  %v3269 = vpop.f32.mrb[0].mxu0
  %v3270 = vadd.f32 %v86, %v3269
  %v3271 = vpop.f32.mrb[0].mxu0
  %v3272 = vpop.f32.mrb[0].mxu0
  %v3273 = vadd.f32 %v86, %v3272
  %v3274 = vpop.f32.mrb[0].mxu0
  %3275 = vmatprep.mubr.bf16.mxu0 0
  %3276 = vmatmul.mubr.bf16.gmra.mrb[0].mxu0 %v3127
  %v3277 = vpop.f32.mrb[0].mxu0
  %v3278 = vadd.f32 %v86, %v3277
  %v3279 = vpop.f32.mrb[0].mxu0
  %v3280 = vpop.f32.mrb[0].mxu0
  %v3281 = vadd.f32 %v86, %v3280
  %v3282 = vpop.f32.mrb[0].mxu0
  %3283 = vmatprep.mubr.bf16.mxu0 0
  %3284 = vmatmul.mubr.bf16.gmra.mrb[0].mxu0 %v3128
  %v3285 = vpop.f32.mrb[0].mxu0
  %v3286 = vadd.f32 %v86, %v3285
  %v3287 = vpop.f32.mrb[0].mxu0
  %v3288 = vpop.f32.mrb[0].mxu0
  %v3289 = vadd.f32 %v86, %v3288
  %v3290 = vpop.f32.mrb[0].mxu0
  %3291 = vmatprep.mubr.bf16.mxu0 0
  %3292 = vmatmul.mubr.bf16.gmra.mrb[0].mxu0 %v3129
  %v3293 = vpop.f32.mrb[0].mxu0
  %v3294 = vadd.f32 %v86, %v3293
  %v3295 = vpop.f32.mrb[0].mxu0
  %v3296 = vpop.f32.mrb[0].mxu0
  %v3297 = vadd.f32 %v86, %v3296
  %v3298 = vpop.f32.mrb[0].mxu0
  %3299 = vmatprep.mubr.bf16.mxu0 0
  %3300 = vmatmul.mubr.bf16.gmra.mrb[0].mxu0 %v3130
  %v3301 = vpop.f32.mrb[0].mxu0
  %v3302 = vadd.f32 %v86, %v3301
  %v3303 = vpop.f32.mrb[0].mxu0
  %v3304 = vpop.f32.mrb[0].mxu0
  %v3305 = vadd.f32 %v86, %v3304
  %v3306 = vpop.f32.mrb[0].mxu0
  %3307 = vdwg.mxu0
  %v3308 = vmax.f32 %v3182, 0.0
  %v3309 = vmax.f32 %v3185, 0.0
  %v3310 = vmax.f32 %v3190, 0.0
  %v3311 = vmax.f32 %v3193, 0.0
  %v3312 = vmax.f32 %v3198, 0.0
  %v3313 = vmax.f32 %v3201, 0.0
  %v3314 = vmax.f32 %v3206, 0.0
  %v3315 = vmax.f32 %v3209, 0.0
  %v3316 = vmax.f32 %v3214, 0.0
  %v3317 = vmax.f32 %v3217, 0.0
  %v3318 = vmax.f32 %v3222, 0.0
  %v3319 = vmax.f32 %v3225, 0.0
  %v3320 = vmax.f32 %v3230, 0.0
  %v3321 = vmax.f32 %v3233, 0.0
  %v3322 = vmax.f32 %v3238, 0.0
  %v3323 = vmax.f32 %v3241, 0.0
  %v3324 = vmax.f32 %v3246, 0.0
  %v3325 = vmax.f32 %v3249, 0.0
  %v3326 = vmax.f32 %v3254, 0.0
  %v3327 = vmax.f32 %v3257, 0.0
  %v3328 = vmax.f32 %v3262, 0.0
  %v3329 = vmax.f32 %v3265, 0.0
  %v3330 = vmax.f32 %v3270, 0.0
  %v3331 = vmax.f32 %v3273, 0.0
  %v3332 = vmax.f32 %v3278, 0.0
  %v3333 = vmax.f32 %v3281, 0.0
  %v3334 = vmax.f32 %v3286, 0.0
  %v3335 = vmax.f32 %v3289, 0.0
  %v3336 = vmax.f32 %v3294, 0.0
  %v3337 = vmax.f32 %v3297, 0.0
  %v3338 = vmax.f32 %v3302, 0.0
  %v3339 = vmax.f32 %v3305, 0.0
  %v3340 = vpack.c.bf16 %v3309, %v3308
  %v3341 = vpack.c.bf16 %v3311, %v3310
  %v3342 = vpack.c.bf16 %v3313, %v3312
  %v3343 = vpack.c.bf16 %v3315, %v3314
  %v3344 = vpack.c.bf16 %v3317, %v3316
  %v3345 = vpack.c.bf16 %v3319, %v3318
  %v3346 = vpack.c.bf16 %v3321, %v3320
  %v3347 = vpack.c.bf16 %v3323, %v3322
  %v3348 = vpack.c.bf16 %v3325, %v3324
  %v3349 = vpack.c.bf16 %v3327, %v3326
  %v3350 = vpack.c.bf16 %v3329, %v3328
  %v3351 = vpack.c.bf16 %v3331, %v3330
  %v3352 = vpack.c.bf16 %v3333, %v3332
  %v3353 = vpack.c.bf16 %v3335, %v3334
  %v3354 = vpack.c.bf16 %v3337, %v3336
  %v3355 = vpack.c.bf16 %v3339, %v3338
  %s3356 = scalar_lea.vmem %s3, 320
  %v3357 = vld [vmem:[%s3356] sm:$0xf]
  %v3358 = vld [vmem:[%s3356 + $0x4] sm:$0xf]
  %v3359 = vld [vmem:[%s3356 + $0x8] sm:$0xf]
  %v3360 = vld [vmem:[%s3356 + $0xc] sm:$0xf]
  %v3361 = vld [vmem:[%s3356 + $0x10] sm:$0xf]
  %v3362 = vld [vmem:[%s3356 + $0x14] sm:$0xf]
  %v3363 = vld [vmem:[%s3356 + $0x18] sm:$0xf]
  %v3364 = vld [vmem:[%s3356 + $0x1c] sm:$0xf]
  %v3365 = vld [vmem:[%s3356 + $0x20] sm:$0xf]
  %v3366 = vld [vmem:[%s3356 + $0x24] sm:$0xf]
  %v3367 = vld [vmem:[%s3356 + $0x28] sm:$0xf]
  %v3368 = vld [vmem:[%s3356 + $0x2c] sm:$0xf]
  %v3369 = vld [vmem:[%s3356 + $0x30] sm:$0xf]
  %v3370 = vld [vmem:[%s3356 + $0x34] sm:$0xf]
  %v3371 = vld [vmem:[%s3356 + $0x38] sm:$0xf]
  %v3372 = vld [vmem:[%s3356 + $0x3c] sm:$0xf]
  %v3389 = vunpack.c.l.b16 %v3357
  %v3390 = vunpack.c.l.b16 %v3358
  %v3391 = vunpack.c.l.b16 %v3359
  %v3392 = vunpack.c.l.b16 %v3360
  %v3393 = vunpack.c.l.b16 %v3361
  %v3394 = vunpack.c.l.b16 %v3362
  %v3395 = vunpack.c.l.b16 %v3363
  %v3396 = vunpack.c.l.b16 %v3364
  %v3397 = vunpack.c.l.b16 %v3365
  %v3398 = vunpack.c.l.b16 %v3366
  %v3399 = vunpack.c.l.b16 %v3367
  %v3400 = vunpack.c.l.b16 %v3368
  %v3401 = vunpack.c.l.b16 %v3369
  %v3402 = vunpack.c.l.b16 %v3370
  %v3403 = vunpack.c.l.b16 %v3371
  %v3404 = vunpack.c.l.b16 %v3372
  %v3405 = vpack.c.b16 %v3390, %v3389
  %v3406 = vpack.c.b16 %v3392, %v3391
  %v3407 = vpack.c.b16 %v3394, %v3393
  %v3408 = vpack.c.b16 %v3396, %v3395
  %v3409 = vpack.c.b16 %v3398, %v3397
  %v3410 = vpack.c.b16 %v3400, %v3399
  %v3411 = vpack.c.b16 %v3402, %v3401
  %v3412 = vpack.c.b16 %v3404, %v3403
  %3421 = vmatprep.subr.bf16.mxu0 0
  %3422 = vmatpush1.bf16.msra.mxu0 %v3405
  %3423 = vmatprep.subr.bf16.mxu0 0
  %3424 = vmatpush1.bf16.msra.mxu0 %v3406
  %3425 = vmatprep.subr.bf16.mxu0 0
  %3426 = vmatpush1.bf16.msra.mxu0 %v3407
  %3427 = vmatprep.subr.bf16.mxu0 0
  %3428 = vmatpush1.bf16.msra.mxu0 %v3408
  %3429 = vmatprep.subr.bf16.mxu0 0
  %3430 = vmatpush1.bf16.msra.mxu0 %v3409
  %3431 = vmatprep.subr.bf16.mxu0 0
  %3432 = vmatpush1.bf16.msra.mxu0 %v3410
  %3433 = vmatprep.subr.bf16.mxu0 0
  %3434 = vmatpush1.bf16.msra.mxu0 %v3411
  %3435 = vmatprep.subr.bf16.mxu0 0
  %3436 = vmatpush1.bf16.msra.mxu0 %v3412
  %3437 = vmatprep.subr.bf16.mxu0 0
  %3438 = vmatpush1.bf16.msra.mxu0 0
  %3439 = vmatprep.subr.bf16.mxu0 0
  %3440 = vmatpush1.bf16.msra.mxu0 0
  %3441 = vmatprep.subr.bf16.mxu0 0
  %3442 = vmatpush1.bf16.msra.mxu0 0
  %3443 = vmatprep.subr.bf16.mxu0 0
  %3444 = vmatpush1.bf16.msra.mxu0 0
  %3445 = vmatprep.subr.bf16.mxu0 0
  %3446 = vmatpush1.bf16.msra.mxu0 0
  %3447 = vmatprep.subr.bf16.mxu0 0
  %3448 = vmatpush1.bf16.msra.mxu0 0
  %3449 = vmatprep.subr.bf16.mxu0 0
  %3450 = vmatpush1.bf16.msra.mxu0 0
  %3451 = vmatprep.subr.bf16.mxu0 0
  %3452 = vmatpush1.bf16.msra.mxu0 0
  %3453 = vmatprep.mubr.bf16.mxu0 0
  %3454 = vmatmul.mubr.bf16.gmra.mrb[0].mxu0 %v3340
  %v3455 = vpop.f32.mrb[0].mxu0
  %v3456 = vadd.f32 0.0, %v3455
  %v3457 = vpop.f32.mrb[0].mxu0
  %v3458 = vpop.f32.mrb[0].mxu0
  %v3459 = vadd.f32 0.0, %v3458
  %v3460 = vpop.f32.mrb[0].mxu0
  %3461 = vmatprep.mubr.bf16.mxu0 0
  %3462 = vmatmul.mubr.bf16.gmra.mrb[0].mxu0 %v3341
  %v3463 = vpop.f32.mrb[0].mxu0
  %v3464 = vadd.f32 0.0, %v3463
  %v3465 = vpop.f32.mrb[0].mxu0
  %v3466 = vpop.f32.mrb[0].mxu0
  %v3467 = vadd.f32 0.0, %v3466
  %v3468 = vpop.f32.mrb[0].mxu0
  %3469 = vmatprep.mubr.bf16.mxu0 0
  %3470 = vmatmul.mubr.bf16.gmra.mrb[0].mxu0 %v3342
  %v3471 = vpop.f32.mrb[0].mxu0
  %v3472 = vadd.f32 0.0, %v3471
  %v3473 = vpop.f32.mrb[0].mxu0
  %v3474 = vpop.f32.mrb[0].mxu0
  %v3475 = vadd.f32 0.0, %v3474
  %v3476 = vpop.f32.mrb[0].mxu0
  %3477 = vmatprep.mubr.bf16.mxu0 0
  %3478 = vmatmul.mubr.bf16.gmra.mrb[0].mxu0 %v3343
  %v3479 = vpop.f32.mrb[0].mxu0
  %v3480 = vadd.f32 0.0, %v3479
  %v3481 = vpop.f32.mrb[0].mxu0
  %v3482 = vpop.f32.mrb[0].mxu0
  %v3483 = vadd.f32 0.0, %v3482
  %v3484 = vpop.f32.mrb[0].mxu0
  %3485 = vmatprep.mubr.bf16.mxu0 0
  %3486 = vmatmul.mubr.bf16.gmra.mrb[0].mxu0 %v3344
  %v3487 = vpop.f32.mrb[0].mxu0
  %v3488 = vadd.f32 0.0, %v3487
  %v3489 = vpop.f32.mrb[0].mxu0
  %v3490 = vpop.f32.mrb[0].mxu0
  %v3491 = vadd.f32 0.0, %v3490
  %v3492 = vpop.f32.mrb[0].mxu0
  %3493 = vmatprep.mubr.bf16.mxu0 0
  %3494 = vmatmul.mubr.bf16.gmra.mrb[0].mxu0 %v3345
  %v3495 = vpop.f32.mrb[0].mxu0
  %v3496 = vadd.f32 0.0, %v3495
  %v3497 = vpop.f32.mrb[0].mxu0
  %v3498 = vpop.f32.mrb[0].mxu0
  %v3499 = vadd.f32 0.0, %v3498
  %v3500 = vpop.f32.mrb[0].mxu0
  %3501 = vmatprep.mubr.bf16.mxu0 0
  %3502 = vmatmul.mubr.bf16.gmra.mrb[0].mxu0 %v3346
  %v3503 = vpop.f32.mrb[0].mxu0
  %v3504 = vadd.f32 0.0, %v3503
  %v3505 = vpop.f32.mrb[0].mxu0
  %v3506 = vpop.f32.mrb[0].mxu0
  %v3507 = vadd.f32 0.0, %v3506
  %v3508 = vpop.f32.mrb[0].mxu0
  %3509 = vmatprep.mubr.bf16.mxu0 0
  %3510 = vmatmul.mubr.bf16.gmra.mrb[0].mxu0 %v3347
  %v3511 = vpop.f32.mrb[0].mxu0
  %v3512 = vadd.f32 0.0, %v3511
  %v3513 = vpop.f32.mrb[0].mxu0
  %v3514 = vpop.f32.mrb[0].mxu0
  %v3515 = vadd.f32 0.0, %v3514
  %v3516 = vpop.f32.mrb[0].mxu0
  %3517 = vmatprep.mubr.bf16.mxu0 0
  %3518 = vmatmul.mubr.bf16.gmra.mrb[0].mxu0 %v3348
  %v3519 = vpop.f32.mrb[0].mxu0
  %v3520 = vadd.f32 0.0, %v3519
  %v3521 = vpop.f32.mrb[0].mxu0
  %v3522 = vpop.f32.mrb[0].mxu0
  %v3523 = vadd.f32 0.0, %v3522
  %v3524 = vpop.f32.mrb[0].mxu0
  %3525 = vmatprep.mubr.bf16.mxu0 0
  %3526 = vmatmul.mubr.bf16.gmra.mrb[0].mxu0 %v3349
  %v3527 = vpop.f32.mrb[0].mxu0
  %v3528 = vadd.f32 0.0, %v3527
  %v3529 = vpop.f32.mrb[0].mxu0
  %v3530 = vpop.f32.mrb[0].mxu0
  %v3531 = vadd.f32 0.0, %v3530
  %v3532 = vpop.f32.mrb[0].mxu0
  %3533 = vmatprep.mubr.bf16.mxu0 0
  %3534 = vmatmul.mubr.bf16.gmra.mrb[0].mxu0 %v3350
  %v3535 = vpop.f32.mrb[0].mxu0
  %v3536 = vadd.f32 0.0, %v3535
  %v3537 = vpop.f32.mrb[0].mxu0
  %v3538 = vpop.f32.mrb[0].mxu0
  %v3539 = vadd.f32 0.0, %v3538
  %v3540 = vpop.f32.mrb[0].mxu0
  %3541 = vmatprep.mubr.bf16.mxu0 0
  %3542 = vmatmul.mubr.bf16.gmra.mrb[0].mxu0 %v3351
  %v3543 = vpop.f32.mrb[0].mxu0
  %v3544 = vadd.f32 0.0, %v3543
  %v3545 = vpop.f32.mrb[0].mxu0
  %v3546 = vpop.f32.mrb[0].mxu0
  %v3547 = vadd.f32 0.0, %v3546
  %v3548 = vpop.f32.mrb[0].mxu0
  %3549 = vmatprep.mubr.bf16.mxu0 0
  %3550 = vmatmul.mubr.bf16.gmra.mrb[0].mxu0 %v3352
  %v3551 = vpop.f32.mrb[0].mxu0
  %v3552 = vadd.f32 0.0, %v3551
  %v3553 = vpop.f32.mrb[0].mxu0
  %v3554 = vpop.f32.mrb[0].mxu0
  %v3555 = vadd.f32 0.0, %v3554
  %v3556 = vpop.f32.mrb[0].mxu0
  %3557 = vmatprep.mubr.bf16.mxu0 0
  %3558 = vmatmul.mubr.bf16.gmra.mrb[0].mxu0 %v3353
  %v3559 = vpop.f32.mrb[0].mxu0
  %v3560 = vadd.f32 0.0, %v3559
  %v3561 = vpop.f32.mrb[0].mxu0
  %v3562 = vpop.f32.mrb[0].mxu0
  %v3563 = vadd.f32 0.0, %v3562
  %v3564 = vpop.f32.mrb[0].mxu0
  %3565 = vmatprep.mubr.bf16.mxu0 0
  %3566 = vmatmul.mubr.bf16.gmra.mrb[0].mxu0 %v3354
  %v3567 = vpop.f32.mrb[0].mxu0
  %v3568 = vadd.f32 0.0, %v3567
  %v3569 = vpop.f32.mrb[0].mxu0
  %v3570 = vpop.f32.mrb[0].mxu0
  %v3571 = vadd.f32 0.0, %v3570
  %v3572 = vpop.f32.mrb[0].mxu0
  %3573 = vmatprep.mubr.bf16.mxu0 0
  %3574 = vmatmul.mubr.bf16.gmra.mrb[0].mxu0 %v3355
  %v3575 = vpop.f32.mrb[0].mxu0
  %v3576 = vadd.f32 0.0, %v3575
  %v3577 = vpop.f32.mrb[0].mxu0
  %v3578 = vpop.f32.mrb[0].mxu0
  %v3579 = vadd.f32 0.0, %v3578
  %v3580 = vpop.f32.mrb[0].mxu0
  %3581 = vdwg.mxu0
  %v3582 = vadd.f32 %v2986, %v3456
  %v3583 = vadd.f32 %v2987, %v3459
  %v3584 = vadd.f32 %v2988, %v3464
  %v3585 = vadd.f32 %v2989, %v3467
  %v3586 = vadd.f32 %v2990, %v3472
  %v3587 = vadd.f32 %v2991, %v3475
  %v3588 = vadd.f32 %v2992, %v3480
  %v3589 = vadd.f32 %v2993, %v3483
  %v3590 = vadd.f32 %v2994, %v3488
  %v3591 = vadd.f32 %v2995, %v3491
  %v3592 = vadd.f32 %v2996, %v3496
  %v3593 = vadd.f32 %v2997, %v3499
  %v3594 = vadd.f32 %v2998, %v3504
  %v3595 = vadd.f32 %v2999, %v3507
  %v3596 = vadd.f32 %v3000, %v3512
  %v3597 = vadd.f32 %v3001, %v3515
  %v3598 = vadd.f32 %v3002, %v3520
  %v3599 = vadd.f32 %v3003, %v3523
  %v3600 = vadd.f32 %v3004, %v3528
  %v3601 = vadd.f32 %v3005, %v3531
  %v3602 = vadd.f32 %v3006, %v3536
  %v3603 = vadd.f32 %v3007, %v3539
  %v3604 = vadd.f32 %v3008, %v3544
  %v3605 = vadd.f32 %v3009, %v3547
  %v3606 = vadd.f32 %v3010, %v3552
  %v3607 = vadd.f32 %v3011, %v3555
  %v3608 = vadd.f32 %v3012, %v3560
  %v3609 = vadd.f32 %v3013, %v3563
  %v3610 = vadd.f32 %v3014, %v3568
  %v3611 = vadd.f32 %v3015, %v3571
  %v3612 = vadd.f32 %v3016, %v3576
  %v3613 = vadd.f32 %v3017, %v3579
  %s3614 = scalar_lea.vmem %s0, 768
  %v3615 = vld [vmem:[%s3614] sm:$0xf]
  %v3616 = vld [vmem:[%s3614 + $0x4] sm:$0xf]
  %v3617 = vld [vmem:[%s3614 + $0x8] sm:$0xf]
  %v3618 = vld [vmem:[%s3614 + $0xc] sm:$0xf]
  %v3619 = vld [vmem:[%s3614 + $0x10] sm:$0xf]
  %v3620 = vld [vmem:[%s3614 + $0x14] sm:$0xf]
  %v3621 = vld [vmem:[%s3614 + $0x18] sm:$0xf]
  %v3622 = vld [vmem:[%s3614 + $0x1c] sm:$0xf]
  %v3623 = vld [vmem:[%s3614 + $0x20] sm:$0xf]
  %v3624 = vld [vmem:[%s3614 + $0x24] sm:$0xf]
  %v3625 = vld [vmem:[%s3614 + $0x28] sm:$0xf]
  %v3626 = vld [vmem:[%s3614 + $0x2c] sm:$0xf]
  %v3627 = vld [vmem:[%s3614 + $0x30] sm:$0xf]
  %v3628 = vld [vmem:[%s3614 + $0x34] sm:$0xf]
  %v3629 = vld [vmem:[%s3614 + $0x38] sm:$0xf]
  %v3630 = vld [vmem:[%s3614 + $0x3c] sm:$0xf]
  %v3631 = vld [vmem:[%s3614 + $0x40] sm:$0xf]
  %v3632 = vld [vmem:[%s3614 + $0x44] sm:$0xf]
  %v3633 = vld [vmem:[%s3614 + $0x48] sm:$0xf]
  %v3634 = vld [vmem:[%s3614 + $0x4c] sm:$0xf]
  %v3635 = vld [vmem:[%s3614 + $0x50] sm:$0xf]
  %v3636 = vld [vmem:[%s3614 + $0x54] sm:$0xf]
  %v3637 = vld [vmem:[%s3614 + $0x58] sm:$0xf]
  %v3638 = vld [vmem:[%s3614 + $0x5c] sm:$0xf]
  %v3639 = vld [vmem:[%s3614 + $0x60] sm:$0xf]
  %v3640 = vld [vmem:[%s3614 + $0x64] sm:$0xf]
  %v3641 = vld [vmem:[%s3614 + $0x68] sm:$0xf]
  %v3642 = vld [vmem:[%s3614 + $0x6c] sm:$0xf]
  %v3643 = vld [vmem:[%s3614 + $0x70] sm:$0xf]
  %v3644 = vld [vmem:[%s3614 + $0x74] sm:$0xf]
  %v3645 = vld [vmem:[%s3614 + $0x78] sm:$0xf]
  %v3646 = vld [vmem:[%s3614 + $0x7c] sm:$0xf]
  %v3679 = vunpack.c.l.b16 %v3615
  %v3680 = vunpack.c.l.b16 %v3616
  %v3681 = vunpack.c.l.b16 %v3617
  %v3682 = vunpack.c.l.b16 %v3618
  %v3683 = vunpack.c.l.b16 %v3619
  %v3684 = vunpack.c.l.b16 %v3620
  %v3685 = vunpack.c.l.b16 %v3621
  %v3686 = vunpack.c.l.b16 %v3622
  %v3687 = vunpack.c.l.b16 %v3623
  %v3688 = vunpack.c.l.b16 %v3624
  %v3689 = vunpack.c.l.b16 %v3625
  %v3690 = vunpack.c.l.b16 %v3626
  %v3691 = vunpack.c.l.b16 %v3627
  %v3692 = vunpack.c.l.b16 %v3628
  %v3693 = vunpack.c.l.b16 %v3629
  %v3694 = vunpack.c.l.b16 %v3630
  %v3695 = vunpack.c.l.b16 %v3631
  %v3696 = vunpack.c.l.b16 %v3632
  %v3697 = vunpack.c.l.b16 %v3633
  %v3698 = vunpack.c.l.b16 %v3634
  %v3699 = vunpack.c.l.b16 %v3635
  %v3700 = vunpack.c.l.b16 %v3636
  %v3701 = vunpack.c.l.b16 %v3637
  %v3702 = vunpack.c.l.b16 %v3638
  %v3703 = vunpack.c.l.b16 %v3639
  %v3704 = vunpack.c.l.b16 %v3640
  %v3705 = vunpack.c.l.b16 %v3641
  %v3706 = vunpack.c.l.b16 %v3642
  %v3707 = vunpack.c.l.b16 %v3643
  %v3708 = vunpack.c.l.b16 %v3644
  %v3709 = vunpack.c.l.b16 %v3645
  %v3710 = vunpack.c.l.b16 %v3646
  %v3711 = vpack.c.b16 %v3680, %v3679
  %v3712 = vpack.c.b16 %v3682, %v3681
  %v3713 = vpack.c.b16 %v3684, %v3683
  %v3714 = vpack.c.b16 %v3686, %v3685
  %v3715 = vpack.c.b16 %v3688, %v3687
  %v3716 = vpack.c.b16 %v3690, %v3689
  %v3717 = vpack.c.b16 %v3692, %v3691
  %v3718 = vpack.c.b16 %v3694, %v3693
  %v3719 = vpack.c.b16 %v3696, %v3695
  %v3720 = vpack.c.b16 %v3698, %v3697
  %v3721 = vpack.c.b16 %v3700, %v3699
  %v3722 = vpack.c.b16 %v3702, %v3701
  %v3723 = vpack.c.b16 %v3704, %v3703
  %v3724 = vpack.c.b16 %v3706, %v3705
  %v3725 = vpack.c.b16 %v3708, %v3707
  %v3726 = vpack.c.b16 %v3710, %v3709
  %3743 = vmatprep.subr.bf16.mxu0 0
  %3744 = vmatpush1.bf16.msra.mxu0 %v216
  %3745 = vmatprep.subr.bf16.mxu0 0
  %3746 = vmatpush1.bf16.msra.mxu0 %v217
  %3747 = vmatprep.subr.bf16.mxu0 0
  %3748 = vmatpush1.bf16.msra.mxu0 %v218
  %3749 = vmatprep.subr.bf16.mxu0 0
  %3750 = vmatpush1.bf16.msra.mxu0 %v219
  %3751 = vmatprep.subr.bf16.mxu0 0
  %3752 = vmatpush1.bf16.msra.mxu0 %v220
  %3753 = vmatprep.subr.bf16.mxu0 0
  %3754 = vmatpush1.bf16.msra.mxu0 %v221
  %3755 = vmatprep.subr.bf16.mxu0 0
  %3756 = vmatpush1.bf16.msra.mxu0 %v222
  %3757 = vmatprep.subr.bf16.mxu0 0
  %3758 = vmatpush1.bf16.msra.mxu0 %v223
  %3759 = vmatprep.subr.bf16.mxu0 0
  %3760 = vmatpush1.bf16.msra.mxu0 0
  %3761 = vmatprep.subr.bf16.mxu0 0
  %3762 = vmatpush1.bf16.msra.mxu0 0
  %3763 = vmatprep.subr.bf16.mxu0 0
  %3764 = vmatpush1.bf16.msra.mxu0 0
  %3765 = vmatprep.subr.bf16.mxu0 0
  %3766 = vmatpush1.bf16.msra.mxu0 0
  %3767 = vmatprep.subr.bf16.mxu0 0
  %3768 = vmatpush1.bf16.msra.mxu0 0
  %3769 = vmatprep.subr.bf16.mxu0 0
  %3770 = vmatpush1.bf16.msra.mxu0 0
  %3771 = vmatprep.subr.bf16.mxu0 0
  %3772 = vmatpush1.bf16.msra.mxu0 0
  %3773 = vmatprep.subr.bf16.mxu0 0
  %3774 = vmatpush1.bf16.msra.mxu0 0
  %3775 = vmatprep.mubr.bf16.mxu0 0
  %3776 = vmatmul.mubr.bf16.gmra.mrb[0].mxu0 %v3711
  %v3777 = vpop.f32.mrb[0].mxu0
  %v3778 = vadd.f32 %v86, %v3777
  %v3779 = vpop.f32.mrb[0].mxu0
  %v3780 = vpop.f32.mrb[0].mxu0
  %v3781 = vadd.f32 %v86, %v3780
  %v3782 = vpop.f32.mrb[0].mxu0
  %3783 = vmatprep.mubr.bf16.mxu0 0
  %3784 = vmatmul.mubr.bf16.gmra.mrb[0].mxu0 %v3712
  %v3785 = vpop.f32.mrb[0].mxu0
  %v3786 = vadd.f32 %v86, %v3785
  %v3787 = vpop.f32.mrb[0].mxu0
  %v3788 = vpop.f32.mrb[0].mxu0
  %v3789 = vadd.f32 %v86, %v3788
  %v3790 = vpop.f32.mrb[0].mxu0
  %3791 = vmatprep.mubr.bf16.mxu0 0
  %3792 = vmatmul.mubr.bf16.gmra.mrb[0].mxu0 %v3713
  %v3793 = vpop.f32.mrb[0].mxu0
  %v3794 = vadd.f32 %v86, %v3793
  %v3795 = vpop.f32.mrb[0].mxu0
  %v3796 = vpop.f32.mrb[0].mxu0
  %v3797 = vadd.f32 %v86, %v3796
  %v3798 = vpop.f32.mrb[0].mxu0
  %3799 = vmatprep.mubr.bf16.mxu0 0
  %3800 = vmatmul.mubr.bf16.gmra.mrb[0].mxu0 %v3714
  %v3801 = vpop.f32.mrb[0].mxu0
  %v3802 = vadd.f32 %v86, %v3801
  %v3803 = vpop.f32.mrb[0].mxu0
  %v3804 = vpop.f32.mrb[0].mxu0
  %v3805 = vadd.f32 %v86, %v3804
  %v3806 = vpop.f32.mrb[0].mxu0
  %3807 = vmatprep.mubr.bf16.mxu0 0
  %3808 = vmatmul.mubr.bf16.gmra.mrb[0].mxu0 %v3715
  %v3809 = vpop.f32.mrb[0].mxu0
  %v3810 = vadd.f32 %v86, %v3809
  %v3811 = vpop.f32.mrb[0].mxu0
  %v3812 = vpop.f32.mrb[0].mxu0
  %v3813 = vadd.f32 %v86, %v3812
  %v3814 = vpop.f32.mrb[0].mxu0
  %3815 = vmatprep.mubr.bf16.mxu0 0
  %3816 = vmatmul.mubr.bf16.gmra.mrb[0].mxu0 %v3716
  %v3817 = vpop.f32.mrb[0].mxu0
  %v3818 = vadd.f32 %v86, %v3817
  %v3819 = vpop.f32.mrb[0].mxu0
  %v3820 = vpop.f32.mrb[0].mxu0
  %v3821 = vadd.f32 %v86, %v3820
  %v3822 = vpop.f32.mrb[0].mxu0
  %3823 = vmatprep.mubr.bf16.mxu0 0
  %3824 = vmatmul.mubr.bf16.gmra.mrb[0].mxu0 %v3717
  %v3825 = vpop.f32.mrb[0].mxu0
  %v3826 = vadd.f32 %v86, %v3825
  %v3827 = vpop.f32.mrb[0].mxu0
  %v3828 = vpop.f32.mrb[0].mxu0
  %v3829 = vadd.f32 %v86, %v3828
  %v3830 = vpop.f32.mrb[0].mxu0
  %3831 = vmatprep.mubr.bf16.mxu0 0
  %3832 = vmatmul.mubr.bf16.gmra.mrb[0].mxu0 %v3718
  %v3833 = vpop.f32.mrb[0].mxu0
  %v3834 = vadd.f32 %v86, %v3833
  %v3835 = vpop.f32.mrb[0].mxu0
  %v3836 = vpop.f32.mrb[0].mxu0
  %v3837 = vadd.f32 %v86, %v3836
  %v3838 = vpop.f32.mrb[0].mxu0
  %3839 = vmatprep.mubr.bf16.mxu0 0
  %3840 = vmatmul.mubr.bf16.gmra.mrb[0].mxu0 %v3719
  %v3841 = vpop.f32.mrb[0].mxu0
  %v3842 = vadd.f32 %v86, %v3841
  %v3843 = vpop.f32.mrb[0].mxu0
  %v3844 = vpop.f32.mrb[0].mxu0
  %v3845 = vadd.f32 %v86, %v3844
  %v3846 = vpop.f32.mrb[0].mxu0
  %3847 = vmatprep.mubr.bf16.mxu0 0
  %3848 = vmatmul.mubr.bf16.gmra.mrb[0].mxu0 %v3720
  %v3849 = vpop.f32.mrb[0].mxu0
  %v3850 = vadd.f32 %v86, %v3849
  %v3851 = vpop.f32.mrb[0].mxu0
  %v3852 = vpop.f32.mrb[0].mxu0
  %v3853 = vadd.f32 %v86, %v3852
  %v3854 = vpop.f32.mrb[0].mxu0
  %3855 = vmatprep.mubr.bf16.mxu0 0
  %3856 = vmatmul.mubr.bf16.gmra.mrb[0].mxu0 %v3721
  %v3857 = vpop.f32.mrb[0].mxu0
  %v3858 = vadd.f32 %v86, %v3857
  %v3859 = vpop.f32.mrb[0].mxu0
  %v3860 = vpop.f32.mrb[0].mxu0
  %v3861 = vadd.f32 %v86, %v3860
  %v3862 = vpop.f32.mrb[0].mxu0
  %3863 = vmatprep.mubr.bf16.mxu0 0
  %3864 = vmatmul.mubr.bf16.gmra.mrb[0].mxu0 %v3722
  %v3865 = vpop.f32.mrb[0].mxu0
  %v3866 = vadd.f32 %v86, %v3865
  %v3867 = vpop.f32.mrb[0].mxu0
  %v3868 = vpop.f32.mrb[0].mxu0
  %v3869 = vadd.f32 %v86, %v3868
  %v3870 = vpop.f32.mrb[0].mxu0
  %3871 = vmatprep.mubr.bf16.mxu0 0
  %3872 = vmatmul.mubr.bf16.gmra.mrb[0].mxu0 %v3723
  %v3873 = vpop.f32.mrb[0].mxu0
  %v3874 = vadd.f32 %v86, %v3873
  %v3875 = vpop.f32.mrb[0].mxu0
  %v3876 = vpop.f32.mrb[0].mxu0
  %v3877 = vadd.f32 %v86, %v3876
  %v3878 = vpop.f32.mrb[0].mxu0
  %3879 = vmatprep.mubr.bf16.mxu0 0
  %3880 = vmatmul.mubr.bf16.gmra.mrb[0].mxu0 %v3724
  %v3881 = vpop.f32.mrb[0].mxu0
  %v3882 = vadd.f32 %v86, %v3881
  %v3883 = vpop.f32.mrb[0].mxu0
  %v3884 = vpop.f32.mrb[0].mxu0
  %v3885 = vadd.f32 %v86, %v3884
  %v3886 = vpop.f32.mrb[0].mxu0
  %3887 = vmatprep.mubr.bf16.mxu0 0
  %3888 = vmatmul.mubr.bf16.gmra.mrb[0].mxu0 %v3725
  %v3889 = vpop.f32.mrb[0].mxu0
  %v3890 = vadd.f32 %v86, %v3889
  %v3891 = vpop.f32.mrb[0].mxu0
  %v3892 = vpop.f32.mrb[0].mxu0
  %v3893 = vadd.f32 %v86, %v3892
  %v3894 = vpop.f32.mrb[0].mxu0
  %3895 = vmatprep.mubr.bf16.mxu0 0
  %3896 = vmatmul.mubr.bf16.gmra.mrb[0].mxu0 %v3726
  %v3897 = vpop.f32.mrb[0].mxu0
  %v3898 = vadd.f32 %v86, %v3897
  %v3899 = vpop.f32.mrb[0].mxu0
  %v3900 = vpop.f32.mrb[0].mxu0
  %v3901 = vadd.f32 %v86, %v3900
  %v3902 = vpop.f32.mrb[0].mxu0
  %3903 = vdwg.mxu0
  %v3904 = vmax.f32 %v3778, 0.0
  %v3905 = vmax.f32 %v3781, 0.0
  %v3906 = vmax.f32 %v3786, 0.0
  %v3907 = vmax.f32 %v3789, 0.0
  %v3908 = vmax.f32 %v3794, 0.0
  %v3909 = vmax.f32 %v3797, 0.0
  %v3910 = vmax.f32 %v3802, 0.0
  %v3911 = vmax.f32 %v3805, 0.0
  %v3912 = vmax.f32 %v3810, 0.0
  %v3913 = vmax.f32 %v3813, 0.0
  %v3914 = vmax.f32 %v3818, 0.0
  %v3915 = vmax.f32 %v3821, 0.0
  %v3916 = vmax.f32 %v3826, 0.0
  %v3917 = vmax.f32 %v3829, 0.0
  %v3918 = vmax.f32 %v3834, 0.0
  %v3919 = vmax.f32 %v3837, 0.0
  %v3920 = vmax.f32 %v3842, 0.0
  %v3921 = vmax.f32 %v3845, 0.0
  %v3922 = vmax.f32 %v3850, 0.0
  %v3923 = vmax.f32 %v3853, 0.0
  %v3924 = vmax.f32 %v3858, 0.0
  %v3925 = vmax.f32 %v3861, 0.0
  %v3926 = vmax.f32 %v3866, 0.0
  %v3927 = vmax.f32 %v3869, 0.0
  %v3928 = vmax.f32 %v3874, 0.0
  %v3929 = vmax.f32 %v3877, 0.0
  %v3930 = vmax.f32 %v3882, 0.0
  %v3931 = vmax.f32 %v3885, 0.0
  %v3932 = vmax.f32 %v3890, 0.0
  %v3933 = vmax.f32 %v3893, 0.0
  %v3934 = vmax.f32 %v3898, 0.0
  %v3935 = vmax.f32 %v3901, 0.0
  %v3936 = vpack.c.bf16 %v3905, %v3904
  %v3937 = vpack.c.bf16 %v3907, %v3906
  %v3938 = vpack.c.bf16 %v3909, %v3908
  %v3939 = vpack.c.bf16 %v3911, %v3910
  %v3940 = vpack.c.bf16 %v3913, %v3912
  %v3941 = vpack.c.bf16 %v3915, %v3914
  %v3942 = vpack.c.bf16 %v3917, %v3916
  %v3943 = vpack.c.bf16 %v3919, %v3918
  %v3944 = vpack.c.bf16 %v3921, %v3920
  %v3945 = vpack.c.bf16 %v3923, %v3922
  %v3946 = vpack.c.bf16 %v3925, %v3924
  %v3947 = vpack.c.bf16 %v3927, %v3926
  %v3948 = vpack.c.bf16 %v3929, %v3928
  %v3949 = vpack.c.bf16 %v3931, %v3930
  %v3950 = vpack.c.bf16 %v3933, %v3932
  %v3951 = vpack.c.bf16 %v3935, %v3934
  %s3952 = scalar_lea.vmem %s3, 384
  %v3953 = vld [vmem:[%s3952] sm:$0xf]
  %v3954 = vld [vmem:[%s3952 + $0x4] sm:$0xf]
  %v3955 = vld [vmem:[%s3952 + $0x8] sm:$0xf]
  %v3956 = vld [vmem:[%s3952 + $0xc] sm:$0xf]
  %v3957 = vld [vmem:[%s3952 + $0x10] sm:$0xf]
  %v3958 = vld [vmem:[%s3952 + $0x14] sm:$0xf]
  %v3959 = vld [vmem:[%s3952 + $0x18] sm:$0xf]
  %v3960 = vld [vmem:[%s3952 + $0x1c] sm:$0xf]
  %v3961 = vld [vmem:[%s3952 + $0x20] sm:$0xf]
  %v3962 = vld [vmem:[%s3952 + $0x24] sm:$0xf]
  %v3963 = vld [vmem:[%s3952 + $0x28] sm:$0xf]
  %v3964 = vld [vmem:[%s3952 + $0x2c] sm:$0xf]
  %v3965 = vld [vmem:[%s3952 + $0x30] sm:$0xf]
  %v3966 = vld [vmem:[%s3952 + $0x34] sm:$0xf]
  %v3967 = vld [vmem:[%s3952 + $0x38] sm:$0xf]
  %v3968 = vld [vmem:[%s3952 + $0x3c] sm:$0xf]
  %v3985 = vunpack.c.l.b16 %v3953
  %v3986 = vunpack.c.l.b16 %v3954
  %v3987 = vunpack.c.l.b16 %v3955
  %v3988 = vunpack.c.l.b16 %v3956
  %v3989 = vunpack.c.l.b16 %v3957
  %v3990 = vunpack.c.l.b16 %v3958
  %v3991 = vunpack.c.l.b16 %v3959
  %v3992 = vunpack.c.l.b16 %v3960
  %v3993 = vunpack.c.l.b16 %v3961
  %v3994 = vunpack.c.l.b16 %v3962
  %v3995 = vunpack.c.l.b16 %v3963
  %v3996 = vunpack.c.l.b16 %v3964
  %v3997 = vunpack.c.l.b16 %v3965
  %v3998 = vunpack.c.l.b16 %v3966
  %v3999 = vunpack.c.l.b16 %v3967
  %v4000 = vunpack.c.l.b16 %v3968
  %v4001 = vpack.c.b16 %v3986, %v3985
  %v4002 = vpack.c.b16 %v3988, %v3987
  %v4003 = vpack.c.b16 %v3990, %v3989
  %v4004 = vpack.c.b16 %v3992, %v3991
  %v4005 = vpack.c.b16 %v3994, %v3993
  %v4006 = vpack.c.b16 %v3996, %v3995
  %v4007 = vpack.c.b16 %v3998, %v3997
  %v4008 = vpack.c.b16 %v4000, %v3999
  %4017 = vmatprep.subr.bf16.mxu0 0
  %4018 = vmatpush1.bf16.msra.mxu0 %v4001
  %4019 = vmatprep.subr.bf16.mxu0 0
  %4020 = vmatpush1.bf16.msra.mxu0 %v4002
  %4021 = vmatprep.subr.bf16.mxu0 0
  %4022 = vmatpush1.bf16.msra.mxu0 %v4003
  %4023 = vmatprep.subr.bf16.mxu0 0
  %4024 = vmatpush1.bf16.msra.mxu0 %v4004
  %4025 = vmatprep.subr.bf16.mxu0 0
  %4026 = vmatpush1.bf16.msra.mxu0 %v4005
  %4027 = vmatprep.subr.bf16.mxu0 0
  %4028 = vmatpush1.bf16.msra.mxu0 %v4006
  %4029 = vmatprep.subr.bf16.mxu0 0
  %4030 = vmatpush1.bf16.msra.mxu0 %v4007
  %4031 = vmatprep.subr.bf16.mxu0 0
  %4032 = vmatpush1.bf16.msra.mxu0 %v4008
  %4033 = vmatprep.subr.bf16.mxu0 0
  %4034 = vmatpush1.bf16.msra.mxu0 0
  %4035 = vmatprep.subr.bf16.mxu0 0
  %4036 = vmatpush1.bf16.msra.mxu0 0
  %4037 = vmatprep.subr.bf16.mxu0 0
  %4038 = vmatpush1.bf16.msra.mxu0 0
  %4039 = vmatprep.subr.bf16.mxu0 0
  %4040 = vmatpush1.bf16.msra.mxu0 0
  %4041 = vmatprep.subr.bf16.mxu0 0
  %4042 = vmatpush1.bf16.msra.mxu0 0
  %4043 = vmatprep.subr.bf16.mxu0 0
  %4044 = vmatpush1.bf16.msra.mxu0 0
  %4045 = vmatprep.subr.bf16.mxu0 0
  %4046 = vmatpush1.bf16.msra.mxu0 0
  %4047 = vmatprep.subr.bf16.mxu0 0
  %4048 = vmatpush1.bf16.msra.mxu0 0
  %4049 = vmatprep.mubr.bf16.mxu0 0
  %4050 = vmatmul.mubr.bf16.gmra.mrb[0].mxu0 %v3936
  %v4051 = vpop.f32.mrb[0].mxu0
  %v4052 = vadd.f32 0.0, %v4051
  %v4053 = vpop.f32.mrb[0].mxu0
  %v4054 = vpop.f32.mrb[0].mxu0
  %v4055 = vadd.f32 0.0, %v4054
  %v4056 = vpop.f32.mrb[0].mxu0
  %4057 = vmatprep.mubr.bf16.mxu0 0
  %4058 = vmatmul.mubr.bf16.gmra.mrb[0].mxu0 %v3937
  %v4059 = vpop.f32.mrb[0].mxu0
  %v4060 = vadd.f32 0.0, %v4059
  %v4061 = vpop.f32.mrb[0].mxu0
  %v4062 = vpop.f32.mrb[0].mxu0
  %v4063 = vadd.f32 0.0, %v4062
  %v4064 = vpop.f32.mrb[0].mxu0
  %4065 = vmatprep.mubr.bf16.mxu0 0
  %4066 = vmatmul.mubr.bf16.gmra.mrb[0].mxu0 %v3938
  %v4067 = vpop.f32.mrb[0].mxu0
  %v4068 = vadd.f32 0.0, %v4067
  %v4069 = vpop.f32.mrb[0].mxu0
  %v4070 = vpop.f32.mrb[0].mxu0
  %v4071 = vadd.f32 0.0, %v4070
  %v4072 = vpop.f32.mrb[0].mxu0
  %4073 = vmatprep.mubr.bf16.mxu0 0
  %4074 = vmatmul.mubr.bf16.gmra.mrb[0].mxu0 %v3939
  %v4075 = vpop.f32.mrb[0].mxu0
  %v4076 = vadd.f32 0.0, %v4075
  %v4077 = vpop.f32.mrb[0].mxu0
  %v4078 = vpop.f32.mrb[0].mxu0
  %v4079 = vadd.f32 0.0, %v4078
  %v4080 = vpop.f32.mrb[0].mxu0
  %4081 = vmatprep.mubr.bf16.mxu0 0
  %4082 = vmatmul.mubr.bf16.gmra.mrb[0].mxu0 %v3940
  %v4083 = vpop.f32.mrb[0].mxu0
  %v4084 = vadd.f32 0.0, %v4083
  %v4085 = vpop.f32.mrb[0].mxu0
  %v4086 = vpop.f32.mrb[0].mxu0
  %v4087 = vadd.f32 0.0, %v4086
  %v4088 = vpop.f32.mrb[0].mxu0
  %4089 = vmatprep.mubr.bf16.mxu0 0
  %4090 = vmatmul.mubr.bf16.gmra.mrb[0].mxu0 %v3941
  %v4091 = vpop.f32.mrb[0].mxu0
  %v4092 = vadd.f32 0.0, %v4091
  %v4093 = vpop.f32.mrb[0].mxu0
  %v4094 = vpop.f32.mrb[0].mxu0
  %v4095 = vadd.f32 0.0, %v4094
  %v4096 = vpop.f32.mrb[0].mxu0
  %4097 = vmatprep.mubr.bf16.mxu0 0
  %4098 = vmatmul.mubr.bf16.gmra.mrb[0].mxu0 %v3942
  %v4099 = vpop.f32.mrb[0].mxu0
  %v4100 = vadd.f32 0.0, %v4099
  %v4101 = vpop.f32.mrb[0].mxu0
  %v4102 = vpop.f32.mrb[0].mxu0
  %v4103 = vadd.f32 0.0, %v4102
  %v4104 = vpop.f32.mrb[0].mxu0
  %4105 = vmatprep.mubr.bf16.mxu0 0
  %4106 = vmatmul.mubr.bf16.gmra.mrb[0].mxu0 %v3943
  %v4107 = vpop.f32.mrb[0].mxu0
  %v4108 = vadd.f32 0.0, %v4107
  %v4109 = vpop.f32.mrb[0].mxu0
  %v4110 = vpop.f32.mrb[0].mxu0
  %v4111 = vadd.f32 0.0, %v4110
  %v4112 = vpop.f32.mrb[0].mxu0
  %4113 = vmatprep.mubr.bf16.mxu0 0
  %4114 = vmatmul.mubr.bf16.gmra.mrb[0].mxu0 %v3944
  %v4115 = vpop.f32.mrb[0].mxu0
  %v4116 = vadd.f32 0.0, %v4115
  %v4117 = vpop.f32.mrb[0].mxu0
  %v4118 = vpop.f32.mrb[0].mxu0
  %v4119 = vadd.f32 0.0, %v4118
  %v4120 = vpop.f32.mrb[0].mxu0
  %4121 = vmatprep.mubr.bf16.mxu0 0
  %4122 = vmatmul.mubr.bf16.gmra.mrb[0].mxu0 %v3945
  %v4123 = vpop.f32.mrb[0].mxu0
  %v4124 = vadd.f32 0.0, %v4123
  %v4125 = vpop.f32.mrb[0].mxu0
  %v4126 = vpop.f32.mrb[0].mxu0
  %v4127 = vadd.f32 0.0, %v4126
  %v4128 = vpop.f32.mrb[0].mxu0
  %4129 = vmatprep.mubr.bf16.mxu0 0
  %4130 = vmatmul.mubr.bf16.gmra.mrb[0].mxu0 %v3946
  %v4131 = vpop.f32.mrb[0].mxu0
  %v4132 = vadd.f32 0.0, %v4131
  %v4133 = vpop.f32.mrb[0].mxu0
  %v4134 = vpop.f32.mrb[0].mxu0
  %v4135 = vadd.f32 0.0, %v4134
  %v4136 = vpop.f32.mrb[0].mxu0
  %4137 = vmatprep.mubr.bf16.mxu0 0
  %4138 = vmatmul.mubr.bf16.gmra.mrb[0].mxu0 %v3947
  %v4139 = vpop.f32.mrb[0].mxu0
  %v4140 = vadd.f32 0.0, %v4139
  %v4141 = vpop.f32.mrb[0].mxu0
  %v4142 = vpop.f32.mrb[0].mxu0
  %v4143 = vadd.f32 0.0, %v4142
  %v4144 = vpop.f32.mrb[0].mxu0
  %4145 = vmatprep.mubr.bf16.mxu0 0
  %4146 = vmatmul.mubr.bf16.gmra.mrb[0].mxu0 %v3948
  %v4147 = vpop.f32.mrb[0].mxu0
  %v4148 = vadd.f32 0.0, %v4147
  %v4149 = vpop.f32.mrb[0].mxu0
  %v4150 = vpop.f32.mrb[0].mxu0
  %v4151 = vadd.f32 0.0, %v4150
  %v4152 = vpop.f32.mrb[0].mxu0
  %4153 = vmatprep.mubr.bf16.mxu0 0
  %4154 = vmatmul.mubr.bf16.gmra.mrb[0].mxu0 %v3949
  %v4155 = vpop.f32.mrb[0].mxu0
  %v4156 = vadd.f32 0.0, %v4155
  %v4157 = vpop.f32.mrb[0].mxu0
  %v4158 = vpop.f32.mrb[0].mxu0
  %v4159 = vadd.f32 0.0, %v4158
  %v4160 = vpop.f32.mrb[0].mxu0
  %4161 = vmatprep.mubr.bf16.mxu0 0
  %4162 = vmatmul.mubr.bf16.gmra.mrb[0].mxu0 %v3950
  %v4163 = vpop.f32.mrb[0].mxu0
  %v4164 = vadd.f32 0.0, %v4163
  %v4165 = vpop.f32.mrb[0].mxu0
  %v4166 = vpop.f32.mrb[0].mxu0
  %v4167 = vadd.f32 0.0, %v4166
  %v4168 = vpop.f32.mrb[0].mxu0
  %4169 = vmatprep.mubr.bf16.mxu0 0
  %4170 = vmatmul.mubr.bf16.gmra.mrb[0].mxu0 %v3951
  %v4171 = vpop.f32.mrb[0].mxu0
  %v4172 = vadd.f32 0.0, %v4171
  %v4173 = vpop.f32.mrb[0].mxu0
  %v4174 = vpop.f32.mrb[0].mxu0
  %v4175 = vadd.f32 0.0, %v4174
  %v4176 = vpop.f32.mrb[0].mxu0
  %4177 = vdwg.mxu0
  %v4178 = vadd.f32 %v3582, %v4052
  %v4179 = vadd.f32 %v3583, %v4055
  %v4180 = vadd.f32 %v3584, %v4060
  %v4181 = vadd.f32 %v3585, %v4063
  %v4182 = vadd.f32 %v3586, %v4068
  %v4183 = vadd.f32 %v3587, %v4071
  %v4184 = vadd.f32 %v3588, %v4076
  %v4185 = vadd.f32 %v3589, %v4079
  %v4186 = vadd.f32 %v3590, %v4084
  %v4187 = vadd.f32 %v3591, %v4087
  %v4188 = vadd.f32 %v3592, %v4092
  %v4189 = vadd.f32 %v3593, %v4095
  %v4190 = vadd.f32 %v3594, %v4100
  %v4191 = vadd.f32 %v3595, %v4103
  %v4192 = vadd.f32 %v3596, %v4108
  %v4193 = vadd.f32 %v3597, %v4111
  %v4194 = vadd.f32 %v3598, %v4116
  %v4195 = vadd.f32 %v3599, %v4119
  %v4196 = vadd.f32 %v3600, %v4124
  %v4197 = vadd.f32 %v3601, %v4127
  %v4198 = vadd.f32 %v3602, %v4132
  %v4199 = vadd.f32 %v3603, %v4135
  %v4200 = vadd.f32 %v3604, %v4140
  %v4201 = vadd.f32 %v3605, %v4143
  %v4202 = vadd.f32 %v3606, %v4148
  %v4203 = vadd.f32 %v3607, %v4151
  %v4204 = vadd.f32 %v3608, %v4156
  %v4205 = vadd.f32 %v3609, %v4159
  %v4206 = vadd.f32 %v3610, %v4164
  %v4207 = vadd.f32 %v3611, %v4167
  %v4208 = vadd.f32 %v3612, %v4172
  %v4209 = vadd.f32 %v3613, %v4175
  %v4210 = vld [vmem:[%s4] sm:$0x1]
  %v4212 = vlaneseq
  %v4213 = vshrl.u32 %v4212, 7
  %v4214 = vsub.s32 0, %v4213
  %v4215 = vrot.slane %v4210, %v4214
  %v4217 = vadd.f32 %v4178, %v4215
  %v4218 = vadd.f32 %v4179, %v4215
  %v4219 = vadd.f32 %v4180, %v4215
  %v4220 = vadd.f32 %v4181, %v4215
  %v4221 = vadd.f32 %v4182, %v4215
  %v4222 = vadd.f32 %v4183, %v4215
  %v4223 = vadd.f32 %v4184, %v4215
  %v4224 = vadd.f32 %v4185, %v4215
  %v4225 = vadd.f32 %v4186, %v4215
  %v4226 = vadd.f32 %v4187, %v4215
  %v4227 = vadd.f32 %v4188, %v4215
  %v4228 = vadd.f32 %v4189, %v4215
  %v4229 = vadd.f32 %v4190, %v4215
  %v4230 = vadd.f32 %v4191, %v4215
  %v4231 = vadd.f32 %v4192, %v4215
  %v4232 = vadd.f32 %v4193, %v4215
  %v4233 = vadd.f32 %v4194, %v4215
  %v4234 = vadd.f32 %v4195, %v4215
  %v4235 = vadd.f32 %v4196, %v4215
  %v4236 = vadd.f32 %v4197, %v4215
  %v4237 = vadd.f32 %v4198, %v4215
  %v4238 = vadd.f32 %v4199, %v4215
  %v4239 = vadd.f32 %v4200, %v4215
  %v4240 = vadd.f32 %v4201, %v4215
  %v4241 = vadd.f32 %v4202, %v4215
  %v4242 = vadd.f32 %v4203, %v4215
  %v4243 = vadd.f32 %v4204, %v4215
  %v4244 = vadd.f32 %v4205, %v4215
  %v4245 = vadd.f32 %v4206, %v4215
  %v4246 = vadd.f32 %v4207, %v4215
  %v4247 = vadd.f32 %v4208, %v4215
  %v4248 = vadd.f32 %v4209, %v4215
  %v4249 = vmax.f32 %v4217, 0.0
  %v4250 = vmax.f32 %v4218, 0.0
  %v4251 = vmax.f32 %v4219, 0.0
  %v4252 = vmax.f32 %v4220, 0.0
  %v4253 = vmax.f32 %v4221, 0.0
  %v4254 = vmax.f32 %v4222, 0.0
  %v4255 = vmax.f32 %v4223, 0.0
  %v4256 = vmax.f32 %v4224, 0.0
  %v4257 = vmax.f32 %v4225, 0.0
  %v4258 = vmax.f32 %v4226, 0.0
  %v4259 = vmax.f32 %v4227, 0.0
  %v4260 = vmax.f32 %v4228, 0.0
  %v4261 = vmax.f32 %v4229, 0.0
  %v4262 = vmax.f32 %v4230, 0.0
  %v4263 = vmax.f32 %v4231, 0.0
  %v4264 = vmax.f32 %v4232, 0.0
  %v4265 = vmax.f32 %v4233, 0.0
  %v4266 = vmax.f32 %v4234, 0.0
  %v4267 = vmax.f32 %v4235, 0.0
  %v4268 = vmax.f32 %v4236, 0.0
  %v4269 = vmax.f32 %v4237, 0.0
  %v4270 = vmax.f32 %v4238, 0.0
  %v4271 = vmax.f32 %v4239, 0.0
  %v4272 = vmax.f32 %v4240, 0.0
  %v4273 = vmax.f32 %v4241, 0.0
  %v4274 = vmax.f32 %v4242, 0.0
  %v4275 = vmax.f32 %v4243, 0.0
  %v4276 = vmax.f32 %v4244, 0.0
  %v4277 = vmax.f32 %v4245, 0.0
  %v4278 = vmax.f32 %v4246, 0.0
  %v4279 = vmax.f32 %v4247, 0.0
  %v4280 = vmax.f32 %v4248, 0.0
  %v4281 = vpack.c.bf16 %v4250, %v4249
  %v4282 = vpack.c.bf16 %v4252, %v4251
  %v4283 = vpack.c.bf16 %v4254, %v4253
  %v4284 = vpack.c.bf16 %v4256, %v4255
  %v4285 = vpack.c.bf16 %v4258, %v4257
  %v4286 = vpack.c.bf16 %v4260, %v4259
  %v4287 = vpack.c.bf16 %v4262, %v4261
  %v4288 = vpack.c.bf16 %v4264, %v4263
  %v4289 = vpack.c.bf16 %v4266, %v4265
  %v4290 = vpack.c.bf16 %v4268, %v4267
  %v4291 = vpack.c.bf16 %v4270, %v4269
  %v4292 = vpack.c.bf16 %v4272, %v4271
  %v4293 = vpack.c.bf16 %v4274, %v4273
  %v4294 = vpack.c.bf16 %v4276, %v4275
  %v4295 = vpack.c.bf16 %v4278, %v4277
  %v4296 = vpack.c.bf16 %v4280, %v4279
  %v4297 = vld [vmem:[%s5] sm:$0xff]
  %v4298 = vld [vmem:[%s5 + $0x8] sm:$0xff]
  %v4299 = vld [vmem:[%s5 + $0x10] sm:$0xff]
  %v4300 = vld [vmem:[%s5 + $0x18] sm:$0xff]
  %v4301 = vld [vmem:[%s5 + $0x20] sm:$0xff]
  %v4302 = vld [vmem:[%s5 + $0x28] sm:$0xff]
  %v4303 = vld [vmem:[%s5 + $0x30] sm:$0xff]
  %v4304 = vld [vmem:[%s5 + $0x38] sm:$0xff]
  %v4305 = vld [vmem:[%s5 + $0x40] sm:$0xff]
  %v4306 = vld [vmem:[%s5 + $0x48] sm:$0xff]
  %v4307 = vld [vmem:[%s5 + $0x50] sm:$0xff]
  %v4308 = vld [vmem:[%s5 + $0x58] sm:$0xff]
  %v4309 = vld [vmem:[%s5 + $0x60] sm:$0xff]
  %v4310 = vld [vmem:[%s5 + $0x68] sm:$0xff]
  %v4311 = vld [vmem:[%s5 + $0x70] sm:$0xff]
  %v4312 = vld [vmem:[%s5 + $0x78] sm:$0xff]
  %v4313 = vld [vmem:[%s5 + $0x80] sm:$0xff]
  %v4314 = vld [vmem:[%s5 + $0x88] sm:$0xff]
  %v4315 = vld [vmem:[%s5 + $0x90] sm:$0xff]
  %v4316 = vld [vmem:[%s5 + $0x98] sm:$0xff]
  %v4317 = vld [vmem:[%s5 + $0xa0] sm:$0xff]
  %v4318 = vld [vmem:[%s5 + $0xa8] sm:$0xff]
  %v4319 = vld [vmem:[%s5 + $0xb0] sm:$0xff]
  %v4320 = vld [vmem:[%s5 + $0xb8] sm:$0xff]
  %v4321 = vld [vmem:[%s5 + $0xc0] sm:$0xff]
  %v4322 = vld [vmem:[%s5 + $0xc8] sm:$0xff]
  %v4323 = vld [vmem:[%s5 + $0xd0] sm:$0xff]
  %v4324 = vld [vmem:[%s5 + $0xd8] sm:$0xff]
  %v4325 = vld [vmem:[%s5 + $0xe0] sm:$0xff]
  %v4326 = vld [vmem:[%s5 + $0xe8] sm:$0xff]
  %v4327 = vld [vmem:[%s5 + $0xf0] sm:$0xff]
  %v4328 = vld [vmem:[%s5 + $0xf8] sm:$0xff]
  %s4329 = scalar_lea.vmem %s5, 256
  %v4330 = vld [vmem:[%s4329] sm:$0xff]
  %v4331 = vld [vmem:[%s4329 + $0x8] sm:$0xff]
  %v4332 = vld [vmem:[%s4329 + $0x10] sm:$0xff]
  %v4333 = vld [vmem:[%s4329 + $0x18] sm:$0xff]
  %v4334 = vld [vmem:[%s4329 + $0x20] sm:$0xff]
  %v4335 = vld [vmem:[%s4329 + $0x28] sm:$0xff]
  %v4336 = vld [vmem:[%s4329 + $0x30] sm:$0xff]
  %v4337 = vld [vmem:[%s4329 + $0x38] sm:$0xff]
  %v4338 = vld [vmem:[%s4329 + $0x40] sm:$0xff]
  %v4339 = vld [vmem:[%s4329 + $0x48] sm:$0xff]
  %v4340 = vld [vmem:[%s4329 + $0x50] sm:$0xff]
  %v4341 = vld [vmem:[%s4329 + $0x58] sm:$0xff]
  %v4342 = vld [vmem:[%s4329 + $0x60] sm:$0xff]
  %v4343 = vld [vmem:[%s4329 + $0x68] sm:$0xff]
  %v4344 = vld [vmem:[%s4329 + $0x70] sm:$0xff]
  %v4345 = vld [vmem:[%s4329 + $0x78] sm:$0xff]
  %v4346 = vld [vmem:[%s4329 + $0x80] sm:$0xff]
  %v4347 = vld [vmem:[%s4329 + $0x88] sm:$0xff]
  %v4348 = vld [vmem:[%s4329 + $0x90] sm:$0xff]
  %v4349 = vld [vmem:[%s4329 + $0x98] sm:$0xff]
  %v4350 = vld [vmem:[%s4329 + $0xa0] sm:$0xff]
  %v4351 = vld [vmem:[%s4329 + $0xa8] sm:$0xff]
  %v4352 = vld [vmem:[%s4329 + $0xb0] sm:$0xff]
  %v4353 = vld [vmem:[%s4329 + $0xb8] sm:$0xff]
  %v4354 = vld [vmem:[%s4329 + $0xc0] sm:$0xff]
  %v4355 = vld [vmem:[%s4329 + $0xc8] sm:$0xff]
  %v4356 = vld [vmem:[%s4329 + $0xd0] sm:$0xff]
  %v4357 = vld [vmem:[%s4329 + $0xd8] sm:$0xff]
  %v4358 = vld [vmem:[%s4329 + $0xe0] sm:$0xff]
  %v4359 = vld [vmem:[%s4329 + $0xe8] sm:$0xff]
  %v4360 = vld [vmem:[%s4329 + $0xf0] sm:$0xff]
  %v4361 = vld [vmem:[%s4329 + $0xf8] sm:$0xff]
  %v4394 = vunpack.c.l.b16 %v4330
  %v4395 = vunpack.c.h.b16 %v4330
  %v4396 = vunpack.c.l.b16 %v4331
  %v4397 = vunpack.c.h.b16 %v4331
  %v4398 = vunpack.c.l.b16 %v4332
  %v4399 = vunpack.c.h.b16 %v4332
  %v4400 = vunpack.c.l.b16 %v4333
  %v4401 = vunpack.c.h.b16 %v4333
  %v4402 = vunpack.c.l.b16 %v4334
  %v4403 = vunpack.c.h.b16 %v4334
  %v4404 = vunpack.c.l.b16 %v4335
  %v4405 = vunpack.c.h.b16 %v4335
  %v4406 = vunpack.c.l.b16 %v4336
  %v4407 = vunpack.c.h.b16 %v4336
  %v4408 = vunpack.c.l.b16 %v4337
  %v4409 = vunpack.c.h.b16 %v4337
  %v4410 = vunpack.c.l.b16 %v4338
  %v4411 = vunpack.c.h.b16 %v4338
  %v4412 = vunpack.c.l.b16 %v4339
  %v4413 = vunpack.c.h.b16 %v4339
  %v4414 = vunpack.c.l.b16 %v4340
  %v4415 = vunpack.c.h.b16 %v4340
  %v4416 = vunpack.c.l.b16 %v4341
  %v4417 = vunpack.c.h.b16 %v4341
  %v4418 = vunpack.c.l.b16 %v4342
  %v4419 = vunpack.c.h.b16 %v4342
  %v4420 = vunpack.c.l.b16 %v4343
  %v4421 = vunpack.c.h.b16 %v4343
  %v4422 = vunpack.c.l.b16 %v4344
  %v4423 = vunpack.c.h.b16 %v4344
  %v4424 = vunpack.c.l.b16 %v4345
  %v4425 = vunpack.c.h.b16 %v4345
  %v4426 = vunpack.c.l.b16 %v4346
  %v4427 = vunpack.c.h.b16 %v4346
  %v4428 = vunpack.c.l.b16 %v4347
  %v4429 = vunpack.c.h.b16 %v4347
  %v4430 = vunpack.c.l.b16 %v4348
  %v4431 = vunpack.c.h.b16 %v4348
  %v4432 = vunpack.c.l.b16 %v4349
  %v4433 = vunpack.c.h.b16 %v4349
  %v4434 = vunpack.c.l.b16 %v4350
  %v4435 = vunpack.c.h.b16 %v4350
  %v4436 = vunpack.c.l.b16 %v4351
  %v4437 = vunpack.c.h.b16 %v4351
  %v4438 = vunpack.c.l.b16 %v4352
  %v4439 = vunpack.c.h.b16 %v4352
  %v4440 = vunpack.c.l.b16 %v4353
  %v4441 = vunpack.c.h.b16 %v4353
  %v4442 = vunpack.c.l.b16 %v4354
  %v4443 = vunpack.c.h.b16 %v4354
  %v4444 = vunpack.c.l.b16 %v4355
  %v4445 = vunpack.c.h.b16 %v4355
  %v4446 = vunpack.c.l.b16 %v4356
  %v4447 = vunpack.c.h.b16 %v4356
  %v4448 = vunpack.c.l.b16 %v4357
  %v4449 = vunpack.c.h.b16 %v4357
  %v4450 = vunpack.c.l.b16 %v4358
  %v4451 = vunpack.c.h.b16 %v4358
  %v4452 = vunpack.c.l.b16 %v4359
  %v4453 = vunpack.c.h.b16 %v4359
  %v4454 = vunpack.c.l.b16 %v4360
  %v4455 = vunpack.c.h.b16 %v4360
  %v4456 = vunpack.c.l.b16 %v4361
  %v4457 = vunpack.c.h.b16 %v4361
  %v4458 = vpack.c.b16 %v4402, %v4394
  %v4459 = vpack.c.b16 %v4403, %v4395
  %v4460 = vpack.c.b16 %v4404, %v4396
  %v4461 = vpack.c.b16 %v4405, %v4397
  %v4462 = vpack.c.b16 %v4406, %v4398
  %v4463 = vpack.c.b16 %v4407, %v4399
  %v4464 = vpack.c.b16 %v4408, %v4400
  %v4465 = vpack.c.b16 %v4409, %v4401
  %v4466 = vpack.c.b16 %v4418, %v4410
  %v4467 = vpack.c.b16 %v4419, %v4411
  %v4468 = vpack.c.b16 %v4420, %v4412
  %v4469 = vpack.c.b16 %v4421, %v4413
  %v4470 = vpack.c.b16 %v4422, %v4414
  %v4471 = vpack.c.b16 %v4423, %v4415
  %v4472 = vpack.c.b16 %v4424, %v4416
  %v4473 = vpack.c.b16 %v4425, %v4417
  %v4474 = vpack.c.b16 %v4434, %v4426
  %v4475 = vpack.c.b16 %v4435, %v4427
  %v4476 = vpack.c.b16 %v4436, %v4428
  %v4477 = vpack.c.b16 %v4437, %v4429
  %v4478 = vpack.c.b16 %v4438, %v4430
  %v4479 = vpack.c.b16 %v4439, %v4431
  %v4480 = vpack.c.b16 %v4440, %v4432
  %v4481 = vpack.c.b16 %v4441, %v4433
  %v4482 = vpack.c.b16 %v4450, %v4442
  %v4483 = vpack.c.b16 %v4451, %v4443
  %v4484 = vpack.c.b16 %v4452, %v4444
  %v4485 = vpack.c.b16 %v4453, %v4445
  %v4486 = vpack.c.b16 %v4454, %v4446
  %v4487 = vpack.c.b16 %v4455, %v4447
  %v4488 = vpack.c.b16 %v4456, %v4448
  %v4489 = vpack.c.b16 %v4457, %v4449
  %vm4522 = vcmask 523264
  %v4524 = vsel %vm4522, %v4282, 0
  %4526 = vmatprep.subr.bf16.mxu0 %v4459
  %4527 = vmatpush1.bf16.msra.mxu0 %v4458
  %4528 = vmatprep.subr.bf16.mxu0 %v4467
  %4529 = vmatpush1.bf16.msra.mxu0 %v4466
  %4530 = vmatprep.subr.bf16.mxu0 %v4475
  %4531 = vmatpush1.bf16.msra.mxu0 %v4474
  %4532 = vmatprep.subr.bf16.mxu0 %v4483
  %4533 = vmatpush1.bf16.msra.mxu0 %v4482
  %4534 = vmatprep.subr.bf16.mxu0 0
  %4535 = vmatpush1.bf16.msra.mxu0 0
  %4536 = vmatprep.subr.bf16.mxu0 0
  %4537 = vmatpush1.bf16.msra.mxu0 0
  %4538 = vmatprep.subr.bf16.mxu0 0
  %4539 = vmatpush1.bf16.msra.mxu0 0
  %4540 = vmatprep.subr.bf16.mxu0 0
  %4541 = vmatpush1.bf16.msra.mxu0 0
  %4542 = vmatprep.subr.bf16.mxu0 0
  %4543 = vmatpush1.bf16.msra.mxu0 0
  %4544 = vmatprep.subr.bf16.mxu0 0
  %4545 = vmatpush1.bf16.msra.mxu0 0
  %4546 = vmatprep.subr.bf16.mxu0 0
  %4547 = vmatpush1.bf16.msra.mxu0 0
  %4548 = vmatprep.subr.bf16.mxu0 0
  %4549 = vmatpush1.bf16.msra.mxu0 0
  %4550 = vmatprep.subr.bf16.mxu0 0
  %4551 = vmatpush1.bf16.msra.mxu0 0
  %4552 = vmatprep.subr.bf16.mxu0 0
  %4553 = vmatpush1.bf16.msra.mxu0 0
  %4554 = vmatprep.subr.bf16.mxu0 0
  %4555 = vmatpush1.bf16.msra.mxu0 0
  %4556 = vmatprep.subr.bf16.mxu0 0
  %4557 = vmatpush1.bf16.msra.mxu0 0
  %4558 = vmatprep.mubr.bf16.mxu0 0
  %4559 = vmatmul.mubr.bf16.gmra.mrb[0].mxu0 %v4524
  %v4560 = vpop.f32.mrb[0].mxu0
  %v4561 = vadd.f32 0.0, %v4560
  %v4562 = vpop.f32.mrb[0].mxu0
  %v4563 = vadd.f32 0.0, %v4562
  %v4564 = vpop.f32.mrb[0].mxu0
  %v4565 = vadd.f32 0.0, %v4564
  %v4566 = vpop.f32.mrb[0].mxu0
  %v4567 = vadd.f32 0.0, %v4566
  %4568 = vdwg.mxu0
  %4569 = vmatprep.subr.bf16.mxu0 %v4461
  %4570 = vmatpush1.bf16.msra.mxu0 %v4460
  %4571 = vmatprep.subr.bf16.mxu0 %v4469
  %4572 = vmatpush1.bf16.msra.mxu0 %v4468
  %4573 = vmatprep.subr.bf16.mxu0 %v4477
  %4574 = vmatpush1.bf16.msra.mxu0 %v4476
  %4575 = vmatprep.subr.bf16.mxu0 %v4485
  %4576 = vmatpush1.bf16.msra.mxu0 %v4484
  %4577 = vmatprep.subr.bf16.mxu0 0
  %4578 = vmatpush1.bf16.msra.mxu0 0
  %4579 = vmatprep.subr.bf16.mxu0 0
  %4580 = vmatpush1.bf16.msra.mxu0 0
  %4581 = vmatprep.subr.bf16.mxu0 0
  %4582 = vmatpush1.bf16.msra.mxu0 0
  %4583 = vmatprep.subr.bf16.mxu0 0
  %4584 = vmatpush1.bf16.msra.mxu0 0
  %4585 = vmatprep.subr.bf16.mxu0 0
  %4586 = vmatpush1.bf16.msra.mxu0 0
  %4587 = vmatprep.subr.bf16.mxu0 0
  %4588 = vmatpush1.bf16.msra.mxu0 0
  %4589 = vmatprep.subr.bf16.mxu0 0
  %4590 = vmatpush1.bf16.msra.mxu0 0
  %4591 = vmatprep.subr.bf16.mxu0 0
  %4592 = vmatpush1.bf16.msra.mxu0 0
  %4593 = vmatprep.subr.bf16.mxu0 0
  %4594 = vmatpush1.bf16.msra.mxu0 0
  %4595 = vmatprep.subr.bf16.mxu0 0
  %4596 = vmatpush1.bf16.msra.mxu0 0
  %4597 = vmatprep.subr.bf16.mxu0 0
  %4598 = vmatpush1.bf16.msra.mxu0 0
  %4599 = vmatprep.subr.bf16.mxu0 0
  %4600 = vmatpush1.bf16.msra.mxu0 0
  %4601 = vmatprep.mubr.bf16.mxu0 0
  %4602 = vmatmul.mubr.bf16.gmra.mrb[0].mxu0 %v4524
  %v4603 = vpop.f32.mrb[0].mxu0
  %v4604 = vadd.f32 0.0, %v4603
  %v4605 = vpop.f32.mrb[0].mxu0
  %v4606 = vadd.f32 0.0, %v4605
  %v4607 = vpop.f32.mrb[0].mxu0
  %v4608 = vadd.f32 0.0, %v4607
  %v4609 = vpop.f32.mrb[0].mxu0
  %v4610 = vadd.f32 0.0, %v4609
  %4611 = vdwg.mxu0
  %4612 = vmatprep.subr.bf16.mxu0 %v4463
  %4613 = vmatpush1.bf16.msra.mxu0 %v4462
  %4614 = vmatprep.subr.bf16.mxu0 %v4471
  %4615 = vmatpush1.bf16.msra.mxu0 %v4470
  %4616 = vmatprep.subr.bf16.mxu0 %v4479
  %4617 = vmatpush1.bf16.msra.mxu0 %v4478
  %4618 = vmatprep.subr.bf16.mxu0 %v4487
  %4619 = vmatpush1.bf16.msra.mxu0 %v4486
  %4620 = vmatprep.subr.bf16.mxu0 0
  %4621 = vmatpush1.bf16.msra.mxu0 0
  %4622 = vmatprep.subr.bf16.mxu0 0
  %4623 = vmatpush1.bf16.msra.mxu0 0
  %4624 = vmatprep.subr.bf16.mxu0 0
  %4625 = vmatpush1.bf16.msra.mxu0 0
  %4626 = vmatprep.subr.bf16.mxu0 0
  %4627 = vmatpush1.bf16.msra.mxu0 0
  %4628 = vmatprep.subr.bf16.mxu0 0
  %4629 = vmatpush1.bf16.msra.mxu0 0
  %4630 = vmatprep.subr.bf16.mxu0 0
  %4631 = vmatpush1.bf16.msra.mxu0 0
  %4632 = vmatprep.subr.bf16.mxu0 0
  %4633 = vmatpush1.bf16.msra.mxu0 0
  %4634 = vmatprep.subr.bf16.mxu0 0
  %4635 = vmatpush1.bf16.msra.mxu0 0
  %4636 = vmatprep.subr.bf16.mxu0 0
  %4637 = vmatpush1.bf16.msra.mxu0 0
  %4638 = vmatprep.subr.bf16.mxu0 0
  %4639 = vmatpush1.bf16.msra.mxu0 0
  %4640 = vmatprep.subr.bf16.mxu0 0
  %4641 = vmatpush1.bf16.msra.mxu0 0
  %4642 = vmatprep.subr.bf16.mxu0 0
  %4643 = vmatpush1.bf16.msra.mxu0 0
  %4644 = vmatprep.mubr.bf16.mxu0 0
  %4645 = vmatmul.mubr.bf16.gmra.mrb[0].mxu0 %v4524
  %v4646 = vpop.f32.mrb[0].mxu0
  %v4647 = vadd.f32 0.0, %v4646
  %v4648 = vpop.f32.mrb[0].mxu0
  %v4649 = vadd.f32 0.0, %v4648
  %v4650 = vpop.f32.mrb[0].mxu0
  %v4651 = vadd.f32 0.0, %v4650
  %v4652 = vpop.f32.mrb[0].mxu0
  %v4653 = vadd.f32 0.0, %v4652
  %4654 = vdwg.mxu0
  %4655 = vmatprep.subr.bf16.mxu0 %v4465
  %4656 = vmatpush1.bf16.msra.mxu0 %v4464
  %4657 = vmatprep.subr.bf16.mxu0 %v4473
  %4658 = vmatpush1.bf16.msra.mxu0 %v4472
  %4659 = vmatprep.subr.bf16.mxu0 %v4481
  %4660 = vmatpush1.bf16.msra.mxu0 %v4480
  %4661 = vmatprep.subr.bf16.mxu0 %v4489
  %4662 = vmatpush1.bf16.msra.mxu0 %v4488
  %4663 = vmatprep.subr.bf16.mxu0 0
  %4664 = vmatpush1.bf16.msra.mxu0 0
  %4665 = vmatprep.subr.bf16.mxu0 0
  %4666 = vmatpush1.bf16.msra.mxu0 0
  %4667 = vmatprep.subr.bf16.mxu0 0
  %4668 = vmatpush1.bf16.msra.mxu0 0
  %4669 = vmatprep.subr.bf16.mxu0 0
  %4670 = vmatpush1.bf16.msra.mxu0 0
  %4671 = vmatprep.subr.bf16.mxu0 0
  %4672 = vmatpush1.bf16.msra.mxu0 0
  %4673 = vmatprep.subr.bf16.mxu0 0
  %4674 = vmatpush1.bf16.msra.mxu0 0
  %4675 = vmatprep.subr.bf16.mxu0 0
  %4676 = vmatpush1.bf16.msra.mxu0 0
  %4677 = vmatprep.subr.bf16.mxu0 0
  %4678 = vmatpush1.bf16.msra.mxu0 0
  %4679 = vmatprep.subr.bf16.mxu0 0
  %4680 = vmatpush1.bf16.msra.mxu0 0
  %4681 = vmatprep.subr.bf16.mxu0 0
  %4682 = vmatpush1.bf16.msra.mxu0 0
  %4683 = vmatprep.subr.bf16.mxu0 0
  %4684 = vmatpush1.bf16.msra.mxu0 0
  %4685 = vmatprep.subr.bf16.mxu0 0
  %4686 = vmatpush1.bf16.msra.mxu0 0
  %4687 = vmatprep.mubr.bf16.mxu0 0
  %4688 = vmatmul.mubr.bf16.gmra.mrb[0].mxu0 %v4524
  %v4689 = vpop.f32.mrb[0].mxu0
  %v4690 = vadd.f32 0.0, %v4689
  %v4691 = vpop.f32.mrb[0].mxu0
  %v4692 = vadd.f32 0.0, %v4691
  %v4693 = vpop.f32.mrb[0].mxu0
  %v4694 = vadd.f32 0.0, %v4693
  %v4695 = vpop.f32.mrb[0].mxu0
  %v4696 = vadd.f32 0.0, %v4695
  %4697 = vdwg.mxu0
  %v4730 = vunpack.c.l.b16 %v4297
  %v4731 = vunpack.c.h.b16 %v4297
  %v4732 = vunpack.c.l.b16 %v4298
  %v4733 = vunpack.c.h.b16 %v4298
  %v4734 = vunpack.c.l.b16 %v4299
  %v4735 = vunpack.c.h.b16 %v4299
  %v4736 = vunpack.c.l.b16 %v4300
  %v4737 = vunpack.c.h.b16 %v4300
  %v4738 = vunpack.c.l.b16 %v4301
  %v4739 = vunpack.c.h.b16 %v4301
  %v4740 = vunpack.c.l.b16 %v4302
  %v4741 = vunpack.c.h.b16 %v4302
  %v4742 = vunpack.c.l.b16 %v4303
  %v4743 = vunpack.c.h.b16 %v4303
  %v4744 = vunpack.c.l.b16 %v4304
  %v4745 = vunpack.c.h.b16 %v4304
  %v4746 = vunpack.c.l.b16 %v4305
  %v4747 = vunpack.c.h.b16 %v4305
  %v4748 = vunpack.c.l.b16 %v4306
  %v4749 = vunpack.c.h.b16 %v4306
  %v4750 = vunpack.c.l.b16 %v4307
  %v4751 = vunpack.c.h.b16 %v4307
  %v4752 = vunpack.c.l.b16 %v4308
  %v4753 = vunpack.c.h.b16 %v4308
  %v4754 = vunpack.c.l.b16 %v4309
  %v4755 = vunpack.c.h.b16 %v4309
  %v4756 = vunpack.c.l.b16 %v4310
  %v4757 = vunpack.c.h.b16 %v4310
  %v4758 = vunpack.c.l.b16 %v4311
  %v4759 = vunpack.c.h.b16 %v4311
  %v4760 = vunpack.c.l.b16 %v4312
  %v4761 = vunpack.c.h.b16 %v4312
  %v4762 = vunpack.c.l.b16 %v4313
  %v4763 = vunpack.c.h.b16 %v4313
  %v4764 = vunpack.c.l.b16 %v4314
  %v4765 = vunpack.c.h.b16 %v4314
  %v4766 = vunpack.c.l.b16 %v4315
  %v4767 = vunpack.c.h.b16 %v4315
  %v4768 = vunpack.c.l.b16 %v4316
  %v4769 = vunpack.c.h.b16 %v4316
  %v4770 = vunpack.c.l.b16 %v4317
  %v4771 = vunpack.c.h.b16 %v4317
  %v4772 = vunpack.c.l.b16 %v4318
  %v4773 = vunpack.c.h.b16 %v4318
  %v4774 = vunpack.c.l.b16 %v4319
  %v4775 = vunpack.c.h.b16 %v4319
  %v4776 = vunpack.c.l.b16 %v4320
  %v4777 = vunpack.c.h.b16 %v4320
  %v4778 = vunpack.c.l.b16 %v4321
  %v4779 = vunpack.c.h.b16 %v4321
  %v4780 = vunpack.c.l.b16 %v4322
  %v4781 = vunpack.c.h.b16 %v4322
  %v4782 = vunpack.c.l.b16 %v4323
  %v4783 = vunpack.c.h.b16 %v4323
  %v4784 = vunpack.c.l.b16 %v4324
  %v4785 = vunpack.c.h.b16 %v4324
  %v4786 = vunpack.c.l.b16 %v4325
  %v4787 = vunpack.c.h.b16 %v4325
  %v4788 = vunpack.c.l.b16 %v4326
  %v4789 = vunpack.c.h.b16 %v4326
  %v4790 = vunpack.c.l.b16 %v4327
  %v4791 = vunpack.c.h.b16 %v4327
  %v4792 = vunpack.c.l.b16 %v4328
  %v4793 = vunpack.c.h.b16 %v4328
  %v4794 = vpack.c.b16 %v4738, %v4730
  %v4795 = vpack.c.b16 %v4739, %v4731
  %v4796 = vpack.c.b16 %v4740, %v4732
  %v4797 = vpack.c.b16 %v4741, %v4733
  %v4798 = vpack.c.b16 %v4742, %v4734
  %v4799 = vpack.c.b16 %v4743, %v4735
  %v4800 = vpack.c.b16 %v4744, %v4736
  %v4801 = vpack.c.b16 %v4745, %v4737
  %v4802 = vpack.c.b16 %v4754, %v4746
  %v4803 = vpack.c.b16 %v4755, %v4747
  %v4804 = vpack.c.b16 %v4756, %v4748
  %v4805 = vpack.c.b16 %v4757, %v4749
  %v4806 = vpack.c.b16 %v4758, %v4750
  %v4807 = vpack.c.b16 %v4759, %v4751
  %v4808 = vpack.c.b16 %v4760, %v4752
  %v4809 = vpack.c.b16 %v4761, %v4753
  %v4810 = vpack.c.b16 %v4770, %v4762
  %v4811 = vpack.c.b16 %v4771, %v4763
  %v4812 = vpack.c.b16 %v4772, %v4764
  %v4813 = vpack.c.b16 %v4773, %v4765
  %v4814 = vpack.c.b16 %v4774, %v4766
  %v4815 = vpack.c.b16 %v4775, %v4767
  %v4816 = vpack.c.b16 %v4776, %v4768
  %v4817 = vpack.c.b16 %v4777, %v4769
  %v4818 = vpack.c.b16 %v4786, %v4778
  %v4819 = vpack.c.b16 %v4787, %v4779
  %v4820 = vpack.c.b16 %v4788, %v4780
  %v4821 = vpack.c.b16 %v4789, %v4781
  %v4822 = vpack.c.b16 %v4790, %v4782
  %v4823 = vpack.c.b16 %v4791, %v4783
  %v4824 = vpack.c.b16 %v4792, %v4784
  %v4825 = vpack.c.b16 %v4793, %v4785
  %v4859 = vsel %vm4522, %v4281, 0
  %4861 = vmatprep.subr.bf16.mxu0 %v4795
  %4862 = vmatpush1.bf16.msra.mxu0 %v4794
  %4863 = vmatprep.subr.bf16.mxu0 %v4803
  %4864 = vmatpush1.bf16.msra.mxu0 %v4802
  %4865 = vmatprep.subr.bf16.mxu0 %v4811
  %4866 = vmatpush1.bf16.msra.mxu0 %v4810
  %4867 = vmatprep.subr.bf16.mxu0 %v4819
  %4868 = vmatpush1.bf16.msra.mxu0 %v4818
  %4869 = vmatprep.subr.bf16.mxu0 0
  %4870 = vmatpush1.bf16.msra.mxu0 0
  %4871 = vmatprep.subr.bf16.mxu0 0
  %4872 = vmatpush1.bf16.msra.mxu0 0
  %4873 = vmatprep.subr.bf16.mxu0 0
  %4874 = vmatpush1.bf16.msra.mxu0 0
  %4875 = vmatprep.subr.bf16.mxu0 0
  %4876 = vmatpush1.bf16.msra.mxu0 0
  %4877 = vmatprep.subr.bf16.mxu0 0
  %4878 = vmatpush1.bf16.msra.mxu0 0
  %4879 = vmatprep.subr.bf16.mxu0 0
  %4880 = vmatpush1.bf16.msra.mxu0 0
  %4881 = vmatprep.subr.bf16.mxu0 0
  %4882 = vmatpush1.bf16.msra.mxu0 0
  %4883 = vmatprep.subr.bf16.mxu0 0
  %4884 = vmatpush1.bf16.msra.mxu0 0
  %4885 = vmatprep.subr.bf16.mxu0 0
  %4886 = vmatpush1.bf16.msra.mxu0 0
  %4887 = vmatprep.subr.bf16.mxu0 0
  %4888 = vmatpush1.bf16.msra.mxu0 0
  %4889 = vmatprep.subr.bf16.mxu0 0
  %4890 = vmatpush1.bf16.msra.mxu0 0
  %4891 = vmatprep.subr.bf16.mxu0 0
  %4892 = vmatpush1.bf16.msra.mxu0 0
  %4893 = vmatprep.mubr.bf16.mxu0 0
  %4894 = vmatmul.mubr.bf16.gmra.mrb[0].mxu0 %v4859
  %v4895 = vpop.f32.mrb[0].mxu0
  %v4896 = vadd.f32 %v4561, %v4895
  %v4897 = vpop.f32.mrb[0].mxu0
  %v4898 = vadd.f32 %v4563, %v4897
  %v4899 = vpop.f32.mrb[0].mxu0
  %v4900 = vadd.f32 %v4565, %v4899
  %v4901 = vpop.f32.mrb[0].mxu0
  %v4902 = vadd.f32 %v4567, %v4901
  %4903 = vdwg.mxu0
  %4904 = vmatprep.subr.bf16.mxu0 %v4797
  %4905 = vmatpush1.bf16.msra.mxu0 %v4796
  %4906 = vmatprep.subr.bf16.mxu0 %v4805
  %4907 = vmatpush1.bf16.msra.mxu0 %v4804
  %4908 = vmatprep.subr.bf16.mxu0 %v4813
  %4909 = vmatpush1.bf16.msra.mxu0 %v4812
  %4910 = vmatprep.subr.bf16.mxu0 %v4821
  %4911 = vmatpush1.bf16.msra.mxu0 %v4820
  %4912 = vmatprep.subr.bf16.mxu0 0
  %4913 = vmatpush1.bf16.msra.mxu0 0
  %4914 = vmatprep.subr.bf16.mxu0 0
  %4915 = vmatpush1.bf16.msra.mxu0 0
  %4916 = vmatprep.subr.bf16.mxu0 0
  %4917 = vmatpush1.bf16.msra.mxu0 0
  %4918 = vmatprep.subr.bf16.mxu0 0
  %4919 = vmatpush1.bf16.msra.mxu0 0
  %4920 = vmatprep.subr.bf16.mxu0 0
  %4921 = vmatpush1.bf16.msra.mxu0 0
  %4922 = vmatprep.subr.bf16.mxu0 0
  %4923 = vmatpush1.bf16.msra.mxu0 0
  %4924 = vmatprep.subr.bf16.mxu0 0
  %4925 = vmatpush1.bf16.msra.mxu0 0
  %4926 = vmatprep.subr.bf16.mxu0 0
  %4927 = vmatpush1.bf16.msra.mxu0 0
  %4928 = vmatprep.subr.bf16.mxu0 0
  %4929 = vmatpush1.bf16.msra.mxu0 0
  %4930 = vmatprep.subr.bf16.mxu0 0
  %4931 = vmatpush1.bf16.msra.mxu0 0
  %4932 = vmatprep.subr.bf16.mxu0 0
  %4933 = vmatpush1.bf16.msra.mxu0 0
  %4934 = vmatprep.subr.bf16.mxu0 0
  %4935 = vmatpush1.bf16.msra.mxu0 0
  %4936 = vmatprep.mubr.bf16.mxu0 0
  %4937 = vmatmul.mubr.bf16.gmra.mrb[0].mxu0 %v4859
  %v4938 = vpop.f32.mrb[0].mxu0
  %v4939 = vadd.f32 %v4604, %v4938
  %v4940 = vpop.f32.mrb[0].mxu0
  %v4941 = vadd.f32 %v4606, %v4940
  %v4942 = vpop.f32.mrb[0].mxu0
  %v4943 = vadd.f32 %v4608, %v4942
  %v4944 = vpop.f32.mrb[0].mxu0
  %v4945 = vadd.f32 %v4610, %v4944
  %4946 = vdwg.mxu0
  %4947 = vmatprep.subr.bf16.mxu0 %v4799
  %4948 = vmatpush1.bf16.msra.mxu0 %v4798
  %4949 = vmatprep.subr.bf16.mxu0 %v4807
  %4950 = vmatpush1.bf16.msra.mxu0 %v4806
  %4951 = vmatprep.subr.bf16.mxu0 %v4815
  %4952 = vmatpush1.bf16.msra.mxu0 %v4814
  %4953 = vmatprep.subr.bf16.mxu0 %v4823
  %4954 = vmatpush1.bf16.msra.mxu0 %v4822
  %4955 = vmatprep.subr.bf16.mxu0 0
  %4956 = vmatpush1.bf16.msra.mxu0 0
  %4957 = vmatprep.subr.bf16.mxu0 0
  %4958 = vmatpush1.bf16.msra.mxu0 0
  %4959 = vmatprep.subr.bf16.mxu0 0
  %4960 = vmatpush1.bf16.msra.mxu0 0
  %4961 = vmatprep.subr.bf16.mxu0 0
  %4962 = vmatpush1.bf16.msra.mxu0 0
  %4963 = vmatprep.subr.bf16.mxu0 0
  %4964 = vmatpush1.bf16.msra.mxu0 0
  %4965 = vmatprep.subr.bf16.mxu0 0
  %4966 = vmatpush1.bf16.msra.mxu0 0
  %4967 = vmatprep.subr.bf16.mxu0 0
  %4968 = vmatpush1.bf16.msra.mxu0 0
  %4969 = vmatprep.subr.bf16.mxu0 0
  %4970 = vmatpush1.bf16.msra.mxu0 0
  %4971 = vmatprep.subr.bf16.mxu0 0
  %4972 = vmatpush1.bf16.msra.mxu0 0
  %4973 = vmatprep.subr.bf16.mxu0 0
  %4974 = vmatpush1.bf16.msra.mxu0 0
  %4975 = vmatprep.subr.bf16.mxu0 0
  %4976 = vmatpush1.bf16.msra.mxu0 0
  %4977 = vmatprep.subr.bf16.mxu0 0
  %4978 = vmatpush1.bf16.msra.mxu0 0
  %4979 = vmatprep.mubr.bf16.mxu0 0
  %4980 = vmatmul.mubr.bf16.gmra.mrb[0].mxu0 %v4859
  %v4981 = vpop.f32.mrb[0].mxu0
  %v4982 = vadd.f32 %v4647, %v4981
  %v4983 = vpop.f32.mrb[0].mxu0
  %v4984 = vadd.f32 %v4649, %v4983
  %v4985 = vpop.f32.mrb[0].mxu0
  %v4986 = vadd.f32 %v4651, %v4985
  %v4987 = vpop.f32.mrb[0].mxu0
  %v4988 = vadd.f32 %v4653, %v4987
  %4989 = vdwg.mxu0
  %4990 = vmatprep.subr.bf16.mxu0 %v4801
  %4991 = vmatpush1.bf16.msra.mxu0 %v4800
  %4992 = vmatprep.subr.bf16.mxu0 %v4809
  %4993 = vmatpush1.bf16.msra.mxu0 %v4808
  %4994 = vmatprep.subr.bf16.mxu0 %v4817
  %4995 = vmatpush1.bf16.msra.mxu0 %v4816
  %4996 = vmatprep.subr.bf16.mxu0 %v4825
  %4997 = vmatpush1.bf16.msra.mxu0 %v4824
  %4998 = vmatprep.subr.bf16.mxu0 0
  %4999 = vmatpush1.bf16.msra.mxu0 0
  %5000 = vmatprep.subr.bf16.mxu0 0
  %5001 = vmatpush1.bf16.msra.mxu0 0
  %5002 = vmatprep.subr.bf16.mxu0 0
  %5003 = vmatpush1.bf16.msra.mxu0 0
  %5004 = vmatprep.subr.bf16.mxu0 0
  %5005 = vmatpush1.bf16.msra.mxu0 0
  %5006 = vmatprep.subr.bf16.mxu0 0
  %5007 = vmatpush1.bf16.msra.mxu0 0
  %5008 = vmatprep.subr.bf16.mxu0 0
  %5009 = vmatpush1.bf16.msra.mxu0 0
  %5010 = vmatprep.subr.bf16.mxu0 0
  %5011 = vmatpush1.bf16.msra.mxu0 0
  %5012 = vmatprep.subr.bf16.mxu0 0
  %5013 = vmatpush1.bf16.msra.mxu0 0
  %5014 = vmatprep.subr.bf16.mxu0 0
  %5015 = vmatpush1.bf16.msra.mxu0 0
  %5016 = vmatprep.subr.bf16.mxu0 0
  %5017 = vmatpush1.bf16.msra.mxu0 0
  %5018 = vmatprep.subr.bf16.mxu0 0
  %5019 = vmatpush1.bf16.msra.mxu0 0
  %5020 = vmatprep.subr.bf16.mxu0 0
  %5021 = vmatpush1.bf16.msra.mxu0 0
  %5022 = vmatprep.mubr.bf16.mxu0 0
  %5023 = vmatmul.mubr.bf16.gmra.mrb[0].mxu0 %v4859
  %v5024 = vpop.f32.mrb[0].mxu0
  %v5025 = vadd.f32 %v4690, %v5024
  %v5026 = vpop.f32.mrb[0].mxu0
  %v5027 = vadd.f32 %v4692, %v5026
  %v5028 = vpop.f32.mrb[0].mxu0
  %v5029 = vadd.f32 %v4694, %v5028
  %v5030 = vpop.f32.mrb[0].mxu0
  %v5031 = vadd.f32 %v4696, %v5030
  %5032 = vdwg.mxu0
  %s5033 = scalar_lea.vmem %s5, 512
  %v5034 = vld [vmem:[%s5033] sm:$0xff]
  %v5035 = vld [vmem:[%s5033 + $0x8] sm:$0xff]
  %v5036 = vld [vmem:[%s5033 + $0x10] sm:$0xff]
  %v5037 = vld [vmem:[%s5033 + $0x18] sm:$0xff]
  %v5038 = vld [vmem:[%s5033 + $0x20] sm:$0xff]
  %v5039 = vld [vmem:[%s5033 + $0x28] sm:$0xff]
  %v5040 = vld [vmem:[%s5033 + $0x30] sm:$0xff]
  %v5041 = vld [vmem:[%s5033 + $0x38] sm:$0xff]
  %v5042 = vld [vmem:[%s5033 + $0x40] sm:$0xff]
  %v5043 = vld [vmem:[%s5033 + $0x48] sm:$0xff]
  %v5044 = vld [vmem:[%s5033 + $0x50] sm:$0xff]
  %v5045 = vld [vmem:[%s5033 + $0x58] sm:$0xff]
  %v5046 = vld [vmem:[%s5033 + $0x60] sm:$0xff]
  %v5047 = vld [vmem:[%s5033 + $0x68] sm:$0xff]
  %v5048 = vld [vmem:[%s5033 + $0x70] sm:$0xff]
  %v5049 = vld [vmem:[%s5033 + $0x78] sm:$0xff]
  %v5050 = vld [vmem:[%s5033 + $0x80] sm:$0xff]
  %v5051 = vld [vmem:[%s5033 + $0x88] sm:$0xff]
  %v5052 = vld [vmem:[%s5033 + $0x90] sm:$0xff]
  %v5053 = vld [vmem:[%s5033 + $0x98] sm:$0xff]
  %v5054 = vld [vmem:[%s5033 + $0xa0] sm:$0xff]
  %v5055 = vld [vmem:[%s5033 + $0xa8] sm:$0xff]
  %v5056 = vld [vmem:[%s5033 + $0xb0] sm:$0xff]
  %v5057 = vld [vmem:[%s5033 + $0xb8] sm:$0xff]
  %v5058 = vld [vmem:[%s5033 + $0xc0] sm:$0xff]
  %v5059 = vld [vmem:[%s5033 + $0xc8] sm:$0xff]
  %v5060 = vld [vmem:[%s5033 + $0xd0] sm:$0xff]
  %v5061 = vld [vmem:[%s5033 + $0xd8] sm:$0xff]
  %v5062 = vld [vmem:[%s5033 + $0xe0] sm:$0xff]
  %v5063 = vld [vmem:[%s5033 + $0xe8] sm:$0xff]
  %v5064 = vld [vmem:[%s5033 + $0xf0] sm:$0xff]
  %v5065 = vld [vmem:[%s5033 + $0xf8] sm:$0xff]
  %v5098 = vunpack.c.l.b16 %v5034
  %v5099 = vunpack.c.h.b16 %v5034
  %v5100 = vunpack.c.l.b16 %v5035
  %v5101 = vunpack.c.h.b16 %v5035
  %v5102 = vunpack.c.l.b16 %v5036
  %v5103 = vunpack.c.h.b16 %v5036
  %v5104 = vunpack.c.l.b16 %v5037
  %v5105 = vunpack.c.h.b16 %v5037
  %v5106 = vunpack.c.l.b16 %v5038
  %v5107 = vunpack.c.h.b16 %v5038
  %v5108 = vunpack.c.l.b16 %v5039
  %v5109 = vunpack.c.h.b16 %v5039
  %v5110 = vunpack.c.l.b16 %v5040
  %v5111 = vunpack.c.h.b16 %v5040
  %v5112 = vunpack.c.l.b16 %v5041
  %v5113 = vunpack.c.h.b16 %v5041
  %v5114 = vunpack.c.l.b16 %v5042
  %v5115 = vunpack.c.h.b16 %v5042
  %v5116 = vunpack.c.l.b16 %v5043
  %v5117 = vunpack.c.h.b16 %v5043
  %v5118 = vunpack.c.l.b16 %v5044
  %v5119 = vunpack.c.h.b16 %v5044
  %v5120 = vunpack.c.l.b16 %v5045
  %v5121 = vunpack.c.h.b16 %v5045
  %v5122 = vunpack.c.l.b16 %v5046
  %v5123 = vunpack.c.h.b16 %v5046
  %v5124 = vunpack.c.l.b16 %v5047
  %v5125 = vunpack.c.h.b16 %v5047
  %v5126 = vunpack.c.l.b16 %v5048
  %v5127 = vunpack.c.h.b16 %v5048
  %v5128 = vunpack.c.l.b16 %v5049
  %v5129 = vunpack.c.h.b16 %v5049
  %v5130 = vunpack.c.l.b16 %v5050
  %v5131 = vunpack.c.h.b16 %v5050
  %v5132 = vunpack.c.l.b16 %v5051
  %v5133 = vunpack.c.h.b16 %v5051
  %v5134 = vunpack.c.l.b16 %v5052
  %v5135 = vunpack.c.h.b16 %v5052
  %v5136 = vunpack.c.l.b16 %v5053
  %v5137 = vunpack.c.h.b16 %v5053
  %v5138 = vunpack.c.l.b16 %v5054
  %v5139 = vunpack.c.h.b16 %v5054
  %v5140 = vunpack.c.l.b16 %v5055
  %v5141 = vunpack.c.h.b16 %v5055
  %v5142 = vunpack.c.l.b16 %v5056
  %v5143 = vunpack.c.h.b16 %v5056
  %v5144 = vunpack.c.l.b16 %v5057
  %v5145 = vunpack.c.h.b16 %v5057
  %v5146 = vunpack.c.l.b16 %v5058
  %v5147 = vunpack.c.h.b16 %v5058
  %v5148 = vunpack.c.l.b16 %v5059
  %v5149 = vunpack.c.h.b16 %v5059
  %v5150 = vunpack.c.l.b16 %v5060
  %v5151 = vunpack.c.h.b16 %v5060
  %v5152 = vunpack.c.l.b16 %v5061
  %v5153 = vunpack.c.h.b16 %v5061
  %v5154 = vunpack.c.l.b16 %v5062
  %v5155 = vunpack.c.h.b16 %v5062
  %v5156 = vunpack.c.l.b16 %v5063
  %v5157 = vunpack.c.h.b16 %v5063
  %v5158 = vunpack.c.l.b16 %v5064
  %v5159 = vunpack.c.h.b16 %v5064
  %v5160 = vunpack.c.l.b16 %v5065
  %v5161 = vunpack.c.h.b16 %v5065
  %v5162 = vpack.c.b16 %v5106, %v5098
  %v5163 = vpack.c.b16 %v5107, %v5099
  %v5164 = vpack.c.b16 %v5108, %v5100
  %v5165 = vpack.c.b16 %v5109, %v5101
  %v5166 = vpack.c.b16 %v5110, %v5102
  %v5167 = vpack.c.b16 %v5111, %v5103
  %v5168 = vpack.c.b16 %v5112, %v5104
  %v5169 = vpack.c.b16 %v5113, %v5105
  %v5170 = vpack.c.b16 %v5122, %v5114
  %v5171 = vpack.c.b16 %v5123, %v5115
  %v5172 = vpack.c.b16 %v5124, %v5116
  %v5173 = vpack.c.b16 %v5125, %v5117
  %v5174 = vpack.c.b16 %v5126, %v5118
  %v5175 = vpack.c.b16 %v5127, %v5119
  %v5176 = vpack.c.b16 %v5128, %v5120
  %v5177 = vpack.c.b16 %v5129, %v5121
  %v5178 = vpack.c.b16 %v5138, %v5130
  %v5179 = vpack.c.b16 %v5139, %v5131
  %v5180 = vpack.c.b16 %v5140, %v5132
  %v5181 = vpack.c.b16 %v5141, %v5133
  %v5182 = vpack.c.b16 %v5142, %v5134
  %v5183 = vpack.c.b16 %v5143, %v5135
  %v5184 = vpack.c.b16 %v5144, %v5136
  %v5185 = vpack.c.b16 %v5145, %v5137
  %v5186 = vpack.c.b16 %v5154, %v5146
  %v5187 = vpack.c.b16 %v5155, %v5147
  %v5188 = vpack.c.b16 %v5156, %v5148
  %v5189 = vpack.c.b16 %v5157, %v5149
  %v5190 = vpack.c.b16 %v5158, %v5150
  %v5191 = vpack.c.b16 %v5159, %v5151
  %v5192 = vpack.c.b16 %v5160, %v5152
  %v5193 = vpack.c.b16 %v5161, %v5153
  %v5227 = vsel %vm4522, %v4283, 0
  %5229 = vmatprep.subr.bf16.mxu0 %v5163
  %5230 = vmatpush1.bf16.msra.mxu0 %v5162
  %5231 = vmatprep.subr.bf16.mxu0 %v5171
  %5232 = vmatpush1.bf16.msra.mxu0 %v5170
  %5233 = vmatprep.subr.bf16.mxu0 %v5179
  %5234 = vmatpush1.bf16.msra.mxu0 %v5178
  %5235 = vmatprep.subr.bf16.mxu0 %v5187
  %5236 = vmatpush1.bf16.msra.mxu0 %v5186
  %5237 = vmatprep.subr.bf16.mxu0 0
  %5238 = vmatpush1.bf16.msra.mxu0 0
  %5239 = vmatprep.subr.bf16.mxu0 0
  %5240 = vmatpush1.bf16.msra.mxu0 0
  %5241 = vmatprep.subr.bf16.mxu0 0
  %5242 = vmatpush1.bf16.msra.mxu0 0
  %5243 = vmatprep.subr.bf16.mxu0 0
  %5244 = vmatpush1.bf16.msra.mxu0 0
  %5245 = vmatprep.subr.bf16.mxu0 0
  %5246 = vmatpush1.bf16.msra.mxu0 0
  %5247 = vmatprep.subr.bf16.mxu0 0
  %5248 = vmatpush1.bf16.msra.mxu0 0
  %5249 = vmatprep.subr.bf16.mxu0 0
  %5250 = vmatpush1.bf16.msra.mxu0 0
  %5251 = vmatprep.subr.bf16.mxu0 0
  %5252 = vmatpush1.bf16.msra.mxu0 0
  %5253 = vmatprep.subr.bf16.mxu0 0
  %5254 = vmatpush1.bf16.msra.mxu0 0
  %5255 = vmatprep.subr.bf16.mxu0 0
  %5256 = vmatpush1.bf16.msra.mxu0 0
  %5257 = vmatprep.subr.bf16.mxu0 0
  %5258 = vmatpush1.bf16.msra.mxu0 0
  %5259 = vmatprep.subr.bf16.mxu0 0
  %5260 = vmatpush1.bf16.msra.mxu0 0
  %5261 = vmatprep.mubr.bf16.mxu0 0
  %5262 = vmatmul.mubr.bf16.gmra.mrb[0].mxu0 %v5227
  %v5263 = vpop.f32.mrb[0].mxu0
  %v5264 = vadd.f32 0.0, %v5263
  %v5265 = vpop.f32.mrb[0].mxu0
  %v5266 = vadd.f32 0.0, %v5265
  %v5267 = vpop.f32.mrb[0].mxu0
  %v5268 = vadd.f32 0.0, %v5267
  %v5269 = vpop.f32.mrb[0].mxu0
  %v5270 = vadd.f32 0.0, %v5269
  %5271 = vdwg.mxu0
  %5272 = vmatprep.subr.bf16.mxu0 %v5165
  %5273 = vmatpush1.bf16.msra.mxu0 %v5164
  %5274 = vmatprep.subr.bf16.mxu0 %v5173
  %5275 = vmatpush1.bf16.msra.mxu0 %v5172
  %5276 = vmatprep.subr.bf16.mxu0 %v5181
  %5277 = vmatpush1.bf16.msra.mxu0 %v5180
  %5278 = vmatprep.subr.bf16.mxu0 %v5189
  %5279 = vmatpush1.bf16.msra.mxu0 %v5188
  %5280 = vmatprep.subr.bf16.mxu0 0
  %5281 = vmatpush1.bf16.msra.mxu0 0
  %5282 = vmatprep.subr.bf16.mxu0 0
  %5283 = vmatpush1.bf16.msra.mxu0 0
  %5284 = vmatprep.subr.bf16.mxu0 0
  %5285 = vmatpush1.bf16.msra.mxu0 0
  %5286 = vmatprep.subr.bf16.mxu0 0
  %5287 = vmatpush1.bf16.msra.mxu0 0
  %5288 = vmatprep.subr.bf16.mxu0 0
  %5289 = vmatpush1.bf16.msra.mxu0 0
  %5290 = vmatprep.subr.bf16.mxu0 0
  %5291 = vmatpush1.bf16.msra.mxu0 0
  %5292 = vmatprep.subr.bf16.mxu0 0
  %5293 = vmatpush1.bf16.msra.mxu0 0
  %5294 = vmatprep.subr.bf16.mxu0 0
  %5295 = vmatpush1.bf16.msra.mxu0 0
  %5296 = vmatprep.subr.bf16.mxu0 0
  %5297 = vmatpush1.bf16.msra.mxu0 0
  %5298 = vmatprep.subr.bf16.mxu0 0
  %5299 = vmatpush1.bf16.msra.mxu0 0
  %5300 = vmatprep.subr.bf16.mxu0 0
  %5301 = vmatpush1.bf16.msra.mxu0 0
  %5302 = vmatprep.subr.bf16.mxu0 0
  %5303 = vmatpush1.bf16.msra.mxu0 0
  %5304 = vmatprep.mubr.bf16.mxu0 0
  %5305 = vmatmul.mubr.bf16.gmra.mrb[0].mxu0 %v5227
  %v5306 = vpop.f32.mrb[0].mxu0
  %v5307 = vadd.f32 0.0, %v5306
  %v5308 = vpop.f32.mrb[0].mxu0
  %v5309 = vadd.f32 0.0, %v5308
  %v5310 = vpop.f32.mrb[0].mxu0
  %v5311 = vadd.f32 0.0, %v5310
  %v5312 = vpop.f32.mrb[0].mxu0
  %v5313 = vadd.f32 0.0, %v5312
  %5314 = vdwg.mxu0
  %5315 = vmatprep.subr.bf16.mxu0 %v5167
  %5316 = vmatpush1.bf16.msra.mxu0 %v5166
  %5317 = vmatprep.subr.bf16.mxu0 %v5175
  %5318 = vmatpush1.bf16.msra.mxu0 %v5174
  %5319 = vmatprep.subr.bf16.mxu0 %v5183
  %5320 = vmatpush1.bf16.msra.mxu0 %v5182
  %5321 = vmatprep.subr.bf16.mxu0 %v5191
  %5322 = vmatpush1.bf16.msra.mxu0 %v5190
  %5323 = vmatprep.subr.bf16.mxu0 0
  %5324 = vmatpush1.bf16.msra.mxu0 0
  %5325 = vmatprep.subr.bf16.mxu0 0
  %5326 = vmatpush1.bf16.msra.mxu0 0
  %5327 = vmatprep.subr.bf16.mxu0 0
  %5328 = vmatpush1.bf16.msra.mxu0 0
  %5329 = vmatprep.subr.bf16.mxu0 0
  %5330 = vmatpush1.bf16.msra.mxu0 0
  %5331 = vmatprep.subr.bf16.mxu0 0
  %5332 = vmatpush1.bf16.msra.mxu0 0
  %5333 = vmatprep.subr.bf16.mxu0 0
  %5334 = vmatpush1.bf16.msra.mxu0 0
  %5335 = vmatprep.subr.bf16.mxu0 0
  %5336 = vmatpush1.bf16.msra.mxu0 0
  %5337 = vmatprep.subr.bf16.mxu0 0
  %5338 = vmatpush1.bf16.msra.mxu0 0
  %5339 = vmatprep.subr.bf16.mxu0 0
  %5340 = vmatpush1.bf16.msra.mxu0 0
  %5341 = vmatprep.subr.bf16.mxu0 0
  %5342 = vmatpush1.bf16.msra.mxu0 0
  %5343 = vmatprep.subr.bf16.mxu0 0
  %5344 = vmatpush1.bf16.msra.mxu0 0
  %5345 = vmatprep.subr.bf16.mxu0 0
  %5346 = vmatpush1.bf16.msra.mxu0 0
  %5347 = vmatprep.mubr.bf16.mxu0 0
  %5348 = vmatmul.mubr.bf16.gmra.mrb[0].mxu0 %v5227
  %v5349 = vpop.f32.mrb[0].mxu0
  %v5350 = vadd.f32 0.0, %v5349
  %v5351 = vpop.f32.mrb[0].mxu0
  %v5352 = vadd.f32 0.0, %v5351
  %v5353 = vpop.f32.mrb[0].mxu0
  %v5354 = vadd.f32 0.0, %v5353
  %v5355 = vpop.f32.mrb[0].mxu0
  %v5356 = vadd.f32 0.0, %v5355
  %5357 = vdwg.mxu0
  %5358 = vmatprep.subr.bf16.mxu0 %v5169
  %5359 = vmatpush1.bf16.msra.mxu0 %v5168
  %5360 = vmatprep.subr.bf16.mxu0 %v5177
  %5361 = vmatpush1.bf16.msra.mxu0 %v5176
  %5362 = vmatprep.subr.bf16.mxu0 %v5185
  %5363 = vmatpush1.bf16.msra.mxu0 %v5184
  %5364 = vmatprep.subr.bf16.mxu0 %v5193
  %5365 = vmatpush1.bf16.msra.mxu0 %v5192
  %5366 = vmatprep.subr.bf16.mxu0 0
  %5367 = vmatpush1.bf16.msra.mxu0 0
  %5368 = vmatprep.subr.bf16.mxu0 0
  %5369 = vmatpush1.bf16.msra.mxu0 0
  %5370 = vmatprep.subr.bf16.mxu0 0
  %5371 = vmatpush1.bf16.msra.mxu0 0
  %5372 = vmatprep.subr.bf16.mxu0 0
  %5373 = vmatpush1.bf16.msra.mxu0 0
  %5374 = vmatprep.subr.bf16.mxu0 0
  %5375 = vmatpush1.bf16.msra.mxu0 0
  %5376 = vmatprep.subr.bf16.mxu0 0
  %5377 = vmatpush1.bf16.msra.mxu0 0
  %5378 = vmatprep.subr.bf16.mxu0 0
  %5379 = vmatpush1.bf16.msra.mxu0 0
  %5380 = vmatprep.subr.bf16.mxu0 0
  %5381 = vmatpush1.bf16.msra.mxu0 0
  %5382 = vmatprep.subr.bf16.mxu0 0
  %5383 = vmatpush1.bf16.msra.mxu0 0
  %5384 = vmatprep.subr.bf16.mxu0 0
  %5385 = vmatpush1.bf16.msra.mxu0 0
  %5386 = vmatprep.subr.bf16.mxu0 0
  %5387 = vmatpush1.bf16.msra.mxu0 0
  %5388 = vmatprep.subr.bf16.mxu0 0
  %5389 = vmatpush1.bf16.msra.mxu0 0
  %5390 = vmatprep.mubr.bf16.mxu0 0
  %5391 = vmatmul.mubr.bf16.gmra.mrb[0].mxu0 %v5227
  %v5392 = vpop.f32.mrb[0].mxu0
  %v5393 = vadd.f32 0.0, %v5392
  %v5394 = vpop.f32.mrb[0].mxu0
  %v5395 = vadd.f32 0.0, %v5394
  %v5396 = vpop.f32.mrb[0].mxu0
  %v5397 = vadd.f32 0.0, %v5396
  %v5398 = vpop.f32.mrb[0].mxu0
  %v5399 = vadd.f32 0.0, %v5398
  %5400 = vdwg.mxu0
  %v5401 = vadd.f32 %v4896, %v5264
  %v5402 = vadd.f32 %v4898, %v5266
  %v5403 = vadd.f32 %v4939, %v5307
  %v5404 = vadd.f32 %v4941, %v5309
  %v5405 = vadd.f32 %v4982, %v5350
  %v5406 = vadd.f32 %v4984, %v5352
  %v5407 = vadd.f32 %v5025, %v5393
  %v5408 = vadd.f32 %v5027, %v5395
  %v5409 = vadd.f32 %v4900, %v5268
  %v5410 = vadd.f32 %v4902, %v5270
  %v5411 = vadd.f32 %v4943, %v5311
  %v5412 = vadd.f32 %v4945, %v5313
  %v5413 = vadd.f32 %v4986, %v5354
  %v5414 = vadd.f32 %v4988, %v5356
  %v5415 = vadd.f32 %v5029, %v5397
  %v5416 = vadd.f32 %v5031, %v5399
  %s5417 = scalar_lea.vmem %s5, 768
  %v5418 = vld [vmem:[%s5417] sm:$0xff]
  %v5419 = vld [vmem:[%s5417 + $0x8] sm:$0xff]
  %v5420 = vld [vmem:[%s5417 + $0x10] sm:$0xff]
  %v5421 = vld [vmem:[%s5417 + $0x18] sm:$0xff]
  %v5422 = vld [vmem:[%s5417 + $0x20] sm:$0xff]
  %v5423 = vld [vmem:[%s5417 + $0x28] sm:$0xff]
  %v5424 = vld [vmem:[%s5417 + $0x30] sm:$0xff]
  %v5425 = vld [vmem:[%s5417 + $0x38] sm:$0xff]
  %v5426 = vld [vmem:[%s5417 + $0x40] sm:$0xff]
  %v5427 = vld [vmem:[%s5417 + $0x48] sm:$0xff]
  %v5428 = vld [vmem:[%s5417 + $0x50] sm:$0xff]
  %v5429 = vld [vmem:[%s5417 + $0x58] sm:$0xff]
  %v5430 = vld [vmem:[%s5417 + $0x60] sm:$0xff]
  %v5431 = vld [vmem:[%s5417 + $0x68] sm:$0xff]
  %v5432 = vld [vmem:[%s5417 + $0x70] sm:$0xff]
  %v5433 = vld [vmem:[%s5417 + $0x78] sm:$0xff]
  %v5434 = vld [vmem:[%s5417 + $0x80] sm:$0xff]
  %v5435 = vld [vmem:[%s5417 + $0x88] sm:$0xff]
  %v5436 = vld [vmem:[%s5417 + $0x90] sm:$0xff]
  %v5437 = vld [vmem:[%s5417 + $0x98] sm:$0xff]
  %v5438 = vld [vmem:[%s5417 + $0xa0] sm:$0xff]
  %v5439 = vld [vmem:[%s5417 + $0xa8] sm:$0xff]
  %v5440 = vld [vmem:[%s5417 + $0xb0] sm:$0xff]
  %v5441 = vld [vmem:[%s5417 + $0xb8] sm:$0xff]
  %v5442 = vld [vmem:[%s5417 + $0xc0] sm:$0xff]
  %v5443 = vld [vmem:[%s5417 + $0xc8] sm:$0xff]
  %v5444 = vld [vmem:[%s5417 + $0xd0] sm:$0xff]
  %v5445 = vld [vmem:[%s5417 + $0xd8] sm:$0xff]
  %v5446 = vld [vmem:[%s5417 + $0xe0] sm:$0xff]
  %v5447 = vld [vmem:[%s5417 + $0xe8] sm:$0xff]
  %v5448 = vld [vmem:[%s5417 + $0xf0] sm:$0xff]
  %v5449 = vld [vmem:[%s5417 + $0xf8] sm:$0xff]
  %v5482 = vunpack.c.l.b16 %v5418
  %v5483 = vunpack.c.h.b16 %v5418
  %v5484 = vunpack.c.l.b16 %v5419
  %v5485 = vunpack.c.h.b16 %v5419
  %v5486 = vunpack.c.l.b16 %v5420
  %v5487 = vunpack.c.h.b16 %v5420
  %v5488 = vunpack.c.l.b16 %v5421
  %v5489 = vunpack.c.h.b16 %v5421
  %v5490 = vunpack.c.l.b16 %v5422
  %v5491 = vunpack.c.h.b16 %v5422
  %v5492 = vunpack.c.l.b16 %v5423
  %v5493 = vunpack.c.h.b16 %v5423
  %v5494 = vunpack.c.l.b16 %v5424
  %v5495 = vunpack.c.h.b16 %v5424
  %v5496 = vunpack.c.l.b16 %v5425
  %v5497 = vunpack.c.h.b16 %v5425
  %v5498 = vunpack.c.l.b16 %v5426
  %v5499 = vunpack.c.h.b16 %v5426
  %v5500 = vunpack.c.l.b16 %v5427
  %v5501 = vunpack.c.h.b16 %v5427
  %v5502 = vunpack.c.l.b16 %v5428
  %v5503 = vunpack.c.h.b16 %v5428
  %v5504 = vunpack.c.l.b16 %v5429
  %v5505 = vunpack.c.h.b16 %v5429
  %v5506 = vunpack.c.l.b16 %v5430
  %v5507 = vunpack.c.h.b16 %v5430
  %v5508 = vunpack.c.l.b16 %v5431
  %v5509 = vunpack.c.h.b16 %v5431
  %v5510 = vunpack.c.l.b16 %v5432
  %v5511 = vunpack.c.h.b16 %v5432
  %v5512 = vunpack.c.l.b16 %v5433
  %v5513 = vunpack.c.h.b16 %v5433
  %v5514 = vunpack.c.l.b16 %v5434
  %v5515 = vunpack.c.h.b16 %v5434
  %v5516 = vunpack.c.l.b16 %v5435
  %v5517 = vunpack.c.h.b16 %v5435
  %v5518 = vunpack.c.l.b16 %v5436
  %v5519 = vunpack.c.h.b16 %v5436
  %v5520 = vunpack.c.l.b16 %v5437
  %v5521 = vunpack.c.h.b16 %v5437
  %v5522 = vunpack.c.l.b16 %v5438
  %v5523 = vunpack.c.h.b16 %v5438
  %v5524 = vunpack.c.l.b16 %v5439
  %v5525 = vunpack.c.h.b16 %v5439
  %v5526 = vunpack.c.l.b16 %v5440
  %v5527 = vunpack.c.h.b16 %v5440
  %v5528 = vunpack.c.l.b16 %v5441
  %v5529 = vunpack.c.h.b16 %v5441
  %v5530 = vunpack.c.l.b16 %v5442
  %v5531 = vunpack.c.h.b16 %v5442
  %v5532 = vunpack.c.l.b16 %v5443
  %v5533 = vunpack.c.h.b16 %v5443
  %v5534 = vunpack.c.l.b16 %v5444
  %v5535 = vunpack.c.h.b16 %v5444
  %v5536 = vunpack.c.l.b16 %v5445
  %v5537 = vunpack.c.h.b16 %v5445
  %v5538 = vunpack.c.l.b16 %v5446
  %v5539 = vunpack.c.h.b16 %v5446
  %v5540 = vunpack.c.l.b16 %v5447
  %v5541 = vunpack.c.h.b16 %v5447
  %v5542 = vunpack.c.l.b16 %v5448
  %v5543 = vunpack.c.h.b16 %v5448
  %v5544 = vunpack.c.l.b16 %v5449
  %v5545 = vunpack.c.h.b16 %v5449
  %v5546 = vpack.c.b16 %v5490, %v5482
  %v5547 = vpack.c.b16 %v5491, %v5483
  %v5548 = vpack.c.b16 %v5492, %v5484
  %v5549 = vpack.c.b16 %v5493, %v5485
  %v5550 = vpack.c.b16 %v5494, %v5486
  %v5551 = vpack.c.b16 %v5495, %v5487
  %v5552 = vpack.c.b16 %v5496, %v5488
  %v5553 = vpack.c.b16 %v5497, %v5489
  %v5554 = vpack.c.b16 %v5506, %v5498
  %v5555 = vpack.c.b16 %v5507, %v5499
  %v5556 = vpack.c.b16 %v5508, %v5500
  %v5557 = vpack.c.b16 %v5509, %v5501
  %v5558 = vpack.c.b16 %v5510, %v5502
  %v5559 = vpack.c.b16 %v5511, %v5503
  %v5560 = vpack.c.b16 %v5512, %v5504
  %v5561 = vpack.c.b16 %v5513, %v5505
  %v5562 = vpack.c.b16 %v5522, %v5514
  %v5563 = vpack.c.b16 %v5523, %v5515
  %v5564 = vpack.c.b16 %v5524, %v5516
  %v5565 = vpack.c.b16 %v5525, %v5517
  %v5566 = vpack.c.b16 %v5526, %v5518
  %v5567 = vpack.c.b16 %v5527, %v5519
  %v5568 = vpack.c.b16 %v5528, %v5520
  %v5569 = vpack.c.b16 %v5529, %v5521
  %v5570 = vpack.c.b16 %v5538, %v5530
  %v5571 = vpack.c.b16 %v5539, %v5531
  %v5572 = vpack.c.b16 %v5540, %v5532
  %v5573 = vpack.c.b16 %v5541, %v5533
  %v5574 = vpack.c.b16 %v5542, %v5534
  %v5575 = vpack.c.b16 %v5543, %v5535
  %v5576 = vpack.c.b16 %v5544, %v5536
  %v5577 = vpack.c.b16 %v5545, %v5537
  %v5611 = vsel %vm4522, %v4284, 0
  %5613 = vmatprep.subr.bf16.mxu0 %v5547
  %5614 = vmatpush1.bf16.msra.mxu0 %v5546
  %5615 = vmatprep.subr.bf16.mxu0 %v5555
  %5616 = vmatpush1.bf16.msra.mxu0 %v5554
  %5617 = vmatprep.subr.bf16.mxu0 %v5563
  %5618 = vmatpush1.bf16.msra.mxu0 %v5562
  %5619 = vmatprep.subr.bf16.mxu0 %v5571
  %5620 = vmatpush1.bf16.msra.mxu0 %v5570
  %5621 = vmatprep.subr.bf16.mxu0 0
  %5622 = vmatpush1.bf16.msra.mxu0 0
  %5623 = vmatprep.subr.bf16.mxu0 0
  %5624 = vmatpush1.bf16.msra.mxu0 0
  %5625 = vmatprep.subr.bf16.mxu0 0
  %5626 = vmatpush1.bf16.msra.mxu0 0
  %5627 = vmatprep.subr.bf16.mxu0 0
  %5628 = vmatpush1.bf16.msra.mxu0 0
  %5629 = vmatprep.subr.bf16.mxu0 0
  %5630 = vmatpush1.bf16.msra.mxu0 0
  %5631 = vmatprep.subr.bf16.mxu0 0
  %5632 = vmatpush1.bf16.msra.mxu0 0
  %5633 = vmatprep.subr.bf16.mxu0 0
  %5634 = vmatpush1.bf16.msra.mxu0 0
  %5635 = vmatprep.subr.bf16.mxu0 0
  %5636 = vmatpush1.bf16.msra.mxu0 0
  %5637 = vmatprep.subr.bf16.mxu0 0
  %5638 = vmatpush1.bf16.msra.mxu0 0
  %5639 = vmatprep.subr.bf16.mxu0 0
  %5640 = vmatpush1.bf16.msra.mxu0 0
  %5641 = vmatprep.subr.bf16.mxu0 0
  %5642 = vmatpush1.bf16.msra.mxu0 0
  %5643 = vmatprep.subr.bf16.mxu0 0
  %5644 = vmatpush1.bf16.msra.mxu0 0
  %5645 = vmatprep.mubr.bf16.mxu0 0
  %5646 = vmatmul.mubr.bf16.gmra.mrb[0].mxu0 %v5611
  %v5647 = vpop.f32.mrb[0].mxu0
  %v5648 = vadd.f32 0.0, %v5647
  %v5649 = vpop.f32.mrb[0].mxu0
  %v5650 = vadd.f32 0.0, %v5649
  %v5651 = vpop.f32.mrb[0].mxu0
  %v5652 = vadd.f32 0.0, %v5651
  %v5653 = vpop.f32.mrb[0].mxu0
  %v5654 = vadd.f32 0.0, %v5653
  %5655 = vdwg.mxu0
  %5656 = vmatprep.subr.bf16.mxu0 %v5549
  %5657 = vmatpush1.bf16.msra.mxu0 %v5548
  %5658 = vmatprep.subr.bf16.mxu0 %v5557
  %5659 = vmatpush1.bf16.msra.mxu0 %v5556
  %5660 = vmatprep.subr.bf16.mxu0 %v5565
  %5661 = vmatpush1.bf16.msra.mxu0 %v5564
  %5662 = vmatprep.subr.bf16.mxu0 %v5573
  %5663 = vmatpush1.bf16.msra.mxu0 %v5572
  %5664 = vmatprep.subr.bf16.mxu0 0
  %5665 = vmatpush1.bf16.msra.mxu0 0
  %5666 = vmatprep.subr.bf16.mxu0 0
  %5667 = vmatpush1.bf16.msra.mxu0 0
  %5668 = vmatprep.subr.bf16.mxu0 0
  %5669 = vmatpush1.bf16.msra.mxu0 0
  %5670 = vmatprep.subr.bf16.mxu0 0
  %5671 = vmatpush1.bf16.msra.mxu0 0
  %5672 = vmatprep.subr.bf16.mxu0 0
  %5673 = vmatpush1.bf16.msra.mxu0 0
  %5674 = vmatprep.subr.bf16.mxu0 0
  %5675 = vmatpush1.bf16.msra.mxu0 0
  %5676 = vmatprep.subr.bf16.mxu0 0
  %5677 = vmatpush1.bf16.msra.mxu0 0
  %5678 = vmatprep.subr.bf16.mxu0 0
  %5679 = vmatpush1.bf16.msra.mxu0 0
  %5680 = vmatprep.subr.bf16.mxu0 0
  %5681 = vmatpush1.bf16.msra.mxu0 0
  %5682 = vmatprep.subr.bf16.mxu0 0
  %5683 = vmatpush1.bf16.msra.mxu0 0
  %5684 = vmatprep.subr.bf16.mxu0 0
  %5685 = vmatpush1.bf16.msra.mxu0 0
  %5686 = vmatprep.subr.bf16.mxu0 0
  %5687 = vmatpush1.bf16.msra.mxu0 0
  %5688 = vmatprep.mubr.bf16.mxu0 0
  %5689 = vmatmul.mubr.bf16.gmra.mrb[0].mxu0 %v5611
  %v5690 = vpop.f32.mrb[0].mxu0
  %v5691 = vadd.f32 0.0, %v5690
  %v5692 = vpop.f32.mrb[0].mxu0
  %v5693 = vadd.f32 0.0, %v5692
  %v5694 = vpop.f32.mrb[0].mxu0
  %v5695 = vadd.f32 0.0, %v5694
  %v5696 = vpop.f32.mrb[0].mxu0
  %v5697 = vadd.f32 0.0, %v5696
  %5698 = vdwg.mxu0
  %5699 = vmatprep.subr.bf16.mxu0 %v5551
  %5700 = vmatpush1.bf16.msra.mxu0 %v5550
  %5701 = vmatprep.subr.bf16.mxu0 %v5559
  %5702 = vmatpush1.bf16.msra.mxu0 %v5558
  %5703 = vmatprep.subr.bf16.mxu0 %v5567
  %5704 = vmatpush1.bf16.msra.mxu0 %v5566
  %5705 = vmatprep.subr.bf16.mxu0 %v5575
  %5706 = vmatpush1.bf16.msra.mxu0 %v5574
  %5707 = vmatprep.subr.bf16.mxu0 0
  %5708 = vmatpush1.bf16.msra.mxu0 0
  %5709 = vmatprep.subr.bf16.mxu0 0
  %5710 = vmatpush1.bf16.msra.mxu0 0
  %5711 = vmatprep.subr.bf16.mxu0 0
  %5712 = vmatpush1.bf16.msra.mxu0 0
  %5713 = vmatprep.subr.bf16.mxu0 0
  %5714 = vmatpush1.bf16.msra.mxu0 0
  %5715 = vmatprep.subr.bf16.mxu0 0
  %5716 = vmatpush1.bf16.msra.mxu0 0
  %5717 = vmatprep.subr.bf16.mxu0 0
  %5718 = vmatpush1.bf16.msra.mxu0 0
  %5719 = vmatprep.subr.bf16.mxu0 0
  %5720 = vmatpush1.bf16.msra.mxu0 0
  %5721 = vmatprep.subr.bf16.mxu0 0
  %5722 = vmatpush1.bf16.msra.mxu0 0
  %5723 = vmatprep.subr.bf16.mxu0 0
  %5724 = vmatpush1.bf16.msra.mxu0 0
  %5725 = vmatprep.subr.bf16.mxu0 0
  %5726 = vmatpush1.bf16.msra.mxu0 0
  %5727 = vmatprep.subr.bf16.mxu0 0
  %5728 = vmatpush1.bf16.msra.mxu0 0
  %5729 = vmatprep.subr.bf16.mxu0 0
  %5730 = vmatpush1.bf16.msra.mxu0 0
  %5731 = vmatprep.mubr.bf16.mxu0 0
  %5732 = vmatmul.mubr.bf16.gmra.mrb[0].mxu0 %v5611
  %v5733 = vpop.f32.mrb[0].mxu0
  %v5734 = vadd.f32 0.0, %v5733
  %v5735 = vpop.f32.mrb[0].mxu0
  %v5736 = vadd.f32 0.0, %v5735
  %v5737 = vpop.f32.mrb[0].mxu0
  %v5738 = vadd.f32 0.0, %v5737
  %v5739 = vpop.f32.mrb[0].mxu0
  %v5740 = vadd.f32 0.0, %v5739
  %5741 = vdwg.mxu0
  %5742 = vmatprep.subr.bf16.mxu0 %v5553
  %5743 = vmatpush1.bf16.msra.mxu0 %v5552
  %5744 = vmatprep.subr.bf16.mxu0 %v5561
  %5745 = vmatpush1.bf16.msra.mxu0 %v5560
  %5746 = vmatprep.subr.bf16.mxu0 %v5569
  %5747 = vmatpush1.bf16.msra.mxu0 %v5568
  %5748 = vmatprep.subr.bf16.mxu0 %v5577
  %5749 = vmatpush1.bf16.msra.mxu0 %v5576
  %5750 = vmatprep.subr.bf16.mxu0 0
  %5751 = vmatpush1.bf16.msra.mxu0 0
  %5752 = vmatprep.subr.bf16.mxu0 0
  %5753 = vmatpush1.bf16.msra.mxu0 0
  %5754 = vmatprep.subr.bf16.mxu0 0
  %5755 = vmatpush1.bf16.msra.mxu0 0
  %5756 = vmatprep.subr.bf16.mxu0 0
  %5757 = vmatpush1.bf16.msra.mxu0 0
  %5758 = vmatprep.subr.bf16.mxu0 0
  %5759 = vmatpush1.bf16.msra.mxu0 0
  %5760 = vmatprep.subr.bf16.mxu0 0
  %5761 = vmatpush1.bf16.msra.mxu0 0
  %5762 = vmatprep.subr.bf16.mxu0 0
  %5763 = vmatpush1.bf16.msra.mxu0 0
  %5764 = vmatprep.subr.bf16.mxu0 0
  %5765 = vmatpush1.bf16.msra.mxu0 0
  %5766 = vmatprep.subr.bf16.mxu0 0
  %5767 = vmatpush1.bf16.msra.mxu0 0
  %5768 = vmatprep.subr.bf16.mxu0 0
  %5769 = vmatpush1.bf16.msra.mxu0 0
  %5770 = vmatprep.subr.bf16.mxu0 0
  %5771 = vmatpush1.bf16.msra.mxu0 0
  %5772 = vmatprep.subr.bf16.mxu0 0
  %5773 = vmatpush1.bf16.msra.mxu0 0
  %5774 = vmatprep.mubr.bf16.mxu0 0
  %5775 = vmatmul.mubr.bf16.gmra.mrb[0].mxu0 %v5611
  %v5776 = vpop.f32.mrb[0].mxu0
  %v5777 = vadd.f32 0.0, %v5776
  %v5778 = vpop.f32.mrb[0].mxu0
  %v5779 = vadd.f32 0.0, %v5778
  %v5780 = vpop.f32.mrb[0].mxu0
  %v5781 = vadd.f32 0.0, %v5780
  %v5782 = vpop.f32.mrb[0].mxu0
  %v5783 = vadd.f32 0.0, %v5782
  %5784 = vdwg.mxu0
  %v5785 = vadd.f32 %v5401, %v5648
  %v5786 = vadd.f32 %v5402, %v5650
  %v5787 = vadd.f32 %v5403, %v5691
  %v5788 = vadd.f32 %v5404, %v5693
  %v5789 = vadd.f32 %v5405, %v5734
  %v5790 = vadd.f32 %v5406, %v5736
  %v5791 = vadd.f32 %v5407, %v5777
  %v5792 = vadd.f32 %v5408, %v5779
  %v5793 = vadd.f32 %v5409, %v5652
  %v5794 = vadd.f32 %v5410, %v5654
  %v5795 = vadd.f32 %v5411, %v5695
  %v5796 = vadd.f32 %v5412, %v5697
  %v5797 = vadd.f32 %v5413, %v5738
  %v5798 = vadd.f32 %v5414, %v5740
  %v5799 = vadd.f32 %v5415, %v5781
  %v5800 = vadd.f32 %v5416, %v5783
  %s5801 = scalar_lea.vmem %s5, 1024
  %v5802 = vld [vmem:[%s5801] sm:$0xff]
  %v5803 = vld [vmem:[%s5801 + $0x8] sm:$0xff]
  %v5804 = vld [vmem:[%s5801 + $0x10] sm:$0xff]
  %v5805 = vld [vmem:[%s5801 + $0x18] sm:$0xff]
  %v5806 = vld [vmem:[%s5801 + $0x20] sm:$0xff]
  %v5807 = vld [vmem:[%s5801 + $0x28] sm:$0xff]
  %v5808 = vld [vmem:[%s5801 + $0x30] sm:$0xff]
  %v5809 = vld [vmem:[%s5801 + $0x38] sm:$0xff]
  %v5810 = vld [vmem:[%s5801 + $0x40] sm:$0xff]
  %v5811 = vld [vmem:[%s5801 + $0x48] sm:$0xff]
  %v5812 = vld [vmem:[%s5801 + $0x50] sm:$0xff]
  %v5813 = vld [vmem:[%s5801 + $0x58] sm:$0xff]
  %v5814 = vld [vmem:[%s5801 + $0x60] sm:$0xff]
  %v5815 = vld [vmem:[%s5801 + $0x68] sm:$0xff]
  %v5816 = vld [vmem:[%s5801 + $0x70] sm:$0xff]
  %v5817 = vld [vmem:[%s5801 + $0x78] sm:$0xff]
  %v5818 = vld [vmem:[%s5801 + $0x80] sm:$0xff]
  %v5819 = vld [vmem:[%s5801 + $0x88] sm:$0xff]
  %v5820 = vld [vmem:[%s5801 + $0x90] sm:$0xff]
  %v5821 = vld [vmem:[%s5801 + $0x98] sm:$0xff]
  %v5822 = vld [vmem:[%s5801 + $0xa0] sm:$0xff]
  %v5823 = vld [vmem:[%s5801 + $0xa8] sm:$0xff]
  %v5824 = vld [vmem:[%s5801 + $0xb0] sm:$0xff]
  %v5825 = vld [vmem:[%s5801 + $0xb8] sm:$0xff]
  %v5826 = vld [vmem:[%s5801 + $0xc0] sm:$0xff]
  %v5827 = vld [vmem:[%s5801 + $0xc8] sm:$0xff]
  %v5828 = vld [vmem:[%s5801 + $0xd0] sm:$0xff]
  %v5829 = vld [vmem:[%s5801 + $0xd8] sm:$0xff]
  %v5830 = vld [vmem:[%s5801 + $0xe0] sm:$0xff]
  %v5831 = vld [vmem:[%s5801 + $0xe8] sm:$0xff]
  %v5832 = vld [vmem:[%s5801 + $0xf0] sm:$0xff]
  %v5833 = vld [vmem:[%s5801 + $0xf8] sm:$0xff]
  %v5866 = vunpack.c.l.b16 %v5802
  %v5867 = vunpack.c.h.b16 %v5802
  %v5868 = vunpack.c.l.b16 %v5803
  %v5869 = vunpack.c.h.b16 %v5803
  %v5870 = vunpack.c.l.b16 %v5804
  %v5871 = vunpack.c.h.b16 %v5804
  %v5872 = vunpack.c.l.b16 %v5805
  %v5873 = vunpack.c.h.b16 %v5805
  %v5874 = vunpack.c.l.b16 %v5806
  %v5875 = vunpack.c.h.b16 %v5806
  %v5876 = vunpack.c.l.b16 %v5807
  %v5877 = vunpack.c.h.b16 %v5807
  %v5878 = vunpack.c.l.b16 %v5808
  %v5879 = vunpack.c.h.b16 %v5808
  %v5880 = vunpack.c.l.b16 %v5809
  %v5881 = vunpack.c.h.b16 %v5809
  %v5882 = vunpack.c.l.b16 %v5810
  %v5883 = vunpack.c.h.b16 %v5810
  %v5884 = vunpack.c.l.b16 %v5811
  %v5885 = vunpack.c.h.b16 %v5811
  %v5886 = vunpack.c.l.b16 %v5812
  %v5887 = vunpack.c.h.b16 %v5812
  %v5888 = vunpack.c.l.b16 %v5813
  %v5889 = vunpack.c.h.b16 %v5813
  %v5890 = vunpack.c.l.b16 %v5814
  %v5891 = vunpack.c.h.b16 %v5814
  %v5892 = vunpack.c.l.b16 %v5815
  %v5893 = vunpack.c.h.b16 %v5815
  %v5894 = vunpack.c.l.b16 %v5816
  %v5895 = vunpack.c.h.b16 %v5816
  %v5896 = vunpack.c.l.b16 %v5817
  %v5897 = vunpack.c.h.b16 %v5817
  %v5898 = vunpack.c.l.b16 %v5818
  %v5899 = vunpack.c.h.b16 %v5818
  %v5900 = vunpack.c.l.b16 %v5819
  %v5901 = vunpack.c.h.b16 %v5819
  %v5902 = vunpack.c.l.b16 %v5820
  %v5903 = vunpack.c.h.b16 %v5820
  %v5904 = vunpack.c.l.b16 %v5821
  %v5905 = vunpack.c.h.b16 %v5821
  %v5906 = vunpack.c.l.b16 %v5822
  %v5907 = vunpack.c.h.b16 %v5822
  %v5908 = vunpack.c.l.b16 %v5823
  %v5909 = vunpack.c.h.b16 %v5823
  %v5910 = vunpack.c.l.b16 %v5824
  %v5911 = vunpack.c.h.b16 %v5824
  %v5912 = vunpack.c.l.b16 %v5825
  %v5913 = vunpack.c.h.b16 %v5825
  %v5914 = vunpack.c.l.b16 %v5826
  %v5915 = vunpack.c.h.b16 %v5826
  %v5916 = vunpack.c.l.b16 %v5827
  %v5917 = vunpack.c.h.b16 %v5827
  %v5918 = vunpack.c.l.b16 %v5828
  %v5919 = vunpack.c.h.b16 %v5828
  %v5920 = vunpack.c.l.b16 %v5829
  %v5921 = vunpack.c.h.b16 %v5829
  %v5922 = vunpack.c.l.b16 %v5830
  %v5923 = vunpack.c.h.b16 %v5830
  %v5924 = vunpack.c.l.b16 %v5831
  %v5925 = vunpack.c.h.b16 %v5831
  %v5926 = vunpack.c.l.b16 %v5832
  %v5927 = vunpack.c.h.b16 %v5832
  %v5928 = vunpack.c.l.b16 %v5833
  %v5929 = vunpack.c.h.b16 %v5833
  %v5930 = vpack.c.b16 %v5874, %v5866
  %v5931 = vpack.c.b16 %v5875, %v5867
  %v5932 = vpack.c.b16 %v5876, %v5868
  %v5933 = vpack.c.b16 %v5877, %v5869
  %v5934 = vpack.c.b16 %v5878, %v5870
  %v5935 = vpack.c.b16 %v5879, %v5871
  %v5936 = vpack.c.b16 %v5880, %v5872
  %v5937 = vpack.c.b16 %v5881, %v5873
  %v5938 = vpack.c.b16 %v5890, %v5882
  %v5939 = vpack.c.b16 %v5891, %v5883
  %v5940 = vpack.c.b16 %v5892, %v5884
  %v5941 = vpack.c.b16 %v5893, %v5885
  %v5942 = vpack.c.b16 %v5894, %v5886
  %v5943 = vpack.c.b16 %v5895, %v5887
  %v5944 = vpack.c.b16 %v5896, %v5888
  %v5945 = vpack.c.b16 %v5897, %v5889
  %v5946 = vpack.c.b16 %v5906, %v5898
  %v5947 = vpack.c.b16 %v5907, %v5899
  %v5948 = vpack.c.b16 %v5908, %v5900
  %v5949 = vpack.c.b16 %v5909, %v5901
  %v5950 = vpack.c.b16 %v5910, %v5902
  %v5951 = vpack.c.b16 %v5911, %v5903
  %v5952 = vpack.c.b16 %v5912, %v5904
  %v5953 = vpack.c.b16 %v5913, %v5905
  %v5954 = vpack.c.b16 %v5922, %v5914
  %v5955 = vpack.c.b16 %v5923, %v5915
  %v5956 = vpack.c.b16 %v5924, %v5916
  %v5957 = vpack.c.b16 %v5925, %v5917
  %v5958 = vpack.c.b16 %v5926, %v5918
  %v5959 = vpack.c.b16 %v5927, %v5919
  %v5960 = vpack.c.b16 %v5928, %v5920
  %v5961 = vpack.c.b16 %v5929, %v5921
  %v5995 = vsel %vm4522, %v4285, 0
  %5997 = vmatprep.subr.bf16.mxu0 %v5931
  %5998 = vmatpush1.bf16.msra.mxu0 %v5930
  %5999 = vmatprep.subr.bf16.mxu0 %v5939
  %6000 = vmatpush1.bf16.msra.mxu0 %v5938
  %6001 = vmatprep.subr.bf16.mxu0 %v5947
  %6002 = vmatpush1.bf16.msra.mxu0 %v5946
  %6003 = vmatprep.subr.bf16.mxu0 %v5955
  %6004 = vmatpush1.bf16.msra.mxu0 %v5954
  %6005 = vmatprep.subr.bf16.mxu0 0
  %6006 = vmatpush1.bf16.msra.mxu0 0
  %6007 = vmatprep.subr.bf16.mxu0 0
  %6008 = vmatpush1.bf16.msra.mxu0 0
  %6009 = vmatprep.subr.bf16.mxu0 0
  %6010 = vmatpush1.bf16.msra.mxu0 0
  %6011 = vmatprep.subr.bf16.mxu0 0
  %6012 = vmatpush1.bf16.msra.mxu0 0
  %6013 = vmatprep.subr.bf16.mxu0 0
  %6014 = vmatpush1.bf16.msra.mxu0 0
  %6015 = vmatprep.subr.bf16.mxu0 0
  %6016 = vmatpush1.bf16.msra.mxu0 0
  %6017 = vmatprep.subr.bf16.mxu0 0
  %6018 = vmatpush1.bf16.msra.mxu0 0
  %6019 = vmatprep.subr.bf16.mxu0 0
  %6020 = vmatpush1.bf16.msra.mxu0 0
  %6021 = vmatprep.subr.bf16.mxu0 0
  %6022 = vmatpush1.bf16.msra.mxu0 0
  %6023 = vmatprep.subr.bf16.mxu0 0
  %6024 = vmatpush1.bf16.msra.mxu0 0
  %6025 = vmatprep.subr.bf16.mxu0 0
  %6026 = vmatpush1.bf16.msra.mxu0 0
  %6027 = vmatprep.subr.bf16.mxu0 0
  %6028 = vmatpush1.bf16.msra.mxu0 0
  %6029 = vmatprep.mubr.bf16.mxu0 0
  %6030 = vmatmul.mubr.bf16.gmra.mrb[0].mxu0 %v5995
  %v6031 = vpop.f32.mrb[0].mxu0
  %v6032 = vadd.f32 0.0, %v6031
  %v6033 = vpop.f32.mrb[0].mxu0
  %v6034 = vadd.f32 0.0, %v6033
  %v6035 = vpop.f32.mrb[0].mxu0
  %v6036 = vadd.f32 0.0, %v6035
  %v6037 = vpop.f32.mrb[0].mxu0
  %v6038 = vadd.f32 0.0, %v6037
  %6039 = vdwg.mxu0
  %6040 = vmatprep.subr.bf16.mxu0 %v5933
  %6041 = vmatpush1.bf16.msra.mxu0 %v5932
  %6042 = vmatprep.subr.bf16.mxu0 %v5941
  %6043 = vmatpush1.bf16.msra.mxu0 %v5940
  %6044 = vmatprep.subr.bf16.mxu0 %v5949
  %6045 = vmatpush1.bf16.msra.mxu0 %v5948
  %6046 = vmatprep.subr.bf16.mxu0 %v5957
  %6047 = vmatpush1.bf16.msra.mxu0 %v5956
  %6048 = vmatprep.subr.bf16.mxu0 0
  %6049 = vmatpush1.bf16.msra.mxu0 0
  %6050 = vmatprep.subr.bf16.mxu0 0
  %6051 = vmatpush1.bf16.msra.mxu0 0
  %6052 = vmatprep.subr.bf16.mxu0 0
  %6053 = vmatpush1.bf16.msra.mxu0 0
  %6054 = vmatprep.subr.bf16.mxu0 0
  %6055 = vmatpush1.bf16.msra.mxu0 0
  %6056 = vmatprep.subr.bf16.mxu0 0
  %6057 = vmatpush1.bf16.msra.mxu0 0
  %6058 = vmatprep.subr.bf16.mxu0 0
  %6059 = vmatpush1.bf16.msra.mxu0 0
  %6060 = vmatprep.subr.bf16.mxu0 0
  %6061 = vmatpush1.bf16.msra.mxu0 0
  %6062 = vmatprep.subr.bf16.mxu0 0
  %6063 = vmatpush1.bf16.msra.mxu0 0
  %6064 = vmatprep.subr.bf16.mxu0 0
  %6065 = vmatpush1.bf16.msra.mxu0 0
  %6066 = vmatprep.subr.bf16.mxu0 0
  %6067 = vmatpush1.bf16.msra.mxu0 0
  %6068 = vmatprep.subr.bf16.mxu0 0
  %6069 = vmatpush1.bf16.msra.mxu0 0
  %6070 = vmatprep.subr.bf16.mxu0 0
  %6071 = vmatpush1.bf16.msra.mxu0 0
  %6072 = vmatprep.mubr.bf16.mxu0 0
  %6073 = vmatmul.mubr.bf16.gmra.mrb[0].mxu0 %v5995
  %v6074 = vpop.f32.mrb[0].mxu0
  %v6075 = vadd.f32 0.0, %v6074
  %v6076 = vpop.f32.mrb[0].mxu0
  %v6077 = vadd.f32 0.0, %v6076
  %v6078 = vpop.f32.mrb[0].mxu0
  %v6079 = vadd.f32 0.0, %v6078
  %v6080 = vpop.f32.mrb[0].mxu0
  %v6081 = vadd.f32 0.0, %v6080
  %6082 = vdwg.mxu0
  %6083 = vmatprep.subr.bf16.mxu0 %v5935
  %6084 = vmatpush1.bf16.msra.mxu0 %v5934
  %6085 = vmatprep.subr.bf16.mxu0 %v5943
  %6086 = vmatpush1.bf16.msra.mxu0 %v5942
  %6087 = vmatprep.subr.bf16.mxu0 %v5951
  %6088 = vmatpush1.bf16.msra.mxu0 %v5950
  %6089 = vmatprep.subr.bf16.mxu0 %v5959
  %6090 = vmatpush1.bf16.msra.mxu0 %v5958
  %6091 = vmatprep.subr.bf16.mxu0 0
  %6092 = vmatpush1.bf16.msra.mxu0 0
  %6093 = vmatprep.subr.bf16.mxu0 0
  %6094 = vmatpush1.bf16.msra.mxu0 0
  %6095 = vmatprep.subr.bf16.mxu0 0
  %6096 = vmatpush1.bf16.msra.mxu0 0
  %6097 = vmatprep.subr.bf16.mxu0 0
  %6098 = vmatpush1.bf16.msra.mxu0 0
  %6099 = vmatprep.subr.bf16.mxu0 0
  %6100 = vmatpush1.bf16.msra.mxu0 0
  %6101 = vmatprep.subr.bf16.mxu0 0
  %6102 = vmatpush1.bf16.msra.mxu0 0
  %6103 = vmatprep.subr.bf16.mxu0 0
  %6104 = vmatpush1.bf16.msra.mxu0 0
  %6105 = vmatprep.subr.bf16.mxu0 0
  %6106 = vmatpush1.bf16.msra.mxu0 0
  %6107 = vmatprep.subr.bf16.mxu0 0
  %6108 = vmatpush1.bf16.msra.mxu0 0
  %6109 = vmatprep.subr.bf16.mxu0 0
  %6110 = vmatpush1.bf16.msra.mxu0 0
  %6111 = vmatprep.subr.bf16.mxu0 0
  %6112 = vmatpush1.bf16.msra.mxu0 0
  %6113 = vmatprep.subr.bf16.mxu0 0
  %6114 = vmatpush1.bf16.msra.mxu0 0
  %6115 = vmatprep.mubr.bf16.mxu0 0
  %6116 = vmatmul.mubr.bf16.gmra.mrb[0].mxu0 %v5995
  %v6117 = vpop.f32.mrb[0].mxu0
  %v6118 = vadd.f32 0.0, %v6117
  %v6119 = vpop.f32.mrb[0].mxu0
  %v6120 = vadd.f32 0.0, %v6119
  %v6121 = vpop.f32.mrb[0].mxu0
  %v6122 = vadd.f32 0.0, %v6121
  %v6123 = vpop.f32.mrb[0].mxu0
  %v6124 = vadd.f32 0.0, %v6123
  %6125 = vdwg.mxu0
  %6126 = vmatprep.subr.bf16.mxu0 %v5937
  %6127 = vmatpush1.bf16.msra.mxu0 %v5936
  %6128 = vmatprep.subr.bf16.mxu0 %v5945
  %6129 = vmatpush1.bf16.msra.mxu0 %v5944
  %6130 = vmatprep.subr.bf16.mxu0 %v5953
  %6131 = vmatpush1.bf16.msra.mxu0 %v5952
  %6132 = vmatprep.subr.bf16.mxu0 %v5961
  %6133 = vmatpush1.bf16.msra.mxu0 %v5960
  %6134 = vmatprep.subr.bf16.mxu0 0
  %6135 = vmatpush1.bf16.msra.mxu0 0
  %6136 = vmatprep.subr.bf16.mxu0 0
  %6137 = vmatpush1.bf16.msra.mxu0 0
  %6138 = vmatprep.subr.bf16.mxu0 0
  %6139 = vmatpush1.bf16.msra.mxu0 0
  %6140 = vmatprep.subr.bf16.mxu0 0
  %6141 = vmatpush1.bf16.msra.mxu0 0
  %6142 = vmatprep.subr.bf16.mxu0 0
  %6143 = vmatpush1.bf16.msra.mxu0 0
  %6144 = vmatprep.subr.bf16.mxu0 0
  %6145 = vmatpush1.bf16.msra.mxu0 0
  %6146 = vmatprep.subr.bf16.mxu0 0
  %6147 = vmatpush1.bf16.msra.mxu0 0
  %6148 = vmatprep.subr.bf16.mxu0 0
  %6149 = vmatpush1.bf16.msra.mxu0 0
  %6150 = vmatprep.subr.bf16.mxu0 0
  %6151 = vmatpush1.bf16.msra.mxu0 0
  %6152 = vmatprep.subr.bf16.mxu0 0
  %6153 = vmatpush1.bf16.msra.mxu0 0
  %6154 = vmatprep.subr.bf16.mxu0 0
  %6155 = vmatpush1.bf16.msra.mxu0 0
  %6156 = vmatprep.subr.bf16.mxu0 0
  %6157 = vmatpush1.bf16.msra.mxu0 0
  %6158 = vmatprep.mubr.bf16.mxu0 0
  %6159 = vmatmul.mubr.bf16.gmra.mrb[0].mxu0 %v5995
  %v6160 = vpop.f32.mrb[0].mxu0
  %v6161 = vadd.f32 0.0, %v6160
  %v6162 = vpop.f32.mrb[0].mxu0
  %v6163 = vadd.f32 0.0, %v6162
  %v6164 = vpop.f32.mrb[0].mxu0
  %v6165 = vadd.f32 0.0, %v6164
  %v6166 = vpop.f32.mrb[0].mxu0
  %v6167 = vadd.f32 0.0, %v6166
  %6168 = vdwg.mxu0
  %v6169 = vadd.f32 %v5785, %v6032
  %v6170 = vadd.f32 %v5786, %v6034
  %v6171 = vadd.f32 %v5787, %v6075
  %v6172 = vadd.f32 %v5788, %v6077
  %v6173 = vadd.f32 %v5789, %v6118
  %v6174 = vadd.f32 %v5790, %v6120
  %v6175 = vadd.f32 %v5791, %v6161
  %v6176 = vadd.f32 %v5792, %v6163
  %v6177 = vadd.f32 %v5793, %v6036
  %v6178 = vadd.f32 %v5794, %v6038
  %v6179 = vadd.f32 %v5795, %v6079
  %v6180 = vadd.f32 %v5796, %v6081
  %v6181 = vadd.f32 %v5797, %v6122
  %v6182 = vadd.f32 %v5798, %v6124
  %v6183 = vadd.f32 %v5799, %v6165
  %v6184 = vadd.f32 %v5800, %v6167
  %s6185 = scalar_lea.vmem %s5, 1280
  %v6186 = vld [vmem:[%s6185] sm:$0xff]
  %v6187 = vld [vmem:[%s6185 + $0x8] sm:$0xff]
  %v6188 = vld [vmem:[%s6185 + $0x10] sm:$0xff]
  %v6189 = vld [vmem:[%s6185 + $0x18] sm:$0xff]
  %v6190 = vld [vmem:[%s6185 + $0x20] sm:$0xff]
  %v6191 = vld [vmem:[%s6185 + $0x28] sm:$0xff]
  %v6192 = vld [vmem:[%s6185 + $0x30] sm:$0xff]
  %v6193 = vld [vmem:[%s6185 + $0x38] sm:$0xff]
  %v6194 = vld [vmem:[%s6185 + $0x40] sm:$0xff]
  %v6195 = vld [vmem:[%s6185 + $0x48] sm:$0xff]
  %v6196 = vld [vmem:[%s6185 + $0x50] sm:$0xff]
  %v6197 = vld [vmem:[%s6185 + $0x58] sm:$0xff]
  %v6198 = vld [vmem:[%s6185 + $0x60] sm:$0xff]
  %v6199 = vld [vmem:[%s6185 + $0x68] sm:$0xff]
  %v6200 = vld [vmem:[%s6185 + $0x70] sm:$0xff]
  %v6201 = vld [vmem:[%s6185 + $0x78] sm:$0xff]
  %v6202 = vld [vmem:[%s6185 + $0x80] sm:$0xff]
  %v6203 = vld [vmem:[%s6185 + $0x88] sm:$0xff]
  %v6204 = vld [vmem:[%s6185 + $0x90] sm:$0xff]
  %v6205 = vld [vmem:[%s6185 + $0x98] sm:$0xff]
  %v6206 = vld [vmem:[%s6185 + $0xa0] sm:$0xff]
  %v6207 = vld [vmem:[%s6185 + $0xa8] sm:$0xff]
  %v6208 = vld [vmem:[%s6185 + $0xb0] sm:$0xff]
  %v6209 = vld [vmem:[%s6185 + $0xb8] sm:$0xff]
  %v6210 = vld [vmem:[%s6185 + $0xc0] sm:$0xff]
  %v6211 = vld [vmem:[%s6185 + $0xc8] sm:$0xff]
  %v6212 = vld [vmem:[%s6185 + $0xd0] sm:$0xff]
  %v6213 = vld [vmem:[%s6185 + $0xd8] sm:$0xff]
  %v6214 = vld [vmem:[%s6185 + $0xe0] sm:$0xff]
  %v6215 = vld [vmem:[%s6185 + $0xe8] sm:$0xff]
  %v6216 = vld [vmem:[%s6185 + $0xf0] sm:$0xff]
  %v6217 = vld [vmem:[%s6185 + $0xf8] sm:$0xff]
  %v6250 = vunpack.c.l.b16 %v6186
  %v6251 = vunpack.c.h.b16 %v6186
  %v6252 = vunpack.c.l.b16 %v6187
  %v6253 = vunpack.c.h.b16 %v6187
  %v6254 = vunpack.c.l.b16 %v6188
  %v6255 = vunpack.c.h.b16 %v6188
  %v6256 = vunpack.c.l.b16 %v6189
  %v6257 = vunpack.c.h.b16 %v6189
  %v6258 = vunpack.c.l.b16 %v6190
  %v6259 = vunpack.c.h.b16 %v6190
  %v6260 = vunpack.c.l.b16 %v6191
  %v6261 = vunpack.c.h.b16 %v6191
  %v6262 = vunpack.c.l.b16 %v6192
  %v6263 = vunpack.c.h.b16 %v6192
  %v6264 = vunpack.c.l.b16 %v6193
  %v6265 = vunpack.c.h.b16 %v6193
  %v6266 = vunpack.c.l.b16 %v6194
  %v6267 = vunpack.c.h.b16 %v6194
  %v6268 = vunpack.c.l.b16 %v6195
  %v6269 = vunpack.c.h.b16 %v6195
  %v6270 = vunpack.c.l.b16 %v6196
  %v6271 = vunpack.c.h.b16 %v6196
  %v6272 = vunpack.c.l.b16 %v6197
  %v6273 = vunpack.c.h.b16 %v6197
  %v6274 = vunpack.c.l.b16 %v6198
  %v6275 = vunpack.c.h.b16 %v6198
  %v6276 = vunpack.c.l.b16 %v6199
  %v6277 = vunpack.c.h.b16 %v6199
  %v6278 = vunpack.c.l.b16 %v6200
  %v6279 = vunpack.c.h.b16 %v6200
  %v6280 = vunpack.c.l.b16 %v6201
  %v6281 = vunpack.c.h.b16 %v6201
  %v6282 = vunpack.c.l.b16 %v6202
  %v6283 = vunpack.c.h.b16 %v6202
  %v6284 = vunpack.c.l.b16 %v6203
  %v6285 = vunpack.c.h.b16 %v6203
  %v6286 = vunpack.c.l.b16 %v6204
  %v6287 = vunpack.c.h.b16 %v6204
  %v6288 = vunpack.c.l.b16 %v6205
  %v6289 = vunpack.c.h.b16 %v6205
  %v6290 = vunpack.c.l.b16 %v6206
  %v6291 = vunpack.c.h.b16 %v6206
  %v6292 = vunpack.c.l.b16 %v6207
  %v6293 = vunpack.c.h.b16 %v6207
  %v6294 = vunpack.c.l.b16 %v6208
  %v6295 = vunpack.c.h.b16 %v6208
  %v6296 = vunpack.c.l.b16 %v6209
  %v6297 = vunpack.c.h.b16 %v6209
  %v6298 = vunpack.c.l.b16 %v6210
  %v6299 = vunpack.c.h.b16 %v6210
  %v6300 = vunpack.c.l.b16 %v6211
  %v6301 = vunpack.c.h.b16 %v6211
  %v6302 = vunpack.c.l.b16 %v6212
  %v6303 = vunpack.c.h.b16 %v6212
  %v6304 = vunpack.c.l.b16 %v6213
  %v6305 = vunpack.c.h.b16 %v6213
  %v6306 = vunpack.c.l.b16 %v6214
  %v6307 = vunpack.c.h.b16 %v6214
  %v6308 = vunpack.c.l.b16 %v6215
  %v6309 = vunpack.c.h.b16 %v6215
  %v6310 = vunpack.c.l.b16 %v6216
  %v6311 = vunpack.c.h.b16 %v6216
  %v6312 = vunpack.c.l.b16 %v6217
  %v6313 = vunpack.c.h.b16 %v6217
  %v6314 = vpack.c.b16 %v6258, %v6250
  %v6315 = vpack.c.b16 %v6259, %v6251
  %v6316 = vpack.c.b16 %v6260, %v6252
  %v6317 = vpack.c.b16 %v6261, %v6253
  %v6318 = vpack.c.b16 %v6262, %v6254
  %v6319 = vpack.c.b16 %v6263, %v6255
  %v6320 = vpack.c.b16 %v6264, %v6256
  %v6321 = vpack.c.b16 %v6265, %v6257
  %v6322 = vpack.c.b16 %v6274, %v6266
  %v6323 = vpack.c.b16 %v6275, %v6267
  %v6324 = vpack.c.b16 %v6276, %v6268
  %v6325 = vpack.c.b16 %v6277, %v6269
  %v6326 = vpack.c.b16 %v6278, %v6270
  %v6327 = vpack.c.b16 %v6279, %v6271
  %v6328 = vpack.c.b16 %v6280, %v6272
  %v6329 = vpack.c.b16 %v6281, %v6273
  %v6330 = vpack.c.b16 %v6290, %v6282
  %v6331 = vpack.c.b16 %v6291, %v6283
  %v6332 = vpack.c.b16 %v6292, %v6284
  %v6333 = vpack.c.b16 %v6293, %v6285
  %v6334 = vpack.c.b16 %v6294, %v6286
  %v6335 = vpack.c.b16 %v6295, %v6287
  %v6336 = vpack.c.b16 %v6296, %v6288
  %v6337 = vpack.c.b16 %v6297, %v6289
  %v6338 = vpack.c.b16 %v6306, %v6298
  %v6339 = vpack.c.b16 %v6307, %v6299
  %v6340 = vpack.c.b16 %v6308, %v6300
  %v6341 = vpack.c.b16 %v6309, %v6301
  %v6342 = vpack.c.b16 %v6310, %v6302
  %v6343 = vpack.c.b16 %v6311, %v6303
  %v6344 = vpack.c.b16 %v6312, %v6304
  %v6345 = vpack.c.b16 %v6313, %v6305
  %v6379 = vsel %vm4522, %v4286, 0
  %6381 = vmatprep.subr.bf16.mxu0 %v6315
  %6382 = vmatpush1.bf16.msra.mxu0 %v6314
  %6383 = vmatprep.subr.bf16.mxu0 %v6323
  %6384 = vmatpush1.bf16.msra.mxu0 %v6322
  %6385 = vmatprep.subr.bf16.mxu0 %v6331
  %6386 = vmatpush1.bf16.msra.mxu0 %v6330
  %6387 = vmatprep.subr.bf16.mxu0 %v6339
  %6388 = vmatpush1.bf16.msra.mxu0 %v6338
  %6389 = vmatprep.subr.bf16.mxu0 0
  %6390 = vmatpush1.bf16.msra.mxu0 0
  %6391 = vmatprep.subr.bf16.mxu0 0
  %6392 = vmatpush1.bf16.msra.mxu0 0
  %6393 = vmatprep.subr.bf16.mxu0 0
  %6394 = vmatpush1.bf16.msra.mxu0 0
  %6395 = vmatprep.subr.bf16.mxu0 0
  %6396 = vmatpush1.bf16.msra.mxu0 0
  %6397 = vmatprep.subr.bf16.mxu0 0
  %6398 = vmatpush1.bf16.msra.mxu0 0
  %6399 = vmatprep.subr.bf16.mxu0 0
  %6400 = vmatpush1.bf16.msra.mxu0 0
  %6401 = vmatprep.subr.bf16.mxu0 0
  %6402 = vmatpush1.bf16.msra.mxu0 0
  %6403 = vmatprep.subr.bf16.mxu0 0
  %6404 = vmatpush1.bf16.msra.mxu0 0
  %6405 = vmatprep.subr.bf16.mxu0 0
  %6406 = vmatpush1.bf16.msra.mxu0 0
  %6407 = vmatprep.subr.bf16.mxu0 0
  %6408 = vmatpush1.bf16.msra.mxu0 0
  %6409 = vmatprep.subr.bf16.mxu0 0
  %6410 = vmatpush1.bf16.msra.mxu0 0
  %6411 = vmatprep.subr.bf16.mxu0 0
  %6412 = vmatpush1.bf16.msra.mxu0 0
  %6413 = vmatprep.mubr.bf16.mxu0 0
  %6414 = vmatmul.mubr.bf16.gmra.mrb[0].mxu0 %v6379
  %v6415 = vpop.f32.mrb[0].mxu0
  %v6416 = vadd.f32 0.0, %v6415
  %v6417 = vpop.f32.mrb[0].mxu0
  %v6418 = vadd.f32 0.0, %v6417
  %v6419 = vpop.f32.mrb[0].mxu0
  %v6420 = vadd.f32 0.0, %v6419
  %v6421 = vpop.f32.mrb[0].mxu0
  %v6422 = vadd.f32 0.0, %v6421
  %6423 = vdwg.mxu0
  %6424 = vmatprep.subr.bf16.mxu0 %v6317
  %6425 = vmatpush1.bf16.msra.mxu0 %v6316
  %6426 = vmatprep.subr.bf16.mxu0 %v6325
  %6427 = vmatpush1.bf16.msra.mxu0 %v6324
  %6428 = vmatprep.subr.bf16.mxu0 %v6333
  %6429 = vmatpush1.bf16.msra.mxu0 %v6332
  %6430 = vmatprep.subr.bf16.mxu0 %v6341
  %6431 = vmatpush1.bf16.msra.mxu0 %v6340
  %6432 = vmatprep.subr.bf16.mxu0 0
  %6433 = vmatpush1.bf16.msra.mxu0 0
  %6434 = vmatprep.subr.bf16.mxu0 0
  %6435 = vmatpush1.bf16.msra.mxu0 0
  %6436 = vmatprep.subr.bf16.mxu0 0
  %6437 = vmatpush1.bf16.msra.mxu0 0
  %6438 = vmatprep.subr.bf16.mxu0 0
  %6439 = vmatpush1.bf16.msra.mxu0 0
  %6440 = vmatprep.subr.bf16.mxu0 0
  %6441 = vmatpush1.bf16.msra.mxu0 0
  %6442 = vmatprep.subr.bf16.mxu0 0
  %6443 = vmatpush1.bf16.msra.mxu0 0
  %6444 = vmatprep.subr.bf16.mxu0 0
  %6445 = vmatpush1.bf16.msra.mxu0 0
  %6446 = vmatprep.subr.bf16.mxu0 0
  %6447 = vmatpush1.bf16.msra.mxu0 0
  %6448 = vmatprep.subr.bf16.mxu0 0
  %6449 = vmatpush1.bf16.msra.mxu0 0
  %6450 = vmatprep.subr.bf16.mxu0 0
  %6451 = vmatpush1.bf16.msra.mxu0 0
  %6452 = vmatprep.subr.bf16.mxu0 0
  %6453 = vmatpush1.bf16.msra.mxu0 0
  %6454 = vmatprep.subr.bf16.mxu0 0
  %6455 = vmatpush1.bf16.msra.mxu0 0
  %6456 = vmatprep.mubr.bf16.mxu0 0
  %6457 = vmatmul.mubr.bf16.gmra.mrb[0].mxu0 %v6379
  %v6458 = vpop.f32.mrb[0].mxu0
  %v6459 = vadd.f32 0.0, %v6458
  %v6460 = vpop.f32.mrb[0].mxu0
  %v6461 = vadd.f32 0.0, %v6460
  %v6462 = vpop.f32.mrb[0].mxu0
  %v6463 = vadd.f32 0.0, %v6462
  %v6464 = vpop.f32.mrb[0].mxu0
  %v6465 = vadd.f32 0.0, %v6464
  %6466 = vdwg.mxu0
  %6467 = vmatprep.subr.bf16.mxu0 %v6319
  %6468 = vmatpush1.bf16.msra.mxu0 %v6318
  %6469 = vmatprep.subr.bf16.mxu0 %v6327
  %6470 = vmatpush1.bf16.msra.mxu0 %v6326
  %6471 = vmatprep.subr.bf16.mxu0 %v6335
  %6472 = vmatpush1.bf16.msra.mxu0 %v6334
  %6473 = vmatprep.subr.bf16.mxu0 %v6343
  %6474 = vmatpush1.bf16.msra.mxu0 %v6342
  %6475 = vmatprep.subr.bf16.mxu0 0
  %6476 = vmatpush1.bf16.msra.mxu0 0
  %6477 = vmatprep.subr.bf16.mxu0 0
  %6478 = vmatpush1.bf16.msra.mxu0 0
  %6479 = vmatprep.subr.bf16.mxu0 0
  %6480 = vmatpush1.bf16.msra.mxu0 0
  %6481 = vmatprep.subr.bf16.mxu0 0
  %6482 = vmatpush1.bf16.msra.mxu0 0
  %6483 = vmatprep.subr.bf16.mxu0 0
  %6484 = vmatpush1.bf16.msra.mxu0 0
  %6485 = vmatprep.subr.bf16.mxu0 0
  %6486 = vmatpush1.bf16.msra.mxu0 0
  %6487 = vmatprep.subr.bf16.mxu0 0
  %6488 = vmatpush1.bf16.msra.mxu0 0
  %6489 = vmatprep.subr.bf16.mxu0 0
  %6490 = vmatpush1.bf16.msra.mxu0 0
  %6491 = vmatprep.subr.bf16.mxu0 0
  %6492 = vmatpush1.bf16.msra.mxu0 0
  %6493 = vmatprep.subr.bf16.mxu0 0
  %6494 = vmatpush1.bf16.msra.mxu0 0
  %6495 = vmatprep.subr.bf16.mxu0 0
  %6496 = vmatpush1.bf16.msra.mxu0 0
  %6497 = vmatprep.subr.bf16.mxu0 0
  %6498 = vmatpush1.bf16.msra.mxu0 0
  %6499 = vmatprep.mubr.bf16.mxu0 0
  %6500 = vmatmul.mubr.bf16.gmra.mrb[0].mxu0 %v6379
  %v6501 = vpop.f32.mrb[0].mxu0
  %v6502 = vadd.f32 0.0, %v6501
  %v6503 = vpop.f32.mrb[0].mxu0
  %v6504 = vadd.f32 0.0, %v6503
  %v6505 = vpop.f32.mrb[0].mxu0
  %v6506 = vadd.f32 0.0, %v6505
  %v6507 = vpop.f32.mrb[0].mxu0
  %v6508 = vadd.f32 0.0, %v6507
  %6509 = vdwg.mxu0
  %6510 = vmatprep.subr.bf16.mxu0 %v6321
  %6511 = vmatpush1.bf16.msra.mxu0 %v6320
  %6512 = vmatprep.subr.bf16.mxu0 %v6329
  %6513 = vmatpush1.bf16.msra.mxu0 %v6328
  %6514 = vmatprep.subr.bf16.mxu0 %v6337
  %6515 = vmatpush1.bf16.msra.mxu0 %v6336
  %6516 = vmatprep.subr.bf16.mxu0 %v6345
  %6517 = vmatpush1.bf16.msra.mxu0 %v6344
  %6518 = vmatprep.subr.bf16.mxu0 0
  %6519 = vmatpush1.bf16.msra.mxu0 0
  %6520 = vmatprep.subr.bf16.mxu0 0
  %6521 = vmatpush1.bf16.msra.mxu0 0
  %6522 = vmatprep.subr.bf16.mxu0 0
  %6523 = vmatpush1.bf16.msra.mxu0 0
  %6524 = vmatprep.subr.bf16.mxu0 0
  %6525 = vmatpush1.bf16.msra.mxu0 0
  %6526 = vmatprep.subr.bf16.mxu0 0
  %6527 = vmatpush1.bf16.msra.mxu0 0
  %6528 = vmatprep.subr.bf16.mxu0 0
  %6529 = vmatpush1.bf16.msra.mxu0 0
  %6530 = vmatprep.subr.bf16.mxu0 0
  %6531 = vmatpush1.bf16.msra.mxu0 0
  %6532 = vmatprep.subr.bf16.mxu0 0
  %6533 = vmatpush1.bf16.msra.mxu0 0
  %6534 = vmatprep.subr.bf16.mxu0 0
  %6535 = vmatpush1.bf16.msra.mxu0 0
  %6536 = vmatprep.subr.bf16.mxu0 0
  %6537 = vmatpush1.bf16.msra.mxu0 0
  %6538 = vmatprep.subr.bf16.mxu0 0
  %6539 = vmatpush1.bf16.msra.mxu0 0
  %6540 = vmatprep.subr.bf16.mxu0 0
  %6541 = vmatpush1.bf16.msra.mxu0 0
  %6542 = vmatprep.mubr.bf16.mxu0 0
  %6543 = vmatmul.mubr.bf16.gmra.mrb[0].mxu0 %v6379
  %v6544 = vpop.f32.mrb[0].mxu0
  %v6545 = vadd.f32 0.0, %v6544
  %v6546 = vpop.f32.mrb[0].mxu0
  %v6547 = vadd.f32 0.0, %v6546
  %v6548 = vpop.f32.mrb[0].mxu0
  %v6549 = vadd.f32 0.0, %v6548
  %v6550 = vpop.f32.mrb[0].mxu0
  %v6551 = vadd.f32 0.0, %v6550
  %6552 = vdwg.mxu0
  %v6553 = vadd.f32 %v6169, %v6416
  %v6554 = vadd.f32 %v6170, %v6418
  %v6555 = vadd.f32 %v6171, %v6459
  %v6556 = vadd.f32 %v6172, %v6461
  %v6557 = vadd.f32 %v6173, %v6502
  %v6558 = vadd.f32 %v6174, %v6504
  %v6559 = vadd.f32 %v6175, %v6545
  %v6560 = vadd.f32 %v6176, %v6547
  %v6561 = vadd.f32 %v6177, %v6420
  %v6562 = vadd.f32 %v6178, %v6422
  %v6563 = vadd.f32 %v6179, %v6463
  %v6564 = vadd.f32 %v6180, %v6465
  %v6565 = vadd.f32 %v6181, %v6506
  %v6566 = vadd.f32 %v6182, %v6508
  %v6567 = vadd.f32 %v6183, %v6549
  %v6568 = vadd.f32 %v6184, %v6551
  %s6569 = scalar_lea.vmem %s5, 1536
  %v6570 = vld [vmem:[%s6569] sm:$0xff]
  %v6571 = vld [vmem:[%s6569 + $0x8] sm:$0xff]
  %v6572 = vld [vmem:[%s6569 + $0x10] sm:$0xff]
  %v6573 = vld [vmem:[%s6569 + $0x18] sm:$0xff]
  %v6574 = vld [vmem:[%s6569 + $0x20] sm:$0xff]
  %v6575 = vld [vmem:[%s6569 + $0x28] sm:$0xff]
  %v6576 = vld [vmem:[%s6569 + $0x30] sm:$0xff]
  %v6577 = vld [vmem:[%s6569 + $0x38] sm:$0xff]
  %v6578 = vld [vmem:[%s6569 + $0x40] sm:$0xff]
  %v6579 = vld [vmem:[%s6569 + $0x48] sm:$0xff]
  %v6580 = vld [vmem:[%s6569 + $0x50] sm:$0xff]
  %v6581 = vld [vmem:[%s6569 + $0x58] sm:$0xff]
  %v6582 = vld [vmem:[%s6569 + $0x60] sm:$0xff]
  %v6583 = vld [vmem:[%s6569 + $0x68] sm:$0xff]
  %v6584 = vld [vmem:[%s6569 + $0x70] sm:$0xff]
  %v6585 = vld [vmem:[%s6569 + $0x78] sm:$0xff]
  %v6586 = vld [vmem:[%s6569 + $0x80] sm:$0xff]
  %v6587 = vld [vmem:[%s6569 + $0x88] sm:$0xff]
  %v6588 = vld [vmem:[%s6569 + $0x90] sm:$0xff]
  %v6589 = vld [vmem:[%s6569 + $0x98] sm:$0xff]
  %v6590 = vld [vmem:[%s6569 + $0xa0] sm:$0xff]
  %v6591 = vld [vmem:[%s6569 + $0xa8] sm:$0xff]
  %v6592 = vld [vmem:[%s6569 + $0xb0] sm:$0xff]
  %v6593 = vld [vmem:[%s6569 + $0xb8] sm:$0xff]
  %v6594 = vld [vmem:[%s6569 + $0xc0] sm:$0xff]
  %v6595 = vld [vmem:[%s6569 + $0xc8] sm:$0xff]
  %v6596 = vld [vmem:[%s6569 + $0xd0] sm:$0xff]
  %v6597 = vld [vmem:[%s6569 + $0xd8] sm:$0xff]
  %v6598 = vld [vmem:[%s6569 + $0xe0] sm:$0xff]
  %v6599 = vld [vmem:[%s6569 + $0xe8] sm:$0xff]
  %v6600 = vld [vmem:[%s6569 + $0xf0] sm:$0xff]
  %v6601 = vld [vmem:[%s6569 + $0xf8] sm:$0xff]
  %v6634 = vunpack.c.l.b16 %v6570
  %v6635 = vunpack.c.h.b16 %v6570
  %v6636 = vunpack.c.l.b16 %v6571
  %v6637 = vunpack.c.h.b16 %v6571
  %v6638 = vunpack.c.l.b16 %v6572
  %v6639 = vunpack.c.h.b16 %v6572
  %v6640 = vunpack.c.l.b16 %v6573
  %v6641 = vunpack.c.h.b16 %v6573
  %v6642 = vunpack.c.l.b16 %v6574
  %v6643 = vunpack.c.h.b16 %v6574
  %v6644 = vunpack.c.l.b16 %v6575
  %v6645 = vunpack.c.h.b16 %v6575
  %v6646 = vunpack.c.l.b16 %v6576
  %v6647 = vunpack.c.h.b16 %v6576
  %v6648 = vunpack.c.l.b16 %v6577
  %v6649 = vunpack.c.h.b16 %v6577
  %v6650 = vunpack.c.l.b16 %v6578
  %v6651 = vunpack.c.h.b16 %v6578
  %v6652 = vunpack.c.l.b16 %v6579
  %v6653 = vunpack.c.h.b16 %v6579
  %v6654 = vunpack.c.l.b16 %v6580
  %v6655 = vunpack.c.h.b16 %v6580
  %v6656 = vunpack.c.l.b16 %v6581
  %v6657 = vunpack.c.h.b16 %v6581
  %v6658 = vunpack.c.l.b16 %v6582
  %v6659 = vunpack.c.h.b16 %v6582
  %v6660 = vunpack.c.l.b16 %v6583
  %v6661 = vunpack.c.h.b16 %v6583
  %v6662 = vunpack.c.l.b16 %v6584
  %v6663 = vunpack.c.h.b16 %v6584
  %v6664 = vunpack.c.l.b16 %v6585
  %v6665 = vunpack.c.h.b16 %v6585
  %v6666 = vunpack.c.l.b16 %v6586
  %v6667 = vunpack.c.h.b16 %v6586
  %v6668 = vunpack.c.l.b16 %v6587
  %v6669 = vunpack.c.h.b16 %v6587
  %v6670 = vunpack.c.l.b16 %v6588
  %v6671 = vunpack.c.h.b16 %v6588
  %v6672 = vunpack.c.l.b16 %v6589
  %v6673 = vunpack.c.h.b16 %v6589
  %v6674 = vunpack.c.l.b16 %v6590
  %v6675 = vunpack.c.h.b16 %v6590
  %v6676 = vunpack.c.l.b16 %v6591
  %v6677 = vunpack.c.h.b16 %v6591
  %v6678 = vunpack.c.l.b16 %v6592
  %v6679 = vunpack.c.h.b16 %v6592
  %v6680 = vunpack.c.l.b16 %v6593
  %v6681 = vunpack.c.h.b16 %v6593
  %v6682 = vunpack.c.l.b16 %v6594
  %v6683 = vunpack.c.h.b16 %v6594
  %v6684 = vunpack.c.l.b16 %v6595
  %v6685 = vunpack.c.h.b16 %v6595
  %v6686 = vunpack.c.l.b16 %v6596
  %v6687 = vunpack.c.h.b16 %v6596
  %v6688 = vunpack.c.l.b16 %v6597
  %v6689 = vunpack.c.h.b16 %v6597
  %v6690 = vunpack.c.l.b16 %v6598
  %v6691 = vunpack.c.h.b16 %v6598
  %v6692 = vunpack.c.l.b16 %v6599
  %v6693 = vunpack.c.h.b16 %v6599
  %v6694 = vunpack.c.l.b16 %v6600
  %v6695 = vunpack.c.h.b16 %v6600
  %v6696 = vunpack.c.l.b16 %v6601
  %v6697 = vunpack.c.h.b16 %v6601
  %v6698 = vpack.c.b16 %v6642, %v6634
  %v6699 = vpack.c.b16 %v6643, %v6635
  %v6700 = vpack.c.b16 %v6644, %v6636
  %v6701 = vpack.c.b16 %v6645, %v6637
  %v6702 = vpack.c.b16 %v6646, %v6638
  %v6703 = vpack.c.b16 %v6647, %v6639
  %v6704 = vpack.c.b16 %v6648, %v6640
  %v6705 = vpack.c.b16 %v6649, %v6641
  %v6706 = vpack.c.b16 %v6658, %v6650
  %v6707 = vpack.c.b16 %v6659, %v6651
  %v6708 = vpack.c.b16 %v6660, %v6652
  %v6709 = vpack.c.b16 %v6661, %v6653
  %v6710 = vpack.c.b16 %v6662, %v6654
  %v6711 = vpack.c.b16 %v6663, %v6655
  %v6712 = vpack.c.b16 %v6664, %v6656
  %v6713 = vpack.c.b16 %v6665, %v6657
  %v6714 = vpack.c.b16 %v6674, %v6666
  %v6715 = vpack.c.b16 %v6675, %v6667
  %v6716 = vpack.c.b16 %v6676, %v6668
  %v6717 = vpack.c.b16 %v6677, %v6669
  %v6718 = vpack.c.b16 %v6678, %v6670
  %v6719 = vpack.c.b16 %v6679, %v6671
  %v6720 = vpack.c.b16 %v6680, %v6672
  %v6721 = vpack.c.b16 %v6681, %v6673
  %v6722 = vpack.c.b16 %v6690, %v6682
  %v6723 = vpack.c.b16 %v6691, %v6683
  %v6724 = vpack.c.b16 %v6692, %v6684
  %v6725 = vpack.c.b16 %v6693, %v6685
  %v6726 = vpack.c.b16 %v6694, %v6686
  %v6727 = vpack.c.b16 %v6695, %v6687
  %v6728 = vpack.c.b16 %v6696, %v6688
  %v6729 = vpack.c.b16 %v6697, %v6689
  %v6763 = vsel %vm4522, %v4287, 0
  %6765 = vmatprep.subr.bf16.mxu0 %v6699
  %6766 = vmatpush1.bf16.msra.mxu0 %v6698
  %6767 = vmatprep.subr.bf16.mxu0 %v6707
  %6768 = vmatpush1.bf16.msra.mxu0 %v6706
  %6769 = vmatprep.subr.bf16.mxu0 %v6715
  %6770 = vmatpush1.bf16.msra.mxu0 %v6714
  %6771 = vmatprep.subr.bf16.mxu0 %v6723
  %6772 = vmatpush1.bf16.msra.mxu0 %v6722
  %6773 = vmatprep.subr.bf16.mxu0 0
  %6774 = vmatpush1.bf16.msra.mxu0 0
  %6775 = vmatprep.subr.bf16.mxu0 0
  %6776 = vmatpush1.bf16.msra.mxu0 0
  %6777 = vmatprep.subr.bf16.mxu0 0
  %6778 = vmatpush1.bf16.msra.mxu0 0
  %6779 = vmatprep.subr.bf16.mxu0 0
  %6780 = vmatpush1.bf16.msra.mxu0 0
  %6781 = vmatprep.subr.bf16.mxu0 0
  %6782 = vmatpush1.bf16.msra.mxu0 0
  %6783 = vmatprep.subr.bf16.mxu0 0
  %6784 = vmatpush1.bf16.msra.mxu0 0
  %6785 = vmatprep.subr.bf16.mxu0 0
  %6786 = vmatpush1.bf16.msra.mxu0 0
  %6787 = vmatprep.subr.bf16.mxu0 0
  %6788 = vmatpush1.bf16.msra.mxu0 0
  %6789 = vmatprep.subr.bf16.mxu0 0
  %6790 = vmatpush1.bf16.msra.mxu0 0
  %6791 = vmatprep.subr.bf16.mxu0 0
  %6792 = vmatpush1.bf16.msra.mxu0 0
  %6793 = vmatprep.subr.bf16.mxu0 0
  %6794 = vmatpush1.bf16.msra.mxu0 0
  %6795 = vmatprep.subr.bf16.mxu0 0
  %6796 = vmatpush1.bf16.msra.mxu0 0
  %6797 = vmatprep.mubr.bf16.mxu0 0
  %6798 = vmatmul.mubr.bf16.gmra.mrb[0].mxu0 %v6763
  %v6799 = vpop.f32.mrb[0].mxu0
  %v6800 = vadd.f32 0.0, %v6799
  %v6801 = vpop.f32.mrb[0].mxu0
  %v6802 = vadd.f32 0.0, %v6801
  %v6803 = vpop.f32.mrb[0].mxu0
  %v6804 = vadd.f32 0.0, %v6803
  %v6805 = vpop.f32.mrb[0].mxu0
  %v6806 = vadd.f32 0.0, %v6805
  %6807 = vdwg.mxu0
  %6808 = vmatprep.subr.bf16.mxu0 %v6701
  %6809 = vmatpush1.bf16.msra.mxu0 %v6700
  %6810 = vmatprep.subr.bf16.mxu0 %v6709
  %6811 = vmatpush1.bf16.msra.mxu0 %v6708
  %6812 = vmatprep.subr.bf16.mxu0 %v6717
  %6813 = vmatpush1.bf16.msra.mxu0 %v6716
  %6814 = vmatprep.subr.bf16.mxu0 %v6725
  %6815 = vmatpush1.bf16.msra.mxu0 %v6724
  %6816 = vmatprep.subr.bf16.mxu0 0
  %6817 = vmatpush1.bf16.msra.mxu0 0
  %6818 = vmatprep.subr.bf16.mxu0 0
  %6819 = vmatpush1.bf16.msra.mxu0 0
  %6820 = vmatprep.subr.bf16.mxu0 0
  %6821 = vmatpush1.bf16.msra.mxu0 0
  %6822 = vmatprep.subr.bf16.mxu0 0
  %6823 = vmatpush1.bf16.msra.mxu0 0
  %6824 = vmatprep.subr.bf16.mxu0 0
  %6825 = vmatpush1.bf16.msra.mxu0 0
  %6826 = vmatprep.subr.bf16.mxu0 0
  %6827 = vmatpush1.bf16.msra.mxu0 0
  %6828 = vmatprep.subr.bf16.mxu0 0
  %6829 = vmatpush1.bf16.msra.mxu0 0
  %6830 = vmatprep.subr.bf16.mxu0 0
  %6831 = vmatpush1.bf16.msra.mxu0 0
  %6832 = vmatprep.subr.bf16.mxu0 0
  %6833 = vmatpush1.bf16.msra.mxu0 0
  %6834 = vmatprep.subr.bf16.mxu0 0
  %6835 = vmatpush1.bf16.msra.mxu0 0
  %6836 = vmatprep.subr.bf16.mxu0 0
  %6837 = vmatpush1.bf16.msra.mxu0 0
  %6838 = vmatprep.subr.bf16.mxu0 0
  %6839 = vmatpush1.bf16.msra.mxu0 0
  %6840 = vmatprep.mubr.bf16.mxu0 0
  %6841 = vmatmul.mubr.bf16.gmra.mrb[0].mxu0 %v6763
  %v6842 = vpop.f32.mrb[0].mxu0
  %v6843 = vadd.f32 0.0, %v6842
  %v6844 = vpop.f32.mrb[0].mxu0
  %v6845 = vadd.f32 0.0, %v6844
  %v6846 = vpop.f32.mrb[0].mxu0
  %v6847 = vadd.f32 0.0, %v6846
  %v6848 = vpop.f32.mrb[0].mxu0
  %v6849 = vadd.f32 0.0, %v6848
  %6850 = vdwg.mxu0
  %6851 = vmatprep.subr.bf16.mxu0 %v6703
  %6852 = vmatpush1.bf16.msra.mxu0 %v6702
  %6853 = vmatprep.subr.bf16.mxu0 %v6711
  %6854 = vmatpush1.bf16.msra.mxu0 %v6710
  %6855 = vmatprep.subr.bf16.mxu0 %v6719
  %6856 = vmatpush1.bf16.msra.mxu0 %v6718
  %6857 = vmatprep.subr.bf16.mxu0 %v6727
  %6858 = vmatpush1.bf16.msra.mxu0 %v6726
  %6859 = vmatprep.subr.bf16.mxu0 0
  %6860 = vmatpush1.bf16.msra.mxu0 0
  %6861 = vmatprep.subr.bf16.mxu0 0
  %6862 = vmatpush1.bf16.msra.mxu0 0
  %6863 = vmatprep.subr.bf16.mxu0 0
  %6864 = vmatpush1.bf16.msra.mxu0 0
  %6865 = vmatprep.subr.bf16.mxu0 0
  %6866 = vmatpush1.bf16.msra.mxu0 0
  %6867 = vmatprep.subr.bf16.mxu0 0
  %6868 = vmatpush1.bf16.msra.mxu0 0
  %6869 = vmatprep.subr.bf16.mxu0 0
  %6870 = vmatpush1.bf16.msra.mxu0 0
  %6871 = vmatprep.subr.bf16.mxu0 0
  %6872 = vmatpush1.bf16.msra.mxu0 0
  %6873 = vmatprep.subr.bf16.mxu0 0
  %6874 = vmatpush1.bf16.msra.mxu0 0
  %6875 = vmatprep.subr.bf16.mxu0 0
  %6876 = vmatpush1.bf16.msra.mxu0 0
  %6877 = vmatprep.subr.bf16.mxu0 0
  %6878 = vmatpush1.bf16.msra.mxu0 0
  %6879 = vmatprep.subr.bf16.mxu0 0
  %6880 = vmatpush1.bf16.msra.mxu0 0
  %6881 = vmatprep.subr.bf16.mxu0 0
  %6882 = vmatpush1.bf16.msra.mxu0 0
  %6883 = vmatprep.mubr.bf16.mxu0 0
  %6884 = vmatmul.mubr.bf16.gmra.mrb[0].mxu0 %v6763
  %v6885 = vpop.f32.mrb[0].mxu0
  %v6886 = vadd.f32 0.0, %v6885
  %v6887 = vpop.f32.mrb[0].mxu0
  %v6888 = vadd.f32 0.0, %v6887
  %v6889 = vpop.f32.mrb[0].mxu0
  %v6890 = vadd.f32 0.0, %v6889
  %v6891 = vpop.f32.mrb[0].mxu0
  %v6892 = vadd.f32 0.0, %v6891
  %6893 = vdwg.mxu0
  %6894 = vmatprep.subr.bf16.mxu0 %v6705
  %6895 = vmatpush1.bf16.msra.mxu0 %v6704
  %6896 = vmatprep.subr.bf16.mxu0 %v6713
  %6897 = vmatpush1.bf16.msra.mxu0 %v6712
  %6898 = vmatprep.subr.bf16.mxu0 %v6721
  %6899 = vmatpush1.bf16.msra.mxu0 %v6720
  %6900 = vmatprep.subr.bf16.mxu0 %v6729
  %6901 = vmatpush1.bf16.msra.mxu0 %v6728
  %6902 = vmatprep.subr.bf16.mxu0 0
  %6903 = vmatpush1.bf16.msra.mxu0 0
  %6904 = vmatprep.subr.bf16.mxu0 0
  %6905 = vmatpush1.bf16.msra.mxu0 0
  %6906 = vmatprep.subr.bf16.mxu0 0
  %6907 = vmatpush1.bf16.msra.mxu0 0
  %6908 = vmatprep.subr.bf16.mxu0 0
  %6909 = vmatpush1.bf16.msra.mxu0 0
  %6910 = vmatprep.subr.bf16.mxu0 0
  %6911 = vmatpush1.bf16.msra.mxu0 0
  %6912 = vmatprep.subr.bf16.mxu0 0
  %6913 = vmatpush1.bf16.msra.mxu0 0
  %6914 = vmatprep.subr.bf16.mxu0 0
  %6915 = vmatpush1.bf16.msra.mxu0 0
  %6916 = vmatprep.subr.bf16.mxu0 0
  %6917 = vmatpush1.bf16.msra.mxu0 0
  %6918 = vmatprep.subr.bf16.mxu0 0
  %6919 = vmatpush1.bf16.msra.mxu0 0
  %6920 = vmatprep.subr.bf16.mxu0 0
  %6921 = vmatpush1.bf16.msra.mxu0 0
  %6922 = vmatprep.subr.bf16.mxu0 0
  %6923 = vmatpush1.bf16.msra.mxu0 0
  %6924 = vmatprep.subr.bf16.mxu0 0
  %6925 = vmatpush1.bf16.msra.mxu0 0
  %6926 = vmatprep.mubr.bf16.mxu0 0
  %6927 = vmatmul.mubr.bf16.gmra.mrb[0].mxu0 %v6763
  %v6928 = vpop.f32.mrb[0].mxu0
  %v6929 = vadd.f32 0.0, %v6928
  %v6930 = vpop.f32.mrb[0].mxu0
  %v6931 = vadd.f32 0.0, %v6930
  %v6932 = vpop.f32.mrb[0].mxu0
  %v6933 = vadd.f32 0.0, %v6932
  %v6934 = vpop.f32.mrb[0].mxu0
  %v6935 = vadd.f32 0.0, %v6934
  %6936 = vdwg.mxu0
  %v6937 = vadd.f32 %v6553, %v6800
  %v6938 = vadd.f32 %v6554, %v6802
  %v6939 = vadd.f32 %v6555, %v6843
  %v6940 = vadd.f32 %v6556, %v6845
  %v6941 = vadd.f32 %v6557, %v6886
  %v6942 = vadd.f32 %v6558, %v6888
  %v6943 = vadd.f32 %v6559, %v6929
  %v6944 = vadd.f32 %v6560, %v6931
  %v6945 = vadd.f32 %v6561, %v6804
  %v6946 = vadd.f32 %v6562, %v6806
  %v6947 = vadd.f32 %v6563, %v6847
  %v6948 = vadd.f32 %v6564, %v6849
  %v6949 = vadd.f32 %v6565, %v6890
  %v6950 = vadd.f32 %v6566, %v6892
  %v6951 = vadd.f32 %v6567, %v6933
  %v6952 = vadd.f32 %v6568, %v6935
  %s6953 = scalar_lea.vmem %s5, 1792
  %v6954 = vld [vmem:[%s6953] sm:$0xff]
  %v6955 = vld [vmem:[%s6953 + $0x8] sm:$0xff]
  %v6956 = vld [vmem:[%s6953 + $0x10] sm:$0xff]
  %v6957 = vld [vmem:[%s6953 + $0x18] sm:$0xff]
  %v6958 = vld [vmem:[%s6953 + $0x20] sm:$0xff]
  %v6959 = vld [vmem:[%s6953 + $0x28] sm:$0xff]
  %v6960 = vld [vmem:[%s6953 + $0x30] sm:$0xff]
  %v6961 = vld [vmem:[%s6953 + $0x38] sm:$0xff]
  %v6962 = vld [vmem:[%s6953 + $0x40] sm:$0xff]
  %v6963 = vld [vmem:[%s6953 + $0x48] sm:$0xff]
  %v6964 = vld [vmem:[%s6953 + $0x50] sm:$0xff]
  %v6965 = vld [vmem:[%s6953 + $0x58] sm:$0xff]
  %v6966 = vld [vmem:[%s6953 + $0x60] sm:$0xff]
  %v6967 = vld [vmem:[%s6953 + $0x68] sm:$0xff]
  %v6968 = vld [vmem:[%s6953 + $0x70] sm:$0xff]
  %v6969 = vld [vmem:[%s6953 + $0x78] sm:$0xff]
  %v6970 = vld [vmem:[%s6953 + $0x80] sm:$0xff]
  %v6971 = vld [vmem:[%s6953 + $0x88] sm:$0xff]
  %v6972 = vld [vmem:[%s6953 + $0x90] sm:$0xff]
  %v6973 = vld [vmem:[%s6953 + $0x98] sm:$0xff]
  %v6974 = vld [vmem:[%s6953 + $0xa0] sm:$0xff]
  %v6975 = vld [vmem:[%s6953 + $0xa8] sm:$0xff]
  %v6976 = vld [vmem:[%s6953 + $0xb0] sm:$0xff]
  %v6977 = vld [vmem:[%s6953 + $0xb8] sm:$0xff]
  %v6978 = vld [vmem:[%s6953 + $0xc0] sm:$0xff]
  %v6979 = vld [vmem:[%s6953 + $0xc8] sm:$0xff]
  %v6980 = vld [vmem:[%s6953 + $0xd0] sm:$0xff]
  %v6981 = vld [vmem:[%s6953 + $0xd8] sm:$0xff]
  %v6982 = vld [vmem:[%s6953 + $0xe0] sm:$0xff]
  %v6983 = vld [vmem:[%s6953 + $0xe8] sm:$0xff]
  %v6984 = vld [vmem:[%s6953 + $0xf0] sm:$0xff]
  %v6985 = vld [vmem:[%s6953 + $0xf8] sm:$0xff]
  %v7018 = vunpack.c.l.b16 %v6954
  %v7019 = vunpack.c.h.b16 %v6954
  %v7020 = vunpack.c.l.b16 %v6955
  %v7021 = vunpack.c.h.b16 %v6955
  %v7022 = vunpack.c.l.b16 %v6956
  %v7023 = vunpack.c.h.b16 %v6956
  %v7024 = vunpack.c.l.b16 %v6957
  %v7025 = vunpack.c.h.b16 %v6957
  %v7026 = vunpack.c.l.b16 %v6958
  %v7027 = vunpack.c.h.b16 %v6958
  %v7028 = vunpack.c.l.b16 %v6959
  %v7029 = vunpack.c.h.b16 %v6959
  %v7030 = vunpack.c.l.b16 %v6960
  %v7031 = vunpack.c.h.b16 %v6960
  %v7032 = vunpack.c.l.b16 %v6961
  %v7033 = vunpack.c.h.b16 %v6961
  %v7034 = vunpack.c.l.b16 %v6962
  %v7035 = vunpack.c.h.b16 %v6962
  %v7036 = vunpack.c.l.b16 %v6963
  %v7037 = vunpack.c.h.b16 %v6963
  %v7038 = vunpack.c.l.b16 %v6964
  %v7039 = vunpack.c.h.b16 %v6964
  %v7040 = vunpack.c.l.b16 %v6965
  %v7041 = vunpack.c.h.b16 %v6965
  %v7042 = vunpack.c.l.b16 %v6966
  %v7043 = vunpack.c.h.b16 %v6966
  %v7044 = vunpack.c.l.b16 %v6967
  %v7045 = vunpack.c.h.b16 %v6967
  %v7046 = vunpack.c.l.b16 %v6968
  %v7047 = vunpack.c.h.b16 %v6968
  %v7048 = vunpack.c.l.b16 %v6969
  %v7049 = vunpack.c.h.b16 %v6969
  %v7050 = vunpack.c.l.b16 %v6970
  %v7051 = vunpack.c.h.b16 %v6970
  %v7052 = vunpack.c.l.b16 %v6971
  %v7053 = vunpack.c.h.b16 %v6971
  %v7054 = vunpack.c.l.b16 %v6972
  %v7055 = vunpack.c.h.b16 %v6972
  %v7056 = vunpack.c.l.b16 %v6973
  %v7057 = vunpack.c.h.b16 %v6973
  %v7058 = vunpack.c.l.b16 %v6974
  %v7059 = vunpack.c.h.b16 %v6974
  %v7060 = vunpack.c.l.b16 %v6975
  %v7061 = vunpack.c.h.b16 %v6975
  %v7062 = vunpack.c.l.b16 %v6976
  %v7063 = vunpack.c.h.b16 %v6976
  %v7064 = vunpack.c.l.b16 %v6977
  %v7065 = vunpack.c.h.b16 %v6977
  %v7066 = vunpack.c.l.b16 %v6978
  %v7067 = vunpack.c.h.b16 %v6978
  %v7068 = vunpack.c.l.b16 %v6979
  %v7069 = vunpack.c.h.b16 %v6979
  %v7070 = vunpack.c.l.b16 %v6980
  %v7071 = vunpack.c.h.b16 %v6980
  %v7072 = vunpack.c.l.b16 %v6981
  %v7073 = vunpack.c.h.b16 %v6981
  %v7074 = vunpack.c.l.b16 %v6982
  %v7075 = vunpack.c.h.b16 %v6982
  %v7076 = vunpack.c.l.b16 %v6983
  %v7077 = vunpack.c.h.b16 %v6983
  %v7078 = vunpack.c.l.b16 %v6984
  %v7079 = vunpack.c.h.b16 %v6984
  %v7080 = vunpack.c.l.b16 %v6985
  %v7081 = vunpack.c.h.b16 %v6985
  %v7082 = vpack.c.b16 %v7026, %v7018
  %v7083 = vpack.c.b16 %v7027, %v7019
  %v7084 = vpack.c.b16 %v7028, %v7020
  %v7085 = vpack.c.b16 %v7029, %v7021
  %v7086 = vpack.c.b16 %v7030, %v7022
  %v7087 = vpack.c.b16 %v7031, %v7023
  %v7088 = vpack.c.b16 %v7032, %v7024
  %v7089 = vpack.c.b16 %v7033, %v7025
  %v7090 = vpack.c.b16 %v7042, %v7034
  %v7091 = vpack.c.b16 %v7043, %v7035
  %v7092 = vpack.c.b16 %v7044, %v7036
  %v7093 = vpack.c.b16 %v7045, %v7037
  %v7094 = vpack.c.b16 %v7046, %v7038
  %v7095 = vpack.c.b16 %v7047, %v7039
  %v7096 = vpack.c.b16 %v7048, %v7040
  %v7097 = vpack.c.b16 %v7049, %v7041
  %v7098 = vpack.c.b16 %v7058, %v7050
  %v7099 = vpack.c.b16 %v7059, %v7051
  %v7100 = vpack.c.b16 %v7060, %v7052
  %v7101 = vpack.c.b16 %v7061, %v7053
  %v7102 = vpack.c.b16 %v7062, %v7054
  %v7103 = vpack.c.b16 %v7063, %v7055
  %v7104 = vpack.c.b16 %v7064, %v7056
  %v7105 = vpack.c.b16 %v7065, %v7057
  %v7106 = vpack.c.b16 %v7074, %v7066
  %v7107 = vpack.c.b16 %v7075, %v7067
  %v7108 = vpack.c.b16 %v7076, %v7068
  %v7109 = vpack.c.b16 %v7077, %v7069
  %v7110 = vpack.c.b16 %v7078, %v7070
  %v7111 = vpack.c.b16 %v7079, %v7071
  %v7112 = vpack.c.b16 %v7080, %v7072
  %v7113 = vpack.c.b16 %v7081, %v7073
  %v7147 = vsel %vm4522, %v4288, 0
  %7149 = vmatprep.subr.bf16.mxu0 %v7083
  %7150 = vmatpush1.bf16.msra.mxu0 %v7082
  %7151 = vmatprep.subr.bf16.mxu0 %v7091
  %7152 = vmatpush1.bf16.msra.mxu0 %v7090
  %7153 = vmatprep.subr.bf16.mxu0 %v7099
  %7154 = vmatpush1.bf16.msra.mxu0 %v7098
  %7155 = vmatprep.subr.bf16.mxu0 %v7107
  %7156 = vmatpush1.bf16.msra.mxu0 %v7106
  %7157 = vmatprep.subr.bf16.mxu0 0
  %7158 = vmatpush1.bf16.msra.mxu0 0
  %7159 = vmatprep.subr.bf16.mxu0 0
  %7160 = vmatpush1.bf16.msra.mxu0 0
  %7161 = vmatprep.subr.bf16.mxu0 0
  %7162 = vmatpush1.bf16.msra.mxu0 0
  %7163 = vmatprep.subr.bf16.mxu0 0
  %7164 = vmatpush1.bf16.msra.mxu0 0
  %7165 = vmatprep.subr.bf16.mxu0 0
  %7166 = vmatpush1.bf16.msra.mxu0 0
  %7167 = vmatprep.subr.bf16.mxu0 0
  %7168 = vmatpush1.bf16.msra.mxu0 0
  %7169 = vmatprep.subr.bf16.mxu0 0
  %7170 = vmatpush1.bf16.msra.mxu0 0
  %7171 = vmatprep.subr.bf16.mxu0 0
  %7172 = vmatpush1.bf16.msra.mxu0 0
  %7173 = vmatprep.subr.bf16.mxu0 0
  %7174 = vmatpush1.bf16.msra.mxu0 0
  %7175 = vmatprep.subr.bf16.mxu0 0
  %7176 = vmatpush1.bf16.msra.mxu0 0
  %7177 = vmatprep.subr.bf16.mxu0 0
  %7178 = vmatpush1.bf16.msra.mxu0 0
  %7179 = vmatprep.subr.bf16.mxu0 0
  %7180 = vmatpush1.bf16.msra.mxu0 0
  %7181 = vmatprep.mubr.bf16.mxu0 0
  %7182 = vmatmul.mubr.bf16.gmra.mrb[0].mxu0 %v7147
  %v7183 = vpop.f32.mrb[0].mxu0
  %v7184 = vadd.f32 0.0, %v7183
  %v7185 = vpop.f32.mrb[0].mxu0
  %v7186 = vadd.f32 0.0, %v7185
  %v7187 = vpop.f32.mrb[0].mxu0
  %v7188 = vadd.f32 0.0, %v7187
  %v7189 = vpop.f32.mrb[0].mxu0
  %v7190 = vadd.f32 0.0, %v7189
  %7191 = vdwg.mxu0
  %7192 = vmatprep.subr.bf16.mxu0 %v7085
  %7193 = vmatpush1.bf16.msra.mxu0 %v7084
  %7194 = vmatprep.subr.bf16.mxu0 %v7093
  %7195 = vmatpush1.bf16.msra.mxu0 %v7092
  %7196 = vmatprep.subr.bf16.mxu0 %v7101
  %7197 = vmatpush1.bf16.msra.mxu0 %v7100
  %7198 = vmatprep.subr.bf16.mxu0 %v7109
  %7199 = vmatpush1.bf16.msra.mxu0 %v7108
  %7200 = vmatprep.subr.bf16.mxu0 0
  %7201 = vmatpush1.bf16.msra.mxu0 0
  %7202 = vmatprep.subr.bf16.mxu0 0
  %7203 = vmatpush1.bf16.msra.mxu0 0
  %7204 = vmatprep.subr.bf16.mxu0 0
  %7205 = vmatpush1.bf16.msra.mxu0 0
  %7206 = vmatprep.subr.bf16.mxu0 0
  %7207 = vmatpush1.bf16.msra.mxu0 0
  %7208 = vmatprep.subr.bf16.mxu0 0
  %7209 = vmatpush1.bf16.msra.mxu0 0
  %7210 = vmatprep.subr.bf16.mxu0 0
  %7211 = vmatpush1.bf16.msra.mxu0 0
  %7212 = vmatprep.subr.bf16.mxu0 0
  %7213 = vmatpush1.bf16.msra.mxu0 0
  %7214 = vmatprep.subr.bf16.mxu0 0
  %7215 = vmatpush1.bf16.msra.mxu0 0
  %7216 = vmatprep.subr.bf16.mxu0 0
  %7217 = vmatpush1.bf16.msra.mxu0 0
  %7218 = vmatprep.subr.bf16.mxu0 0
  %7219 = vmatpush1.bf16.msra.mxu0 0
  %7220 = vmatprep.subr.bf16.mxu0 0
  %7221 = vmatpush1.bf16.msra.mxu0 0
  %7222 = vmatprep.subr.bf16.mxu0 0
  %7223 = vmatpush1.bf16.msra.mxu0 0
  %7224 = vmatprep.mubr.bf16.mxu0 0
  %7225 = vmatmul.mubr.bf16.gmra.mrb[0].mxu0 %v7147
  %v7226 = vpop.f32.mrb[0].mxu0
  %v7227 = vadd.f32 0.0, %v7226
  %v7228 = vpop.f32.mrb[0].mxu0
  %v7229 = vadd.f32 0.0, %v7228
  %v7230 = vpop.f32.mrb[0].mxu0
  %v7231 = vadd.f32 0.0, %v7230
  %v7232 = vpop.f32.mrb[0].mxu0
  %v7233 = vadd.f32 0.0, %v7232
  %7234 = vdwg.mxu0
  %7235 = vmatprep.subr.bf16.mxu0 %v7087
  %7236 = vmatpush1.bf16.msra.mxu0 %v7086
  %7237 = vmatprep.subr.bf16.mxu0 %v7095
  %7238 = vmatpush1.bf16.msra.mxu0 %v7094
  %7239 = vmatprep.subr.bf16.mxu0 %v7103
  %7240 = vmatpush1.bf16.msra.mxu0 %v7102
  %7241 = vmatprep.subr.bf16.mxu0 %v7111
  %7242 = vmatpush1.bf16.msra.mxu0 %v7110
  %7243 = vmatprep.subr.bf16.mxu0 0
  %7244 = vmatpush1.bf16.msra.mxu0 0
  %7245 = vmatprep.subr.bf16.mxu0 0
  %7246 = vmatpush1.bf16.msra.mxu0 0
  %7247 = vmatprep.subr.bf16.mxu0 0
  %7248 = vmatpush1.bf16.msra.mxu0 0
  %7249 = vmatprep.subr.bf16.mxu0 0
  %7250 = vmatpush1.bf16.msra.mxu0 0
  %7251 = vmatprep.subr.bf16.mxu0 0
  %7252 = vmatpush1.bf16.msra.mxu0 0
  %7253 = vmatprep.subr.bf16.mxu0 0
  %7254 = vmatpush1.bf16.msra.mxu0 0
  %7255 = vmatprep.subr.bf16.mxu0 0
  %7256 = vmatpush1.bf16.msra.mxu0 0
  %7257 = vmatprep.subr.bf16.mxu0 0
  %7258 = vmatpush1.bf16.msra.mxu0 0
  %7259 = vmatprep.subr.bf16.mxu0 0
  %7260 = vmatpush1.bf16.msra.mxu0 0
  %7261 = vmatprep.subr.bf16.mxu0 0
  %7262 = vmatpush1.bf16.msra.mxu0 0
  %7263 = vmatprep.subr.bf16.mxu0 0
  %7264 = vmatpush1.bf16.msra.mxu0 0
  %7265 = vmatprep.subr.bf16.mxu0 0
  %7266 = vmatpush1.bf16.msra.mxu0 0
  %7267 = vmatprep.mubr.bf16.mxu0 0
  %7268 = vmatmul.mubr.bf16.gmra.mrb[0].mxu0 %v7147
  %v7269 = vpop.f32.mrb[0].mxu0
  %v7270 = vadd.f32 0.0, %v7269
  %v7271 = vpop.f32.mrb[0].mxu0
  %v7272 = vadd.f32 0.0, %v7271
  %v7273 = vpop.f32.mrb[0].mxu0
  %v7274 = vadd.f32 0.0, %v7273
  %v7275 = vpop.f32.mrb[0].mxu0
  %v7276 = vadd.f32 0.0, %v7275
  %7277 = vdwg.mxu0
  %7278 = vmatprep.subr.bf16.mxu0 %v7089
  %7279 = vmatpush1.bf16.msra.mxu0 %v7088
  %7280 = vmatprep.subr.bf16.mxu0 %v7097
  %7281 = vmatpush1.bf16.msra.mxu0 %v7096
  %7282 = vmatprep.subr.bf16.mxu0 %v7105
  %7283 = vmatpush1.bf16.msra.mxu0 %v7104
  %7284 = vmatprep.subr.bf16.mxu0 %v7113
  %7285 = vmatpush1.bf16.msra.mxu0 %v7112
  %7286 = vmatprep.subr.bf16.mxu0 0
  %7287 = vmatpush1.bf16.msra.mxu0 0
  %7288 = vmatprep.subr.bf16.mxu0 0
  %7289 = vmatpush1.bf16.msra.mxu0 0
  %7290 = vmatprep.subr.bf16.mxu0 0
  %7291 = vmatpush1.bf16.msra.mxu0 0
  %7292 = vmatprep.subr.bf16.mxu0 0
  %7293 = vmatpush1.bf16.msra.mxu0 0
  %7294 = vmatprep.subr.bf16.mxu0 0
  %7295 = vmatpush1.bf16.msra.mxu0 0
  %7296 = vmatprep.subr.bf16.mxu0 0
  %7297 = vmatpush1.bf16.msra.mxu0 0
  %7298 = vmatprep.subr.bf16.mxu0 0
  %7299 = vmatpush1.bf16.msra.mxu0 0
  %7300 = vmatprep.subr.bf16.mxu0 0
  %7301 = vmatpush1.bf16.msra.mxu0 0
  %7302 = vmatprep.subr.bf16.mxu0 0
  %7303 = vmatpush1.bf16.msra.mxu0 0
  %7304 = vmatprep.subr.bf16.mxu0 0
  %7305 = vmatpush1.bf16.msra.mxu0 0
  %7306 = vmatprep.subr.bf16.mxu0 0
  %7307 = vmatpush1.bf16.msra.mxu0 0
  %7308 = vmatprep.subr.bf16.mxu0 0
  %7309 = vmatpush1.bf16.msra.mxu0 0
  %7310 = vmatprep.mubr.bf16.mxu0 0
  %7311 = vmatmul.mubr.bf16.gmra.mrb[0].mxu0 %v7147
  %v7312 = vpop.f32.mrb[0].mxu0
  %v7313 = vadd.f32 0.0, %v7312
  %v7314 = vpop.f32.mrb[0].mxu0
  %v7315 = vadd.f32 0.0, %v7314
  %v7316 = vpop.f32.mrb[0].mxu0
  %v7317 = vadd.f32 0.0, %v7316
  %v7318 = vpop.f32.mrb[0].mxu0
  %v7319 = vadd.f32 0.0, %v7318
  %7320 = vdwg.mxu0
  %v7321 = vadd.f32 %v6937, %v7184
  %v7322 = vadd.f32 %v6938, %v7186
  %v7323 = vadd.f32 %v6939, %v7227
  %v7324 = vadd.f32 %v6940, %v7229
  %v7325 = vadd.f32 %v6941, %v7270
  %v7326 = vadd.f32 %v6942, %v7272
  %v7327 = vadd.f32 %v6943, %v7313
  %v7328 = vadd.f32 %v6944, %v7315
  %v7329 = vadd.f32 %v6945, %v7188
  %v7330 = vadd.f32 %v6946, %v7190
  %v7331 = vadd.f32 %v6947, %v7231
  %v7332 = vadd.f32 %v6948, %v7233
  %v7333 = vadd.f32 %v6949, %v7274
  %v7334 = vadd.f32 %v6950, %v7276
  %v7335 = vadd.f32 %v6951, %v7317
  %v7336 = vadd.f32 %v6952, %v7319
  %s7337 = scalar_lea.vmem %s5, 2048
  %v7338 = vld [vmem:[%s7337] sm:$0xff]
  %v7339 = vld [vmem:[%s7337 + $0x8] sm:$0xff]
  %v7340 = vld [vmem:[%s7337 + $0x10] sm:$0xff]
  %v7341 = vld [vmem:[%s7337 + $0x18] sm:$0xff]
  %v7342 = vld [vmem:[%s7337 + $0x20] sm:$0xff]
  %v7343 = vld [vmem:[%s7337 + $0x28] sm:$0xff]
  %v7344 = vld [vmem:[%s7337 + $0x30] sm:$0xff]
  %v7345 = vld [vmem:[%s7337 + $0x38] sm:$0xff]
  %v7346 = vld [vmem:[%s7337 + $0x40] sm:$0xff]
  %v7347 = vld [vmem:[%s7337 + $0x48] sm:$0xff]
  %v7348 = vld [vmem:[%s7337 + $0x50] sm:$0xff]
  %v7349 = vld [vmem:[%s7337 + $0x58] sm:$0xff]
  %v7350 = vld [vmem:[%s7337 + $0x60] sm:$0xff]
  %v7351 = vld [vmem:[%s7337 + $0x68] sm:$0xff]
  %v7352 = vld [vmem:[%s7337 + $0x70] sm:$0xff]
  %v7353 = vld [vmem:[%s7337 + $0x78] sm:$0xff]
  %v7354 = vld [vmem:[%s7337 + $0x80] sm:$0xff]
  %v7355 = vld [vmem:[%s7337 + $0x88] sm:$0xff]
  %v7356 = vld [vmem:[%s7337 + $0x90] sm:$0xff]
  %v7357 = vld [vmem:[%s7337 + $0x98] sm:$0xff]
  %v7358 = vld [vmem:[%s7337 + $0xa0] sm:$0xff]
  %v7359 = vld [vmem:[%s7337 + $0xa8] sm:$0xff]
  %v7360 = vld [vmem:[%s7337 + $0xb0] sm:$0xff]
  %v7361 = vld [vmem:[%s7337 + $0xb8] sm:$0xff]
  %v7362 = vld [vmem:[%s7337 + $0xc0] sm:$0xff]
  %v7363 = vld [vmem:[%s7337 + $0xc8] sm:$0xff]
  %v7364 = vld [vmem:[%s7337 + $0xd0] sm:$0xff]
  %v7365 = vld [vmem:[%s7337 + $0xd8] sm:$0xff]
  %v7366 = vld [vmem:[%s7337 + $0xe0] sm:$0xff]
  %v7367 = vld [vmem:[%s7337 + $0xe8] sm:$0xff]
  %v7368 = vld [vmem:[%s7337 + $0xf0] sm:$0xff]
  %v7369 = vld [vmem:[%s7337 + $0xf8] sm:$0xff]
  %v7402 = vunpack.c.l.b16 %v7338
  %v7403 = vunpack.c.h.b16 %v7338
  %v7404 = vunpack.c.l.b16 %v7339
  %v7405 = vunpack.c.h.b16 %v7339
  %v7406 = vunpack.c.l.b16 %v7340
  %v7407 = vunpack.c.h.b16 %v7340
  %v7408 = vunpack.c.l.b16 %v7341
  %v7409 = vunpack.c.h.b16 %v7341
  %v7410 = vunpack.c.l.b16 %v7342
  %v7411 = vunpack.c.h.b16 %v7342
  %v7412 = vunpack.c.l.b16 %v7343
  %v7413 = vunpack.c.h.b16 %v7343
  %v7414 = vunpack.c.l.b16 %v7344
  %v7415 = vunpack.c.h.b16 %v7344
  %v7416 = vunpack.c.l.b16 %v7345
  %v7417 = vunpack.c.h.b16 %v7345
  %v7418 = vunpack.c.l.b16 %v7346
  %v7419 = vunpack.c.h.b16 %v7346
  %v7420 = vunpack.c.l.b16 %v7347
  %v7421 = vunpack.c.h.b16 %v7347
  %v7422 = vunpack.c.l.b16 %v7348
  %v7423 = vunpack.c.h.b16 %v7348
  %v7424 = vunpack.c.l.b16 %v7349
  %v7425 = vunpack.c.h.b16 %v7349
  %v7426 = vunpack.c.l.b16 %v7350
  %v7427 = vunpack.c.h.b16 %v7350
  %v7428 = vunpack.c.l.b16 %v7351
  %v7429 = vunpack.c.h.b16 %v7351
  %v7430 = vunpack.c.l.b16 %v7352
  %v7431 = vunpack.c.h.b16 %v7352
  %v7432 = vunpack.c.l.b16 %v7353
  %v7433 = vunpack.c.h.b16 %v7353
  %v7434 = vunpack.c.l.b16 %v7354
  %v7435 = vunpack.c.h.b16 %v7354
  %v7436 = vunpack.c.l.b16 %v7355
  %v7437 = vunpack.c.h.b16 %v7355
  %v7438 = vunpack.c.l.b16 %v7356
  %v7439 = vunpack.c.h.b16 %v7356
  %v7440 = vunpack.c.l.b16 %v7357
  %v7441 = vunpack.c.h.b16 %v7357
  %v7442 = vunpack.c.l.b16 %v7358
  %v7443 = vunpack.c.h.b16 %v7358
  %v7444 = vunpack.c.l.b16 %v7359
  %v7445 = vunpack.c.h.b16 %v7359
  %v7446 = vunpack.c.l.b16 %v7360
  %v7447 = vunpack.c.h.b16 %v7360
  %v7448 = vunpack.c.l.b16 %v7361
  %v7449 = vunpack.c.h.b16 %v7361
  %v7450 = vunpack.c.l.b16 %v7362
  %v7451 = vunpack.c.h.b16 %v7362
  %v7452 = vunpack.c.l.b16 %v7363
  %v7453 = vunpack.c.h.b16 %v7363
  %v7454 = vunpack.c.l.b16 %v7364
  %v7455 = vunpack.c.h.b16 %v7364
  %v7456 = vunpack.c.l.b16 %v7365
  %v7457 = vunpack.c.h.b16 %v7365
  %v7458 = vunpack.c.l.b16 %v7366
  %v7459 = vunpack.c.h.b16 %v7366
  %v7460 = vunpack.c.l.b16 %v7367
  %v7461 = vunpack.c.h.b16 %v7367
  %v7462 = vunpack.c.l.b16 %v7368
  %v7463 = vunpack.c.h.b16 %v7368
  %v7464 = vunpack.c.l.b16 %v7369
  %v7465 = vunpack.c.h.b16 %v7369
  %v7466 = vpack.c.b16 %v7410, %v7402
  %v7467 = vpack.c.b16 %v7411, %v7403
  %v7468 = vpack.c.b16 %v7412, %v7404
  %v7469 = vpack.c.b16 %v7413, %v7405
  %v7470 = vpack.c.b16 %v7414, %v7406
  %v7471 = vpack.c.b16 %v7415, %v7407
  %v7472 = vpack.c.b16 %v7416, %v7408
  %v7473 = vpack.c.b16 %v7417, %v7409
  %v7474 = vpack.c.b16 %v7426, %v7418
  %v7475 = vpack.c.b16 %v7427, %v7419
  %v7476 = vpack.c.b16 %v7428, %v7420
  %v7477 = vpack.c.b16 %v7429, %v7421
  %v7478 = vpack.c.b16 %v7430, %v7422
  %v7479 = vpack.c.b16 %v7431, %v7423
  %v7480 = vpack.c.b16 %v7432, %v7424
  %v7481 = vpack.c.b16 %v7433, %v7425
  %v7482 = vpack.c.b16 %v7442, %v7434
  %v7483 = vpack.c.b16 %v7443, %v7435
  %v7484 = vpack.c.b16 %v7444, %v7436
  %v7485 = vpack.c.b16 %v7445, %v7437
  %v7486 = vpack.c.b16 %v7446, %v7438
  %v7487 = vpack.c.b16 %v7447, %v7439
  %v7488 = vpack.c.b16 %v7448, %v7440
  %v7489 = vpack.c.b16 %v7449, %v7441
  %v7490 = vpack.c.b16 %v7458, %v7450
  %v7491 = vpack.c.b16 %v7459, %v7451
  %v7492 = vpack.c.b16 %v7460, %v7452
  %v7493 = vpack.c.b16 %v7461, %v7453
  %v7494 = vpack.c.b16 %v7462, %v7454
  %v7495 = vpack.c.b16 %v7463, %v7455
  %v7496 = vpack.c.b16 %v7464, %v7456
  %v7497 = vpack.c.b16 %v7465, %v7457
  %v7531 = vsel %vm4522, %v4289, 0
  %7533 = vmatprep.subr.bf16.mxu0 %v7467
  %7534 = vmatpush1.bf16.msra.mxu0 %v7466
  %7535 = vmatprep.subr.bf16.mxu0 %v7475
  %7536 = vmatpush1.bf16.msra.mxu0 %v7474
  %7537 = vmatprep.subr.bf16.mxu0 %v7483
  %7538 = vmatpush1.bf16.msra.mxu0 %v7482
  %7539 = vmatprep.subr.bf16.mxu0 %v7491
  %7540 = vmatpush1.bf16.msra.mxu0 %v7490
  %7541 = vmatprep.subr.bf16.mxu0 0
  %7542 = vmatpush1.bf16.msra.mxu0 0
  %7543 = vmatprep.subr.bf16.mxu0 0
  %7544 = vmatpush1.bf16.msra.mxu0 0
  %7545 = vmatprep.subr.bf16.mxu0 0
  %7546 = vmatpush1.bf16.msra.mxu0 0
  %7547 = vmatprep.subr.bf16.mxu0 0
  %7548 = vmatpush1.bf16.msra.mxu0 0
  %7549 = vmatprep.subr.bf16.mxu0 0
  %7550 = vmatpush1.bf16.msra.mxu0 0
  %7551 = vmatprep.subr.bf16.mxu0 0
  %7552 = vmatpush1.bf16.msra.mxu0 0
  %7553 = vmatprep.subr.bf16.mxu0 0
  %7554 = vmatpush1.bf16.msra.mxu0 0
  %7555 = vmatprep.subr.bf16.mxu0 0
  %7556 = vmatpush1.bf16.msra.mxu0 0
  %7557 = vmatprep.subr.bf16.mxu0 0
  %7558 = vmatpush1.bf16.msra.mxu0 0
  %7559 = vmatprep.subr.bf16.mxu0 0
  %7560 = vmatpush1.bf16.msra.mxu0 0
  %7561 = vmatprep.subr.bf16.mxu0 0
  %7562 = vmatpush1.bf16.msra.mxu0 0
  %7563 = vmatprep.subr.bf16.mxu0 0
  %7564 = vmatpush1.bf16.msra.mxu0 0
  %7565 = vmatprep.mubr.bf16.mxu0 0
  %7566 = vmatmul.mubr.bf16.gmra.mrb[0].mxu0 %v7531
  %v7567 = vpop.f32.mrb[0].mxu0
  %v7568 = vadd.f32 0.0, %v7567
  %v7569 = vpop.f32.mrb[0].mxu0
  %v7570 = vadd.f32 0.0, %v7569
  %v7571 = vpop.f32.mrb[0].mxu0
  %v7572 = vadd.f32 0.0, %v7571
  %v7573 = vpop.f32.mrb[0].mxu0
  %v7574 = vadd.f32 0.0, %v7573
  %7575 = vdwg.mxu0
  %7576 = vmatprep.subr.bf16.mxu0 %v7469
  %7577 = vmatpush1.bf16.msra.mxu0 %v7468
  %7578 = vmatprep.subr.bf16.mxu0 %v7477
  %7579 = vmatpush1.bf16.msra.mxu0 %v7476
  %7580 = vmatprep.subr.bf16.mxu0 %v7485
  %7581 = vmatpush1.bf16.msra.mxu0 %v7484
  %7582 = vmatprep.subr.bf16.mxu0 %v7493
  %7583 = vmatpush1.bf16.msra.mxu0 %v7492
  %7584 = vmatprep.subr.bf16.mxu0 0
  %7585 = vmatpush1.bf16.msra.mxu0 0
  %7586 = vmatprep.subr.bf16.mxu0 0
  %7587 = vmatpush1.bf16.msra.mxu0 0
  %7588 = vmatprep.subr.bf16.mxu0 0
  %7589 = vmatpush1.bf16.msra.mxu0 0
  %7590 = vmatprep.subr.bf16.mxu0 0
  %7591 = vmatpush1.bf16.msra.mxu0 0
  %7592 = vmatprep.subr.bf16.mxu0 0
  %7593 = vmatpush1.bf16.msra.mxu0 0
  %7594 = vmatprep.subr.bf16.mxu0 0
  %7595 = vmatpush1.bf16.msra.mxu0 0
  %7596 = vmatprep.subr.bf16.mxu0 0
  %7597 = vmatpush1.bf16.msra.mxu0 0
  %7598 = vmatprep.subr.bf16.mxu0 0
  %7599 = vmatpush1.bf16.msra.mxu0 0
  %7600 = vmatprep.subr.bf16.mxu0 0
  %7601 = vmatpush1.bf16.msra.mxu0 0
  %7602 = vmatprep.subr.bf16.mxu0 0
  %7603 = vmatpush1.bf16.msra.mxu0 0
  %7604 = vmatprep.subr.bf16.mxu0 0
  %7605 = vmatpush1.bf16.msra.mxu0 0
  %7606 = vmatprep.subr.bf16.mxu0 0
  %7607 = vmatpush1.bf16.msra.mxu0 0
  %7608 = vmatprep.mubr.bf16.mxu0 0
  %7609 = vmatmul.mubr.bf16.gmra.mrb[0].mxu0 %v7531
  %v7610 = vpop.f32.mrb[0].mxu0
  %v7611 = vadd.f32 0.0, %v7610
  %v7612 = vpop.f32.mrb[0].mxu0
  %v7613 = vadd.f32 0.0, %v7612
  %v7614 = vpop.f32.mrb[0].mxu0
  %v7615 = vadd.f32 0.0, %v7614
  %v7616 = vpop.f32.mrb[0].mxu0
  %v7617 = vadd.f32 0.0, %v7616
  %7618 = vdwg.mxu0
  %7619 = vmatprep.subr.bf16.mxu0 %v7471
  %7620 = vmatpush1.bf16.msra.mxu0 %v7470
  %7621 = vmatprep.subr.bf16.mxu0 %v7479
  %7622 = vmatpush1.bf16.msra.mxu0 %v7478
  %7623 = vmatprep.subr.bf16.mxu0 %v7487
  %7624 = vmatpush1.bf16.msra.mxu0 %v7486
  %7625 = vmatprep.subr.bf16.mxu0 %v7495
  %7626 = vmatpush1.bf16.msra.mxu0 %v7494
  %7627 = vmatprep.subr.bf16.mxu0 0
  %7628 = vmatpush1.bf16.msra.mxu0 0
  %7629 = vmatprep.subr.bf16.mxu0 0
  %7630 = vmatpush1.bf16.msra.mxu0 0
  %7631 = vmatprep.subr.bf16.mxu0 0
  %7632 = vmatpush1.bf16.msra.mxu0 0
  %7633 = vmatprep.subr.bf16.mxu0 0
  %7634 = vmatpush1.bf16.msra.mxu0 0
  %7635 = vmatprep.subr.bf16.mxu0 0
  %7636 = vmatpush1.bf16.msra.mxu0 0
  %7637 = vmatprep.subr.bf16.mxu0 0
  %7638 = vmatpush1.bf16.msra.mxu0 0
  %7639 = vmatprep.subr.bf16.mxu0 0
  %7640 = vmatpush1.bf16.msra.mxu0 0
  %7641 = vmatprep.subr.bf16.mxu0 0
  %7642 = vmatpush1.bf16.msra.mxu0 0
  %7643 = vmatprep.subr.bf16.mxu0 0
  %7644 = vmatpush1.bf16.msra.mxu0 0
  %7645 = vmatprep.subr.bf16.mxu0 0
  %7646 = vmatpush1.bf16.msra.mxu0 0
  %7647 = vmatprep.subr.bf16.mxu0 0
  %7648 = vmatpush1.bf16.msra.mxu0 0
  %7649 = vmatprep.subr.bf16.mxu0 0
  %7650 = vmatpush1.bf16.msra.mxu0 0
  %7651 = vmatprep.mubr.bf16.mxu0 0
  %7652 = vmatmul.mubr.bf16.gmra.mrb[0].mxu0 %v7531
  %v7653 = vpop.f32.mrb[0].mxu0
  %v7654 = vadd.f32 0.0, %v7653
  %v7655 = vpop.f32.mrb[0].mxu0
  %v7656 = vadd.f32 0.0, %v7655
  %v7657 = vpop.f32.mrb[0].mxu0
  %v7658 = vadd.f32 0.0, %v7657
  %v7659 = vpop.f32.mrb[0].mxu0
  %v7660 = vadd.f32 0.0, %v7659
  %7661 = vdwg.mxu0
  %7662 = vmatprep.subr.bf16.mxu0 %v7473
  %7663 = vmatpush1.bf16.msra.mxu0 %v7472
  %7664 = vmatprep.subr.bf16.mxu0 %v7481
  %7665 = vmatpush1.bf16.msra.mxu0 %v7480
  %7666 = vmatprep.subr.bf16.mxu0 %v7489
  %7667 = vmatpush1.bf16.msra.mxu0 %v7488
  %7668 = vmatprep.subr.bf16.mxu0 %v7497
  %7669 = vmatpush1.bf16.msra.mxu0 %v7496
  %7670 = vmatprep.subr.bf16.mxu0 0
  %7671 = vmatpush1.bf16.msra.mxu0 0
  %7672 = vmatprep.subr.bf16.mxu0 0
  %7673 = vmatpush1.bf16.msra.mxu0 0
  %7674 = vmatprep.subr.bf16.mxu0 0
  %7675 = vmatpush1.bf16.msra.mxu0 0
  %7676 = vmatprep.subr.bf16.mxu0 0
  %7677 = vmatpush1.bf16.msra.mxu0 0
  %7678 = vmatprep.subr.bf16.mxu0 0
  %7679 = vmatpush1.bf16.msra.mxu0 0
  %7680 = vmatprep.subr.bf16.mxu0 0
  %7681 = vmatpush1.bf16.msra.mxu0 0
  %7682 = vmatprep.subr.bf16.mxu0 0
  %7683 = vmatpush1.bf16.msra.mxu0 0
  %7684 = vmatprep.subr.bf16.mxu0 0
  %7685 = vmatpush1.bf16.msra.mxu0 0
  %7686 = vmatprep.subr.bf16.mxu0 0
  %7687 = vmatpush1.bf16.msra.mxu0 0
  %7688 = vmatprep.subr.bf16.mxu0 0
  %7689 = vmatpush1.bf16.msra.mxu0 0
  %7690 = vmatprep.subr.bf16.mxu0 0
  %7691 = vmatpush1.bf16.msra.mxu0 0
  %7692 = vmatprep.subr.bf16.mxu0 0
  %7693 = vmatpush1.bf16.msra.mxu0 0
  %7694 = vmatprep.mubr.bf16.mxu0 0
  %7695 = vmatmul.mubr.bf16.gmra.mrb[0].mxu0 %v7531
  %v7696 = vpop.f32.mrb[0].mxu0
  %v7697 = vadd.f32 0.0, %v7696
  %v7698 = vpop.f32.mrb[0].mxu0
  %v7699 = vadd.f32 0.0, %v7698
  %v7700 = vpop.f32.mrb[0].mxu0
  %v7701 = vadd.f32 0.0, %v7700
  %v7702 = vpop.f32.mrb[0].mxu0
  %v7703 = vadd.f32 0.0, %v7702
  %7704 = vdwg.mxu0
  %v7705 = vadd.f32 %v7321, %v7568
  %v7706 = vadd.f32 %v7322, %v7570
  %v7707 = vadd.f32 %v7323, %v7611
  %v7708 = vadd.f32 %v7324, %v7613
  %v7709 = vadd.f32 %v7325, %v7654
  %v7710 = vadd.f32 %v7326, %v7656
  %v7711 = vadd.f32 %v7327, %v7697
  %v7712 = vadd.f32 %v7328, %v7699
  %v7713 = vadd.f32 %v7329, %v7572
  %v7714 = vadd.f32 %v7330, %v7574
  %v7715 = vadd.f32 %v7331, %v7615
  %v7716 = vadd.f32 %v7332, %v7617
  %v7717 = vadd.f32 %v7333, %v7658
  %v7718 = vadd.f32 %v7334, %v7660
  %v7719 = vadd.f32 %v7335, %v7701
  %v7720 = vadd.f32 %v7336, %v7703
  %s7721 = scalar_lea.vmem %s5, 2304
  %v7722 = vld [vmem:[%s7721] sm:$0xff]
  %v7723 = vld [vmem:[%s7721 + $0x8] sm:$0xff]
  %v7724 = vld [vmem:[%s7721 + $0x10] sm:$0xff]
  %v7725 = vld [vmem:[%s7721 + $0x18] sm:$0xff]
  %v7726 = vld [vmem:[%s7721 + $0x20] sm:$0xff]
  %v7727 = vld [vmem:[%s7721 + $0x28] sm:$0xff]
  %v7728 = vld [vmem:[%s7721 + $0x30] sm:$0xff]
  %v7729 = vld [vmem:[%s7721 + $0x38] sm:$0xff]
  %v7730 = vld [vmem:[%s7721 + $0x40] sm:$0xff]
  %v7731 = vld [vmem:[%s7721 + $0x48] sm:$0xff]
  %v7732 = vld [vmem:[%s7721 + $0x50] sm:$0xff]
  %v7733 = vld [vmem:[%s7721 + $0x58] sm:$0xff]
  %v7734 = vld [vmem:[%s7721 + $0x60] sm:$0xff]
  %v7735 = vld [vmem:[%s7721 + $0x68] sm:$0xff]
  %v7736 = vld [vmem:[%s7721 + $0x70] sm:$0xff]
  %v7737 = vld [vmem:[%s7721 + $0x78] sm:$0xff]
  %v7738 = vld [vmem:[%s7721 + $0x80] sm:$0xff]
  %v7739 = vld [vmem:[%s7721 + $0x88] sm:$0xff]
  %v7740 = vld [vmem:[%s7721 + $0x90] sm:$0xff]
  %v7741 = vld [vmem:[%s7721 + $0x98] sm:$0xff]
  %v7742 = vld [vmem:[%s7721 + $0xa0] sm:$0xff]
  %v7743 = vld [vmem:[%s7721 + $0xa8] sm:$0xff]
  %v7744 = vld [vmem:[%s7721 + $0xb0] sm:$0xff]
  %v7745 = vld [vmem:[%s7721 + $0xb8] sm:$0xff]
  %v7746 = vld [vmem:[%s7721 + $0xc0] sm:$0xff]
  %v7747 = vld [vmem:[%s7721 + $0xc8] sm:$0xff]
  %v7748 = vld [vmem:[%s7721 + $0xd0] sm:$0xff]
  %v7749 = vld [vmem:[%s7721 + $0xd8] sm:$0xff]
  %v7750 = vld [vmem:[%s7721 + $0xe0] sm:$0xff]
  %v7751 = vld [vmem:[%s7721 + $0xe8] sm:$0xff]
  %v7752 = vld [vmem:[%s7721 + $0xf0] sm:$0xff]
  %v7753 = vld [vmem:[%s7721 + $0xf8] sm:$0xff]
  %v7786 = vunpack.c.l.b16 %v7722
  %v7787 = vunpack.c.h.b16 %v7722
  %v7788 = vunpack.c.l.b16 %v7723
  %v7789 = vunpack.c.h.b16 %v7723
  %v7790 = vunpack.c.l.b16 %v7724
  %v7791 = vunpack.c.h.b16 %v7724
  %v7792 = vunpack.c.l.b16 %v7725
  %v7793 = vunpack.c.h.b16 %v7725
  %v7794 = vunpack.c.l.b16 %v7726
  %v7795 = vunpack.c.h.b16 %v7726
  %v7796 = vunpack.c.l.b16 %v7727
  %v7797 = vunpack.c.h.b16 %v7727
  %v7798 = vunpack.c.l.b16 %v7728
  %v7799 = vunpack.c.h.b16 %v7728
  %v7800 = vunpack.c.l.b16 %v7729
  %v7801 = vunpack.c.h.b16 %v7729
  %v7802 = vunpack.c.l.b16 %v7730
  %v7803 = vunpack.c.h.b16 %v7730
  %v7804 = vunpack.c.l.b16 %v7731
  %v7805 = vunpack.c.h.b16 %v7731
  %v7806 = vunpack.c.l.b16 %v7732
  %v7807 = vunpack.c.h.b16 %v7732
  %v7808 = vunpack.c.l.b16 %v7733
  %v7809 = vunpack.c.h.b16 %v7733
  %v7810 = vunpack.c.l.b16 %v7734
  %v7811 = vunpack.c.h.b16 %v7734
  %v7812 = vunpack.c.l.b16 %v7735
  %v7813 = vunpack.c.h.b16 %v7735
  %v7814 = vunpack.c.l.b16 %v7736
  %v7815 = vunpack.c.h.b16 %v7736
  %v7816 = vunpack.c.l.b16 %v7737
  %v7817 = vunpack.c.h.b16 %v7737
  %v7818 = vunpack.c.l.b16 %v7738
  %v7819 = vunpack.c.h.b16 %v7738
  %v7820 = vunpack.c.l.b16 %v7739
  %v7821 = vunpack.c.h.b16 %v7739
  %v7822 = vunpack.c.l.b16 %v7740
  %v7823 = vunpack.c.h.b16 %v7740
  %v7824 = vunpack.c.l.b16 %v7741
  %v7825 = vunpack.c.h.b16 %v7741
  %v7826 = vunpack.c.l.b16 %v7742
  %v7827 = vunpack.c.h.b16 %v7742
  %v7828 = vunpack.c.l.b16 %v7743
  %v7829 = vunpack.c.h.b16 %v7743
  %v7830 = vunpack.c.l.b16 %v7744
  %v7831 = vunpack.c.h.b16 %v7744
  %v7832 = vunpack.c.l.b16 %v7745
  %v7833 = vunpack.c.h.b16 %v7745
  %v7834 = vunpack.c.l.b16 %v7746
  %v7835 = vunpack.c.h.b16 %v7746
  %v7836 = vunpack.c.l.b16 %v7747
  %v7837 = vunpack.c.h.b16 %v7747
  %v7838 = vunpack.c.l.b16 %v7748
  %v7839 = vunpack.c.h.b16 %v7748
  %v7840 = vunpack.c.l.b16 %v7749
  %v7841 = vunpack.c.h.b16 %v7749
  %v7842 = vunpack.c.l.b16 %v7750
  %v7843 = vunpack.c.h.b16 %v7750
  %v7844 = vunpack.c.l.b16 %v7751
  %v7845 = vunpack.c.h.b16 %v7751
  %v7846 = vunpack.c.l.b16 %v7752
  %v7847 = vunpack.c.h.b16 %v7752
  %v7848 = vunpack.c.l.b16 %v7753
  %v7849 = vunpack.c.h.b16 %v7753
  %v7850 = vpack.c.b16 %v7794, %v7786
  %v7851 = vpack.c.b16 %v7795, %v7787
  %v7852 = vpack.c.b16 %v7796, %v7788
  %v7853 = vpack.c.b16 %v7797, %v7789
  %v7854 = vpack.c.b16 %v7798, %v7790
  %v7855 = vpack.c.b16 %v7799, %v7791
  %v7856 = vpack.c.b16 %v7800, %v7792
  %v7857 = vpack.c.b16 %v7801, %v7793
  %v7858 = vpack.c.b16 %v7810, %v7802
  %v7859 = vpack.c.b16 %v7811, %v7803
  %v7860 = vpack.c.b16 %v7812, %v7804
  %v7861 = vpack.c.b16 %v7813, %v7805
  %v7862 = vpack.c.b16 %v7814, %v7806
  %v7863 = vpack.c.b16 %v7815, %v7807
  %v7864 = vpack.c.b16 %v7816, %v7808
  %v7865 = vpack.c.b16 %v7817, %v7809
  %v7866 = vpack.c.b16 %v7826, %v7818
  %v7867 = vpack.c.b16 %v7827, %v7819
  %v7868 = vpack.c.b16 %v7828, %v7820
  %v7869 = vpack.c.b16 %v7829, %v7821
  %v7870 = vpack.c.b16 %v7830, %v7822
  %v7871 = vpack.c.b16 %v7831, %v7823
  %v7872 = vpack.c.b16 %v7832, %v7824
  %v7873 = vpack.c.b16 %v7833, %v7825
  %v7874 = vpack.c.b16 %v7842, %v7834
  %v7875 = vpack.c.b16 %v7843, %v7835
  %v7876 = vpack.c.b16 %v7844, %v7836
  %v7877 = vpack.c.b16 %v7845, %v7837
  %v7878 = vpack.c.b16 %v7846, %v7838
  %v7879 = vpack.c.b16 %v7847, %v7839
  %v7880 = vpack.c.b16 %v7848, %v7840
  %v7881 = vpack.c.b16 %v7849, %v7841
  %v7915 = vsel %vm4522, %v4290, 0
  %7917 = vmatprep.subr.bf16.mxu0 %v7851
  %7918 = vmatpush1.bf16.msra.mxu0 %v7850
  %7919 = vmatprep.subr.bf16.mxu0 %v7859
  %7920 = vmatpush1.bf16.msra.mxu0 %v7858
  %7921 = vmatprep.subr.bf16.mxu0 %v7867
  %7922 = vmatpush1.bf16.msra.mxu0 %v7866
  %7923 = vmatprep.subr.bf16.mxu0 %v7875
  %7924 = vmatpush1.bf16.msra.mxu0 %v7874
  %7925 = vmatprep.subr.bf16.mxu0 0
  %7926 = vmatpush1.bf16.msra.mxu0 0
  %7927 = vmatprep.subr.bf16.mxu0 0
  %7928 = vmatpush1.bf16.msra.mxu0 0
  %7929 = vmatprep.subr.bf16.mxu0 0
  %7930 = vmatpush1.bf16.msra.mxu0 0
  %7931 = vmatprep.subr.bf16.mxu0 0
  %7932 = vmatpush1.bf16.msra.mxu0 0
  %7933 = vmatprep.subr.bf16.mxu0 0
  %7934 = vmatpush1.bf16.msra.mxu0 0
  %7935 = vmatprep.subr.bf16.mxu0 0
  %7936 = vmatpush1.bf16.msra.mxu0 0
  %7937 = vmatprep.subr.bf16.mxu0 0
  %7938 = vmatpush1.bf16.msra.mxu0 0
  %7939 = vmatprep.subr.bf16.mxu0 0
  %7940 = vmatpush1.bf16.msra.mxu0 0
  %7941 = vmatprep.subr.bf16.mxu0 0
  %7942 = vmatpush1.bf16.msra.mxu0 0
  %7943 = vmatprep.subr.bf16.mxu0 0
  %7944 = vmatpush1.bf16.msra.mxu0 0
  %7945 = vmatprep.subr.bf16.mxu0 0
  %7946 = vmatpush1.bf16.msra.mxu0 0
  %7947 = vmatprep.subr.bf16.mxu0 0
  %7948 = vmatpush1.bf16.msra.mxu0 0
  %7949 = vmatprep.mubr.bf16.mxu0 0
  %7950 = vmatmul.mubr.bf16.gmra.mrb[0].mxu0 %v7915
  %v7951 = vpop.f32.mrb[0].mxu0
  %v7952 = vadd.f32 0.0, %v7951
  %v7953 = vpop.f32.mrb[0].mxu0
  %v7954 = vadd.f32 0.0, %v7953
  %v7955 = vpop.f32.mrb[0].mxu0
  %v7956 = vadd.f32 0.0, %v7955
  %v7957 = vpop.f32.mrb[0].mxu0
  %v7958 = vadd.f32 0.0, %v7957
  %7959 = vdwg.mxu0
  %7960 = vmatprep.subr.bf16.mxu0 %v7853
  %7961 = vmatpush1.bf16.msra.mxu0 %v7852
  %7962 = vmatprep.subr.bf16.mxu0 %v7861
  %7963 = vmatpush1.bf16.msra.mxu0 %v7860
  %7964 = vmatprep.subr.bf16.mxu0 %v7869
  %7965 = vmatpush1.bf16.msra.mxu0 %v7868
  %7966 = vmatprep.subr.bf16.mxu0 %v7877
  %7967 = vmatpush1.bf16.msra.mxu0 %v7876
  %7968 = vmatprep.subr.bf16.mxu0 0
  %7969 = vmatpush1.bf16.msra.mxu0 0
  %7970 = vmatprep.subr.bf16.mxu0 0
  %7971 = vmatpush1.bf16.msra.mxu0 0
  %7972 = vmatprep.subr.bf16.mxu0 0
  %7973 = vmatpush1.bf16.msra.mxu0 0
  %7974 = vmatprep.subr.bf16.mxu0 0
  %7975 = vmatpush1.bf16.msra.mxu0 0
  %7976 = vmatprep.subr.bf16.mxu0 0
  %7977 = vmatpush1.bf16.msra.mxu0 0
  %7978 = vmatprep.subr.bf16.mxu0 0
  %7979 = vmatpush1.bf16.msra.mxu0 0
  %7980 = vmatprep.subr.bf16.mxu0 0
  %7981 = vmatpush1.bf16.msra.mxu0 0
  %7982 = vmatprep.subr.bf16.mxu0 0
  %7983 = vmatpush1.bf16.msra.mxu0 0
  %7984 = vmatprep.subr.bf16.mxu0 0
  %7985 = vmatpush1.bf16.msra.mxu0 0
  %7986 = vmatprep.subr.bf16.mxu0 0
  %7987 = vmatpush1.bf16.msra.mxu0 0
  %7988 = vmatprep.subr.bf16.mxu0 0
  %7989 = vmatpush1.bf16.msra.mxu0 0
  %7990 = vmatprep.subr.bf16.mxu0 0
  %7991 = vmatpush1.bf16.msra.mxu0 0
  %7992 = vmatprep.mubr.bf16.mxu0 0
  %7993 = vmatmul.mubr.bf16.gmra.mrb[0].mxu0 %v7915
  %v7994 = vpop.f32.mrb[0].mxu0
  %v7995 = vadd.f32 0.0, %v7994
  %v7996 = vpop.f32.mrb[0].mxu0
  %v7997 = vadd.f32 0.0, %v7996
  %v7998 = vpop.f32.mrb[0].mxu0
  %v7999 = vadd.f32 0.0, %v7998
  %v8000 = vpop.f32.mrb[0].mxu0
  %v8001 = vadd.f32 0.0, %v8000
  %8002 = vdwg.mxu0
  %8003 = vmatprep.subr.bf16.mxu0 %v7855
  %8004 = vmatpush1.bf16.msra.mxu0 %v7854
  %8005 = vmatprep.subr.bf16.mxu0 %v7863
  %8006 = vmatpush1.bf16.msra.mxu0 %v7862
  %8007 = vmatprep.subr.bf16.mxu0 %v7871
  %8008 = vmatpush1.bf16.msra.mxu0 %v7870
  %8009 = vmatprep.subr.bf16.mxu0 %v7879
  %8010 = vmatpush1.bf16.msra.mxu0 %v7878
  %8011 = vmatprep.subr.bf16.mxu0 0
  %8012 = vmatpush1.bf16.msra.mxu0 0
  %8013 = vmatprep.subr.bf16.mxu0 0
  %8014 = vmatpush1.bf16.msra.mxu0 0
  %8015 = vmatprep.subr.bf16.mxu0 0
  %8016 = vmatpush1.bf16.msra.mxu0 0
  %8017 = vmatprep.subr.bf16.mxu0 0
  %8018 = vmatpush1.bf16.msra.mxu0 0
  %8019 = vmatprep.subr.bf16.mxu0 0
  %8020 = vmatpush1.bf16.msra.mxu0 0
  %8021 = vmatprep.subr.bf16.mxu0 0
  %8022 = vmatpush1.bf16.msra.mxu0 0
  %8023 = vmatprep.subr.bf16.mxu0 0
  %8024 = vmatpush1.bf16.msra.mxu0 0
  %8025 = vmatprep.subr.bf16.mxu0 0
  %8026 = vmatpush1.bf16.msra.mxu0 0
  %8027 = vmatprep.subr.bf16.mxu0 0
  %8028 = vmatpush1.bf16.msra.mxu0 0
  %8029 = vmatprep.subr.bf16.mxu0 0
  %8030 = vmatpush1.bf16.msra.mxu0 0
  %8031 = vmatprep.subr.bf16.mxu0 0
  %8032 = vmatpush1.bf16.msra.mxu0 0
  %8033 = vmatprep.subr.bf16.mxu0 0
  %8034 = vmatpush1.bf16.msra.mxu0 0
  %8035 = vmatprep.mubr.bf16.mxu0 0
  %8036 = vmatmul.mubr.bf16.gmra.mrb[0].mxu0 %v7915
  %v8037 = vpop.f32.mrb[0].mxu0
  %v8038 = vadd.f32 0.0, %v8037
  %v8039 = vpop.f32.mrb[0].mxu0
  %v8040 = vadd.f32 0.0, %v8039
  %v8041 = vpop.f32.mrb[0].mxu0
  %v8042 = vadd.f32 0.0, %v8041
  %v8043 = vpop.f32.mrb[0].mxu0
  %v8044 = vadd.f32 0.0, %v8043
  %8045 = vdwg.mxu0
  %8046 = vmatprep.subr.bf16.mxu0 %v7857
  %8047 = vmatpush1.bf16.msra.mxu0 %v7856
  %8048 = vmatprep.subr.bf16.mxu0 %v7865
  %8049 = vmatpush1.bf16.msra.mxu0 %v7864
  %8050 = vmatprep.subr.bf16.mxu0 %v7873
  %8051 = vmatpush1.bf16.msra.mxu0 %v7872
  %8052 = vmatprep.subr.bf16.mxu0 %v7881
  %8053 = vmatpush1.bf16.msra.mxu0 %v7880
  %8054 = vmatprep.subr.bf16.mxu0 0
  %8055 = vmatpush1.bf16.msra.mxu0 0
  %8056 = vmatprep.subr.bf16.mxu0 0
  %8057 = vmatpush1.bf16.msra.mxu0 0
  %8058 = vmatprep.subr.bf16.mxu0 0
  %8059 = vmatpush1.bf16.msra.mxu0 0
  %8060 = vmatprep.subr.bf16.mxu0 0
  %8061 = vmatpush1.bf16.msra.mxu0 0
  %8062 = vmatprep.subr.bf16.mxu0 0
  %8063 = vmatpush1.bf16.msra.mxu0 0
  %8064 = vmatprep.subr.bf16.mxu0 0
  %8065 = vmatpush1.bf16.msra.mxu0 0
  %8066 = vmatprep.subr.bf16.mxu0 0
  %8067 = vmatpush1.bf16.msra.mxu0 0
  %8068 = vmatprep.subr.bf16.mxu0 0
  %8069 = vmatpush1.bf16.msra.mxu0 0
  %8070 = vmatprep.subr.bf16.mxu0 0
  %8071 = vmatpush1.bf16.msra.mxu0 0
  %8072 = vmatprep.subr.bf16.mxu0 0
  %8073 = vmatpush1.bf16.msra.mxu0 0
  %8074 = vmatprep.subr.bf16.mxu0 0
  %8075 = vmatpush1.bf16.msra.mxu0 0
  %8076 = vmatprep.subr.bf16.mxu0 0
  %8077 = vmatpush1.bf16.msra.mxu0 0
  %8078 = vmatprep.mubr.bf16.mxu0 0
  %8079 = vmatmul.mubr.bf16.gmra.mrb[0].mxu0 %v7915
  %v8080 = vpop.f32.mrb[0].mxu0
  %v8081 = vadd.f32 0.0, %v8080
  %v8082 = vpop.f32.mrb[0].mxu0
  %v8083 = vadd.f32 0.0, %v8082
  %v8084 = vpop.f32.mrb[0].mxu0
  %v8085 = vadd.f32 0.0, %v8084
  %v8086 = vpop.f32.mrb[0].mxu0
  %v8087 = vadd.f32 0.0, %v8086
  %8088 = vdwg.mxu0
  %v8089 = vadd.f32 %v7705, %v7952
  %v8090 = vadd.f32 %v7706, %v7954
  %v8091 = vadd.f32 %v7707, %v7995
  %v8092 = vadd.f32 %v7708, %v7997
  %v8093 = vadd.f32 %v7709, %v8038
  %v8094 = vadd.f32 %v7710, %v8040
  %v8095 = vadd.f32 %v7711, %v8081
  %v8096 = vadd.f32 %v7712, %v8083
  %v8097 = vadd.f32 %v7713, %v7956
  %v8098 = vadd.f32 %v7714, %v7958
  %v8099 = vadd.f32 %v7715, %v7999
  %v8100 = vadd.f32 %v7716, %v8001
  %v8101 = vadd.f32 %v7717, %v8042
  %v8102 = vadd.f32 %v7718, %v8044
  %v8103 = vadd.f32 %v7719, %v8085
  %v8104 = vadd.f32 %v7720, %v8087
  %s8105 = scalar_lea.vmem %s5, 2560
  %v8106 = vld [vmem:[%s8105] sm:$0xff]
  %v8107 = vld [vmem:[%s8105 + $0x8] sm:$0xff]
  %v8108 = vld [vmem:[%s8105 + $0x10] sm:$0xff]
  %v8109 = vld [vmem:[%s8105 + $0x18] sm:$0xff]
  %v8110 = vld [vmem:[%s8105 + $0x20] sm:$0xff]
  %v8111 = vld [vmem:[%s8105 + $0x28] sm:$0xff]
  %v8112 = vld [vmem:[%s8105 + $0x30] sm:$0xff]
  %v8113 = vld [vmem:[%s8105 + $0x38] sm:$0xff]
  %v8114 = vld [vmem:[%s8105 + $0x40] sm:$0xff]
  %v8115 = vld [vmem:[%s8105 + $0x48] sm:$0xff]
  %v8116 = vld [vmem:[%s8105 + $0x50] sm:$0xff]
  %v8117 = vld [vmem:[%s8105 + $0x58] sm:$0xff]
  %v8118 = vld [vmem:[%s8105 + $0x60] sm:$0xff]
  %v8119 = vld [vmem:[%s8105 + $0x68] sm:$0xff]
  %v8120 = vld [vmem:[%s8105 + $0x70] sm:$0xff]
  %v8121 = vld [vmem:[%s8105 + $0x78] sm:$0xff]
  %v8122 = vld [vmem:[%s8105 + $0x80] sm:$0xff]
  %v8123 = vld [vmem:[%s8105 + $0x88] sm:$0xff]
  %v8124 = vld [vmem:[%s8105 + $0x90] sm:$0xff]
  %v8125 = vld [vmem:[%s8105 + $0x98] sm:$0xff]
  %v8126 = vld [vmem:[%s8105 + $0xa0] sm:$0xff]
  %v8127 = vld [vmem:[%s8105 + $0xa8] sm:$0xff]
  %v8128 = vld [vmem:[%s8105 + $0xb0] sm:$0xff]
  %v8129 = vld [vmem:[%s8105 + $0xb8] sm:$0xff]
  %v8130 = vld [vmem:[%s8105 + $0xc0] sm:$0xff]
  %v8131 = vld [vmem:[%s8105 + $0xc8] sm:$0xff]
  %v8132 = vld [vmem:[%s8105 + $0xd0] sm:$0xff]
  %v8133 = vld [vmem:[%s8105 + $0xd8] sm:$0xff]
  %v8134 = vld [vmem:[%s8105 + $0xe0] sm:$0xff]
  %v8135 = vld [vmem:[%s8105 + $0xe8] sm:$0xff]
  %v8136 = vld [vmem:[%s8105 + $0xf0] sm:$0xff]
  %v8137 = vld [vmem:[%s8105 + $0xf8] sm:$0xff]
  %v8170 = vunpack.c.l.b16 %v8106
  %v8171 = vunpack.c.h.b16 %v8106
  %v8172 = vunpack.c.l.b16 %v8107
  %v8173 = vunpack.c.h.b16 %v8107
  %v8174 = vunpack.c.l.b16 %v8108
  %v8175 = vunpack.c.h.b16 %v8108
  %v8176 = vunpack.c.l.b16 %v8109
  %v8177 = vunpack.c.h.b16 %v8109
  %v8178 = vunpack.c.l.b16 %v8110
  %v8179 = vunpack.c.h.b16 %v8110
  %v8180 = vunpack.c.l.b16 %v8111
  %v8181 = vunpack.c.h.b16 %v8111
  %v8182 = vunpack.c.l.b16 %v8112
  %v8183 = vunpack.c.h.b16 %v8112
  %v8184 = vunpack.c.l.b16 %v8113
  %v8185 = vunpack.c.h.b16 %v8113
  %v8186 = vunpack.c.l.b16 %v8114
  %v8187 = vunpack.c.h.b16 %v8114
  %v8188 = vunpack.c.l.b16 %v8115
  %v8189 = vunpack.c.h.b16 %v8115
  %v8190 = vunpack.c.l.b16 %v8116
  %v8191 = vunpack.c.h.b16 %v8116
  %v8192 = vunpack.c.l.b16 %v8117
  %v8193 = vunpack.c.h.b16 %v8117
  %v8194 = vunpack.c.l.b16 %v8118
  %v8195 = vunpack.c.h.b16 %v8118
  %v8196 = vunpack.c.l.b16 %v8119
  %v8197 = vunpack.c.h.b16 %v8119
  %v8198 = vunpack.c.l.b16 %v8120
  %v8199 = vunpack.c.h.b16 %v8120
  %v8200 = vunpack.c.l.b16 %v8121
  %v8201 = vunpack.c.h.b16 %v8121
  %v8202 = vunpack.c.l.b16 %v8122
  %v8203 = vunpack.c.h.b16 %v8122
  %v8204 = vunpack.c.l.b16 %v8123
  %v8205 = vunpack.c.h.b16 %v8123
  %v8206 = vunpack.c.l.b16 %v8124
  %v8207 = vunpack.c.h.b16 %v8124
  %v8208 = vunpack.c.l.b16 %v8125
  %v8209 = vunpack.c.h.b16 %v8125
  %v8210 = vunpack.c.l.b16 %v8126
  %v8211 = vunpack.c.h.b16 %v8126
  %v8212 = vunpack.c.l.b16 %v8127
  %v8213 = vunpack.c.h.b16 %v8127
  %v8214 = vunpack.c.l.b16 %v8128
  %v8215 = vunpack.c.h.b16 %v8128
  %v8216 = vunpack.c.l.b16 %v8129
  %v8217 = vunpack.c.h.b16 %v8129
  %v8218 = vunpack.c.l.b16 %v8130
  %v8219 = vunpack.c.h.b16 %v8130
  %v8220 = vunpack.c.l.b16 %v8131
  %v8221 = vunpack.c.h.b16 %v8131
  %v8222 = vunpack.c.l.b16 %v8132
  %v8223 = vunpack.c.h.b16 %v8132
  %v8224 = vunpack.c.l.b16 %v8133
  %v8225 = vunpack.c.h.b16 %v8133
  %v8226 = vunpack.c.l.b16 %v8134
  %v8227 = vunpack.c.h.b16 %v8134
  %v8228 = vunpack.c.l.b16 %v8135
  %v8229 = vunpack.c.h.b16 %v8135
  %v8230 = vunpack.c.l.b16 %v8136
  %v8231 = vunpack.c.h.b16 %v8136
  %v8232 = vunpack.c.l.b16 %v8137
  %v8233 = vunpack.c.h.b16 %v8137
  %v8234 = vpack.c.b16 %v8178, %v8170
  %v8235 = vpack.c.b16 %v8179, %v8171
  %v8236 = vpack.c.b16 %v8180, %v8172
  %v8237 = vpack.c.b16 %v8181, %v8173
  %v8238 = vpack.c.b16 %v8182, %v8174
  %v8239 = vpack.c.b16 %v8183, %v8175
  %v8240 = vpack.c.b16 %v8184, %v8176
  %v8241 = vpack.c.b16 %v8185, %v8177
  %v8242 = vpack.c.b16 %v8194, %v8186
  %v8243 = vpack.c.b16 %v8195, %v8187
  %v8244 = vpack.c.b16 %v8196, %v8188
  %v8245 = vpack.c.b16 %v8197, %v8189
  %v8246 = vpack.c.b16 %v8198, %v8190
  %v8247 = vpack.c.b16 %v8199, %v8191
  %v8248 = vpack.c.b16 %v8200, %v8192
  %v8249 = vpack.c.b16 %v8201, %v8193
  %v8250 = vpack.c.b16 %v8210, %v8202
  %v8251 = vpack.c.b16 %v8211, %v8203
  %v8252 = vpack.c.b16 %v8212, %v8204
  %v8253 = vpack.c.b16 %v8213, %v8205
  %v8254 = vpack.c.b16 %v8214, %v8206
  %v8255 = vpack.c.b16 %v8215, %v8207
  %v8256 = vpack.c.b16 %v8216, %v8208
  %v8257 = vpack.c.b16 %v8217, %v8209
  %v8258 = vpack.c.b16 %v8226, %v8218
  %v8259 = vpack.c.b16 %v8227, %v8219
  %v8260 = vpack.c.b16 %v8228, %v8220
  %v8261 = vpack.c.b16 %v8229, %v8221
  %v8262 = vpack.c.b16 %v8230, %v8222
  %v8263 = vpack.c.b16 %v8231, %v8223
  %v8264 = vpack.c.b16 %v8232, %v8224
  %v8265 = vpack.c.b16 %v8233, %v8225
  %v8299 = vsel %vm4522, %v4291, 0
  %8301 = vmatprep.subr.bf16.mxu0 %v8235
  %8302 = vmatpush1.bf16.msra.mxu0 %v8234
  %8303 = vmatprep.subr.bf16.mxu0 %v8243
  %8304 = vmatpush1.bf16.msra.mxu0 %v8242
  %8305 = vmatprep.subr.bf16.mxu0 %v8251
  %8306 = vmatpush1.bf16.msra.mxu0 %v8250
  %8307 = vmatprep.subr.bf16.mxu0 %v8259
  %8308 = vmatpush1.bf16.msra.mxu0 %v8258
  %8309 = vmatprep.subr.bf16.mxu0 0
  %8310 = vmatpush1.bf16.msra.mxu0 0
  %8311 = vmatprep.subr.bf16.mxu0 0
  %8312 = vmatpush1.bf16.msra.mxu0 0
  %8313 = vmatprep.subr.bf16.mxu0 0
  %8314 = vmatpush1.bf16.msra.mxu0 0
  %8315 = vmatprep.subr.bf16.mxu0 0
  %8316 = vmatpush1.bf16.msra.mxu0 0
  %8317 = vmatprep.subr.bf16.mxu0 0
  %8318 = vmatpush1.bf16.msra.mxu0 0
  %8319 = vmatprep.subr.bf16.mxu0 0
  %8320 = vmatpush1.bf16.msra.mxu0 0
  %8321 = vmatprep.subr.bf16.mxu0 0
  %8322 = vmatpush1.bf16.msra.mxu0 0
  %8323 = vmatprep.subr.bf16.mxu0 0
  %8324 = vmatpush1.bf16.msra.mxu0 0
  %8325 = vmatprep.subr.bf16.mxu0 0
  %8326 = vmatpush1.bf16.msra.mxu0 0
  %8327 = vmatprep.subr.bf16.mxu0 0
  %8328 = vmatpush1.bf16.msra.mxu0 0
  %8329 = vmatprep.subr.bf16.mxu0 0
  %8330 = vmatpush1.bf16.msra.mxu0 0
  %8331 = vmatprep.subr.bf16.mxu0 0
  %8332 = vmatpush1.bf16.msra.mxu0 0
  %8333 = vmatprep.mubr.bf16.mxu0 0
  %8334 = vmatmul.mubr.bf16.gmra.mrb[0].mxu0 %v8299
  %v8335 = vpop.f32.mrb[0].mxu0
  %v8336 = vadd.f32 0.0, %v8335
  %v8337 = vpop.f32.mrb[0].mxu0
  %v8338 = vadd.f32 0.0, %v8337
  %v8339 = vpop.f32.mrb[0].mxu0
  %v8340 = vadd.f32 0.0, %v8339
  %v8341 = vpop.f32.mrb[0].mxu0
  %v8342 = vadd.f32 0.0, %v8341
  %8343 = vdwg.mxu0
  %8344 = vmatprep.subr.bf16.mxu0 %v8237
  %8345 = vmatpush1.bf16.msra.mxu0 %v8236
  %8346 = vmatprep.subr.bf16.mxu0 %v8245
  %8347 = vmatpush1.bf16.msra.mxu0 %v8244
  %8348 = vmatprep.subr.bf16.mxu0 %v8253
  %8349 = vmatpush1.bf16.msra.mxu0 %v8252
  %8350 = vmatprep.subr.bf16.mxu0 %v8261
  %8351 = vmatpush1.bf16.msra.mxu0 %v8260
  %8352 = vmatprep.subr.bf16.mxu0 0
  %8353 = vmatpush1.bf16.msra.mxu0 0
  %8354 = vmatprep.subr.bf16.mxu0 0
  %8355 = vmatpush1.bf16.msra.mxu0 0
  %8356 = vmatprep.subr.bf16.mxu0 0
  %8357 = vmatpush1.bf16.msra.mxu0 0
  %8358 = vmatprep.subr.bf16.mxu0 0
  %8359 = vmatpush1.bf16.msra.mxu0 0
  %8360 = vmatprep.subr.bf16.mxu0 0
  %8361 = vmatpush1.bf16.msra.mxu0 0
  %8362 = vmatprep.subr.bf16.mxu0 0
  %8363 = vmatpush1.bf16.msra.mxu0 0
  %8364 = vmatprep.subr.bf16.mxu0 0
  %8365 = vmatpush1.bf16.msra.mxu0 0
  %8366 = vmatprep.subr.bf16.mxu0 0
  %8367 = vmatpush1.bf16.msra.mxu0 0
  %8368 = vmatprep.subr.bf16.mxu0 0
  %8369 = vmatpush1.bf16.msra.mxu0 0
  %8370 = vmatprep.subr.bf16.mxu0 0
  %8371 = vmatpush1.bf16.msra.mxu0 0
  %8372 = vmatprep.subr.bf16.mxu0 0
  %8373 = vmatpush1.bf16.msra.mxu0 0
  %8374 = vmatprep.subr.bf16.mxu0 0
  %8375 = vmatpush1.bf16.msra.mxu0 0
  %8376 = vmatprep.mubr.bf16.mxu0 0
  %8377 = vmatmul.mubr.bf16.gmra.mrb[0].mxu0 %v8299
  %v8378 = vpop.f32.mrb[0].mxu0
  %v8379 = vadd.f32 0.0, %v8378
  %v8380 = vpop.f32.mrb[0].mxu0
  %v8381 = vadd.f32 0.0, %v8380
  %v8382 = vpop.f32.mrb[0].mxu0
  %v8383 = vadd.f32 0.0, %v8382
  %v8384 = vpop.f32.mrb[0].mxu0
  %v8385 = vadd.f32 0.0, %v8384
  %8386 = vdwg.mxu0
  %8387 = vmatprep.subr.bf16.mxu0 %v8239
  %8388 = vmatpush1.bf16.msra.mxu0 %v8238
  %8389 = vmatprep.subr.bf16.mxu0 %v8247
  %8390 = vmatpush1.bf16.msra.mxu0 %v8246
  %8391 = vmatprep.subr.bf16.mxu0 %v8255
  %8392 = vmatpush1.bf16.msra.mxu0 %v8254
  %8393 = vmatprep.subr.bf16.mxu0 %v8263
  %8394 = vmatpush1.bf16.msra.mxu0 %v8262
  %8395 = vmatprep.subr.bf16.mxu0 0
  %8396 = vmatpush1.bf16.msra.mxu0 0
  %8397 = vmatprep.subr.bf16.mxu0 0
  %8398 = vmatpush1.bf16.msra.mxu0 0
  %8399 = vmatprep.subr.bf16.mxu0 0
  %8400 = vmatpush1.bf16.msra.mxu0 0
  %8401 = vmatprep.subr.bf16.mxu0 0
  %8402 = vmatpush1.bf16.msra.mxu0 0
  %8403 = vmatprep.subr.bf16.mxu0 0
  %8404 = vmatpush1.bf16.msra.mxu0 0
  %8405 = vmatprep.subr.bf16.mxu0 0
  %8406 = vmatpush1.bf16.msra.mxu0 0
  %8407 = vmatprep.subr.bf16.mxu0 0
  %8408 = vmatpush1.bf16.msra.mxu0 0
  %8409 = vmatprep.subr.bf16.mxu0 0
  %8410 = vmatpush1.bf16.msra.mxu0 0
  %8411 = vmatprep.subr.bf16.mxu0 0
  %8412 = vmatpush1.bf16.msra.mxu0 0
  %8413 = vmatprep.subr.bf16.mxu0 0
  %8414 = vmatpush1.bf16.msra.mxu0 0
  %8415 = vmatprep.subr.bf16.mxu0 0
  %8416 = vmatpush1.bf16.msra.mxu0 0
  %8417 = vmatprep.subr.bf16.mxu0 0
  %8418 = vmatpush1.bf16.msra.mxu0 0
  %8419 = vmatprep.mubr.bf16.mxu0 0
  %8420 = vmatmul.mubr.bf16.gmra.mrb[0].mxu0 %v8299
  %v8421 = vpop.f32.mrb[0].mxu0
  %v8422 = vadd.f32 0.0, %v8421
  %v8423 = vpop.f32.mrb[0].mxu0
  %v8424 = vadd.f32 0.0, %v8423
  %v8425 = vpop.f32.mrb[0].mxu0
  %v8426 = vadd.f32 0.0, %v8425
  %v8427 = vpop.f32.mrb[0].mxu0
  %v8428 = vadd.f32 0.0, %v8427
  %8429 = vdwg.mxu0
  %8430 = vmatprep.subr.bf16.mxu0 %v8241
  %8431 = vmatpush1.bf16.msra.mxu0 %v8240
  %8432 = vmatprep.subr.bf16.mxu0 %v8249
  %8433 = vmatpush1.bf16.msra.mxu0 %v8248
  %8434 = vmatprep.subr.bf16.mxu0 %v8257
  %8435 = vmatpush1.bf16.msra.mxu0 %v8256
  %8436 = vmatprep.subr.bf16.mxu0 %v8265
  %8437 = vmatpush1.bf16.msra.mxu0 %v8264
  %8438 = vmatprep.subr.bf16.mxu0 0
  %8439 = vmatpush1.bf16.msra.mxu0 0
  %8440 = vmatprep.subr.bf16.mxu0 0
  %8441 = vmatpush1.bf16.msra.mxu0 0
  %8442 = vmatprep.subr.bf16.mxu0 0
  %8443 = vmatpush1.bf16.msra.mxu0 0
  %8444 = vmatprep.subr.bf16.mxu0 0
  %8445 = vmatpush1.bf16.msra.mxu0 0
  %8446 = vmatprep.subr.bf16.mxu0 0
  %8447 = vmatpush1.bf16.msra.mxu0 0
  %8448 = vmatprep.subr.bf16.mxu0 0
  %8449 = vmatpush1.bf16.msra.mxu0 0
  %8450 = vmatprep.subr.bf16.mxu0 0
  %8451 = vmatpush1.bf16.msra.mxu0 0
  %8452 = vmatprep.subr.bf16.mxu0 0
  %8453 = vmatpush1.bf16.msra.mxu0 0
  %8454 = vmatprep.subr.bf16.mxu0 0
  %8455 = vmatpush1.bf16.msra.mxu0 0
  %8456 = vmatprep.subr.bf16.mxu0 0
  %8457 = vmatpush1.bf16.msra.mxu0 0
  %8458 = vmatprep.subr.bf16.mxu0 0
  %8459 = vmatpush1.bf16.msra.mxu0 0
  %8460 = vmatprep.subr.bf16.mxu0 0
  %8461 = vmatpush1.bf16.msra.mxu0 0
  %8462 = vmatprep.mubr.bf16.mxu0 0
  %8463 = vmatmul.mubr.bf16.gmra.mrb[0].mxu0 %v8299
  %v8464 = vpop.f32.mrb[0].mxu0
  %v8465 = vadd.f32 0.0, %v8464
  %v8466 = vpop.f32.mrb[0].mxu0
  %v8467 = vadd.f32 0.0, %v8466
  %v8468 = vpop.f32.mrb[0].mxu0
  %v8469 = vadd.f32 0.0, %v8468
  %v8470 = vpop.f32.mrb[0].mxu0
  %v8471 = vadd.f32 0.0, %v8470
  %8472 = vdwg.mxu0
  %v8473 = vadd.f32 %v8089, %v8336
  %v8474 = vadd.f32 %v8090, %v8338
  %v8475 = vadd.f32 %v8091, %v8379
  %v8476 = vadd.f32 %v8092, %v8381
  %v8477 = vadd.f32 %v8093, %v8422
  %v8478 = vadd.f32 %v8094, %v8424
  %v8479 = vadd.f32 %v8095, %v8465
  %v8480 = vadd.f32 %v8096, %v8467
  %v8481 = vadd.f32 %v8097, %v8340
  %v8482 = vadd.f32 %v8098, %v8342
  %v8483 = vadd.f32 %v8099, %v8383
  %v8484 = vadd.f32 %v8100, %v8385
  %v8485 = vadd.f32 %v8101, %v8426
  %v8486 = vadd.f32 %v8102, %v8428
  %v8487 = vadd.f32 %v8103, %v8469
  %v8488 = vadd.f32 %v8104, %v8471
  %s8489 = scalar_lea.vmem %s5, 2816
  %v8490 = vld [vmem:[%s8489] sm:$0xff]
  %v8491 = vld [vmem:[%s8489 + $0x8] sm:$0xff]
  %v8492 = vld [vmem:[%s8489 + $0x10] sm:$0xff]
  %v8493 = vld [vmem:[%s8489 + $0x18] sm:$0xff]
  %v8494 = vld [vmem:[%s8489 + $0x20] sm:$0xff]
  %v8495 = vld [vmem:[%s8489 + $0x28] sm:$0xff]
  %v8496 = vld [vmem:[%s8489 + $0x30] sm:$0xff]
  %v8497 = vld [vmem:[%s8489 + $0x38] sm:$0xff]
  %v8498 = vld [vmem:[%s8489 + $0x40] sm:$0xff]
  %v8499 = vld [vmem:[%s8489 + $0x48] sm:$0xff]
  %v8500 = vld [vmem:[%s8489 + $0x50] sm:$0xff]
  %v8501 = vld [vmem:[%s8489 + $0x58] sm:$0xff]
  %v8502 = vld [vmem:[%s8489 + $0x60] sm:$0xff]
  %v8503 = vld [vmem:[%s8489 + $0x68] sm:$0xff]
  %v8504 = vld [vmem:[%s8489 + $0x70] sm:$0xff]
  %v8505 = vld [vmem:[%s8489 + $0x78] sm:$0xff]
  %v8506 = vld [vmem:[%s8489 + $0x80] sm:$0xff]
  %v8507 = vld [vmem:[%s8489 + $0x88] sm:$0xff]
  %v8508 = vld [vmem:[%s8489 + $0x90] sm:$0xff]
  %v8509 = vld [vmem:[%s8489 + $0x98] sm:$0xff]
  %v8510 = vld [vmem:[%s8489 + $0xa0] sm:$0xff]
  %v8511 = vld [vmem:[%s8489 + $0xa8] sm:$0xff]
  %v8512 = vld [vmem:[%s8489 + $0xb0] sm:$0xff]
  %v8513 = vld [vmem:[%s8489 + $0xb8] sm:$0xff]
  %v8514 = vld [vmem:[%s8489 + $0xc0] sm:$0xff]
  %v8515 = vld [vmem:[%s8489 + $0xc8] sm:$0xff]
  %v8516 = vld [vmem:[%s8489 + $0xd0] sm:$0xff]
  %v8517 = vld [vmem:[%s8489 + $0xd8] sm:$0xff]
  %v8518 = vld [vmem:[%s8489 + $0xe0] sm:$0xff]
  %v8519 = vld [vmem:[%s8489 + $0xe8] sm:$0xff]
  %v8520 = vld [vmem:[%s8489 + $0xf0] sm:$0xff]
  %v8521 = vld [vmem:[%s8489 + $0xf8] sm:$0xff]
  %v8554 = vunpack.c.l.b16 %v8490
  %v8555 = vunpack.c.h.b16 %v8490
  %v8556 = vunpack.c.l.b16 %v8491
  %v8557 = vunpack.c.h.b16 %v8491
  %v8558 = vunpack.c.l.b16 %v8492
  %v8559 = vunpack.c.h.b16 %v8492
  %v8560 = vunpack.c.l.b16 %v8493
  %v8561 = vunpack.c.h.b16 %v8493
  %v8562 = vunpack.c.l.b16 %v8494
  %v8563 = vunpack.c.h.b16 %v8494
  %v8564 = vunpack.c.l.b16 %v8495
  %v8565 = vunpack.c.h.b16 %v8495
  %v8566 = vunpack.c.l.b16 %v8496
  %v8567 = vunpack.c.h.b16 %v8496
  %v8568 = vunpack.c.l.b16 %v8497
  %v8569 = vunpack.c.h.b16 %v8497
  %v8570 = vunpack.c.l.b16 %v8498
  %v8571 = vunpack.c.h.b16 %v8498
  %v8572 = vunpack.c.l.b16 %v8499
  %v8573 = vunpack.c.h.b16 %v8499
  %v8574 = vunpack.c.l.b16 %v8500
  %v8575 = vunpack.c.h.b16 %v8500
  %v8576 = vunpack.c.l.b16 %v8501
  %v8577 = vunpack.c.h.b16 %v8501
  %v8578 = vunpack.c.l.b16 %v8502
  %v8579 = vunpack.c.h.b16 %v8502
  %v8580 = vunpack.c.l.b16 %v8503
  %v8581 = vunpack.c.h.b16 %v8503
  %v8582 = vunpack.c.l.b16 %v8504
  %v8583 = vunpack.c.h.b16 %v8504
  %v8584 = vunpack.c.l.b16 %v8505
  %v8585 = vunpack.c.h.b16 %v8505
  %v8586 = vunpack.c.l.b16 %v8506
  %v8587 = vunpack.c.h.b16 %v8506
  %v8588 = vunpack.c.l.b16 %v8507
  %v8589 = vunpack.c.h.b16 %v8507
  %v8590 = vunpack.c.l.b16 %v8508
  %v8591 = vunpack.c.h.b16 %v8508
  %v8592 = vunpack.c.l.b16 %v8509
  %v8593 = vunpack.c.h.b16 %v8509
  %v8594 = vunpack.c.l.b16 %v8510
  %v8595 = vunpack.c.h.b16 %v8510
  %v8596 = vunpack.c.l.b16 %v8511
  %v8597 = vunpack.c.h.b16 %v8511
  %v8598 = vunpack.c.l.b16 %v8512
  %v8599 = vunpack.c.h.b16 %v8512
  %v8600 = vunpack.c.l.b16 %v8513
  %v8601 = vunpack.c.h.b16 %v8513
  %v8602 = vunpack.c.l.b16 %v8514
  %v8603 = vunpack.c.h.b16 %v8514
  %v8604 = vunpack.c.l.b16 %v8515
  %v8605 = vunpack.c.h.b16 %v8515
  %v8606 = vunpack.c.l.b16 %v8516
  %v8607 = vunpack.c.h.b16 %v8516
  %v8608 = vunpack.c.l.b16 %v8517
  %v8609 = vunpack.c.h.b16 %v8517
  %v8610 = vunpack.c.l.b16 %v8518
  %v8611 = vunpack.c.h.b16 %v8518
  %v8612 = vunpack.c.l.b16 %v8519
  %v8613 = vunpack.c.h.b16 %v8519
  %v8614 = vunpack.c.l.b16 %v8520
  %v8615 = vunpack.c.h.b16 %v8520
  %v8616 = vunpack.c.l.b16 %v8521
  %v8617 = vunpack.c.h.b16 %v8521
  %v8618 = vpack.c.b16 %v8562, %v8554
  %v8619 = vpack.c.b16 %v8563, %v8555
  %v8620 = vpack.c.b16 %v8564, %v8556
  %v8621 = vpack.c.b16 %v8565, %v8557
  %v8622 = vpack.c.b16 %v8566, %v8558
  %v8623 = vpack.c.b16 %v8567, %v8559
  %v8624 = vpack.c.b16 %v8568, %v8560
  %v8625 = vpack.c.b16 %v8569, %v8561
  %v8626 = vpack.c.b16 %v8578, %v8570
  %v8627 = vpack.c.b16 %v8579, %v8571
  %v8628 = vpack.c.b16 %v8580, %v8572
  %v8629 = vpack.c.b16 %v8581, %v8573
  %v8630 = vpack.c.b16 %v8582, %v8574
  %v8631 = vpack.c.b16 %v8583, %v8575
  %v8632 = vpack.c.b16 %v8584, %v8576
  %v8633 = vpack.c.b16 %v8585, %v8577
  %v8634 = vpack.c.b16 %v8594, %v8586
  %v8635 = vpack.c.b16 %v8595, %v8587
  %v8636 = vpack.c.b16 %v8596, %v8588
  %v8637 = vpack.c.b16 %v8597, %v8589
  %v8638 = vpack.c.b16 %v8598, %v8590
  %v8639 = vpack.c.b16 %v8599, %v8591
  %v8640 = vpack.c.b16 %v8600, %v8592
  %v8641 = vpack.c.b16 %v8601, %v8593
  %v8642 = vpack.c.b16 %v8610, %v8602
  %v8643 = vpack.c.b16 %v8611, %v8603
  %v8644 = vpack.c.b16 %v8612, %v8604
  %v8645 = vpack.c.b16 %v8613, %v8605
  %v8646 = vpack.c.b16 %v8614, %v8606
  %v8647 = vpack.c.b16 %v8615, %v8607
  %v8648 = vpack.c.b16 %v8616, %v8608
  %v8649 = vpack.c.b16 %v8617, %v8609
  %v8683 = vsel %vm4522, %v4292, 0
  %8685 = vmatprep.subr.bf16.mxu0 %v8619
  %8686 = vmatpush1.bf16.msra.mxu0 %v8618
  %8687 = vmatprep.subr.bf16.mxu0 %v8627
  %8688 = vmatpush1.bf16.msra.mxu0 %v8626
  %8689 = vmatprep.subr.bf16.mxu0 %v8635
  %8690 = vmatpush1.bf16.msra.mxu0 %v8634
  %8691 = vmatprep.subr.bf16.mxu0 %v8643
  %8692 = vmatpush1.bf16.msra.mxu0 %v8642
  %8693 = vmatprep.subr.bf16.mxu0 0
  %8694 = vmatpush1.bf16.msra.mxu0 0
  %8695 = vmatprep.subr.bf16.mxu0 0
  %8696 = vmatpush1.bf16.msra.mxu0 0
  %8697 = vmatprep.subr.bf16.mxu0 0
  %8698 = vmatpush1.bf16.msra.mxu0 0
  %8699 = vmatprep.subr.bf16.mxu0 0
  %8700 = vmatpush1.bf16.msra.mxu0 0
  %8701 = vmatprep.subr.bf16.mxu0 0
  %8702 = vmatpush1.bf16.msra.mxu0 0
  %8703 = vmatprep.subr.bf16.mxu0 0
  %8704 = vmatpush1.bf16.msra.mxu0 0
  %8705 = vmatprep.subr.bf16.mxu0 0
  %8706 = vmatpush1.bf16.msra.mxu0 0
  %8707 = vmatprep.subr.bf16.mxu0 0
  %8708 = vmatpush1.bf16.msra.mxu0 0
  %8709 = vmatprep.subr.bf16.mxu0 0
  %8710 = vmatpush1.bf16.msra.mxu0 0
  %8711 = vmatprep.subr.bf16.mxu0 0
  %8712 = vmatpush1.bf16.msra.mxu0 0
  %8713 = vmatprep.subr.bf16.mxu0 0
  %8714 = vmatpush1.bf16.msra.mxu0 0
  %8715 = vmatprep.subr.bf16.mxu0 0
  %8716 = vmatpush1.bf16.msra.mxu0 0
  %8717 = vmatprep.mubr.bf16.mxu0 0
  %8718 = vmatmul.mubr.bf16.gmra.mrb[0].mxu0 %v8683
  %v8719 = vpop.f32.mrb[0].mxu0
  %v8720 = vadd.f32 0.0, %v8719
  %v8721 = vpop.f32.mrb[0].mxu0
  %v8722 = vadd.f32 0.0, %v8721
  %v8723 = vpop.f32.mrb[0].mxu0
  %v8724 = vadd.f32 0.0, %v8723
  %v8725 = vpop.f32.mrb[0].mxu0
  %v8726 = vadd.f32 0.0, %v8725
  %8727 = vdwg.mxu0
  %8728 = vmatprep.subr.bf16.mxu0 %v8621
  %8729 = vmatpush1.bf16.msra.mxu0 %v8620
  %8730 = vmatprep.subr.bf16.mxu0 %v8629
  %8731 = vmatpush1.bf16.msra.mxu0 %v8628
  %8732 = vmatprep.subr.bf16.mxu0 %v8637
  %8733 = vmatpush1.bf16.msra.mxu0 %v8636
  %8734 = vmatprep.subr.bf16.mxu0 %v8645
  %8735 = vmatpush1.bf16.msra.mxu0 %v8644
  %8736 = vmatprep.subr.bf16.mxu0 0
  %8737 = vmatpush1.bf16.msra.mxu0 0
  %8738 = vmatprep.subr.bf16.mxu0 0
  %8739 = vmatpush1.bf16.msra.mxu0 0
  %8740 = vmatprep.subr.bf16.mxu0 0
  %8741 = vmatpush1.bf16.msra.mxu0 0
  %8742 = vmatprep.subr.bf16.mxu0 0
  %8743 = vmatpush1.bf16.msra.mxu0 0
  %8744 = vmatprep.subr.bf16.mxu0 0
  %8745 = vmatpush1.bf16.msra.mxu0 0
  %8746 = vmatprep.subr.bf16.mxu0 0
  %8747 = vmatpush1.bf16.msra.mxu0 0
  %8748 = vmatprep.subr.bf16.mxu0 0
  %8749 = vmatpush1.bf16.msra.mxu0 0
  %8750 = vmatprep.subr.bf16.mxu0 0
  %8751 = vmatpush1.bf16.msra.mxu0 0
  %8752 = vmatprep.subr.bf16.mxu0 0
  %8753 = vmatpush1.bf16.msra.mxu0 0
  %8754 = vmatprep.subr.bf16.mxu0 0
  %8755 = vmatpush1.bf16.msra.mxu0 0
  %8756 = vmatprep.subr.bf16.mxu0 0
  %8757 = vmatpush1.bf16.msra.mxu0 0
  %8758 = vmatprep.subr.bf16.mxu0 0
  %8759 = vmatpush1.bf16.msra.mxu0 0
  %8760 = vmatprep.mubr.bf16.mxu0 0
  %8761 = vmatmul.mubr.bf16.gmra.mrb[0].mxu0 %v8683
  %v8762 = vpop.f32.mrb[0].mxu0
  %v8763 = vadd.f32 0.0, %v8762
  %v8764 = vpop.f32.mrb[0].mxu0
  %v8765 = vadd.f32 0.0, %v8764
  %v8766 = vpop.f32.mrb[0].mxu0
  %v8767 = vadd.f32 0.0, %v8766
  %v8768 = vpop.f32.mrb[0].mxu0
  %v8769 = vadd.f32 0.0, %v8768
  %8770 = vdwg.mxu0
  %8771 = vmatprep.subr.bf16.mxu0 %v8623
  %8772 = vmatpush1.bf16.msra.mxu0 %v8622
  %8773 = vmatprep.subr.bf16.mxu0 %v8631
  %8774 = vmatpush1.bf16.msra.mxu0 %v8630
  %8775 = vmatprep.subr.bf16.mxu0 %v8639
  %8776 = vmatpush1.bf16.msra.mxu0 %v8638
  %8777 = vmatprep.subr.bf16.mxu0 %v8647
  %8778 = vmatpush1.bf16.msra.mxu0 %v8646
  %8779 = vmatprep.subr.bf16.mxu0 0
  %8780 = vmatpush1.bf16.msra.mxu0 0
  %8781 = vmatprep.subr.bf16.mxu0 0
  %8782 = vmatpush1.bf16.msra.mxu0 0
  %8783 = vmatprep.subr.bf16.mxu0 0
  %8784 = vmatpush1.bf16.msra.mxu0 0
  %8785 = vmatprep.subr.bf16.mxu0 0
  %8786 = vmatpush1.bf16.msra.mxu0 0
  %8787 = vmatprep.subr.bf16.mxu0 0
  %8788 = vmatpush1.bf16.msra.mxu0 0
  %8789 = vmatprep.subr.bf16.mxu0 0
  %8790 = vmatpush1.bf16.msra.mxu0 0
  %8791 = vmatprep.subr.bf16.mxu0 0
  %8792 = vmatpush1.bf16.msra.mxu0 0
  %8793 = vmatprep.subr.bf16.mxu0 0
  %8794 = vmatpush1.bf16.msra.mxu0 0
  %8795 = vmatprep.subr.bf16.mxu0 0
  %8796 = vmatpush1.bf16.msra.mxu0 0
  %8797 = vmatprep.subr.bf16.mxu0 0
  %8798 = vmatpush1.bf16.msra.mxu0 0
  %8799 = vmatprep.subr.bf16.mxu0 0
  %8800 = vmatpush1.bf16.msra.mxu0 0
  %8801 = vmatprep.subr.bf16.mxu0 0
  %8802 = vmatpush1.bf16.msra.mxu0 0
  %8803 = vmatprep.mubr.bf16.mxu0 0
  %8804 = vmatmul.mubr.bf16.gmra.mrb[0].mxu0 %v8683
  %v8805 = vpop.f32.mrb[0].mxu0
  %v8806 = vadd.f32 0.0, %v8805
  %v8807 = vpop.f32.mrb[0].mxu0
  %v8808 = vadd.f32 0.0, %v8807
  %v8809 = vpop.f32.mrb[0].mxu0
  %v8810 = vadd.f32 0.0, %v8809
  %v8811 = vpop.f32.mrb[0].mxu0
  %v8812 = vadd.f32 0.0, %v8811
  %8813 = vdwg.mxu0
  %8814 = vmatprep.subr.bf16.mxu0 %v8625
  %8815 = vmatpush1.bf16.msra.mxu0 %v8624
  %8816 = vmatprep.subr.bf16.mxu0 %v8633
  %8817 = vmatpush1.bf16.msra.mxu0 %v8632
  %8818 = vmatprep.subr.bf16.mxu0 %v8641
  %8819 = vmatpush1.bf16.msra.mxu0 %v8640
  %8820 = vmatprep.subr.bf16.mxu0 %v8649
  %8821 = vmatpush1.bf16.msra.mxu0 %v8648
  %8822 = vmatprep.subr.bf16.mxu0 0
  %8823 = vmatpush1.bf16.msra.mxu0 0
  %8824 = vmatprep.subr.bf16.mxu0 0
  %8825 = vmatpush1.bf16.msra.mxu0 0
  %8826 = vmatprep.subr.bf16.mxu0 0
  %8827 = vmatpush1.bf16.msra.mxu0 0
  %8828 = vmatprep.subr.bf16.mxu0 0
  %8829 = vmatpush1.bf16.msra.mxu0 0
  %8830 = vmatprep.subr.bf16.mxu0 0
  %8831 = vmatpush1.bf16.msra.mxu0 0
  %8832 = vmatprep.subr.bf16.mxu0 0
  %8833 = vmatpush1.bf16.msra.mxu0 0
  %8834 = vmatprep.subr.bf16.mxu0 0
  %8835 = vmatpush1.bf16.msra.mxu0 0
  %8836 = vmatprep.subr.bf16.mxu0 0
  %8837 = vmatpush1.bf16.msra.mxu0 0
  %8838 = vmatprep.subr.bf16.mxu0 0
  %8839 = vmatpush1.bf16.msra.mxu0 0
  %8840 = vmatprep.subr.bf16.mxu0 0
  %8841 = vmatpush1.bf16.msra.mxu0 0
  %8842 = vmatprep.subr.bf16.mxu0 0
  %8843 = vmatpush1.bf16.msra.mxu0 0
  %8844 = vmatprep.subr.bf16.mxu0 0
  %8845 = vmatpush1.bf16.msra.mxu0 0
  %8846 = vmatprep.mubr.bf16.mxu0 0
  %8847 = vmatmul.mubr.bf16.gmra.mrb[0].mxu0 %v8683
  %v8848 = vpop.f32.mrb[0].mxu0
  %v8849 = vadd.f32 0.0, %v8848
  %v8850 = vpop.f32.mrb[0].mxu0
  %v8851 = vadd.f32 0.0, %v8850
  %v8852 = vpop.f32.mrb[0].mxu0
  %v8853 = vadd.f32 0.0, %v8852
  %v8854 = vpop.f32.mrb[0].mxu0
  %v8855 = vadd.f32 0.0, %v8854
  %8856 = vdwg.mxu0
  %v8857 = vadd.f32 %v8473, %v8720
  %v8858 = vadd.f32 %v8474, %v8722
  %v8859 = vadd.f32 %v8475, %v8763
  %v8860 = vadd.f32 %v8476, %v8765
  %v8861 = vadd.f32 %v8477, %v8806
  %v8862 = vadd.f32 %v8478, %v8808
  %v8863 = vadd.f32 %v8479, %v8849
  %v8864 = vadd.f32 %v8480, %v8851
  %v8865 = vadd.f32 %v8481, %v8724
  %v8866 = vadd.f32 %v8482, %v8726
  %v8867 = vadd.f32 %v8483, %v8767
  %v8868 = vadd.f32 %v8484, %v8769
  %v8869 = vadd.f32 %v8485, %v8810
  %v8870 = vadd.f32 %v8486, %v8812
  %v8871 = vadd.f32 %v8487, %v8853
  %v8872 = vadd.f32 %v8488, %v8855
  %s8873 = scalar_lea.vmem %s5, 3072
  %v8874 = vld [vmem:[%s8873] sm:$0xff]
  %v8875 = vld [vmem:[%s8873 + $0x8] sm:$0xff]
  %v8876 = vld [vmem:[%s8873 + $0x10] sm:$0xff]
  %v8877 = vld [vmem:[%s8873 + $0x18] sm:$0xff]
  %v8878 = vld [vmem:[%s8873 + $0x20] sm:$0xff]
  %v8879 = vld [vmem:[%s8873 + $0x28] sm:$0xff]
  %v8880 = vld [vmem:[%s8873 + $0x30] sm:$0xff]
  %v8881 = vld [vmem:[%s8873 + $0x38] sm:$0xff]
  %v8882 = vld [vmem:[%s8873 + $0x40] sm:$0xff]
  %v8883 = vld [vmem:[%s8873 + $0x48] sm:$0xff]
  %v8884 = vld [vmem:[%s8873 + $0x50] sm:$0xff]
  %v8885 = vld [vmem:[%s8873 + $0x58] sm:$0xff]
  %v8886 = vld [vmem:[%s8873 + $0x60] sm:$0xff]
  %v8887 = vld [vmem:[%s8873 + $0x68] sm:$0xff]
  %v8888 = vld [vmem:[%s8873 + $0x70] sm:$0xff]
  %v8889 = vld [vmem:[%s8873 + $0x78] sm:$0xff]
  %v8890 = vld [vmem:[%s8873 + $0x80] sm:$0xff]
  %v8891 = vld [vmem:[%s8873 + $0x88] sm:$0xff]
  %v8892 = vld [vmem:[%s8873 + $0x90] sm:$0xff]
  %v8893 = vld [vmem:[%s8873 + $0x98] sm:$0xff]
  %v8894 = vld [vmem:[%s8873 + $0xa0] sm:$0xff]
  %v8895 = vld [vmem:[%s8873 + $0xa8] sm:$0xff]
  %v8896 = vld [vmem:[%s8873 + $0xb0] sm:$0xff]
  %v8897 = vld [vmem:[%s8873 + $0xb8] sm:$0xff]
  %v8898 = vld [vmem:[%s8873 + $0xc0] sm:$0xff]
  %v8899 = vld [vmem:[%s8873 + $0xc8] sm:$0xff]
  %v8900 = vld [vmem:[%s8873 + $0xd0] sm:$0xff]
  %v8901 = vld [vmem:[%s8873 + $0xd8] sm:$0xff]
  %v8902 = vld [vmem:[%s8873 + $0xe0] sm:$0xff]
  %v8903 = vld [vmem:[%s8873 + $0xe8] sm:$0xff]
  %v8904 = vld [vmem:[%s8873 + $0xf0] sm:$0xff]
  %v8905 = vld [vmem:[%s8873 + $0xf8] sm:$0xff]
  %v8938 = vunpack.c.l.b16 %v8874
  %v8939 = vunpack.c.h.b16 %v8874
  %v8940 = vunpack.c.l.b16 %v8875
  %v8941 = vunpack.c.h.b16 %v8875
  %v8942 = vunpack.c.l.b16 %v8876
  %v8943 = vunpack.c.h.b16 %v8876
  %v8944 = vunpack.c.l.b16 %v8877
  %v8945 = vunpack.c.h.b16 %v8877
  %v8946 = vunpack.c.l.b16 %v8878
  %v8947 = vunpack.c.h.b16 %v8878
  %v8948 = vunpack.c.l.b16 %v8879
  %v8949 = vunpack.c.h.b16 %v8879
  %v8950 = vunpack.c.l.b16 %v8880
  %v8951 = vunpack.c.h.b16 %v8880
  %v8952 = vunpack.c.l.b16 %v8881
  %v8953 = vunpack.c.h.b16 %v8881
  %v8954 = vunpack.c.l.b16 %v8882
  %v8955 = vunpack.c.h.b16 %v8882
  %v8956 = vunpack.c.l.b16 %v8883
  %v8957 = vunpack.c.h.b16 %v8883
  %v8958 = vunpack.c.l.b16 %v8884
  %v8959 = vunpack.c.h.b16 %v8884
  %v8960 = vunpack.c.l.b16 %v8885
  %v8961 = vunpack.c.h.b16 %v8885
  %v8962 = vunpack.c.l.b16 %v8886
  %v8963 = vunpack.c.h.b16 %v8886
  %v8964 = vunpack.c.l.b16 %v8887
  %v8965 = vunpack.c.h.b16 %v8887
  %v8966 = vunpack.c.l.b16 %v8888
  %v8967 = vunpack.c.h.b16 %v8888
  %v8968 = vunpack.c.l.b16 %v8889
  %v8969 = vunpack.c.h.b16 %v8889
  %v8970 = vunpack.c.l.b16 %v8890
  %v8971 = vunpack.c.h.b16 %v8890
  %v8972 = vunpack.c.l.b16 %v8891
  %v8973 = vunpack.c.h.b16 %v8891
  %v8974 = vunpack.c.l.b16 %v8892
  %v8975 = vunpack.c.h.b16 %v8892
  %v8976 = vunpack.c.l.b16 %v8893
  %v8977 = vunpack.c.h.b16 %v8893
  %v8978 = vunpack.c.l.b16 %v8894
  %v8979 = vunpack.c.h.b16 %v8894
  %v8980 = vunpack.c.l.b16 %v8895
  %v8981 = vunpack.c.h.b16 %v8895
  %v8982 = vunpack.c.l.b16 %v8896
  %v8983 = vunpack.c.h.b16 %v8896
  %v8984 = vunpack.c.l.b16 %v8897
  %v8985 = vunpack.c.h.b16 %v8897
  %v8986 = vunpack.c.l.b16 %v8898
  %v8987 = vunpack.c.h.b16 %v8898
  %v8988 = vunpack.c.l.b16 %v8899
  %v8989 = vunpack.c.h.b16 %v8899
  %v8990 = vunpack.c.l.b16 %v8900
  %v8991 = vunpack.c.h.b16 %v8900
  %v8992 = vunpack.c.l.b16 %v8901
  %v8993 = vunpack.c.h.b16 %v8901
  %v8994 = vunpack.c.l.b16 %v8902
  %v8995 = vunpack.c.h.b16 %v8902
  %v8996 = vunpack.c.l.b16 %v8903
  %v8997 = vunpack.c.h.b16 %v8903
  %v8998 = vunpack.c.l.b16 %v8904
  %v8999 = vunpack.c.h.b16 %v8904
  %v9000 = vunpack.c.l.b16 %v8905
  %v9001 = vunpack.c.h.b16 %v8905
  %v9002 = vpack.c.b16 %v8946, %v8938
  %v9003 = vpack.c.b16 %v8947, %v8939
  %v9004 = vpack.c.b16 %v8948, %v8940
  %v9005 = vpack.c.b16 %v8949, %v8941
  %v9006 = vpack.c.b16 %v8950, %v8942
  %v9007 = vpack.c.b16 %v8951, %v8943
  %v9008 = vpack.c.b16 %v8952, %v8944
  %v9009 = vpack.c.b16 %v8953, %v8945
  %v9010 = vpack.c.b16 %v8962, %v8954
  %v9011 = vpack.c.b16 %v8963, %v8955
  %v9012 = vpack.c.b16 %v8964, %v8956
  %v9013 = vpack.c.b16 %v8965, %v8957
  %v9014 = vpack.c.b16 %v8966, %v8958
  %v9015 = vpack.c.b16 %v8967, %v8959
  %v9016 = vpack.c.b16 %v8968, %v8960
  %v9017 = vpack.c.b16 %v8969, %v8961
  %v9018 = vpack.c.b16 %v8978, %v8970
  %v9019 = vpack.c.b16 %v8979, %v8971
  %v9020 = vpack.c.b16 %v8980, %v8972
  %v9021 = vpack.c.b16 %v8981, %v8973
  %v9022 = vpack.c.b16 %v8982, %v8974
  %v9023 = vpack.c.b16 %v8983, %v8975
  %v9024 = vpack.c.b16 %v8984, %v8976
  %v9025 = vpack.c.b16 %v8985, %v8977
  %v9026 = vpack.c.b16 %v8994, %v8986
  %v9027 = vpack.c.b16 %v8995, %v8987
  %v9028 = vpack.c.b16 %v8996, %v8988
  %v9029 = vpack.c.b16 %v8997, %v8989
  %v9030 = vpack.c.b16 %v8998, %v8990
  %v9031 = vpack.c.b16 %v8999, %v8991
  %v9032 = vpack.c.b16 %v9000, %v8992
  %v9033 = vpack.c.b16 %v9001, %v8993
  %v9067 = vsel %vm4522, %v4293, 0
  %9069 = vmatprep.subr.bf16.mxu0 %v9003
  %9070 = vmatpush1.bf16.msra.mxu0 %v9002
  %9071 = vmatprep.subr.bf16.mxu0 %v9011
  %9072 = vmatpush1.bf16.msra.mxu0 %v9010
  %9073 = vmatprep.subr.bf16.mxu0 %v9019
  %9074 = vmatpush1.bf16.msra.mxu0 %v9018
  %9075 = vmatprep.subr.bf16.mxu0 %v9027
  %9076 = vmatpush1.bf16.msra.mxu0 %v9026
  %9077 = vmatprep.subr.bf16.mxu0 0
  %9078 = vmatpush1.bf16.msra.mxu0 0
  %9079 = vmatprep.subr.bf16.mxu0 0
  %9080 = vmatpush1.bf16.msra.mxu0 0
  %9081 = vmatprep.subr.bf16.mxu0 0
  %9082 = vmatpush1.bf16.msra.mxu0 0
  %9083 = vmatprep.subr.bf16.mxu0 0
  %9084 = vmatpush1.bf16.msra.mxu0 0
  %9085 = vmatprep.subr.bf16.mxu0 0
  %9086 = vmatpush1.bf16.msra.mxu0 0
  %9087 = vmatprep.subr.bf16.mxu0 0
  %9088 = vmatpush1.bf16.msra.mxu0 0
  %9089 = vmatprep.subr.bf16.mxu0 0
  %9090 = vmatpush1.bf16.msra.mxu0 0
  %9091 = vmatprep.subr.bf16.mxu0 0
  %9092 = vmatpush1.bf16.msra.mxu0 0
  %9093 = vmatprep.subr.bf16.mxu0 0
  %9094 = vmatpush1.bf16.msra.mxu0 0
  %9095 = vmatprep.subr.bf16.mxu0 0
  %9096 = vmatpush1.bf16.msra.mxu0 0
  %9097 = vmatprep.subr.bf16.mxu0 0
  %9098 = vmatpush1.bf16.msra.mxu0 0
  %9099 = vmatprep.subr.bf16.mxu0 0
  %9100 = vmatpush1.bf16.msra.mxu0 0
  %9101 = vmatprep.mubr.bf16.mxu0 0
  %9102 = vmatmul.mubr.bf16.gmra.mrb[0].mxu0 %v9067
  %v9103 = vpop.f32.mrb[0].mxu0
  %v9104 = vadd.f32 0.0, %v9103
  %v9105 = vpop.f32.mrb[0].mxu0
  %v9106 = vadd.f32 0.0, %v9105
  %v9107 = vpop.f32.mrb[0].mxu0
  %v9108 = vadd.f32 0.0, %v9107
  %v9109 = vpop.f32.mrb[0].mxu0
  %v9110 = vadd.f32 0.0, %v9109
  %9111 = vdwg.mxu0
  %9112 = vmatprep.subr.bf16.mxu0 %v9005
  %9113 = vmatpush1.bf16.msra.mxu0 %v9004
  %9114 = vmatprep.subr.bf16.mxu0 %v9013
  %9115 = vmatpush1.bf16.msra.mxu0 %v9012
  %9116 = vmatprep.subr.bf16.mxu0 %v9021
  %9117 = vmatpush1.bf16.msra.mxu0 %v9020
  %9118 = vmatprep.subr.bf16.mxu0 %v9029
  %9119 = vmatpush1.bf16.msra.mxu0 %v9028
  %9120 = vmatprep.subr.bf16.mxu0 0
  %9121 = vmatpush1.bf16.msra.mxu0 0
  %9122 = vmatprep.subr.bf16.mxu0 0
  %9123 = vmatpush1.bf16.msra.mxu0 0
  %9124 = vmatprep.subr.bf16.mxu0 0
  %9125 = vmatpush1.bf16.msra.mxu0 0
  %9126 = vmatprep.subr.bf16.mxu0 0
  %9127 = vmatpush1.bf16.msra.mxu0 0
  %9128 = vmatprep.subr.bf16.mxu0 0
  %9129 = vmatpush1.bf16.msra.mxu0 0
  %9130 = vmatprep.subr.bf16.mxu0 0
  %9131 = vmatpush1.bf16.msra.mxu0 0
  %9132 = vmatprep.subr.bf16.mxu0 0
  %9133 = vmatpush1.bf16.msra.mxu0 0
  %9134 = vmatprep.subr.bf16.mxu0 0
  %9135 = vmatpush1.bf16.msra.mxu0 0
  %9136 = vmatprep.subr.bf16.mxu0 0
  %9137 = vmatpush1.bf16.msra.mxu0 0
  %9138 = vmatprep.subr.bf16.mxu0 0
  %9139 = vmatpush1.bf16.msra.mxu0 0
  %9140 = vmatprep.subr.bf16.mxu0 0
  %9141 = vmatpush1.bf16.msra.mxu0 0
  %9142 = vmatprep.subr.bf16.mxu0 0
  %9143 = vmatpush1.bf16.msra.mxu0 0
  %9144 = vmatprep.mubr.bf16.mxu0 0
  %9145 = vmatmul.mubr.bf16.gmra.mrb[0].mxu0 %v9067
  %v9146 = vpop.f32.mrb[0].mxu0
  %v9147 = vadd.f32 0.0, %v9146
  %v9148 = vpop.f32.mrb[0].mxu0
  %v9149 = vadd.f32 0.0, %v9148
  %v9150 = vpop.f32.mrb[0].mxu0
  %v9151 = vadd.f32 0.0, %v9150
  %v9152 = vpop.f32.mrb[0].mxu0
  %v9153 = vadd.f32 0.0, %v9152
  %9154 = vdwg.mxu0
  %9155 = vmatprep.subr.bf16.mxu0 %v9007
  %9156 = vmatpush1.bf16.msra.mxu0 %v9006
  %9157 = vmatprep.subr.bf16.mxu0 %v9015
  %9158 = vmatpush1.bf16.msra.mxu0 %v9014
  %9159 = vmatprep.subr.bf16.mxu0 %v9023
  %9160 = vmatpush1.bf16.msra.mxu0 %v9022
  %9161 = vmatprep.subr.bf16.mxu0 %v9031
  %9162 = vmatpush1.bf16.msra.mxu0 %v9030
  %9163 = vmatprep.subr.bf16.mxu0 0
  %9164 = vmatpush1.bf16.msra.mxu0 0
  %9165 = vmatprep.subr.bf16.mxu0 0
  %9166 = vmatpush1.bf16.msra.mxu0 0
  %9167 = vmatprep.subr.bf16.mxu0 0
  %9168 = vmatpush1.bf16.msra.mxu0 0
  %9169 = vmatprep.subr.bf16.mxu0 0
  %9170 = vmatpush1.bf16.msra.mxu0 0
  %9171 = vmatprep.subr.bf16.mxu0 0
  %9172 = vmatpush1.bf16.msra.mxu0 0
  %9173 = vmatprep.subr.bf16.mxu0 0
  %9174 = vmatpush1.bf16.msra.mxu0 0
  %9175 = vmatprep.subr.bf16.mxu0 0
  %9176 = vmatpush1.bf16.msra.mxu0 0
  %9177 = vmatprep.subr.bf16.mxu0 0
  %9178 = vmatpush1.bf16.msra.mxu0 0
  %9179 = vmatprep.subr.bf16.mxu0 0
  %9180 = vmatpush1.bf16.msra.mxu0 0
  %9181 = vmatprep.subr.bf16.mxu0 0
  %9182 = vmatpush1.bf16.msra.mxu0 0
  %9183 = vmatprep.subr.bf16.mxu0 0
  %9184 = vmatpush1.bf16.msra.mxu0 0
  %9185 = vmatprep.subr.bf16.mxu0 0
  %9186 = vmatpush1.bf16.msra.mxu0 0
  %9187 = vmatprep.mubr.bf16.mxu0 0
  %9188 = vmatmul.mubr.bf16.gmra.mrb[0].mxu0 %v9067
  %v9189 = vpop.f32.mrb[0].mxu0
  %v9190 = vadd.f32 0.0, %v9189
  %v9191 = vpop.f32.mrb[0].mxu0
  %v9192 = vadd.f32 0.0, %v9191
  %v9193 = vpop.f32.mrb[0].mxu0
  %v9194 = vadd.f32 0.0, %v9193
  %v9195 = vpop.f32.mrb[0].mxu0
  %v9196 = vadd.f32 0.0, %v9195
  %9197 = vdwg.mxu0
  %9198 = vmatprep.subr.bf16.mxu0 %v9009
  %9199 = vmatpush1.bf16.msra.mxu0 %v9008
  %9200 = vmatprep.subr.bf16.mxu0 %v9017
  %9201 = vmatpush1.bf16.msra.mxu0 %v9016
  %9202 = vmatprep.subr.bf16.mxu0 %v9025
  %9203 = vmatpush1.bf16.msra.mxu0 %v9024
  %9204 = vmatprep.subr.bf16.mxu0 %v9033
  %9205 = vmatpush1.bf16.msra.mxu0 %v9032
  %9206 = vmatprep.subr.bf16.mxu0 0
  %9207 = vmatpush1.bf16.msra.mxu0 0
  %9208 = vmatprep.subr.bf16.mxu0 0
  %9209 = vmatpush1.bf16.msra.mxu0 0
  %9210 = vmatprep.subr.bf16.mxu0 0
  %9211 = vmatpush1.bf16.msra.mxu0 0
  %9212 = vmatprep.subr.bf16.mxu0 0
  %9213 = vmatpush1.bf16.msra.mxu0 0
  %9214 = vmatprep.subr.bf16.mxu0 0
  %9215 = vmatpush1.bf16.msra.mxu0 0
  %9216 = vmatprep.subr.bf16.mxu0 0
  %9217 = vmatpush1.bf16.msra.mxu0 0
  %9218 = vmatprep.subr.bf16.mxu0 0
  %9219 = vmatpush1.bf16.msra.mxu0 0
  %9220 = vmatprep.subr.bf16.mxu0 0
  %9221 = vmatpush1.bf16.msra.mxu0 0
  %9222 = vmatprep.subr.bf16.mxu0 0
  %9223 = vmatpush1.bf16.msra.mxu0 0
  %9224 = vmatprep.subr.bf16.mxu0 0
  %9225 = vmatpush1.bf16.msra.mxu0 0
  %9226 = vmatprep.subr.bf16.mxu0 0
  %9227 = vmatpush1.bf16.msra.mxu0 0
  %9228 = vmatprep.subr.bf16.mxu0 0
  %9229 = vmatpush1.bf16.msra.mxu0 0
  %9230 = vmatprep.mubr.bf16.mxu0 0
  %9231 = vmatmul.mubr.bf16.gmra.mrb[0].mxu0 %v9067
  %v9232 = vpop.f32.mrb[0].mxu0
  %v9233 = vadd.f32 0.0, %v9232
  %v9234 = vpop.f32.mrb[0].mxu0
  %v9235 = vadd.f32 0.0, %v9234
  %v9236 = vpop.f32.mrb[0].mxu0
  %v9237 = vadd.f32 0.0, %v9236
  %v9238 = vpop.f32.mrb[0].mxu0
  %v9239 = vadd.f32 0.0, %v9238
  %9240 = vdwg.mxu0
  %v9241 = vadd.f32 %v8857, %v9104
  %v9242 = vadd.f32 %v8858, %v9106
  %v9243 = vadd.f32 %v8859, %v9147
  %v9244 = vadd.f32 %v8860, %v9149
  %v9245 = vadd.f32 %v8861, %v9190
  %v9246 = vadd.f32 %v8862, %v9192
  %v9247 = vadd.f32 %v8863, %v9233
  %v9248 = vadd.f32 %v8864, %v9235
  %v9249 = vadd.f32 %v8865, %v9108
  %v9250 = vadd.f32 %v8866, %v9110
  %v9251 = vadd.f32 %v8867, %v9151
  %v9252 = vadd.f32 %v8868, %v9153
  %v9253 = vadd.f32 %v8869, %v9194
  %v9254 = vadd.f32 %v8870, %v9196
  %v9255 = vadd.f32 %v8871, %v9237
  %v9256 = vadd.f32 %v8872, %v9239
  %s9257 = scalar_lea.vmem %s5, 3328
  %v9258 = vld [vmem:[%s9257] sm:$0xff]
  %v9259 = vld [vmem:[%s9257 + $0x8] sm:$0xff]
  %v9260 = vld [vmem:[%s9257 + $0x10] sm:$0xff]
  %v9261 = vld [vmem:[%s9257 + $0x18] sm:$0xff]
  %v9262 = vld [vmem:[%s9257 + $0x20] sm:$0xff]
  %v9263 = vld [vmem:[%s9257 + $0x28] sm:$0xff]
  %v9264 = vld [vmem:[%s9257 + $0x30] sm:$0xff]
  %v9265 = vld [vmem:[%s9257 + $0x38] sm:$0xff]
  %v9266 = vld [vmem:[%s9257 + $0x40] sm:$0xff]
  %v9267 = vld [vmem:[%s9257 + $0x48] sm:$0xff]
  %v9268 = vld [vmem:[%s9257 + $0x50] sm:$0xff]
  %v9269 = vld [vmem:[%s9257 + $0x58] sm:$0xff]
  %v9270 = vld [vmem:[%s9257 + $0x60] sm:$0xff]
  %v9271 = vld [vmem:[%s9257 + $0x68] sm:$0xff]
  %v9272 = vld [vmem:[%s9257 + $0x70] sm:$0xff]
  %v9273 = vld [vmem:[%s9257 + $0x78] sm:$0xff]
  %v9274 = vld [vmem:[%s9257 + $0x80] sm:$0xff]
  %v9275 = vld [vmem:[%s9257 + $0x88] sm:$0xff]
  %v9276 = vld [vmem:[%s9257 + $0x90] sm:$0xff]
  %v9277 = vld [vmem:[%s9257 + $0x98] sm:$0xff]
  %v9278 = vld [vmem:[%s9257 + $0xa0] sm:$0xff]
  %v9279 = vld [vmem:[%s9257 + $0xa8] sm:$0xff]
  %v9280 = vld [vmem:[%s9257 + $0xb0] sm:$0xff]
  %v9281 = vld [vmem:[%s9257 + $0xb8] sm:$0xff]
  %v9282 = vld [vmem:[%s9257 + $0xc0] sm:$0xff]
  %v9283 = vld [vmem:[%s9257 + $0xc8] sm:$0xff]
  %v9284 = vld [vmem:[%s9257 + $0xd0] sm:$0xff]
  %v9285 = vld [vmem:[%s9257 + $0xd8] sm:$0xff]
  %v9286 = vld [vmem:[%s9257 + $0xe0] sm:$0xff]
  %v9287 = vld [vmem:[%s9257 + $0xe8] sm:$0xff]
  %v9288 = vld [vmem:[%s9257 + $0xf0] sm:$0xff]
  %v9289 = vld [vmem:[%s9257 + $0xf8] sm:$0xff]
  %v9322 = vunpack.c.l.b16 %v9258
  %v9323 = vunpack.c.h.b16 %v9258
  %v9324 = vunpack.c.l.b16 %v9259
  %v9325 = vunpack.c.h.b16 %v9259
  %v9326 = vunpack.c.l.b16 %v9260
  %v9327 = vunpack.c.h.b16 %v9260
  %v9328 = vunpack.c.l.b16 %v9261
  %v9329 = vunpack.c.h.b16 %v9261
  %v9330 = vunpack.c.l.b16 %v9262
  %v9331 = vunpack.c.h.b16 %v9262
  %v9332 = vunpack.c.l.b16 %v9263
  %v9333 = vunpack.c.h.b16 %v9263
  %v9334 = vunpack.c.l.b16 %v9264
  %v9335 = vunpack.c.h.b16 %v9264
  %v9336 = vunpack.c.l.b16 %v9265
  %v9337 = vunpack.c.h.b16 %v9265
  %v9338 = vunpack.c.l.b16 %v9266
  %v9339 = vunpack.c.h.b16 %v9266
  %v9340 = vunpack.c.l.b16 %v9267
  %v9341 = vunpack.c.h.b16 %v9267
  %v9342 = vunpack.c.l.b16 %v9268
  %v9343 = vunpack.c.h.b16 %v9268
  %v9344 = vunpack.c.l.b16 %v9269
  %v9345 = vunpack.c.h.b16 %v9269
  %v9346 = vunpack.c.l.b16 %v9270
  %v9347 = vunpack.c.h.b16 %v9270
  %v9348 = vunpack.c.l.b16 %v9271
  %v9349 = vunpack.c.h.b16 %v9271
  %v9350 = vunpack.c.l.b16 %v9272
  %v9351 = vunpack.c.h.b16 %v9272
  %v9352 = vunpack.c.l.b16 %v9273
  %v9353 = vunpack.c.h.b16 %v9273
  %v9354 = vunpack.c.l.b16 %v9274
  %v9355 = vunpack.c.h.b16 %v9274
  %v9356 = vunpack.c.l.b16 %v9275
  %v9357 = vunpack.c.h.b16 %v9275
  %v9358 = vunpack.c.l.b16 %v9276
  %v9359 = vunpack.c.h.b16 %v9276
  %v9360 = vunpack.c.l.b16 %v9277
  %v9361 = vunpack.c.h.b16 %v9277
  %v9362 = vunpack.c.l.b16 %v9278
  %v9363 = vunpack.c.h.b16 %v9278
  %v9364 = vunpack.c.l.b16 %v9279
  %v9365 = vunpack.c.h.b16 %v9279
  %v9366 = vunpack.c.l.b16 %v9280
  %v9367 = vunpack.c.h.b16 %v9280
  %v9368 = vunpack.c.l.b16 %v9281
  %v9369 = vunpack.c.h.b16 %v9281
  %v9370 = vunpack.c.l.b16 %v9282
  %v9371 = vunpack.c.h.b16 %v9282
  %v9372 = vunpack.c.l.b16 %v9283
  %v9373 = vunpack.c.h.b16 %v9283
  %v9374 = vunpack.c.l.b16 %v9284
  %v9375 = vunpack.c.h.b16 %v9284
  %v9376 = vunpack.c.l.b16 %v9285
  %v9377 = vunpack.c.h.b16 %v9285
  %v9378 = vunpack.c.l.b16 %v9286
  %v9379 = vunpack.c.h.b16 %v9286
  %v9380 = vunpack.c.l.b16 %v9287
  %v9381 = vunpack.c.h.b16 %v9287
  %v9382 = vunpack.c.l.b16 %v9288
  %v9383 = vunpack.c.h.b16 %v9288
  %v9384 = vunpack.c.l.b16 %v9289
  %v9385 = vunpack.c.h.b16 %v9289
  %v9386 = vpack.c.b16 %v9330, %v9322
  %v9387 = vpack.c.b16 %v9331, %v9323
  %v9388 = vpack.c.b16 %v9332, %v9324
  %v9389 = vpack.c.b16 %v9333, %v9325
  %v9390 = vpack.c.b16 %v9334, %v9326
  %v9391 = vpack.c.b16 %v9335, %v9327
  %v9392 = vpack.c.b16 %v9336, %v9328
  %v9393 = vpack.c.b16 %v9337, %v9329
  %v9394 = vpack.c.b16 %v9346, %v9338
  %v9395 = vpack.c.b16 %v9347, %v9339
  %v9396 = vpack.c.b16 %v9348, %v9340
  %v9397 = vpack.c.b16 %v9349, %v9341
  %v9398 = vpack.c.b16 %v9350, %v9342
  %v9399 = vpack.c.b16 %v9351, %v9343
  %v9400 = vpack.c.b16 %v9352, %v9344
  %v9401 = vpack.c.b16 %v9353, %v9345
  %v9402 = vpack.c.b16 %v9362, %v9354
  %v9403 = vpack.c.b16 %v9363, %v9355
  %v9404 = vpack.c.b16 %v9364, %v9356
  %v9405 = vpack.c.b16 %v9365, %v9357
  %v9406 = vpack.c.b16 %v9366, %v9358
  %v9407 = vpack.c.b16 %v9367, %v9359
  %v9408 = vpack.c.b16 %v9368, %v9360
  %v9409 = vpack.c.b16 %v9369, %v9361
  %v9410 = vpack.c.b16 %v9378, %v9370
  %v9411 = vpack.c.b16 %v9379, %v9371
  %v9412 = vpack.c.b16 %v9380, %v9372
  %v9413 = vpack.c.b16 %v9381, %v9373
  %v9414 = vpack.c.b16 %v9382, %v9374
  %v9415 = vpack.c.b16 %v9383, %v9375
  %v9416 = vpack.c.b16 %v9384, %v9376
  %v9417 = vpack.c.b16 %v9385, %v9377
  %v9451 = vsel %vm4522, %v4294, 0
  %9453 = vmatprep.subr.bf16.mxu0 %v9387
  %9454 = vmatpush1.bf16.msra.mxu0 %v9386
  %9455 = vmatprep.subr.bf16.mxu0 %v9395
  %9456 = vmatpush1.bf16.msra.mxu0 %v9394
  %9457 = vmatprep.subr.bf16.mxu0 %v9403
  %9458 = vmatpush1.bf16.msra.mxu0 %v9402
  %9459 = vmatprep.subr.bf16.mxu0 %v9411
  %9460 = vmatpush1.bf16.msra.mxu0 %v9410
  %9461 = vmatprep.subr.bf16.mxu0 0
  %9462 = vmatpush1.bf16.msra.mxu0 0
  %9463 = vmatprep.subr.bf16.mxu0 0
  %9464 = vmatpush1.bf16.msra.mxu0 0
  %9465 = vmatprep.subr.bf16.mxu0 0
  %9466 = vmatpush1.bf16.msra.mxu0 0
  %9467 = vmatprep.subr.bf16.mxu0 0
  %9468 = vmatpush1.bf16.msra.mxu0 0
  %9469 = vmatprep.subr.bf16.mxu0 0
  %9470 = vmatpush1.bf16.msra.mxu0 0
  %9471 = vmatprep.subr.bf16.mxu0 0
  %9472 = vmatpush1.bf16.msra.mxu0 0
  %9473 = vmatprep.subr.bf16.mxu0 0
  %9474 = vmatpush1.bf16.msra.mxu0 0
  %9475 = vmatprep.subr.bf16.mxu0 0
  %9476 = vmatpush1.bf16.msra.mxu0 0
  %9477 = vmatprep.subr.bf16.mxu0 0
  %9478 = vmatpush1.bf16.msra.mxu0 0
  %9479 = vmatprep.subr.bf16.mxu0 0
  %9480 = vmatpush1.bf16.msra.mxu0 0
  %9481 = vmatprep.subr.bf16.mxu0 0
  %9482 = vmatpush1.bf16.msra.mxu0 0
  %9483 = vmatprep.subr.bf16.mxu0 0
  %9484 = vmatpush1.bf16.msra.mxu0 0
  %9485 = vmatprep.mubr.bf16.mxu0 0
  %9486 = vmatmul.mubr.bf16.gmra.mrb[0].mxu0 %v9451
  %v9487 = vpop.f32.mrb[0].mxu0
  %v9488 = vadd.f32 0.0, %v9487
  %v9489 = vpop.f32.mrb[0].mxu0
  %v9490 = vadd.f32 0.0, %v9489
  %v9491 = vpop.f32.mrb[0].mxu0
  %v9492 = vadd.f32 0.0, %v9491
  %v9493 = vpop.f32.mrb[0].mxu0
  %v9494 = vadd.f32 0.0, %v9493
  %9495 = vdwg.mxu0
  %9496 = vmatprep.subr.bf16.mxu0 %v9389
  %9497 = vmatpush1.bf16.msra.mxu0 %v9388
  %9498 = vmatprep.subr.bf16.mxu0 %v9397
  %9499 = vmatpush1.bf16.msra.mxu0 %v9396
  %9500 = vmatprep.subr.bf16.mxu0 %v9405
  %9501 = vmatpush1.bf16.msra.mxu0 %v9404
  %9502 = vmatprep.subr.bf16.mxu0 %v9413
  %9503 = vmatpush1.bf16.msra.mxu0 %v9412
  %9504 = vmatprep.subr.bf16.mxu0 0
  %9505 = vmatpush1.bf16.msra.mxu0 0
  %9506 = vmatprep.subr.bf16.mxu0 0
  %9507 = vmatpush1.bf16.msra.mxu0 0
  %9508 = vmatprep.subr.bf16.mxu0 0
  %9509 = vmatpush1.bf16.msra.mxu0 0
  %9510 = vmatprep.subr.bf16.mxu0 0
  %9511 = vmatpush1.bf16.msra.mxu0 0
  %9512 = vmatprep.subr.bf16.mxu0 0
  %9513 = vmatpush1.bf16.msra.mxu0 0
  %9514 = vmatprep.subr.bf16.mxu0 0
  %9515 = vmatpush1.bf16.msra.mxu0 0
  %9516 = vmatprep.subr.bf16.mxu0 0
  %9517 = vmatpush1.bf16.msra.mxu0 0
  %9518 = vmatprep.subr.bf16.mxu0 0
  %9519 = vmatpush1.bf16.msra.mxu0 0
  %9520 = vmatprep.subr.bf16.mxu0 0
  %9521 = vmatpush1.bf16.msra.mxu0 0
  %9522 = vmatprep.subr.bf16.mxu0 0
  %9523 = vmatpush1.bf16.msra.mxu0 0
  %9524 = vmatprep.subr.bf16.mxu0 0
  %9525 = vmatpush1.bf16.msra.mxu0 0
  %9526 = vmatprep.subr.bf16.mxu0 0
  %9527 = vmatpush1.bf16.msra.mxu0 0
  %9528 = vmatprep.mubr.bf16.mxu0 0
  %9529 = vmatmul.mubr.bf16.gmra.mrb[0].mxu0 %v9451
  %v9530 = vpop.f32.mrb[0].mxu0
  %v9531 = vadd.f32 0.0, %v9530
  %v9532 = vpop.f32.mrb[0].mxu0
  %v9533 = vadd.f32 0.0, %v9532
  %v9534 = vpop.f32.mrb[0].mxu0
  %v9535 = vadd.f32 0.0, %v9534
  %v9536 = vpop.f32.mrb[0].mxu0
  %v9537 = vadd.f32 0.0, %v9536
  %9538 = vdwg.mxu0
  %9539 = vmatprep.subr.bf16.mxu0 %v9391
  %9540 = vmatpush1.bf16.msra.mxu0 %v9390
  %9541 = vmatprep.subr.bf16.mxu0 %v9399
  %9542 = vmatpush1.bf16.msra.mxu0 %v9398
  %9543 = vmatprep.subr.bf16.mxu0 %v9407
  %9544 = vmatpush1.bf16.msra.mxu0 %v9406
  %9545 = vmatprep.subr.bf16.mxu0 %v9415
  %9546 = vmatpush1.bf16.msra.mxu0 %v9414
  %9547 = vmatprep.subr.bf16.mxu0 0
  %9548 = vmatpush1.bf16.msra.mxu0 0
  %9549 = vmatprep.subr.bf16.mxu0 0
  %9550 = vmatpush1.bf16.msra.mxu0 0
  %9551 = vmatprep.subr.bf16.mxu0 0
  %9552 = vmatpush1.bf16.msra.mxu0 0
  %9553 = vmatprep.subr.bf16.mxu0 0
  %9554 = vmatpush1.bf16.msra.mxu0 0
  %9555 = vmatprep.subr.bf16.mxu0 0
  %9556 = vmatpush1.bf16.msra.mxu0 0
  %9557 = vmatprep.subr.bf16.mxu0 0
  %9558 = vmatpush1.bf16.msra.mxu0 0
  %9559 = vmatprep.subr.bf16.mxu0 0
  %9560 = vmatpush1.bf16.msra.mxu0 0
  %9561 = vmatprep.subr.bf16.mxu0 0
  %9562 = vmatpush1.bf16.msra.mxu0 0
  %9563 = vmatprep.subr.bf16.mxu0 0
  %9564 = vmatpush1.bf16.msra.mxu0 0
  %9565 = vmatprep.subr.bf16.mxu0 0
  %9566 = vmatpush1.bf16.msra.mxu0 0
  %9567 = vmatprep.subr.bf16.mxu0 0
  %9568 = vmatpush1.bf16.msra.mxu0 0
  %9569 = vmatprep.subr.bf16.mxu0 0
  %9570 = vmatpush1.bf16.msra.mxu0 0
  %9571 = vmatprep.mubr.bf16.mxu0 0
  %9572 = vmatmul.mubr.bf16.gmra.mrb[0].mxu0 %v9451
  %v9573 = vpop.f32.mrb[0].mxu0
  %v9574 = vadd.f32 0.0, %v9573
  %v9575 = vpop.f32.mrb[0].mxu0
  %v9576 = vadd.f32 0.0, %v9575
  %v9577 = vpop.f32.mrb[0].mxu0
  %v9578 = vadd.f32 0.0, %v9577
  %v9579 = vpop.f32.mrb[0].mxu0
  %v9580 = vadd.f32 0.0, %v9579
  %9581 = vdwg.mxu0
  %9582 = vmatprep.subr.bf16.mxu0 %v9393
  %9583 = vmatpush1.bf16.msra.mxu0 %v9392
  %9584 = vmatprep.subr.bf16.mxu0 %v9401
  %9585 = vmatpush1.bf16.msra.mxu0 %v9400
  %9586 = vmatprep.subr.bf16.mxu0 %v9409
  %9587 = vmatpush1.bf16.msra.mxu0 %v9408
  %9588 = vmatprep.subr.bf16.mxu0 %v9417
  %9589 = vmatpush1.bf16.msra.mxu0 %v9416
  %9590 = vmatprep.subr.bf16.mxu0 0
  %9591 = vmatpush1.bf16.msra.mxu0 0
  %9592 = vmatprep.subr.bf16.mxu0 0
  %9593 = vmatpush1.bf16.msra.mxu0 0
  %9594 = vmatprep.subr.bf16.mxu0 0
  %9595 = vmatpush1.bf16.msra.mxu0 0
  %9596 = vmatprep.subr.bf16.mxu0 0
  %9597 = vmatpush1.bf16.msra.mxu0 0
  %9598 = vmatprep.subr.bf16.mxu0 0
  %9599 = vmatpush1.bf16.msra.mxu0 0
  %9600 = vmatprep.subr.bf16.mxu0 0
  %9601 = vmatpush1.bf16.msra.mxu0 0
  %9602 = vmatprep.subr.bf16.mxu0 0
  %9603 = vmatpush1.bf16.msra.mxu0 0
  %9604 = vmatprep.subr.bf16.mxu0 0
  %9605 = vmatpush1.bf16.msra.mxu0 0
  %9606 = vmatprep.subr.bf16.mxu0 0
  %9607 = vmatpush1.bf16.msra.mxu0 0
  %9608 = vmatprep.subr.bf16.mxu0 0
  %9609 = vmatpush1.bf16.msra.mxu0 0
  %9610 = vmatprep.subr.bf16.mxu0 0
  %9611 = vmatpush1.bf16.msra.mxu0 0
  %9612 = vmatprep.subr.bf16.mxu0 0
  %9613 = vmatpush1.bf16.msra.mxu0 0
  %9614 = vmatprep.mubr.bf16.mxu0 0
  %9615 = vmatmul.mubr.bf16.gmra.mrb[0].mxu0 %v9451
  %v9616 = vpop.f32.mrb[0].mxu0
  %v9617 = vadd.f32 0.0, %v9616
  %v9618 = vpop.f32.mrb[0].mxu0
  %v9619 = vadd.f32 0.0, %v9618
  %v9620 = vpop.f32.mrb[0].mxu0
  %v9621 = vadd.f32 0.0, %v9620
  %v9622 = vpop.f32.mrb[0].mxu0
  %v9623 = vadd.f32 0.0, %v9622
  %9624 = vdwg.mxu0
  %v9625 = vadd.f32 %v9241, %v9488
  %v9626 = vadd.f32 %v9242, %v9490
  %v9627 = vadd.f32 %v9243, %v9531
  %v9628 = vadd.f32 %v9244, %v9533
  %v9629 = vadd.f32 %v9245, %v9574
  %v9630 = vadd.f32 %v9246, %v9576
  %v9631 = vadd.f32 %v9247, %v9617
  %v9632 = vadd.f32 %v9248, %v9619
  %v9633 = vadd.f32 %v9249, %v9492
  %v9634 = vadd.f32 %v9250, %v9494
  %v9635 = vadd.f32 %v9251, %v9535
  %v9636 = vadd.f32 %v9252, %v9537
  %v9637 = vadd.f32 %v9253, %v9578
  %v9638 = vadd.f32 %v9254, %v9580
  %v9639 = vadd.f32 %v9255, %v9621
  %v9640 = vadd.f32 %v9256, %v9623
  %s9641 = scalar_lea.vmem %s5, 3584
  %v9642 = vld [vmem:[%s9641] sm:$0xff]
  %v9643 = vld [vmem:[%s9641 + $0x8] sm:$0xff]
  %v9644 = vld [vmem:[%s9641 + $0x10] sm:$0xff]
  %v9645 = vld [vmem:[%s9641 + $0x18] sm:$0xff]
  %v9646 = vld [vmem:[%s9641 + $0x20] sm:$0xff]
  %v9647 = vld [vmem:[%s9641 + $0x28] sm:$0xff]
  %v9648 = vld [vmem:[%s9641 + $0x30] sm:$0xff]
  %v9649 = vld [vmem:[%s9641 + $0x38] sm:$0xff]
  %v9650 = vld [vmem:[%s9641 + $0x40] sm:$0xff]
  %v9651 = vld [vmem:[%s9641 + $0x48] sm:$0xff]
  %v9652 = vld [vmem:[%s9641 + $0x50] sm:$0xff]
  %v9653 = vld [vmem:[%s9641 + $0x58] sm:$0xff]
  %v9654 = vld [vmem:[%s9641 + $0x60] sm:$0xff]
  %v9655 = vld [vmem:[%s9641 + $0x68] sm:$0xff]
  %v9656 = vld [vmem:[%s9641 + $0x70] sm:$0xff]
  %v9657 = vld [vmem:[%s9641 + $0x78] sm:$0xff]
  %v9658 = vld [vmem:[%s9641 + $0x80] sm:$0xff]
  %v9659 = vld [vmem:[%s9641 + $0x88] sm:$0xff]
  %v9660 = vld [vmem:[%s9641 + $0x90] sm:$0xff]
  %v9661 = vld [vmem:[%s9641 + $0x98] sm:$0xff]
  %v9662 = vld [vmem:[%s9641 + $0xa0] sm:$0xff]
  %v9663 = vld [vmem:[%s9641 + $0xa8] sm:$0xff]
  %v9664 = vld [vmem:[%s9641 + $0xb0] sm:$0xff]
  %v9665 = vld [vmem:[%s9641 + $0xb8] sm:$0xff]
  %v9666 = vld [vmem:[%s9641 + $0xc0] sm:$0xff]
  %v9667 = vld [vmem:[%s9641 + $0xc8] sm:$0xff]
  %v9668 = vld [vmem:[%s9641 + $0xd0] sm:$0xff]
  %v9669 = vld [vmem:[%s9641 + $0xd8] sm:$0xff]
  %v9670 = vld [vmem:[%s9641 + $0xe0] sm:$0xff]
  %v9671 = vld [vmem:[%s9641 + $0xe8] sm:$0xff]
  %v9672 = vld [vmem:[%s9641 + $0xf0] sm:$0xff]
  %v9673 = vld [vmem:[%s9641 + $0xf8] sm:$0xff]
  %v9706 = vunpack.c.l.b16 %v9642
  %v9707 = vunpack.c.h.b16 %v9642
  %v9708 = vunpack.c.l.b16 %v9643
  %v9709 = vunpack.c.h.b16 %v9643
  %v9710 = vunpack.c.l.b16 %v9644
  %v9711 = vunpack.c.h.b16 %v9644
  %v9712 = vunpack.c.l.b16 %v9645
  %v9713 = vunpack.c.h.b16 %v9645
  %v9714 = vunpack.c.l.b16 %v9646
  %v9715 = vunpack.c.h.b16 %v9646
  %v9716 = vunpack.c.l.b16 %v9647
  %v9717 = vunpack.c.h.b16 %v9647
  %v9718 = vunpack.c.l.b16 %v9648
  %v9719 = vunpack.c.h.b16 %v9648
  %v9720 = vunpack.c.l.b16 %v9649
  %v9721 = vunpack.c.h.b16 %v9649
  %v9722 = vunpack.c.l.b16 %v9650
  %v9723 = vunpack.c.h.b16 %v9650
  %v9724 = vunpack.c.l.b16 %v9651
  %v9725 = vunpack.c.h.b16 %v9651
  %v9726 = vunpack.c.l.b16 %v9652
  %v9727 = vunpack.c.h.b16 %v9652
  %v9728 = vunpack.c.l.b16 %v9653
  %v9729 = vunpack.c.h.b16 %v9653
  %v9730 = vunpack.c.l.b16 %v9654
  %v9731 = vunpack.c.h.b16 %v9654
  %v9732 = vunpack.c.l.b16 %v9655
  %v9733 = vunpack.c.h.b16 %v9655
  %v9734 = vunpack.c.l.b16 %v9656
  %v9735 = vunpack.c.h.b16 %v9656
  %v9736 = vunpack.c.l.b16 %v9657
  %v9737 = vunpack.c.h.b16 %v9657
  %v9738 = vunpack.c.l.b16 %v9658
  %v9739 = vunpack.c.h.b16 %v9658
  %v9740 = vunpack.c.l.b16 %v9659
  %v9741 = vunpack.c.h.b16 %v9659
  %v9742 = vunpack.c.l.b16 %v9660
  %v9743 = vunpack.c.h.b16 %v9660
  %v9744 = vunpack.c.l.b16 %v9661
  %v9745 = vunpack.c.h.b16 %v9661
  %v9746 = vunpack.c.l.b16 %v9662
  %v9747 = vunpack.c.h.b16 %v9662
  %v9748 = vunpack.c.l.b16 %v9663
  %v9749 = vunpack.c.h.b16 %v9663
  %v9750 = vunpack.c.l.b16 %v9664
  %v9751 = vunpack.c.h.b16 %v9664
  %v9752 = vunpack.c.l.b16 %v9665
  %v9753 = vunpack.c.h.b16 %v9665
  %v9754 = vunpack.c.l.b16 %v9666
  %v9755 = vunpack.c.h.b16 %v9666
  %v9756 = vunpack.c.l.b16 %v9667
  %v9757 = vunpack.c.h.b16 %v9667
  %v9758 = vunpack.c.l.b16 %v9668
  %v9759 = vunpack.c.h.b16 %v9668
  %v9760 = vunpack.c.l.b16 %v9669
  %v9761 = vunpack.c.h.b16 %v9669
  %v9762 = vunpack.c.l.b16 %v9670
  %v9763 = vunpack.c.h.b16 %v9670
  %v9764 = vunpack.c.l.b16 %v9671
  %v9765 = vunpack.c.h.b16 %v9671
  %v9766 = vunpack.c.l.b16 %v9672
  %v9767 = vunpack.c.h.b16 %v9672
  %v9768 = vunpack.c.l.b16 %v9673
  %v9769 = vunpack.c.h.b16 %v9673
  %v9770 = vpack.c.b16 %v9714, %v9706
  %v9771 = vpack.c.b16 %v9715, %v9707
  %v9772 = vpack.c.b16 %v9716, %v9708
  %v9773 = vpack.c.b16 %v9717, %v9709
  %v9774 = vpack.c.b16 %v9718, %v9710
  %v9775 = vpack.c.b16 %v9719, %v9711
  %v9776 = vpack.c.b16 %v9720, %v9712
  %v9777 = vpack.c.b16 %v9721, %v9713
  %v9778 = vpack.c.b16 %v9730, %v9722
  %v9779 = vpack.c.b16 %v9731, %v9723
  %v9780 = vpack.c.b16 %v9732, %v9724
  %v9781 = vpack.c.b16 %v9733, %v9725
  %v9782 = vpack.c.b16 %v9734, %v9726
  %v9783 = vpack.c.b16 %v9735, %v9727
  %v9784 = vpack.c.b16 %v9736, %v9728
  %v9785 = vpack.c.b16 %v9737, %v9729
  %v9786 = vpack.c.b16 %v9746, %v9738
  %v9787 = vpack.c.b16 %v9747, %v9739
  %v9788 = vpack.c.b16 %v9748, %v9740
  %v9789 = vpack.c.b16 %v9749, %v9741
  %v9790 = vpack.c.b16 %v9750, %v9742
  %v9791 = vpack.c.b16 %v9751, %v9743
  %v9792 = vpack.c.b16 %v9752, %v9744
  %v9793 = vpack.c.b16 %v9753, %v9745
  %v9794 = vpack.c.b16 %v9762, %v9754
  %v9795 = vpack.c.b16 %v9763, %v9755
  %v9796 = vpack.c.b16 %v9764, %v9756
  %v9797 = vpack.c.b16 %v9765, %v9757
  %v9798 = vpack.c.b16 %v9766, %v9758
  %v9799 = vpack.c.b16 %v9767, %v9759
  %v9800 = vpack.c.b16 %v9768, %v9760
  %v9801 = vpack.c.b16 %v9769, %v9761
  %v9835 = vsel %vm4522, %v4295, 0
  %9837 = vmatprep.subr.bf16.mxu0 %v9771
  %9838 = vmatpush1.bf16.msra.mxu0 %v9770
  %9839 = vmatprep.subr.bf16.mxu0 %v9779
  %9840 = vmatpush1.bf16.msra.mxu0 %v9778
  %9841 = vmatprep.subr.bf16.mxu0 %v9787
  %9842 = vmatpush1.bf16.msra.mxu0 %v9786
  %9843 = vmatprep.subr.bf16.mxu0 %v9795
  %9844 = vmatpush1.bf16.msra.mxu0 %v9794
  %9845 = vmatprep.subr.bf16.mxu0 0
  %9846 = vmatpush1.bf16.msra.mxu0 0
  %9847 = vmatprep.subr.bf16.mxu0 0
  %9848 = vmatpush1.bf16.msra.mxu0 0
  %9849 = vmatprep.subr.bf16.mxu0 0
  %9850 = vmatpush1.bf16.msra.mxu0 0
  %9851 = vmatprep.subr.bf16.mxu0 0
  %9852 = vmatpush1.bf16.msra.mxu0 0
  %9853 = vmatprep.subr.bf16.mxu0 0
  %9854 = vmatpush1.bf16.msra.mxu0 0
  %9855 = vmatprep.subr.bf16.mxu0 0
  %9856 = vmatpush1.bf16.msra.mxu0 0
  %9857 = vmatprep.subr.bf16.mxu0 0
  %9858 = vmatpush1.bf16.msra.mxu0 0
  %9859 = vmatprep.subr.bf16.mxu0 0
  %9860 = vmatpush1.bf16.msra.mxu0 0
  %9861 = vmatprep.subr.bf16.mxu0 0
  %9862 = vmatpush1.bf16.msra.mxu0 0
  %9863 = vmatprep.subr.bf16.mxu0 0
  %9864 = vmatpush1.bf16.msra.mxu0 0
  %9865 = vmatprep.subr.bf16.mxu0 0
  %9866 = vmatpush1.bf16.msra.mxu0 0
  %9867 = vmatprep.subr.bf16.mxu0 0
  %9868 = vmatpush1.bf16.msra.mxu0 0
  %9869 = vmatprep.mubr.bf16.mxu0 0
  %9870 = vmatmul.mubr.bf16.gmra.mrb[0].mxu0 %v9835
  %v9871 = vpop.f32.mrb[0].mxu0
  %v9872 = vadd.f32 0.0, %v9871
  %v9873 = vpop.f32.mrb[0].mxu0
  %v9874 = vadd.f32 0.0, %v9873
  %v9875 = vpop.f32.mrb[0].mxu0
  %v9876 = vadd.f32 0.0, %v9875
  %v9877 = vpop.f32.mrb[0].mxu0
  %v9878 = vadd.f32 0.0, %v9877
  %9879 = vdwg.mxu0
  %9880 = vmatprep.subr.bf16.mxu0 %v9773
  %9881 = vmatpush1.bf16.msra.mxu0 %v9772
  %9882 = vmatprep.subr.bf16.mxu0 %v9781
  %9883 = vmatpush1.bf16.msra.mxu0 %v9780
  %9884 = vmatprep.subr.bf16.mxu0 %v9789
  %9885 = vmatpush1.bf16.msra.mxu0 %v9788
  %9886 = vmatprep.subr.bf16.mxu0 %v9797
  %9887 = vmatpush1.bf16.msra.mxu0 %v9796
  %9888 = vmatprep.subr.bf16.mxu0 0
  %9889 = vmatpush1.bf16.msra.mxu0 0
  %9890 = vmatprep.subr.bf16.mxu0 0
  %9891 = vmatpush1.bf16.msra.mxu0 0
  %9892 = vmatprep.subr.bf16.mxu0 0
  %9893 = vmatpush1.bf16.msra.mxu0 0
  %9894 = vmatprep.subr.bf16.mxu0 0
  %9895 = vmatpush1.bf16.msra.mxu0 0
  %9896 = vmatprep.subr.bf16.mxu0 0
  %9897 = vmatpush1.bf16.msra.mxu0 0
  %9898 = vmatprep.subr.bf16.mxu0 0
  %9899 = vmatpush1.bf16.msra.mxu0 0
  %9900 = vmatprep.subr.bf16.mxu0 0
  %9901 = vmatpush1.bf16.msra.mxu0 0
  %9902 = vmatprep.subr.bf16.mxu0 0
  %9903 = vmatpush1.bf16.msra.mxu0 0
  %9904 = vmatprep.subr.bf16.mxu0 0
  %9905 = vmatpush1.bf16.msra.mxu0 0
  %9906 = vmatprep.subr.bf16.mxu0 0
  %9907 = vmatpush1.bf16.msra.mxu0 0
  %9908 = vmatprep.subr.bf16.mxu0 0
  %9909 = vmatpush1.bf16.msra.mxu0 0
  %9910 = vmatprep.subr.bf16.mxu0 0
  %9911 = vmatpush1.bf16.msra.mxu0 0
  %9912 = vmatprep.mubr.bf16.mxu0 0
  %9913 = vmatmul.mubr.bf16.gmra.mrb[0].mxu0 %v9835
  %v9914 = vpop.f32.mrb[0].mxu0
  %v9915 = vadd.f32 0.0, %v9914
  %v9916 = vpop.f32.mrb[0].mxu0
  %v9917 = vadd.f32 0.0, %v9916
  %v9918 = vpop.f32.mrb[0].mxu0
  %v9919 = vadd.f32 0.0, %v9918
  %v9920 = vpop.f32.mrb[0].mxu0
  %v9921 = vadd.f32 0.0, %v9920
  %9922 = vdwg.mxu0
  %9923 = vmatprep.subr.bf16.mxu0 %v9775
  %9924 = vmatpush1.bf16.msra.mxu0 %v9774
  %9925 = vmatprep.subr.bf16.mxu0 %v9783
  %9926 = vmatpush1.bf16.msra.mxu0 %v9782
  %9927 = vmatprep.subr.bf16.mxu0 %v9791
  %9928 = vmatpush1.bf16.msra.mxu0 %v9790
  %9929 = vmatprep.subr.bf16.mxu0 %v9799
  %9930 = vmatpush1.bf16.msra.mxu0 %v9798
  %9931 = vmatprep.subr.bf16.mxu0 0
  %9932 = vmatpush1.bf16.msra.mxu0 0
  %9933 = vmatprep.subr.bf16.mxu0 0
  %9934 = vmatpush1.bf16.msra.mxu0 0
  %9935 = vmatprep.subr.bf16.mxu0 0
  %9936 = vmatpush1.bf16.msra.mxu0 0
  %9937 = vmatprep.subr.bf16.mxu0 0
  %9938 = vmatpush1.bf16.msra.mxu0 0
  %9939 = vmatprep.subr.bf16.mxu0 0
  %9940 = vmatpush1.bf16.msra.mxu0 0
  %9941 = vmatprep.subr.bf16.mxu0 0
  %9942 = vmatpush1.bf16.msra.mxu0 0
  %9943 = vmatprep.subr.bf16.mxu0 0
  %9944 = vmatpush1.bf16.msra.mxu0 0
  %9945 = vmatprep.subr.bf16.mxu0 0
  %9946 = vmatpush1.bf16.msra.mxu0 0
  %9947 = vmatprep.subr.bf16.mxu0 0
  %9948 = vmatpush1.bf16.msra.mxu0 0
  %9949 = vmatprep.subr.bf16.mxu0 0
  %9950 = vmatpush1.bf16.msra.mxu0 0
  %9951 = vmatprep.subr.bf16.mxu0 0
  %9952 = vmatpush1.bf16.msra.mxu0 0
  %9953 = vmatprep.subr.bf16.mxu0 0
  %9954 = vmatpush1.bf16.msra.mxu0 0
  %9955 = vmatprep.mubr.bf16.mxu0 0
  %9956 = vmatmul.mubr.bf16.gmra.mrb[0].mxu0 %v9835
  %v9957 = vpop.f32.mrb[0].mxu0
  %v9958 = vadd.f32 0.0, %v9957
  %v9959 = vpop.f32.mrb[0].mxu0
  %v9960 = vadd.f32 0.0, %v9959
  %v9961 = vpop.f32.mrb[0].mxu0
  %v9962 = vadd.f32 0.0, %v9961
  %v9963 = vpop.f32.mrb[0].mxu0
  %v9964 = vadd.f32 0.0, %v9963
  %9965 = vdwg.mxu0
  %9966 = vmatprep.subr.bf16.mxu0 %v9777
  %9967 = vmatpush1.bf16.msra.mxu0 %v9776
  %9968 = vmatprep.subr.bf16.mxu0 %v9785
  %9969 = vmatpush1.bf16.msra.mxu0 %v9784
  %9970 = vmatprep.subr.bf16.mxu0 %v9793
  %9971 = vmatpush1.bf16.msra.mxu0 %v9792
  %9972 = vmatprep.subr.bf16.mxu0 %v9801
  %9973 = vmatpush1.bf16.msra.mxu0 %v9800
  %9974 = vmatprep.subr.bf16.mxu0 0
  %9975 = vmatpush1.bf16.msra.mxu0 0
  %9976 = vmatprep.subr.bf16.mxu0 0
  %9977 = vmatpush1.bf16.msra.mxu0 0
  %9978 = vmatprep.subr.bf16.mxu0 0
  %9979 = vmatpush1.bf16.msra.mxu0 0
  %9980 = vmatprep.subr.bf16.mxu0 0
  %9981 = vmatpush1.bf16.msra.mxu0 0
  %9982 = vmatprep.subr.bf16.mxu0 0
  %9983 = vmatpush1.bf16.msra.mxu0 0
  %9984 = vmatprep.subr.bf16.mxu0 0
  %9985 = vmatpush1.bf16.msra.mxu0 0
  %9986 = vmatprep.subr.bf16.mxu0 0
  %9987 = vmatpush1.bf16.msra.mxu0 0
  %9988 = vmatprep.subr.bf16.mxu0 0
  %9989 = vmatpush1.bf16.msra.mxu0 0
  %9990 = vmatprep.subr.bf16.mxu0 0
  %9991 = vmatpush1.bf16.msra.mxu0 0
  %9992 = vmatprep.subr.bf16.mxu0 0
  %9993 = vmatpush1.bf16.msra.mxu0 0
  %9994 = vmatprep.subr.bf16.mxu0 0
  %9995 = vmatpush1.bf16.msra.mxu0 0
  %9996 = vmatprep.subr.bf16.mxu0 0
  %9997 = vmatpush1.bf16.msra.mxu0 0
  %9998 = vmatprep.mubr.bf16.mxu0 0
  %9999 = vmatmul.mubr.bf16.gmra.mrb[0].mxu0 %v9835
  %v10000 = vpop.f32.mrb[0].mxu0
  %v10001 = vadd.f32 0.0, %v10000
  %v10002 = vpop.f32.mrb[0].mxu0
  %v10003 = vadd.f32 0.0, %v10002
  %v10004 = vpop.f32.mrb[0].mxu0
  %v10005 = vadd.f32 0.0, %v10004
  %v10006 = vpop.f32.mrb[0].mxu0
  %v10007 = vadd.f32 0.0, %v10006
  %10008 = vdwg.mxu0
  %v10009 = vadd.f32 %v9625, %v9872
  %v10010 = vadd.f32 %v9626, %v9874
  %v10011 = vadd.f32 %v9627, %v9915
  %v10012 = vadd.f32 %v9628, %v9917
  %v10013 = vadd.f32 %v9629, %v9958
  %v10014 = vadd.f32 %v9630, %v9960
  %v10015 = vadd.f32 %v9631, %v10001
  %v10016 = vadd.f32 %v9632, %v10003
  %v10017 = vadd.f32 %v9633, %v9876
  %v10018 = vadd.f32 %v9634, %v9878
  %v10019 = vadd.f32 %v9635, %v9919
  %v10020 = vadd.f32 %v9636, %v9921
  %v10021 = vadd.f32 %v9637, %v9962
  %v10022 = vadd.f32 %v9638, %v9964
  %v10023 = vadd.f32 %v9639, %v10005
  %v10024 = vadd.f32 %v9640, %v10007
  %s10025 = scalar_lea.vmem %s5, 3840
  %v10026 = vld [vmem:[%s10025] sm:$0xff]
  %v10027 = vld [vmem:[%s10025 + $0x8] sm:$0xff]
  %v10028 = vld [vmem:[%s10025 + $0x10] sm:$0xff]
  %v10029 = vld [vmem:[%s10025 + $0x18] sm:$0xff]
  %v10030 = vld [vmem:[%s10025 + $0x20] sm:$0xff]
  %v10031 = vld [vmem:[%s10025 + $0x28] sm:$0xff]
  %v10032 = vld [vmem:[%s10025 + $0x30] sm:$0xff]
  %v10033 = vld [vmem:[%s10025 + $0x38] sm:$0xff]
  %v10034 = vld [vmem:[%s10025 + $0x40] sm:$0xff]
  %v10035 = vld [vmem:[%s10025 + $0x48] sm:$0xff]
  %v10036 = vld [vmem:[%s10025 + $0x50] sm:$0xff]
  %v10037 = vld [vmem:[%s10025 + $0x58] sm:$0xff]
  %v10038 = vld [vmem:[%s10025 + $0x60] sm:$0xff]
  %v10039 = vld [vmem:[%s10025 + $0x68] sm:$0xff]
  %v10040 = vld [vmem:[%s10025 + $0x70] sm:$0xff]
  %v10041 = vld [vmem:[%s10025 + $0x78] sm:$0xff]
  %v10042 = vld [vmem:[%s10025 + $0x80] sm:$0xff]
  %v10043 = vld [vmem:[%s10025 + $0x88] sm:$0xff]
  %v10044 = vld [vmem:[%s10025 + $0x90] sm:$0xff]
  %v10045 = vld [vmem:[%s10025 + $0x98] sm:$0xff]
  %v10046 = vld [vmem:[%s10025 + $0xa0] sm:$0xff]
  %v10047 = vld [vmem:[%s10025 + $0xa8] sm:$0xff]
  %v10048 = vld [vmem:[%s10025 + $0xb0] sm:$0xff]
  %v10049 = vld [vmem:[%s10025 + $0xb8] sm:$0xff]
  %v10050 = vld [vmem:[%s10025 + $0xc0] sm:$0xff]
  %v10051 = vld [vmem:[%s10025 + $0xc8] sm:$0xff]
  %v10052 = vld [vmem:[%s10025 + $0xd0] sm:$0xff]
  %v10053 = vld [vmem:[%s10025 + $0xd8] sm:$0xff]
  %v10054 = vld [vmem:[%s10025 + $0xe0] sm:$0xff]
  %v10055 = vld [vmem:[%s10025 + $0xe8] sm:$0xff]
  %v10056 = vld [vmem:[%s10025 + $0xf0] sm:$0xff]
  %v10057 = vld [vmem:[%s10025 + $0xf8] sm:$0xff]
  %v10090 = vunpack.c.l.b16 %v10026
  %v10091 = vunpack.c.h.b16 %v10026
  %v10092 = vunpack.c.l.b16 %v10027
  %v10093 = vunpack.c.h.b16 %v10027
  %v10094 = vunpack.c.l.b16 %v10028
  %v10095 = vunpack.c.h.b16 %v10028
  %v10096 = vunpack.c.l.b16 %v10029
  %v10097 = vunpack.c.h.b16 %v10029
  %v10098 = vunpack.c.l.b16 %v10030
  %v10099 = vunpack.c.h.b16 %v10030
  %v10100 = vunpack.c.l.b16 %v10031
  %v10101 = vunpack.c.h.b16 %v10031
  %v10102 = vunpack.c.l.b16 %v10032
  %v10103 = vunpack.c.h.b16 %v10032
  %v10104 = vunpack.c.l.b16 %v10033
  %v10105 = vunpack.c.h.b16 %v10033
  %v10106 = vunpack.c.l.b16 %v10034
  %v10107 = vunpack.c.h.b16 %v10034
  %v10108 = vunpack.c.l.b16 %v10035
  %v10109 = vunpack.c.h.b16 %v10035
  %v10110 = vunpack.c.l.b16 %v10036
  %v10111 = vunpack.c.h.b16 %v10036
  %v10112 = vunpack.c.l.b16 %v10037
  %v10113 = vunpack.c.h.b16 %v10037
  %v10114 = vunpack.c.l.b16 %v10038
  %v10115 = vunpack.c.h.b16 %v10038
  %v10116 = vunpack.c.l.b16 %v10039
  %v10117 = vunpack.c.h.b16 %v10039
  %v10118 = vunpack.c.l.b16 %v10040
  %v10119 = vunpack.c.h.b16 %v10040
  %v10120 = vunpack.c.l.b16 %v10041
  %v10121 = vunpack.c.h.b16 %v10041
  %v10122 = vunpack.c.l.b16 %v10042
  %v10123 = vunpack.c.h.b16 %v10042
  %v10124 = vunpack.c.l.b16 %v10043
  %v10125 = vunpack.c.h.b16 %v10043
  %v10126 = vunpack.c.l.b16 %v10044
  %v10127 = vunpack.c.h.b16 %v10044
  %v10128 = vunpack.c.l.b16 %v10045
  %v10129 = vunpack.c.h.b16 %v10045
  %v10130 = vunpack.c.l.b16 %v10046
  %v10131 = vunpack.c.h.b16 %v10046
  %v10132 = vunpack.c.l.b16 %v10047
  %v10133 = vunpack.c.h.b16 %v10047
  %v10134 = vunpack.c.l.b16 %v10048
  %v10135 = vunpack.c.h.b16 %v10048
  %v10136 = vunpack.c.l.b16 %v10049
  %v10137 = vunpack.c.h.b16 %v10049
  %v10138 = vunpack.c.l.b16 %v10050
  %v10139 = vunpack.c.h.b16 %v10050
  %v10140 = vunpack.c.l.b16 %v10051
  %v10141 = vunpack.c.h.b16 %v10051
  %v10142 = vunpack.c.l.b16 %v10052
  %v10143 = vunpack.c.h.b16 %v10052
  %v10144 = vunpack.c.l.b16 %v10053
  %v10145 = vunpack.c.h.b16 %v10053
  %v10146 = vunpack.c.l.b16 %v10054
  %v10147 = vunpack.c.h.b16 %v10054
  %v10148 = vunpack.c.l.b16 %v10055
  %v10149 = vunpack.c.h.b16 %v10055
  %v10150 = vunpack.c.l.b16 %v10056
  %v10151 = vunpack.c.h.b16 %v10056
  %v10152 = vunpack.c.l.b16 %v10057
  %v10153 = vunpack.c.h.b16 %v10057
  %v10154 = vpack.c.b16 %v10098, %v10090
  %v10155 = vpack.c.b16 %v10099, %v10091
  %v10156 = vpack.c.b16 %v10100, %v10092
  %v10157 = vpack.c.b16 %v10101, %v10093
  %v10158 = vpack.c.b16 %v10102, %v10094
  %v10159 = vpack.c.b16 %v10103, %v10095
  %v10160 = vpack.c.b16 %v10104, %v10096
  %v10161 = vpack.c.b16 %v10105, %v10097
  %v10162 = vpack.c.b16 %v10114, %v10106
  %v10163 = vpack.c.b16 %v10115, %v10107
  %v10164 = vpack.c.b16 %v10116, %v10108
  %v10165 = vpack.c.b16 %v10117, %v10109
  %v10166 = vpack.c.b16 %v10118, %v10110
  %v10167 = vpack.c.b16 %v10119, %v10111
  %v10168 = vpack.c.b16 %v10120, %v10112
  %v10169 = vpack.c.b16 %v10121, %v10113
  %v10170 = vpack.c.b16 %v10130, %v10122
  %v10171 = vpack.c.b16 %v10131, %v10123
  %v10172 = vpack.c.b16 %v10132, %v10124
  %v10173 = vpack.c.b16 %v10133, %v10125
  %v10174 = vpack.c.b16 %v10134, %v10126
  %v10175 = vpack.c.b16 %v10135, %v10127
  %v10176 = vpack.c.b16 %v10136, %v10128
  %v10177 = vpack.c.b16 %v10137, %v10129
  %v10178 = vpack.c.b16 %v10146, %v10138
  %v10179 = vpack.c.b16 %v10147, %v10139
  %v10180 = vpack.c.b16 %v10148, %v10140
  %v10181 = vpack.c.b16 %v10149, %v10141
  %v10182 = vpack.c.b16 %v10150, %v10142
  %v10183 = vpack.c.b16 %v10151, %v10143
  %v10184 = vpack.c.b16 %v10152, %v10144
  %v10185 = vpack.c.b16 %v10153, %v10145
  %v10219 = vsel %vm4522, %v4296, 0
  %10221 = vmatprep.subr.bf16.mxu0 %v10155
  %10222 = vmatpush1.bf16.msra.mxu0 %v10154
  %10223 = vmatprep.subr.bf16.mxu0 %v10163
  %10224 = vmatpush1.bf16.msra.mxu0 %v10162
  %10225 = vmatprep.subr.bf16.mxu0 %v10171
  %10226 = vmatpush1.bf16.msra.mxu0 %v10170
  %10227 = vmatprep.subr.bf16.mxu0 %v10179
  %10228 = vmatpush1.bf16.msra.mxu0 %v10178
  %10229 = vmatprep.subr.bf16.mxu0 0
  %10230 = vmatpush1.bf16.msra.mxu0 0
  %10231 = vmatprep.subr.bf16.mxu0 0
  %10232 = vmatpush1.bf16.msra.mxu0 0
  %10233 = vmatprep.subr.bf16.mxu0 0
  %10234 = vmatpush1.bf16.msra.mxu0 0
  %10235 = vmatprep.subr.bf16.mxu0 0
  %10236 = vmatpush1.bf16.msra.mxu0 0
  %10237 = vmatprep.subr.bf16.mxu0 0
  %10238 = vmatpush1.bf16.msra.mxu0 0
  %10239 = vmatprep.subr.bf16.mxu0 0
  %10240 = vmatpush1.bf16.msra.mxu0 0
  %10241 = vmatprep.subr.bf16.mxu0 0
  %10242 = vmatpush1.bf16.msra.mxu0 0
  %10243 = vmatprep.subr.bf16.mxu0 0
  %10244 = vmatpush1.bf16.msra.mxu0 0
  %10245 = vmatprep.subr.bf16.mxu0 0
  %10246 = vmatpush1.bf16.msra.mxu0 0
  %10247 = vmatprep.subr.bf16.mxu0 0
  %10248 = vmatpush1.bf16.msra.mxu0 0
  %10249 = vmatprep.subr.bf16.mxu0 0
  %10250 = vmatpush1.bf16.msra.mxu0 0
  %10251 = vmatprep.subr.bf16.mxu0 0
  %10252 = vmatpush1.bf16.msra.mxu0 0
  %10253 = vmatprep.mubr.bf16.mxu0 0
  %10254 = vmatmul.mubr.bf16.gmra.mrb[0].mxu0 %v10219
  %v10255 = vpop.f32.mrb[0].mxu0
  %v10256 = vadd.f32 0.0, %v10255
  %v10257 = vpop.f32.mrb[0].mxu0
  %v10258 = vadd.f32 0.0, %v10257
  %v10259 = vpop.f32.mrb[0].mxu0
  %v10260 = vadd.f32 0.0, %v10259
  %v10261 = vpop.f32.mrb[0].mxu0
  %v10262 = vadd.f32 0.0, %v10261
  %10263 = vdwg.mxu0
  %10264 = vmatprep.subr.bf16.mxu0 %v10157
  %10265 = vmatpush1.bf16.msra.mxu0 %v10156
  %10266 = vmatprep.subr.bf16.mxu0 %v10165
  %10267 = vmatpush1.bf16.msra.mxu0 %v10164
  %10268 = vmatprep.subr.bf16.mxu0 %v10173
  %10269 = vmatpush1.bf16.msra.mxu0 %v10172
  %10270 = vmatprep.subr.bf16.mxu0 %v10181
  %10271 = vmatpush1.bf16.msra.mxu0 %v10180
  %10272 = vmatprep.subr.bf16.mxu0 0
  %10273 = vmatpush1.bf16.msra.mxu0 0
  %10274 = vmatprep.subr.bf16.mxu0 0
  %10275 = vmatpush1.bf16.msra.mxu0 0
  %10276 = vmatprep.subr.bf16.mxu0 0
  %10277 = vmatpush1.bf16.msra.mxu0 0
  %10278 = vmatprep.subr.bf16.mxu0 0
  %10279 = vmatpush1.bf16.msra.mxu0 0
  %10280 = vmatprep.subr.bf16.mxu0 0
  %10281 = vmatpush1.bf16.msra.mxu0 0
  %10282 = vmatprep.subr.bf16.mxu0 0
  %10283 = vmatpush1.bf16.msra.mxu0 0
  %10284 = vmatprep.subr.bf16.mxu0 0
  %10285 = vmatpush1.bf16.msra.mxu0 0
  %10286 = vmatprep.subr.bf16.mxu0 0
  %10287 = vmatpush1.bf16.msra.mxu0 0
  %10288 = vmatprep.subr.bf16.mxu0 0
  %10289 = vmatpush1.bf16.msra.mxu0 0
  %10290 = vmatprep.subr.bf16.mxu0 0
  %10291 = vmatpush1.bf16.msra.mxu0 0
  %10292 = vmatprep.subr.bf16.mxu0 0
  %10293 = vmatpush1.bf16.msra.mxu0 0
  %10294 = vmatprep.subr.bf16.mxu0 0
  %10295 = vmatpush1.bf16.msra.mxu0 0
  %10296 = vmatprep.mubr.bf16.mxu0 0
  %10297 = vmatmul.mubr.bf16.gmra.mrb[0].mxu0 %v10219
  %v10298 = vpop.f32.mrb[0].mxu0
  %v10299 = vadd.f32 0.0, %v10298
  %v10300 = vpop.f32.mrb[0].mxu0
  %v10301 = vadd.f32 0.0, %v10300
  %v10302 = vpop.f32.mrb[0].mxu0
  %v10303 = vadd.f32 0.0, %v10302
  %v10304 = vpop.f32.mrb[0].mxu0
  %v10305 = vadd.f32 0.0, %v10304
  %10306 = vdwg.mxu0
  %10307 = vmatprep.subr.bf16.mxu0 %v10159
  %10308 = vmatpush1.bf16.msra.mxu0 %v10158
  %10309 = vmatprep.subr.bf16.mxu0 %v10167
  %10310 = vmatpush1.bf16.msra.mxu0 %v10166
  %10311 = vmatprep.subr.bf16.mxu0 %v10175
  %10312 = vmatpush1.bf16.msra.mxu0 %v10174
  %10313 = vmatprep.subr.bf16.mxu0 %v10183
  %10314 = vmatpush1.bf16.msra.mxu0 %v10182
  %10315 = vmatprep.subr.bf16.mxu0 0
  %10316 = vmatpush1.bf16.msra.mxu0 0
  %10317 = vmatprep.subr.bf16.mxu0 0
  %10318 = vmatpush1.bf16.msra.mxu0 0
  %10319 = vmatprep.subr.bf16.mxu0 0
  %10320 = vmatpush1.bf16.msra.mxu0 0
  %10321 = vmatprep.subr.bf16.mxu0 0
  %10322 = vmatpush1.bf16.msra.mxu0 0
  %10323 = vmatprep.subr.bf16.mxu0 0
  %10324 = vmatpush1.bf16.msra.mxu0 0
  %10325 = vmatprep.subr.bf16.mxu0 0
  %10326 = vmatpush1.bf16.msra.mxu0 0
  %10327 = vmatprep.subr.bf16.mxu0 0
  %10328 = vmatpush1.bf16.msra.mxu0 0
  %10329 = vmatprep.subr.bf16.mxu0 0
  %10330 = vmatpush1.bf16.msra.mxu0 0
  %10331 = vmatprep.subr.bf16.mxu0 0
  %10332 = vmatpush1.bf16.msra.mxu0 0
  %10333 = vmatprep.subr.bf16.mxu0 0
  %10334 = vmatpush1.bf16.msra.mxu0 0
  %10335 = vmatprep.subr.bf16.mxu0 0
  %10336 = vmatpush1.bf16.msra.mxu0 0
  %10337 = vmatprep.subr.bf16.mxu0 0
  %10338 = vmatpush1.bf16.msra.mxu0 0
  %10339 = vmatprep.mubr.bf16.mxu0 0
  %10340 = vmatmul.mubr.bf16.gmra.mrb[0].mxu0 %v10219
  %v10341 = vpop.f32.mrb[0].mxu0
  %v10342 = vadd.f32 0.0, %v10341
  %v10343 = vpop.f32.mrb[0].mxu0
  %v10344 = vadd.f32 0.0, %v10343
  %v10345 = vpop.f32.mrb[0].mxu0
  %v10346 = vadd.f32 0.0, %v10345
  %v10347 = vpop.f32.mrb[0].mxu0
  %v10348 = vadd.f32 0.0, %v10347
  %10349 = vdwg.mxu0
  %10350 = vmatprep.subr.bf16.mxu0 %v10161
  %10351 = vmatpush1.bf16.msra.mxu0 %v10160
  %10352 = vmatprep.subr.bf16.mxu0 %v10169
  %10353 = vmatpush1.bf16.msra.mxu0 %v10168
  %10354 = vmatprep.subr.bf16.mxu0 %v10177
  %10355 = vmatpush1.bf16.msra.mxu0 %v10176
  %10356 = vmatprep.subr.bf16.mxu0 %v10185
  %10357 = vmatpush1.bf16.msra.mxu0 %v10184
  %10358 = vmatprep.subr.bf16.mxu0 0
  %10359 = vmatpush1.bf16.msra.mxu0 0
  %10360 = vmatprep.subr.bf16.mxu0 0
  %10361 = vmatpush1.bf16.msra.mxu0 0
  %10362 = vmatprep.subr.bf16.mxu0 0
  %10363 = vmatpush1.bf16.msra.mxu0 0
  %10364 = vmatprep.subr.bf16.mxu0 0
  %10365 = vmatpush1.bf16.msra.mxu0 0
  %10366 = vmatprep.subr.bf16.mxu0 0
  %10367 = vmatpush1.bf16.msra.mxu0 0
  %10368 = vmatprep.subr.bf16.mxu0 0
  %10369 = vmatpush1.bf16.msra.mxu0 0
  %10370 = vmatprep.subr.bf16.mxu0 0
  %10371 = vmatpush1.bf16.msra.mxu0 0
  %10372 = vmatprep.subr.bf16.mxu0 0
  %10373 = vmatpush1.bf16.msra.mxu0 0
  %10374 = vmatprep.subr.bf16.mxu0 0
  %10375 = vmatpush1.bf16.msra.mxu0 0
  %10376 = vmatprep.subr.bf16.mxu0 0
  %10377 = vmatpush1.bf16.msra.mxu0 0
  %10378 = vmatprep.subr.bf16.mxu0 0
  %10379 = vmatpush1.bf16.msra.mxu0 0
  %10380 = vmatprep.subr.bf16.mxu0 0
  %10381 = vmatpush1.bf16.msra.mxu0 0
  %10382 = vmatprep.mubr.bf16.mxu0 0
  %10383 = vmatmul.mubr.bf16.gmra.mrb[0].mxu0 %v10219
  %v10384 = vpop.f32.mrb[0].mxu0
  %v10385 = vadd.f32 0.0, %v10384
  %v10386 = vpop.f32.mrb[0].mxu0
  %v10387 = vadd.f32 0.0, %v10386
  %v10388 = vpop.f32.mrb[0].mxu0
  %v10389 = vadd.f32 0.0, %v10388
  %v10390 = vpop.f32.mrb[0].mxu0
  %v10391 = vadd.f32 0.0, %v10390
  %10392 = vdwg.mxu0
  %v10393 = vadd.f32 %v10009, %v10256
  %v10394 = vadd.f32 %v10010, %v10258
  %v10395 = vadd.f32 %v10011, %v10299
  %v10396 = vadd.f32 %v10012, %v10301
  %v10397 = vadd.f32 %v10013, %v10342
  %v10398 = vadd.f32 %v10014, %v10344
  %v10399 = vadd.f32 %v10015, %v10385
  %v10400 = vadd.f32 %v10016, %v10387
  %v10401 = vadd.f32 %v10017, %v10260
  %v10402 = vadd.f32 %v10018, %v10262
  %v10403 = vadd.f32 %v10019, %v10303
  %v10404 = vadd.f32 %v10020, %v10305
  %v10405 = vadd.f32 %v10021, %v10346
  %v10406 = vadd.f32 %v10022, %v10348
  %v10407 = vadd.f32 %v10023, %v10389
  %v10408 = vadd.f32 %v10024, %v10391
  %v10409 = vld [vmem:[%s6] sm:$0xff]
  %v10411 = vlaneseq
  %v10412 = vshrl.u32 %v10411, 7
  %v10413 = vsub.s32 0, %v10412
  %v10414 = vrot.slane %v10409, %v10413
  %v10415 = vlaneseq
  %v10416 = vshrl.u32 %v10415, 7
  %v10417 = vsub.s32 1, %v10416
  %v10418 = vrot.slane %v10409, %v10417
  %v10419 = vlaneseq
  %v10420 = vshrl.u32 %v10419, 7
  %v10421 = vsub.s32 2, %v10420
  %v10422 = vrot.slane %v10409, %v10421
  %v10423 = vlaneseq
  %v10424 = vshrl.u32 %v10423, 7
  %v10425 = vsub.s32 3, %v10424
  %v10426 = vrot.slane %v10409, %v10425
  %v10427 = vlaneseq
  %v10428 = vshrl.u32 %v10427, 7
  %v10429 = vsub.s32 4, %v10428
  %v10430 = vrot.slane %v10409, %v10429
  %v10431 = vlaneseq
  %v10432 = vshrl.u32 %v10431, 7
  %v10433 = vsub.s32 5, %v10432
  %v10434 = vrot.slane %v10409, %v10433
  %v10435 = vlaneseq
  %v10436 = vshrl.u32 %v10435, 7
  %v10437 = vsub.s32 6, %v10436
  %v10438 = vrot.slane %v10409, %v10437
  %v10439 = vlaneseq
  %v10440 = vshrl.u32 %v10439, 7
  %v10441 = vsub.s32 7, %v10440
  %v10442 = vrot.slane %v10409, %v10441
  %v10451 = vadd.f32 %v10393, %v10414
  %v10452 = vadd.f32 %v10394, %v10418
  %v10453 = vadd.f32 %v10395, %v10422
  %v10454 = vadd.f32 %v10396, %v10426
  %v10455 = vadd.f32 %v10397, %v10430
  %v10456 = vadd.f32 %v10398, %v10434
  %v10457 = vadd.f32 %v10399, %v10438
  %v10458 = vadd.f32 %v10400, %v10442
  %v10459 = vadd.f32 %v10401, %v10414
  %v10460 = vadd.f32 %v10402, %v10418
  %v10461 = vadd.f32 %v10403, %v10422
  %v10462 = vadd.f32 %v10404, %v10426
  %v10463 = vadd.f32 %v10405, %v10430
  %v10464 = vadd.f32 %v10406, %v10434
  %v10465 = vadd.f32 %v10407, %v10438
  %v10466 = vadd.f32 %v10408, %v10442
  %v10467 = vmax.f32 %v10451, 0.0
  %v10468 = vmax.f32 %v10452, 0.0
  %v10469 = vmax.f32 %v10453, 0.0
  %v10470 = vmax.f32 %v10454, 0.0
  %v10471 = vmax.f32 %v10455, 0.0
  %v10472 = vmax.f32 %v10456, 0.0
  %v10473 = vmax.f32 %v10457, 0.0
  %v10474 = vmax.f32 %v10458, 0.0
  %v10475 = vmax.f32 %v10459, 0.0
  %v10476 = vmax.f32 %v10460, 0.0
  %v10477 = vmax.f32 %v10461, 0.0
  %v10478 = vmax.f32 %v10462, 0.0
  %v10479 = vmax.f32 %v10463, 0.0
  %v10480 = vmax.f32 %v10464, 0.0
  %v10481 = vmax.f32 %v10465, 0.0
  %v10482 = vmax.f32 %v10466, 0.0
  %v10483 = vpack.c.bf16 %v10475, %v10467
  %v10484 = vpack.c.bf16 %v10476, %v10468
  %v10485 = vpack.c.bf16 %v10477, %v10469
  %v10486 = vpack.c.bf16 %v10478, %v10470
  %v10487 = vpack.c.bf16 %v10479, %v10471
  %v10488 = vpack.c.bf16 %v10480, %v10472
  %v10489 = vpack.c.bf16 %v10481, %v10473
  %v10490 = vpack.c.bf16 %v10482, %v10474
  %v10491 = vld [vmem:[%s7] sm:$0xf]
  %v10492 = vld [vmem:[%s7 + $0x4] sm:$0xf]
  %v10493 = vld [vmem:[%s7 + $0x8] sm:$0xf]
  %v10494 = vld [vmem:[%s7 + $0xc] sm:$0xf]
  %v10495 = vld [vmem:[%s7 + $0x10] sm:$0xf]
  %v10496 = vld [vmem:[%s7 + $0x14] sm:$0xf]
  %v10497 = vld [vmem:[%s7 + $0x18] sm:$0xf]
  %v10498 = vld [vmem:[%s7 + $0x1c] sm:$0xf]
  %v10499 = vld [vmem:[%s7 + $0x20] sm:$0xf]
  %v10500 = vld [vmem:[%s7 + $0x24] sm:$0xf]
  %v10501 = vld [vmem:[%s7 + $0x28] sm:$0xf]
  %v10502 = vld [vmem:[%s7 + $0x2c] sm:$0xf]
  %v10503 = vld [vmem:[%s7 + $0x30] sm:$0xf]
  %v10504 = vld [vmem:[%s7 + $0x34] sm:$0xf]
  %v10505 = vld [vmem:[%s7 + $0x38] sm:$0xf]
  %v10506 = vld [vmem:[%s7 + $0x3c] sm:$0xf]
  %v10507 = vld [vmem:[%s7 + $0x40] sm:$0xf]
  %v10508 = vld [vmem:[%s7 + $0x44] sm:$0xf]
  %v10509 = vld [vmem:[%s7 + $0x48] sm:$0xf]
  %v10510 = vld [vmem:[%s7 + $0x4c] sm:$0xf]
  %v10511 = vld [vmem:[%s7 + $0x50] sm:$0xf]
  %v10512 = vld [vmem:[%s7 + $0x54] sm:$0xf]
  %v10513 = vld [vmem:[%s7 + $0x58] sm:$0xf]
  %v10514 = vld [vmem:[%s7 + $0x5c] sm:$0xf]
  %v10515 = vld [vmem:[%s7 + $0x60] sm:$0xf]
  %v10516 = vld [vmem:[%s7 + $0x64] sm:$0xf]
  %v10517 = vld [vmem:[%s7 + $0x68] sm:$0xf]
  %v10518 = vld [vmem:[%s7 + $0x6c] sm:$0xf]
  %v10519 = vld [vmem:[%s7 + $0x70] sm:$0xf]
  %v10520 = vld [vmem:[%s7 + $0x74] sm:$0xf]
  %v10521 = vld [vmem:[%s7 + $0x78] sm:$0xf]
  %v10522 = vld [vmem:[%s7 + $0x7c] sm:$0xf]
  %v10523 = vld [vmem:[%s7 + $0x80] sm:$0xf]
  %v10524 = vld [vmem:[%s7 + $0x84] sm:$0xf]
  %v10525 = vld [vmem:[%s7 + $0x88] sm:$0xf]
  %v10526 = vld [vmem:[%s7 + $0x8c] sm:$0xf]
  %v10527 = vld [vmem:[%s7 + $0x90] sm:$0xf]
  %v10528 = vld [vmem:[%s7 + $0x94] sm:$0xf]
  %v10529 = vld [vmem:[%s7 + $0x98] sm:$0xf]
  %v10530 = vld [vmem:[%s7 + $0x9c] sm:$0xf]
  %v10531 = vld [vmem:[%s7 + $0xa0] sm:$0xf]
  %v10532 = vld [vmem:[%s7 + $0xa4] sm:$0xf]
  %v10533 = vld [vmem:[%s7 + $0xa8] sm:$0xf]
  %v10534 = vld [vmem:[%s7 + $0xac] sm:$0xf]
  %v10535 = vld [vmem:[%s7 + $0xb0] sm:$0xf]
  %v10536 = vld [vmem:[%s7 + $0xb4] sm:$0xf]
  %v10537 = vld [vmem:[%s7 + $0xb8] sm:$0xf]
  %v10538 = vld [vmem:[%s7 + $0xbc] sm:$0xf]
  %v10539 = vld [vmem:[%s7 + $0xc0] sm:$0xf]
  %v10540 = vld [vmem:[%s7 + $0xc4] sm:$0xf]
  %v10541 = vld [vmem:[%s7 + $0xc8] sm:$0xf]
  %v10542 = vld [vmem:[%s7 + $0xcc] sm:$0xf]
  %v10543 = vld [vmem:[%s7 + $0xd0] sm:$0xf]
  %v10544 = vld [vmem:[%s7 + $0xd4] sm:$0xf]
  %v10545 = vld [vmem:[%s7 + $0xd8] sm:$0xf]
  %v10546 = vld [vmem:[%s7 + $0xdc] sm:$0xf]
  %v10547 = vld [vmem:[%s7 + $0xe0] sm:$0xf]
  %v10548 = vld [vmem:[%s7 + $0xe4] sm:$0xf]
  %v10549 = vld [vmem:[%s7 + $0xe8] sm:$0xf]
  %v10550 = vld [vmem:[%s7 + $0xec] sm:$0xf]
  %v10551 = vld [vmem:[%s7 + $0xf0] sm:$0xf]
  %v10552 = vld [vmem:[%s7 + $0xf4] sm:$0xf]
  %v10553 = vld [vmem:[%s7 + $0xf8] sm:$0xf]
  %v10554 = vld [vmem:[%s7 + $0xfc] sm:$0xf]
  %v10555 = vld [vmem:[%s7 + $0x100] sm:$0xf]
  %v10556 = vld [vmem:[%s7 + $0x104] sm:$0xf]
  %v10557 = vld [vmem:[%s7 + $0x108] sm:$0xf]
  %v10558 = vld [vmem:[%s7 + $0x10c] sm:$0xf]
  %v10559 = vld [vmem:[%s7 + $0x110] sm:$0xf]
  %v10560 = vld [vmem:[%s7 + $0x114] sm:$0xf]
  %v10561 = vld [vmem:[%s7 + $0x118] sm:$0xf]
  %v10562 = vld [vmem:[%s7 + $0x11c] sm:$0xf]
  %v10563 = vld [vmem:[%s7 + $0x120] sm:$0xf]
  %v10564 = vld [vmem:[%s7 + $0x124] sm:$0xf]
  %v10565 = vld [vmem:[%s7 + $0x128] sm:$0xf]
  %v10566 = vld [vmem:[%s7 + $0x12c] sm:$0xf]
  %v10567 = vld [vmem:[%s7 + $0x130] sm:$0xf]
  %v10568 = vld [vmem:[%s7 + $0x134] sm:$0xf]
  %v10569 = vld [vmem:[%s7 + $0x138] sm:$0xf]
  %v10570 = vld [vmem:[%s7 + $0x13c] sm:$0xf]
  %v10571 = vld [vmem:[%s7 + $0x140] sm:$0xf]
  %v10572 = vld [vmem:[%s7 + $0x144] sm:$0xf]
  %v10573 = vld [vmem:[%s7 + $0x148] sm:$0xf]
  %v10574 = vld [vmem:[%s7 + $0x14c] sm:$0xf]
  %v10575 = vld [vmem:[%s7 + $0x150] sm:$0xf]
  %v10576 = vld [vmem:[%s7 + $0x154] sm:$0xf]
  %v10577 = vld [vmem:[%s7 + $0x158] sm:$0xf]
  %v10578 = vld [vmem:[%s7 + $0x15c] sm:$0xf]
  %v10579 = vld [vmem:[%s7 + $0x160] sm:$0xf]
  %v10580 = vld [vmem:[%s7 + $0x164] sm:$0xf]
  %v10581 = vld [vmem:[%s7 + $0x168] sm:$0xf]
  %v10582 = vld [vmem:[%s7 + $0x16c] sm:$0xf]
  %v10583 = vld [vmem:[%s7 + $0x170] sm:$0xf]
  %v10584 = vld [vmem:[%s7 + $0x174] sm:$0xf]
  %v10585 = vld [vmem:[%s7 + $0x178] sm:$0xf]
  %v10586 = vld [vmem:[%s7 + $0x17c] sm:$0xf]
  %v10587 = vld [vmem:[%s7 + $0x180] sm:$0xf]
  %v10588 = vld [vmem:[%s7 + $0x184] sm:$0xf]
  %v10589 = vld [vmem:[%s7 + $0x188] sm:$0xf]
  %v10590 = vld [vmem:[%s7 + $0x18c] sm:$0xf]
  %v10591 = vld [vmem:[%s7 + $0x190] sm:$0xf]
  %v10592 = vld [vmem:[%s7 + $0x194] sm:$0xf]
  %v10593 = vld [vmem:[%s7 + $0x198] sm:$0xf]
  %v10594 = vld [vmem:[%s7 + $0x19c] sm:$0xf]
  %v10595 = vld [vmem:[%s7 + $0x1a0] sm:$0xf]
  %v10596 = vld [vmem:[%s7 + $0x1a4] sm:$0xf]
  %v10597 = vld [vmem:[%s7 + $0x1a8] sm:$0xf]
  %v10598 = vld [vmem:[%s7 + $0x1ac] sm:$0xf]
  %v10599 = vld [vmem:[%s7 + $0x1b0] sm:$0xf]
  %v10600 = vld [vmem:[%s7 + $0x1b4] sm:$0xf]
  %v10601 = vld [vmem:[%s7 + $0x1b8] sm:$0xf]
  %v10602 = vld [vmem:[%s7 + $0x1bc] sm:$0xf]
  %v10603 = vld [vmem:[%s7 + $0x1c0] sm:$0xf]
  %v10604 = vld [vmem:[%s7 + $0x1c4] sm:$0xf]
  %v10605 = vld [vmem:[%s7 + $0x1c8] sm:$0xf]
  %v10606 = vld [vmem:[%s7 + $0x1cc] sm:$0xf]
  %v10607 = vld [vmem:[%s7 + $0x1d0] sm:$0xf]
  %v10608 = vld [vmem:[%s7 + $0x1d4] sm:$0xf]
  %v10609 = vld [vmem:[%s7 + $0x1d8] sm:$0xf]
  %v10610 = vld [vmem:[%s7 + $0x1dc] sm:$0xf]
  %v10611 = vld [vmem:[%s7 + $0x1e0] sm:$0xf]
  %v10612 = vld [vmem:[%s7 + $0x1e4] sm:$0xf]
  %v10613 = vld [vmem:[%s7 + $0x1e8] sm:$0xf]
  %v10614 = vld [vmem:[%s7 + $0x1ec] sm:$0xf]
  %v10615 = vld [vmem:[%s7 + $0x1f0] sm:$0xf]
  %v10616 = vld [vmem:[%s7 + $0x1f4] sm:$0xf]
  %v10617 = vld [vmem:[%s7 + $0x1f8] sm:$0xf]
  %v10618 = vld [vmem:[%s7 + $0x1fc] sm:$0xf]
  %v10619 = vld [vmem:[%s8] sm:$0x1]
  %v10621 = vlaneseq
  %v10622 = vshrl.u32 %v10621, 7
  %v10623 = vsub.s32 0, %v10622
  %v10624 = vrot.slane %v10619, %v10623
  %v10754 = vunpack.c.l.b16 %v10491
  %v10755 = vunpack.c.l.b16 %v10492
  %v10756 = vunpack.c.l.b16 %v10493
  %v10757 = vunpack.c.l.b16 %v10494
  %v10758 = vunpack.c.l.b16 %v10495
  %v10759 = vunpack.c.l.b16 %v10496
  %v10760 = vunpack.c.l.b16 %v10497
  %v10761 = vunpack.c.l.b16 %v10498
  %v10762 = vunpack.c.l.b16 %v10499
  %v10763 = vunpack.c.l.b16 %v10500
  %v10764 = vunpack.c.l.b16 %v10501
  %v10765 = vunpack.c.l.b16 %v10502
  %v10766 = vunpack.c.l.b16 %v10503
  %v10767 = vunpack.c.l.b16 %v10504
  %v10768 = vunpack.c.l.b16 %v10505
  %v10769 = vunpack.c.l.b16 %v10506
  %v10770 = vunpack.c.l.b16 %v10507
  %v10771 = vunpack.c.l.b16 %v10508
  %v10772 = vunpack.c.l.b16 %v10509
  %v10773 = vunpack.c.l.b16 %v10510
  %v10774 = vunpack.c.l.b16 %v10511
  %v10775 = vunpack.c.l.b16 %v10512
  %v10776 = vunpack.c.l.b16 %v10513
  %v10777 = vunpack.c.l.b16 %v10514
  %v10778 = vunpack.c.l.b16 %v10515
  %v10779 = vunpack.c.l.b16 %v10516
  %v10780 = vunpack.c.l.b16 %v10517
  %v10781 = vunpack.c.l.b16 %v10518
  %v10782 = vunpack.c.l.b16 %v10519
  %v10783 = vunpack.c.l.b16 %v10520
  %v10784 = vunpack.c.l.b16 %v10521
  %v10785 = vunpack.c.l.b16 %v10522
  %v10786 = vunpack.c.l.b16 %v10523
  %v10787 = vunpack.c.l.b16 %v10524
  %v10788 = vunpack.c.l.b16 %v10525
  %v10789 = vunpack.c.l.b16 %v10526
  %v10790 = vunpack.c.l.b16 %v10527
  %v10791 = vunpack.c.l.b16 %v10528
  %v10792 = vunpack.c.l.b16 %v10529
  %v10793 = vunpack.c.l.b16 %v10530
  %v10794 = vunpack.c.l.b16 %v10531
  %v10795 = vunpack.c.l.b16 %v10532
  %v10796 = vunpack.c.l.b16 %v10533
  %v10797 = vunpack.c.l.b16 %v10534
  %v10798 = vunpack.c.l.b16 %v10535
  %v10799 = vunpack.c.l.b16 %v10536
  %v10800 = vunpack.c.l.b16 %v10537
  %v10801 = vunpack.c.l.b16 %v10538
  %v10802 = vunpack.c.l.b16 %v10539
  %v10803 = vunpack.c.l.b16 %v10540
  %v10804 = vunpack.c.l.b16 %v10541
  %v10805 = vunpack.c.l.b16 %v10542
  %v10806 = vunpack.c.l.b16 %v10543
  %v10807 = vunpack.c.l.b16 %v10544
  %v10808 = vunpack.c.l.b16 %v10545
  %v10809 = vunpack.c.l.b16 %v10546
  %v10810 = vunpack.c.l.b16 %v10547
  %v10811 = vunpack.c.l.b16 %v10548
  %v10812 = vunpack.c.l.b16 %v10549
  %v10813 = vunpack.c.l.b16 %v10550
  %v10814 = vunpack.c.l.b16 %v10551
  %v10815 = vunpack.c.l.b16 %v10552
  %v10816 = vunpack.c.l.b16 %v10553
  %v10817 = vunpack.c.l.b16 %v10554
  %v10818 = vunpack.c.l.b16 %v10555
  %v10819 = vunpack.c.l.b16 %v10556
  %v10820 = vunpack.c.l.b16 %v10557
  %v10821 = vunpack.c.l.b16 %v10558
  %v10822 = vunpack.c.l.b16 %v10559
  %v10823 = vunpack.c.l.b16 %v10560
  %v10824 = vunpack.c.l.b16 %v10561
  %v10825 = vunpack.c.l.b16 %v10562
  %v10826 = vunpack.c.l.b16 %v10563
  %v10827 = vunpack.c.l.b16 %v10564
  %v10828 = vunpack.c.l.b16 %v10565
  %v10829 = vunpack.c.l.b16 %v10566
  %v10830 = vunpack.c.l.b16 %v10567
  %v10831 = vunpack.c.l.b16 %v10568
  %v10832 = vunpack.c.l.b16 %v10569
  %v10833 = vunpack.c.l.b16 %v10570
  %v10834 = vunpack.c.l.b16 %v10571
  %v10835 = vunpack.c.l.b16 %v10572
  %v10836 = vunpack.c.l.b16 %v10573
  %v10837 = vunpack.c.l.b16 %v10574
  %v10838 = vunpack.c.l.b16 %v10575
  %v10839 = vunpack.c.l.b16 %v10576
  %v10840 = vunpack.c.l.b16 %v10577
  %v10841 = vunpack.c.l.b16 %v10578
  %v10842 = vunpack.c.l.b16 %v10579
  %v10843 = vunpack.c.l.b16 %v10580
  %v10844 = vunpack.c.l.b16 %v10581
  %v10845 = vunpack.c.l.b16 %v10582
  %v10846 = vunpack.c.l.b16 %v10583
  %v10847 = vunpack.c.l.b16 %v10584
  %v10848 = vunpack.c.l.b16 %v10585
  %v10849 = vunpack.c.l.b16 %v10586
  %v10850 = vunpack.c.l.b16 %v10587
  %v10851 = vunpack.c.l.b16 %v10588
  %v10852 = vunpack.c.l.b16 %v10589
  %v10853 = vunpack.c.l.b16 %v10590
  %v10854 = vunpack.c.l.b16 %v10591
  %v10855 = vunpack.c.l.b16 %v10592
  %v10856 = vunpack.c.l.b16 %v10593
  %v10857 = vunpack.c.l.b16 %v10594
  %v10858 = vunpack.c.l.b16 %v10595
  %v10859 = vunpack.c.l.b16 %v10596
  %v10860 = vunpack.c.l.b16 %v10597
  %v10861 = vunpack.c.l.b16 %v10598
  %v10862 = vunpack.c.l.b16 %v10599
  %v10863 = vunpack.c.l.b16 %v10600
  %v10864 = vunpack.c.l.b16 %v10601
  %v10865 = vunpack.c.l.b16 %v10602
  %v10866 = vunpack.c.l.b16 %v10603
  %v10867 = vunpack.c.l.b16 %v10604
  %v10868 = vunpack.c.l.b16 %v10605
  %v10869 = vunpack.c.l.b16 %v10606
  %v10870 = vunpack.c.l.b16 %v10607
  %v10871 = vunpack.c.l.b16 %v10608
  %v10872 = vunpack.c.l.b16 %v10609
  %v10873 = vunpack.c.l.b16 %v10610
  %v10874 = vunpack.c.l.b16 %v10611
  %v10875 = vunpack.c.l.b16 %v10612
  %v10876 = vunpack.c.l.b16 %v10613
  %v10877 = vunpack.c.l.b16 %v10614
  %v10878 = vunpack.c.l.b16 %v10615
  %v10879 = vunpack.c.l.b16 %v10616
  %v10880 = vunpack.c.l.b16 %v10617
  %v10881 = vunpack.c.l.b16 %v10618
  %v10882 = vpack.c.b16 %v10755, %v10754
  %v10883 = vpack.c.b16 %v10757, %v10756
  %v10884 = vpack.c.b16 %v10759, %v10758
  %v10885 = vpack.c.b16 %v10761, %v10760
  %v10886 = vpack.c.b16 %v10763, %v10762
  %v10887 = vpack.c.b16 %v10765, %v10764
  %v10888 = vpack.c.b16 %v10767, %v10766
  %v10889 = vpack.c.b16 %v10769, %v10768
  %v10890 = vpack.c.b16 %v10771, %v10770
  %v10891 = vpack.c.b16 %v10773, %v10772
  %v10892 = vpack.c.b16 %v10775, %v10774
  %v10893 = vpack.c.b16 %v10777, %v10776
  %v10894 = vpack.c.b16 %v10779, %v10778
  %v10895 = vpack.c.b16 %v10781, %v10780
  %v10896 = vpack.c.b16 %v10783, %v10782
  %v10897 = vpack.c.b16 %v10785, %v10784
  %v10898 = vpack.c.b16 %v10787, %v10786
  %v10899 = vpack.c.b16 %v10789, %v10788
  %v10900 = vpack.c.b16 %v10791, %v10790
  %v10901 = vpack.c.b16 %v10793, %v10792
  %v10902 = vpack.c.b16 %v10795, %v10794
  %v10903 = vpack.c.b16 %v10797, %v10796
  %v10904 = vpack.c.b16 %v10799, %v10798
  %v10905 = vpack.c.b16 %v10801, %v10800
  %v10906 = vpack.c.b16 %v10803, %v10802
  %v10907 = vpack.c.b16 %v10805, %v10804
  %v10908 = vpack.c.b16 %v10807, %v10806
  %v10909 = vpack.c.b16 %v10809, %v10808
  %v10910 = vpack.c.b16 %v10811, %v10810
  %v10911 = vpack.c.b16 %v10813, %v10812
  %v10912 = vpack.c.b16 %v10815, %v10814
  %v10913 = vpack.c.b16 %v10817, %v10816
  %v10914 = vpack.c.b16 %v10819, %v10818
  %v10915 = vpack.c.b16 %v10821, %v10820
  %v10916 = vpack.c.b16 %v10823, %v10822
  %v10917 = vpack.c.b16 %v10825, %v10824
  %v10918 = vpack.c.b16 %v10827, %v10826
  %v10919 = vpack.c.b16 %v10829, %v10828
  %v10920 = vpack.c.b16 %v10831, %v10830
  %v10921 = vpack.c.b16 %v10833, %v10832
  %v10922 = vpack.c.b16 %v10835, %v10834
  %v10923 = vpack.c.b16 %v10837, %v10836
  %v10924 = vpack.c.b16 %v10839, %v10838
  %v10925 = vpack.c.b16 %v10841, %v10840
  %v10926 = vpack.c.b16 %v10843, %v10842
  %v10927 = vpack.c.b16 %v10845, %v10844
  %v10928 = vpack.c.b16 %v10847, %v10846
  %v10929 = vpack.c.b16 %v10849, %v10848
  %v10930 = vpack.c.b16 %v10851, %v10850
  %v10931 = vpack.c.b16 %v10853, %v10852
  %v10932 = vpack.c.b16 %v10855, %v10854
  %v10933 = vpack.c.b16 %v10857, %v10856
  %v10934 = vpack.c.b16 %v10859, %v10858
  %v10935 = vpack.c.b16 %v10861, %v10860
  %v10936 = vpack.c.b16 %v10863, %v10862
  %v10937 = vpack.c.b16 %v10865, %v10864
  %v10938 = vpack.c.b16 %v10867, %v10866
  %v10939 = vpack.c.b16 %v10869, %v10868
  %v10940 = vpack.c.b16 %v10871, %v10870
  %v10941 = vpack.c.b16 %v10873, %v10872
  %v10942 = vpack.c.b16 %v10875, %v10874
  %v10943 = vpack.c.b16 %v10877, %v10876
  %v10944 = vpack.c.b16 %v10879, %v10878
  %v10945 = vpack.c.b16 %v10881, %v10880
  %11010 = vmatprep.subr.bf16.mxu0 0
  %11011 = vmatpush1.bf16.msra.mxu0 %v10882
  %11012 = vmatprep.subr.bf16.mxu0 0
  %11013 = vmatpush1.bf16.msra.mxu0 %v10883
  %11014 = vmatprep.subr.bf16.mxu0 0
  %11015 = vmatpush1.bf16.msra.mxu0 %v10884
  %11016 = vmatprep.subr.bf16.mxu0 0
  %11017 = vmatpush1.bf16.msra.mxu0 %v10885
  %11018 = vmatprep.subr.bf16.mxu0 0
  %11019 = vmatpush1.bf16.msra.mxu0 %v10886
  %11020 = vmatprep.subr.bf16.mxu0 0
  %11021 = vmatpush1.bf16.msra.mxu0 %v10887
  %11022 = vmatprep.subr.bf16.mxu0 0
  %11023 = vmatpush1.bf16.msra.mxu0 %v10888
  %11024 = vmatprep.subr.bf16.mxu0 0
  %11025 = vmatpush1.bf16.msra.mxu0 %v10889
  %11026 = vmatprep.subr.bf16.mxu0 0
  %11027 = vmatpush1.bf16.msra.mxu0 %v10890
  %11028 = vmatprep.subr.bf16.mxu0 0
  %11029 = vmatpush1.bf16.msra.mxu0 %v10891
  %11030 = vmatprep.subr.bf16.mxu0 0
  %11031 = vmatpush1.bf16.msra.mxu0 %v10892
  %11032 = vmatprep.subr.bf16.mxu0 0
  %11033 = vmatpush1.bf16.msra.mxu0 %v10893
  %11034 = vmatprep.subr.bf16.mxu0 0
  %11035 = vmatpush1.bf16.msra.mxu0 %v10894
  %11036 = vmatprep.subr.bf16.mxu0 0
  %11037 = vmatpush1.bf16.msra.mxu0 %v10895
  %11038 = vmatprep.subr.bf16.mxu0 0
  %11039 = vmatpush1.bf16.msra.mxu0 %v10896
  %11040 = vmatprep.subr.bf16.mxu0 0
  %11041 = vmatpush1.bf16.msra.mxu0 %v10897
  %11042 = vmatprep.mubr.bf16.mxu0 %v10484
  %11043 = vmatmul.mubr.bf16.gmra.mrb[0].mxu0 %v10483
  %v11044 = vpop.f32.mrb[0].mxu0
  %v11045 = vadd.f32 %v10624, %v11044
  %v11046 = vpop.f32.mrb[0].mxu0
  %v11047 = vpop.f32.mrb[0].mxu0
  %v11048 = vadd.f32 %v10624, %v11047
  %v11049 = vpop.f32.mrb[0].mxu0
  %11050 = vdwg.mxu0
  %11051 = vmatprep.subr.bf16.mxu0 0
  %11052 = vmatpush1.bf16.msra.mxu0 %v10898
  %11053 = vmatprep.subr.bf16.mxu0 0
  %11054 = vmatpush1.bf16.msra.mxu0 %v10899
  %11055 = vmatprep.subr.bf16.mxu0 0
  %11056 = vmatpush1.bf16.msra.mxu0 %v10900
  %11057 = vmatprep.subr.bf16.mxu0 0
  %11058 = vmatpush1.bf16.msra.mxu0 %v10901
  %11059 = vmatprep.subr.bf16.mxu0 0
  %11060 = vmatpush1.bf16.msra.mxu0 %v10902
  %11061 = vmatprep.subr.bf16.mxu0 0
  %11062 = vmatpush1.bf16.msra.mxu0 %v10903
  %11063 = vmatprep.subr.bf16.mxu0 0
  %11064 = vmatpush1.bf16.msra.mxu0 %v10904
  %11065 = vmatprep.subr.bf16.mxu0 0
  %11066 = vmatpush1.bf16.msra.mxu0 %v10905
  %11067 = vmatprep.subr.bf16.mxu0 0
  %11068 = vmatpush1.bf16.msra.mxu0 %v10906
  %11069 = vmatprep.subr.bf16.mxu0 0
  %11070 = vmatpush1.bf16.msra.mxu0 %v10907
  %11071 = vmatprep.subr.bf16.mxu0 0
  %11072 = vmatpush1.bf16.msra.mxu0 %v10908
  %11073 = vmatprep.subr.bf16.mxu0 0
  %11074 = vmatpush1.bf16.msra.mxu0 %v10909
  %11075 = vmatprep.subr.bf16.mxu0 0
  %11076 = vmatpush1.bf16.msra.mxu0 %v10910
  %11077 = vmatprep.subr.bf16.mxu0 0
  %11078 = vmatpush1.bf16.msra.mxu0 %v10911
  %11079 = vmatprep.subr.bf16.mxu0 0
  %11080 = vmatpush1.bf16.msra.mxu0 %v10912
  %11081 = vmatprep.subr.bf16.mxu0 0
  %11082 = vmatpush1.bf16.msra.mxu0 %v10913
  %11083 = vmatprep.mubr.bf16.mxu0 %v10486
  %11084 = vmatmul.mubr.bf16.gmra.mrb[0].mxu0 %v10485
  %v11085 = vpop.f32.mrb[0].mxu0
  %v11086 = vadd.f32 %v11045, %v11085
  %v11087 = vpop.f32.mrb[0].mxu0
  %v11088 = vpop.f32.mrb[0].mxu0
  %v11089 = vadd.f32 %v11048, %v11088
  %v11090 = vpop.f32.mrb[0].mxu0
  %11091 = vdwg.mxu0
  %11092 = vmatprep.subr.bf16.mxu0 0
  %11093 = vmatpush1.bf16.msra.mxu0 %v10914
  %11094 = vmatprep.subr.bf16.mxu0 0
  %11095 = vmatpush1.bf16.msra.mxu0 %v10915
  %11096 = vmatprep.subr.bf16.mxu0 0
  %11097 = vmatpush1.bf16.msra.mxu0 %v10916
  %11098 = vmatprep.subr.bf16.mxu0 0
  %11099 = vmatpush1.bf16.msra.mxu0 %v10917
  %11100 = vmatprep.subr.bf16.mxu0 0
  %11101 = vmatpush1.bf16.msra.mxu0 %v10918
  %11102 = vmatprep.subr.bf16.mxu0 0
  %11103 = vmatpush1.bf16.msra.mxu0 %v10919
  %11104 = vmatprep.subr.bf16.mxu0 0
  %11105 = vmatpush1.bf16.msra.mxu0 %v10920
  %11106 = vmatprep.subr.bf16.mxu0 0
  %11107 = vmatpush1.bf16.msra.mxu0 %v10921
  %11108 = vmatprep.subr.bf16.mxu0 0
  %11109 = vmatpush1.bf16.msra.mxu0 %v10922
  %11110 = vmatprep.subr.bf16.mxu0 0
  %11111 = vmatpush1.bf16.msra.mxu0 %v10923
  %11112 = vmatprep.subr.bf16.mxu0 0
  %11113 = vmatpush1.bf16.msra.mxu0 %v10924
  %11114 = vmatprep.subr.bf16.mxu0 0
  %11115 = vmatpush1.bf16.msra.mxu0 %v10925
  %11116 = vmatprep.subr.bf16.mxu0 0
  %11117 = vmatpush1.bf16.msra.mxu0 %v10926
  %11118 = vmatprep.subr.bf16.mxu0 0
  %11119 = vmatpush1.bf16.msra.mxu0 %v10927
  %11120 = vmatprep.subr.bf16.mxu0 0
  %11121 = vmatpush1.bf16.msra.mxu0 %v10928
  %11122 = vmatprep.subr.bf16.mxu0 0
  %11123 = vmatpush1.bf16.msra.mxu0 %v10929
  %11124 = vmatprep.mubr.bf16.mxu0 %v10488
  %11125 = vmatmul.mubr.bf16.gmra.mrb[0].mxu0 %v10487
  %v11126 = vpop.f32.mrb[0].mxu0
  %v11127 = vadd.f32 %v11086, %v11126
  %v11128 = vpop.f32.mrb[0].mxu0
  %v11129 = vpop.f32.mrb[0].mxu0
  %v11130 = vadd.f32 %v11089, %v11129
  %v11131 = vpop.f32.mrb[0].mxu0
  %11132 = vdwg.mxu0
  %11133 = vmatprep.subr.bf16.mxu0 0
  %11134 = vmatpush1.bf16.msra.mxu0 %v10930
  %11135 = vmatprep.subr.bf16.mxu0 0
  %11136 = vmatpush1.bf16.msra.mxu0 %v10931
  %11137 = vmatprep.subr.bf16.mxu0 0
  %11138 = vmatpush1.bf16.msra.mxu0 %v10932
  %11139 = vmatprep.subr.bf16.mxu0 0
  %11140 = vmatpush1.bf16.msra.mxu0 %v10933
  %11141 = vmatprep.subr.bf16.mxu0 0
  %11142 = vmatpush1.bf16.msra.mxu0 %v10934
  %11143 = vmatprep.subr.bf16.mxu0 0
  %11144 = vmatpush1.bf16.msra.mxu0 %v10935
  %11145 = vmatprep.subr.bf16.mxu0 0
  %11146 = vmatpush1.bf16.msra.mxu0 %v10936
  %11147 = vmatprep.subr.bf16.mxu0 0
  %11148 = vmatpush1.bf16.msra.mxu0 %v10937
  %11149 = vmatprep.subr.bf16.mxu0 0
  %11150 = vmatpush1.bf16.msra.mxu0 %v10938
  %11151 = vmatprep.subr.bf16.mxu0 0
  %11152 = vmatpush1.bf16.msra.mxu0 %v10939
  %11153 = vmatprep.subr.bf16.mxu0 0
  %11154 = vmatpush1.bf16.msra.mxu0 %v10940
  %11155 = vmatprep.subr.bf16.mxu0 0
  %11156 = vmatpush1.bf16.msra.mxu0 %v10941
  %11157 = vmatprep.subr.bf16.mxu0 0
  %11158 = vmatpush1.bf16.msra.mxu0 %v10942
  %11159 = vmatprep.subr.bf16.mxu0 0
  %11160 = vmatpush1.bf16.msra.mxu0 %v10943
  %11161 = vmatprep.subr.bf16.mxu0 0
  %11162 = vmatpush1.bf16.msra.mxu0 %v10944
  %11163 = vmatprep.subr.bf16.mxu0 0
  %11164 = vmatpush1.bf16.msra.mxu0 %v10945
  %11165 = vmatprep.mubr.bf16.mxu0 %v10490
  %11166 = vmatmul.mubr.bf16.gmra.mrb[0].mxu0 %v10489
  %v11167 = vpop.f32.mrb[0].mxu0
  %v11168 = vadd.f32 %v11127, %v11167
  %v11169 = vpop.f32.mrb[0].mxu0
  %v11170 = vpop.f32.mrb[0].mxu0
  %v11171 = vadd.f32 %v11130, %v11170
  %v11172 = vpop.f32.mrb[0].mxu0
  %11173 = vdwg.mxu0
  %11174 = vst [vmem:[%s9] sm:$0xff] %v11168
  %11175 = vst [vmem:[%s9 + $0x8] sm:$0xff] %v11171
  // Predicated region
  $region38: #{net_forward.1} parent=0 // pred_check
    _
  $region39: #{net_forward.1} parent=0 // pred_check_branch
    %11177 = sbr.rel (0) target = $region41
  $region40: #{net_forward.1} parent=0 // pred_region
    _
  $region41: #{net_forward.1} parent=0 // pred_fallthru
    _
  // Predicated region
  $region42: #{net_forward.1} parent=0 // pred_check
    _
  $region43: #{net_forward.1} parent=0 // pred_check_branch
    %11179 = sbr.rel (0) target = $region45
  $region44: #{net_forward.1} parent=0 // pred_region
    _
  $region45: #{net_forward.1} parent=0 // pred_fallthru
    _

</llo_original>
